<compile_context>
chip_gen: v7x
topology: tpu7x:2x2x1
jax: 0.10.0
libtpu: 0.0.40
codegen_flags: <defaults>
</compile_context>

<pallas_src>
import functools

import numpy as np
import jax
import jax.numpy as jnp
from jax import lax
from jax.experimental import pallas as pl
from jax.experimental.pallas import tpu as pltpu

BN_EPS = 1e-5      # nn.BatchNorm2d default eps
IN_EPS_CN = 1e-3   # nn.InstanceNorm2d(..., eps=0.001) in PointCN / OAFilter / Diff(Un)Pool
IN_EPS_CR = 1e-5   # nn.InstanceNorm2d default eps in CRLayer
LANE = 128


# ----------------------------------------------------------------------------
# In-kernel helpers (trace-level; x is a (C, B*pts) lane-dense slab).
# ----------------------------------------------------------------------------

def _instance_norm(x, q, eps):
    """Per-(sample, channel) normalization.  q is the precomputed segment-mean
    matrix: q[i, j] = 1/pts if columns i and j belong to the same sample, else
    0, so x @ q is the per-sample mean already broadcast back to every column
    (one MXU matmul instead of per-sample masked XLU reductions)."""
    mean = jnp.dot(x, q, preferred_element_type=jnp.float32)
    d = x - mean
    var = jnp.dot(d * d, q, preferred_element_type=jnp.float32)
    return d * lax.rsqrt(var + eps)


def _batch_norm(x):
    """Training-mode BatchNorm2d (identity affine): per-channel stats over all
    columns of the slab (== the full batch*points extent)."""
    mu = jnp.mean(x, axis=-1, keepdims=True)
    d = x - mu
    var = jnp.mean(d * d, axis=-1, keepdims=True)
    return d * lax.rsqrt(var + BN_EPS)


def _in_bn_relu_conv(x, w, b, q, in_eps):
    """nn.Sequential(InstanceNorm2d, BatchNorm2d, ReLU, Conv2d(1x1))."""
    h = _batch_norm(_instance_norm(x, q, in_eps))
    h = jnp.maximum(h, 0.0)
    return jnp.dot(w, h, preferred_element_type=jnp.float32) + b


def _lc_layer(x, dmat, G, pre, k_nn, bn_cols):
    """LCLayer: downsample conv -> (center - neighbour) for all K neighbours
    via one diff-gather matmul -> mlp (conv, BN, ReLU, conv) on the whole
    (knn_dim, K*B*N) slab -> max over K lane-aligned chunks -> conv_out."""
    f = jnp.dot(G(pre + 'wd'), x, preferred_element_type=jnp.float32) + G(pre + 'bd')
    g = jnp.dot(G(pre + 'wm1'), f, preferred_element_type=jnp.float32)
    h = jnp.dot(g, dmat, preferred_element_type=jnp.float32) + G(pre + 'bm1')
    mu = jnp.mean(h, axis=-1, keepdims=True)          # BN over full (B, N, K) extent
    d = h - mu
    var = jnp.mean(d * d, axis=-1, keepdims=True)
    h = jnp.maximum(d * lax.rsqrt(var + BN_EPS), 0.0)
    h = jnp.dot(G(pre + 'wm2'), h, preferred_element_type=jnp.float32) + G(pre + 'bm2')
    m = h[:, 0:bn_cols]
    for k in range(1, k_nn):                           # static, 128-lane aligned slices
        m = jnp.maximum(m, h[:, k * bn_cols:(k + 1) * bn_cols])
    return jnp.dot(G(pre + 'wo'), m, preferred_element_type=jnp.float32) + G(pre + 'bo')


def _point_cn(x, G, pre, q):
    h = _in_bn_relu_conv(x, G(pre + 'w1'), G(pre + 'b1'), q, IN_EPS_CN)
    h = _in_bn_relu_conv(h, G(pre + 'w2'), G(pre + 'b2'), q, IN_EPS_CN)
    return x + h                                       # residual


def _cr_layer(x, G, pre, q, ubig, ubigT, winv):
    """smooth = U diag(1/(1+eta*lam)) U^T x (block-diag basis, both matmuls
    MXU-native thanks to the host-precomputed ubig^T), then (smooth - x)
    through the filter."""
    proj = jnp.dot(x, ubig, preferred_element_type=jnp.float32) * winv
    smooth = jnp.dot(proj, ubigT, preferred_element_type=jnp.float32)
    d = smooth - x
    h = _in_bn_relu_conv(d, G(pre + 'w1'), G(pre + 'b1'), q, IN_EPS_CR)
    h = _in_bn_relu_conv(h, G(pre + 'w2'), G(pre + 'b2'), q, IN_EPS_CR)
    return h


def _oa_filter(x, G, qm):
    """OAFilter on the pooled (C, B*cluster) slab.  conv2 (the trans(1,2)
    branch): BatchNorm-over-points stats via the Qoa fold matmul and the
    point-mixing conv as ONE block-diagonal matmul (W2bd)."""
    h = _in_bn_relu_conv(x, G('oaf_w1'), G('oaf_b1'), qm, IN_EPS_CN)     # conv1
    qoa = G('Qoa')
    mean = jnp.sum(jnp.dot(h, qoa, preferred_element_type=jnp.float32),
                   axis=0, keepdims=True)                                # (1, B*M)
    d = h - mean
    var = jnp.sum(jnp.dot(d * d, qoa, preferred_element_type=jnp.float32),
                  axis=0, keepdims=True)
    hr = jnp.maximum(d * lax.rsqrt(var + BN_EPS), 0.0)
    h2 = jnp.dot(hr, G('W2bd'), preferred_element_type=jnp.float32) + G('b2row')
    out2 = h + h2                                                        # out + conv2(out)
    h3 = _in_bn_relu_conv(out2, G('oaf_w3'), G('oaf_b3'), qm, IN_EPS_CN) # conv3
    return h3 + x                                                        # shortcut


def _global_cluster(x, G, qn, qm, pool_scr, up_scr, n_b, n_pts, n_clu):
    # DiffPool: per-sample softmax over points; pooled slab assembled with
    # static lane-slice writes into VMEM scratch (no one-hot placer matmuls).
    e = _in_bn_relu_conv(x, G('down_w'), G('down_b'), qn, IN_EPS_CN)     # (M, B*N)
    for b in range(n_b):
        eb = e[:, b * n_pts:(b + 1) * n_pts]
        eb = eb - jnp.max(eb, axis=-1, keepdims=True)
        pb = jnp.exp(eb)
        sb = pb * pl.reciprocal(jnp.sum(pb, axis=-1, keepdims=True), approx=True)
        xb = x[:, b * n_pts:(b + 1) * n_pts]
        pool_scr[:, b * n_clu:(b + 1) * n_clu] = lax.dot_general(
            xb, sb, (((1,), (1,)), ((), ())), preferred_element_type=jnp.float32)
    down = _oa_filter(pool_scr[...], G, qm)

    # DiffUnpool: softmax over clusters is per-column -> full-slab softmax.
    eu = _in_bn_relu_conv(x, G('up_w'), G('up_b'), qn, IN_EPS_CN)        # (M, B*N)
    eu = eu - jnp.max(eu, axis=0, keepdims=True)
    pu = jnp.exp(eu)
    su = pu * pl.reciprocal(jnp.sum(pu, axis=0, keepdims=True), approx=True)
    for b in range(n_b):
        up_scr[:, b * n_pts:(b + 1) * n_pts] = jnp.dot(
            down[:, b * n_clu:(b + 1) * n_clu], su[:, b * n_pts:(b + 1) * n_pts],
            preferred_element_type=jnp.float32)
    return up_scr[...]


# ----------------------------------------------------------------------------
# The single fused kernel.
# ----------------------------------------------------------------------------

def _lmc_block_kernel(x_ref, dmat_ref, slab_ref, o_ref, pool_scr, up_scr, *,
                      offs, n_b, n_pts, k_nn, n_clu):
    def G(name):                       # static slice into the packed param slab
        off, r, c = offs[name]
        return slab_ref[off:off + r, 0:c]

    qn = G('Qn')
    qm = G('Qm')
    ubig = G('ubig')
    ubigT = G('ubigT')
    winv = G('winv')
    dmat = dmat_ref[...]
    bn_cols = n_b * n_pts

    x = x_ref[...]                                                       # (C, B*N)
    x = x + _lc_layer(x, dmat, G, 'lc0_', k_nn, bn_cols)
    x = _point_cn(x, G, 'cn0_', qn)
    x = x + _cr_layer(x, G, 'cr0_', qn, ubig, ubigT, winv)
    x = x + _global_cluster(x, G, qn, qm, pool_scr, up_scr, n_b, n_pts, n_clu)
    x = x + _lc_layer(x, dmat, G, 'lc1_', k_nn, bn_cols)
    x = _point_cn(x, G, 'cn1_', qn)
    x = x + _cr_layer(x, G, 'cr1_', qn, ubig, ubigT, winv)
    o_ref[...] = x


# ----------------------------------------------------------------------------
# Host-side wrapper: layout prep + constant precompute + single-slab packing.
# (In real use the param/constant slab would be packed once at init; here it is
#  built inside the jit so the script stays self-contained.)
# ----------------------------------------------------------------------------

def _pack_slab(entries):
    """Pack a list of (name, 2-D array) into one (rows, lanes) f32 slab with
    8-aligned row offsets; returns (slab, {name: (row_off, rows, cols)})."""
    maxw = max(int(a.shape[1]) for _, a in entries)
    lanes = ((maxw + LANE - 1) // LANE) * LANE
    pieces, offs, row = [], {}, 0
    for name, a in entries:
        a = jnp.asarray(a, jnp.float32)
        r, c = int(a.shape[0]), int(a.shape[1])
        rpad = (-r) % 8
        pieces.append(jnp.pad(a, ((0, rpad), (0, lanes - c))))
        offs[name] = (row, r, c)
        row += r + rpad
    return jnp.concatenate(pieces, axis=0), offs


def lmc_block(params, feats, idxs, eig_vec, eig_val, eta):
    """feats:[B,C,N], idxs:[B,N,K] int32, eig_vec:[B,N,M], eig_val:[B,M]."""
    B, C, N = feats.shape
    K = idxs.shape[2]
    M_eig = eig_vec.shape[-1]
    n_clu = params['cluster']['down_w'].shape[0]
    BN = B * N

    # point features -> lane-dense (C, B*N), column = b*N + n
    x2d = jnp.transpose(feats, (1, 0, 2)).reshape(C, BN)

    # diff-gather matrix D: column k*BN + (b*N+n) = e_{b*N+n} - e_{b*N+idxs[b,n,k]}
    g = idxs.astype(jnp.int32) + (jnp.arange(B, dtype=jnp.int32) * N)[:, None, None]
    gflat = jnp.transpose(g, (2, 0, 1)).reshape(K * BN)
    center = jnp.tile(jnp.eye(BN, dtype=jnp.float32), (1, K))
    nbr = jnp.transpose(jax.nn.one_hot(gflat, BN, dtype=jnp.float32), (1, 0))
    dmat = center - nbr                                                  # (BN, K*BN)

    # block-diag eigen basis, its transpose, and spectral weights
    blocks = []
    for b in range(B):
        row = [eig_vec[b].astype(jnp.float32) if bb == b
               else jnp.zeros((N, M_eig), jnp.float32) for bb in range(B)]
        blocks.append(jnp.concatenate(row, axis=1))
    ubig = jnp.concatenate(blocks, axis=0)                               # (BN, B*M_eig)
    ubigT = jnp.transpose(ubig)                                          # (B*M_eig, BN)
    winv = 1.0 / (1.0 + float(eta) * eig_val.reshape(1, B * M_eig).astype(jnp.float32))

    # segment-mean matrices (instance norm) and OAFilter conv2 fold matrix
    qn = jnp.kron(jnp.eye(B, dtype=jnp.float32),
                  jnp.full((N, N), 1.0 / N, jnp.float32))                # (BN, BN)
    qm = jnp.kron(jnp.eye(B, dtype=jnp.float32),
                  jnp.full((n_clu, n_clu), 1.0 / n_clu, jnp.float32))    # (B*M, B*M)
    qoa = jnp.kron(jnp.ones((B, B), jnp.float32),
                   jnp.eye(n_clu, dtype=jnp.float32)) / float(B * C)     # (B*M, B*M)

    # OAFilter conv2 point-mix as one block-diagonal matmul + lane-dense bias
    oaf = params['cluster']['oaf']
    w2bd = jnp.kron(jnp.eye(B, dtype=jnp.float32),
                    jnp.transpose(oaf['w2'].astype(jnp.float32)))        # (B*M, B*M)
    b2row = jnp.tile(oaf['b2'].astype(jnp.float32).reshape(1, n_clu), (1, B))

    # pack ALL params + constants into one VMEM slab -> 3 input DMAs total
    entries = []
    for pre in ('lc0', 'lc1'):
        for k in ('wd', 'bd', 'wm1', 'bm1', 'wm2', 'bm2', 'wo', 'bo'):
            entries.append((pre + '_' + k, params[pre][k]))
    for pre in ('cn0', 'cr0', 'cn1', 'cr1'):
        for k in ('w1', 'b1', 'w2', 'b2'):
            entries.append((pre + '_' + k, params[pre][k]))
    cl = params['cluster']
    entries += [('down_w', cl['down_w']), ('down_b', cl['down_b']),
                ('up_w', cl['up_w']), ('up_b', cl['up_b']),
                ('oaf_w1', oaf['w1']), ('oaf_b1', oaf['b1']),
                ('oaf_w3', oaf['w3']), ('oaf_b3', oaf['b3']),
                ('W2bd', w2bd), ('b2row', b2row),
                ('ubig', ubig), ('ubigT', ubigT), ('winv', winv),
                ('Qn', qn), ('Qm', qm), ('Qoa', qoa)]
    slab, offs = _pack_slab(entries)

    kern = functools.partial(_lmc_block_kernel, offs=offs,
                             n_b=B, n_pts=N, k_nn=K, n_clu=n_clu)
    vmem = pl.BlockSpec(memory_space=pltpu.MemorySpace.VMEM)
    out2d = pl.pallas_call(
        kern,
        out_shape=jax.ShapeDtypeStruct((C, BN), jnp.float32),
        in_specs=[vmem, vmem, vmem],
        out_specs=vmem,
        scratch_shapes=[pltpu.VMEM((C, B * n_clu), jnp.float32),   # pooled slab
                        pltpu.VMEM((C, BN), jnp.float32)],         # unpooled slab
    )(x2d, dmat, slab)

    return jnp.transpose(out2d.reshape(C, B, N), (1, 0, 2))        # back to (B,C,N)


# ----------------------------------------------------------------------------
# Deterministic parameter init (synthetic; matches nn.Conv2d 1x1 shapes).
# ----------------------------------------------------------------------------

def init_params(key, in_dim, knn_dim, cluster):
    counter = [0]

    def conv(cin, cout):
        counter[0] += 1
        kw, kb = jax.random.split(jax.random.fold_in(key, counter[0]))
        w = jax.random.normal(kw, (cout, cin), jnp.float32) / np.sqrt(cin)
        b = 0.05 * jax.random.normal(kb, (cout, 1), jnp.float32)
        return w, b

    def lc():
        wd, bd = conv(in_dim, knn_dim)
        wm1, bm1 = conv(knn_dim, knn_dim)
        wm2, bm2 = conv(knn_dim, knn_dim)
        wo, bo = conv(knn_dim, in_dim)
        return dict(wd=wd, bd=bd, wm1=wm1, bm1=bm1, wm2=wm2, bm2=bm2, wo=wo, bo=bo)

    def two(c):
        w1, b1 = conv(c, c)
        w2, b2 = conv(c, c)
        return dict(w1=w1, b1=b1, w2=w2, b2=b2)

    dw, db = conv(in_dim, cluster)
    uw, ub = conv(in_dim, cluster)
    o1w, o1b = conv(in_dim, in_dim)
    o2w, o2b = conv(cluster, cluster)
    o3w, o3b = conv(in_dim, in_dim)
    return dict(
        lc0=lc(), cn0=two(in_dim), cr0=two(in_dim),
        cluster=dict(down_w=dw, down_b=db, up_w=uw, up_b=ub,
                     oaf=dict(w1=o1w, b1=o1b, w2=o2w, b2=o2b, w3=o3w, b3=o3b)),
        lc1=lc(), cn1=two(in_dim), cr1=two(in_dim),
    )


if __name__ == "__main__":
    B, C, N, K, M_EIG = 2, 32, 64, 8, 8        # batch, in_dim, points, knn, eig count
    KNN_DIM, CLUSTER, ETA = 16, 16, 0.8

    key = jax.random.PRNGKey(0)
    kf, ki, kv, kl, kp = jax.random.split(key, 5)
    feats = jax.random.normal(kf, (B, C, N), jnp.float32)          # [B,C,N,1] with W dropped
    idxs = jax.random.randint(ki, (B, N, K), 0, N).astype(jnp.int32)
    eig_vec = jax.random.normal(kv, (B, N, M_EIG), jnp.float32) / np.sqrt(N)
    eig_val = jnp.abs(jax.random.normal(kl, (B, M_EIG), jnp.float32))

    params = init_params(kp, C, KNN_DIM, CLUSTER)

    fwd = jax.jit(functools.partial(lmc_block, eta=ETA))
    out = fwd(params, feats, idxs, eig_vec, eig_val)
    jax.block_until_ready(out)
    assert out.shape == (B, C, N) and out.dtype == jnp.float32
    assert bool(jnp.all(jnp.isfinite(out)))
    print("KERNEL_OK")
</pallas_src>

<mosaic_0001>
module attributes {stable_mosaic.version = 11 : i64} {
  func.func @_lmc_block_kernel(%arg0: memref<32x128xf32, #tpu.memory_space<vmem>>, %arg1: memref<128x1024xf32, #tpu.memory_space<vmem>>, %arg2: memref<1408x128xf32, #tpu.memory_space<vmem>>, %arg3: memref<32x128xf32, #tpu.memory_space<vmem>>, %arg4: memref<32x32xf32, #tpu.memory_space<vmem>>, %arg5: memref<32x128xf32, #tpu.memory_space<vmem>>) attributes {dimension_semantics = [], scalar_prefetch = 0 : i64, scratch_operands = 2 : i64, tpu.core_type = #tpu.core_type<tc>} {
    %c1216 = arith.constant 1216 : index
    %c0 = arith.constant 0 : index
    %0 = vector.load %arg2[%c1216, %c0] : memref<1408x128xf32, #tpu.memory_space<vmem>>, vector<128x128xf32>
    %c1344 = arith.constant 1344 : index
    %c0_0 = arith.constant 0 : index
    %1 = vector.load %arg2[%c1344, %c0_0] : memref<1408x128xf32, #tpu.memory_space<vmem>>, vector<32x32xf32>
    %c1064 = arith.constant 1064 : index
    %c0_1 = arith.constant 0 : index
    %2 = vector.load %arg2[%c1064, %c0_1] : memref<1408x128xf32, #tpu.memory_space<vmem>>, vector<128x16xf32>
    %c1192 = arith.constant 1192 : index
    %c0_2 = arith.constant 0 : index
    %3 = vector.load %arg2[%c1192, %c0_2] : memref<1408x128xf32, #tpu.memory_space<vmem>>, vector<16x128xf32>
    %c1208 = arith.constant 1208 : index
    %c0_3 = arith.constant 0 : index
    %4 = vector.load %arg2[%c1208, %c0_3] : memref<1408x128xf32, #tpu.memory_space<vmem>>, vector<1x16xf32>
    %c0_4 = arith.constant 0 : index
    %c0_5 = arith.constant 0 : index
    %5 = vector.load %arg1[%c0_4, %c0_5] : memref<128x1024xf32, #tpu.memory_space<vmem>>, vector<128x1024xf32>
    %c0_6 = arith.constant 0 : index
    %c0_7 = arith.constant 0 : index
    %6 = vector.load %arg0[%c0_6, %c0_7] : memref<32x128xf32, #tpu.memory_space<vmem>>, vector<32x128xf32>
    %c0_8 = arith.constant 0 : index
    %c0_9 = arith.constant 0 : index
    %7 = vector.load %arg2[%c0_8, %c0_9] : memref<1408x128xf32, #tpu.memory_space<vmem>>, vector<16x32xf32>
    %cst = arith.constant dense<0.000000e+00> : vector<16x128xf32>
    %8 = tpu.matmul %7, %6, %cst {dimension_numbers = #tpu.dot_dimension_numbers<[1], [0], [0], [1], [0, 0, 1, 1], [], []>} : vector<16x32xf32>, vector<32x128xf32>, vector<16x128xf32> -> vector<16x128xf32>
    %c16 = arith.constant 16 : index
    %c0_10 = arith.constant 0 : index
    %9 = vector.load %arg2[%c16, %c0_10] : memref<1408x128xf32, #tpu.memory_space<vmem>>, vector<16x1xf32>
    %10 = vector.broadcast %9 : vector<16x1xf32> to vector<16x128xf32>
    %11 = arith.addf %8, %10 : vector<16x128xf32>
    %c32 = arith.constant 32 : index
    %c0_11 = arith.constant 0 : index
    %12 = vector.load %arg2[%c32, %c0_11] : memref<1408x128xf32, #tpu.memory_space<vmem>>, vector<16x16xf32>
    %cst_12 = arith.constant dense<0.000000e+00> : vector<16x128xf32>
    %13 = tpu.matmul %12, %11, %cst_12 {dimension_numbers = #tpu.dot_dimension_numbers<[1], [0], [0], [1], [0, 0, 1, 1], [], []>} : vector<16x16xf32>, vector<16x128xf32>, vector<16x128xf32> -> vector<16x128xf32>
    %cst_13 = arith.constant dense<0.000000e+00> : vector<16x1024xf32>
    %14 = tpu.matmul %13, %5, %cst_13 {dimension_numbers = #tpu.dot_dimension_numbers<[1], [0], [0], [1], [0, 0, 1, 1], [], []>} : vector<16x128xf32>, vector<128x1024xf32>, vector<16x1024xf32> -> vector<16x1024xf32>
    %c48 = arith.constant 48 : index
    %c0_14 = arith.constant 0 : index
    %15 = vector.load %arg2[%c48, %c0_14] : memref<1408x128xf32, #tpu.memory_space<vmem>>, vector<16x1xf32>
    %16 = vector.broadcast %15 : vector<16x1xf32> to vector<16x1024xf32>
    %17 = arith.addf %14, %16 : vector<16x1024xf32>
    %cst_15 = arith.constant dense<0.000000e+00> : vector<16xf32>
    %18 = vector.multi_reduction <add>, %17, %cst_15 [1] : vector<16x1024xf32> to vector<16xf32>
    %19 = vector.shape_cast %18 : vector<16xf32> to vector<16x1xf32>
    %cst_16 = arith.constant 1.024000e+03 : f32
    %20 = vector.broadcast %cst_16 : f32 to vector<16x1xf32>
    %21 = arith.divf %19, %20 : vector<16x1xf32>
    %22 = vector.broadcast %21 : vector<16x1xf32> to vector<16x1024xf32>
    %23 = arith.subf %17, %22 : vector<16x1024xf32>
    %24 = arith.mulf %23, %23 : vector<16x1024xf32>
    %cst_17 = arith.constant dense<0.000000e+00> : vector<16xf32>
    %25 = vector.multi_reduction <add>, %24, %cst_17 [1] : vector<16x1024xf32> to vector<16xf32>
    %26 = vector.shape_cast %25 : vector<16xf32> to vector<16x1xf32>
    %cst_18 = arith.constant 1.024000e+03 : f32
    %27 = vector.broadcast %cst_18 : f32 to vector<16x1xf32>
    %28 = arith.divf %26, %27 : vector<16x1xf32>
    %cst_19 = arith.constant 9.99999974E-6 : f32
    %29 = vector.broadcast %cst_19 : f32 to vector<16x1xf32>
    %30 = arith.addf %28, %29 : vector<16x1xf32>
    %31 = math.rsqrt %30 : vector<16x1xf32>
    %32 = vector.broadcast %31 : vector<16x1xf32> to vector<16x1024xf32>
    %33 = arith.mulf %23, %32 : vector<16x1024xf32>
    %cst_20 = arith.constant 0.000000e+00 : f32
    %34 = vector.broadcast %cst_20 : f32 to vector<16x1024xf32>
    %35 = arith.maximumf %33, %34 : vector<16x1024xf32>
    %c64 = arith.constant 64 : index
    %c0_21 = arith.constant 0 : index
    %36 = vector.load %arg2[%c64, %c0_21] : memref<1408x128xf32, #tpu.memory_space<vmem>>, vector<16x16xf32>
    %cst_22 = arith.constant dense<0.000000e+00> : vector<16x1024xf32>
    %37 = tpu.matmul %36, %35, %cst_22 {dimension_numbers = #tpu.dot_dimension_numbers<[1], [0], [0], [1], [0, 0, 1, 1], [], []>} : vector<16x16xf32>, vector<16x1024xf32>, vector<16x1024xf32> -> vector<16x1024xf32>
    %c80 = arith.constant 80 : index
    %c0_23 = arith.constant 0 : index
    %38 = vector.load %arg2[%c80, %c0_23] : memref<1408x128xf32, #tpu.memory_space<vmem>>, vector<16x1xf32>
    %39 = vector.broadcast %38 : vector<16x1xf32> to vector<16x1024xf32>
    %40 = arith.addf %37, %39 : vector<16x1024xf32>
    %41 = vector.extract_strided_slice %40 {offsets = [0, 0], sizes = [16, 128], strides = [1, 1]} : vector<16x1024xf32> to vector<16x128xf32>
    %42 = vector.extract_strided_slice %40 {offsets = [0, 128], sizes = [16, 128], strides = [1, 1]} : vector<16x1024xf32> to vector<16x128xf32>
    %43 = arith.maximumf %41, %42 : vector<16x128xf32>
    %44 = vector.extract_strided_slice %40 {offsets = [0, 256], sizes = [16, 128], strides = [1, 1]} : vector<16x1024xf32> to vector<16x128xf32>
    %45 = arith.maximumf %43, %44 : vector<16x128xf32>
    %46 = vector.extract_strided_slice %40 {offsets = [0, 384], sizes = [16, 128], strides = [1, 1]} : vector<16x1024xf32> to vector<16x128xf32>
    %47 = arith.maximumf %45, %46 : vector<16x128xf32>
    %48 = vector.extract_strided_slice %40 {offsets = [0, 512], sizes = [16, 128], strides = [1, 1]} : vector<16x1024xf32> to vector<16x128xf32>
    %49 = arith.maximumf %47, %48 : vector<16x128xf32>
    %50 = vector.extract_strided_slice %40 {offsets = [0, 640], sizes = [16, 128], strides = [1, 1]} : vector<16x1024xf32> to vector<16x128xf32>
    %51 = arith.maximumf %49, %50 : vector<16x128xf32>
    %52 = vector.extract_strided_slice %40 {offsets = [0, 768], sizes = [16, 128], strides = [1, 1]} : vector<16x1024xf32> to vector<16x128xf32>
    %53 = arith.maximumf %51, %52 : vector<16x128xf32>
    %54 = vector.extract_strided_slice %40 {offsets = [0, 896], sizes = [16, 128], strides = [1, 1]} : vector<16x1024xf32> to vector<16x128xf32>
    %55 = arith.maximumf %53, %54 : vector<16x128xf32>
    %c96 = arith.constant 96 : index
    %c0_24 = arith.constant 0 : index
    %56 = vector.load %arg2[%c96, %c0_24] : memref<1408x128xf32, #tpu.memory_space<vmem>>, vector<32x16xf32>
    %cst_25 = arith.constant dense<0.000000e+00> : vector<32x128xf32>
    %57 = tpu.matmul %56, %55, %cst_25 {dimension_numbers = #tpu.dot_dimension_numbers<[1], [0], [0], [1], [0, 0, 1, 1], [], []>} : vector<32x16xf32>, vector<16x128xf32>, vector<32x128xf32> -> vector<32x128xf32>
    %c128 = arith.constant 128 : index
    %c0_26 = arith.constant 0 : index
    %58 = vector.load %arg2[%c128, %c0_26] : memref<1408x128xf32, #tpu.memory_space<vmem>>, vector<32x1xf32>
    %59 = vector.broadcast %58 : vector<32x1xf32> to vector<32x128xf32>
    %60 = arith.addf %57, %59 : vector<32x128xf32>
    %61 = arith.addf %6, %60 : vector<32x128xf32>
    %c320 = arith.constant 320 : index
    %c0_27 = arith.constant 0 : index
    %62 = vector.load %arg2[%c320, %c0_27] : memref<1408x128xf32, #tpu.memory_space<vmem>>, vector<32x32xf32>
    %c352 = arith.constant 352 : index
    %c0_28 = arith.constant 0 : index
    %63 = vector.load %arg2[%c352, %c0_28] : memref<1408x128xf32, #tpu.memory_space<vmem>>, vector<32x1xf32>
    %cst_29 = arith.constant dense<0.000000e+00> : vector<32x128xf32>
    %64 = tpu.matmul %61, %0, %cst_29 {dimension_numbers = #tpu.dot_dimension_numbers<[1], [0], [0], [1], [0, 0, 1, 1], [], []>} : vector<32x128xf32>, vector<128x128xf32>, vector<32x128xf32> -> vector<32x128xf32>
    %65 = arith.subf %61, %64 : vector<32x128xf32>
    %66 = arith.mulf %65, %65 : vector<32x128xf32>
    %cst_30 = arith.constant dense<0.000000e+00> : vector<32x128xf32>
    %67 = tpu.matmul %66, %0, %cst_30 {dimension_numbers = #tpu.dot_dimension_numbers<[1], [0], [0], [1], [0, 0, 1, 1], [], []>} : vector<32x128xf32>, vector<128x128xf32>, vector<32x128xf32> -> vector<32x128xf32>
    %cst_31 = arith.constant 1.000000e-03 : f32
    %68 = vector.broadcast %cst_31 : f32 to vector<32x128xf32>
    %69 = arith.addf %67, %68 : vector<32x128xf32>
    %70 = math.rsqrt %69 : vector<32x128xf32>
    %71 = arith.mulf %65, %70 : vector<32x128xf32>
    %cst_32 = arith.constant dense<0.000000e+00> : vector<32xf32>
    %72 = vector.multi_reduction <add>, %71, %cst_32 [1] : vector<32x128xf32> to vector<32xf32>
    %73 = vector.shape_cast %72 : vector<32xf32> to vector<32x1xf32>
    %cst_33 = arith.constant 1.280000e+02 : f32
    %74 = vector.broadcast %cst_33 : f32 to vector<32x1xf32>
    %75 = arith.divf %73, %74 : vector<32x1xf32>
    %76 = vector.broadcast %75 : vector<32x1xf32> to vector<32x128xf32>
    %77 = arith.subf %71, %76 : vector<32x128xf32>
    %78 = arith.mulf %77, %77 : vector<32x128xf32>
    %cst_34 = arith.constant dense<0.000000e+00> : vector<32xf32>
    %79 = vector.multi_reduction <add>, %78, %cst_34 [1] : vector<32x128xf32> to vector<32xf32>
    %80 = vector.shape_cast %79 : vector<32xf32> to vector<32x1xf32>
    %cst_35 = arith.constant 1.280000e+02 : f32
    %81 = vector.broadcast %cst_35 : f32 to vector<32x1xf32>
    %82 = arith.divf %80, %81 : vector<32x1xf32>
    %cst_36 = arith.constant 9.99999974E-6 : f32
    %83 = vector.broadcast %cst_36 : f32 to vector<32x1xf32>
    %84 = arith.addf %82, %83 : vector<32x1xf32>
    %85 = math.rsqrt %84 : vector<32x1xf32>
    %86 = vector.broadcast %85 : vector<32x1xf32> to vector<32x128xf32>
    %87 = arith.mulf %77, %86 : vector<32x128xf32>
    %cst_37 = arith.constant 0.000000e+00 : f32
    %88 = vector.broadcast %cst_37 : f32 to vector<32x128xf32>
    %89 = arith.maximumf %87, %88 : vector<32x128xf32>
    %cst_38 = arith.constant dense<0.000000e+00> : vector<32x128xf32>
    %90 = tpu.matmul %62, %89, %cst_38 {dimension_numbers = #tpu.dot_dimension_numbers<[1], [0], [0], [1], [0, 0, 1, 1], [], []>} : vector<32x32xf32>, vector<32x128xf32>, vector<32x128xf32> -> vector<32x128xf32>
    %91 = vector.broadcast %63 : vector<32x1xf32> to vector<32x128xf32>
    %92 = arith.addf %90, %91 : vector<32x128xf32>
    %c384 = arith.constant 384 : index
    %c0_39 = arith.constant 0 : index
    %93 = vector.load %arg2[%c384, %c0_39] : memref<1408x128xf32, #tpu.memory_space<vmem>>, vector<32x32xf32>
    %c416 = arith.constant 416 : index
    %c0_40 = arith.constant 0 : index
    %94 = vector.load %arg2[%c416, %c0_40] : memref<1408x128xf32, #tpu.memory_space<vmem>>, vector<32x1xf32>
    %cst_41 = arith.constant dense<0.000000e+00> : vector<32x128xf32>
    %95 = tpu.matmul %92, %0, %cst_41 {dimension_numbers = #tpu.dot_dimension_numbers<[1], [0], [0], [1], [0, 0, 1, 1], [], []>} : vector<32x128xf32>, vector<128x128xf32>, vector<32x128xf32> -> vector<32x128xf32>
    %96 = arith.subf %92, %95 : vector<32x128xf32>
    %97 = arith.mulf %96, %96 : vector<32x128xf32>
    %cst_42 = arith.constant dense<0.000000e+00> : vector<32x128xf32>
    %98 = tpu.matmul %97, %0, %cst_42 {dimension_numbers = #tpu.dot_dimension_numbers<[1], [0], [0], [1], [0, 0, 1, 1], [], []>} : vector<32x128xf32>, vector<128x128xf32>, vector<32x128xf32> -> vector<32x128xf32>
    %cst_43 = arith.constant 1.000000e-03 : f32
    %99 = vector.broadcast %cst_43 : f32 to vector<32x128xf32>
    %100 = arith.addf %98, %99 : vector<32x128xf32>
    %101 = math.rsqrt %100 : vector<32x128xf32>
    %102 = arith.mulf %96, %101 : vector<32x128xf32>
    %cst_44 = arith.constant dense<0.000000e+00> : vector<32xf32>
    %103 = vector.multi_reduction <add>, %102, %cst_44 [1] : vector<32x128xf32> to vector<32xf32>
    %104 = vector.shape_cast %103 : vector<32xf32> to vector<32x1xf32>
    %cst_45 = arith.constant 1.280000e+02 : f32
    %105 = vector.broadcast %cst_45 : f32 to vector<32x1xf32>
    %106 = arith.divf %104, %105 : vector<32x1xf32>
    %107 = vector.broadcast %106 : vector<32x1xf32> to vector<32x128xf32>
    %108 = arith.subf %102, %107 : vector<32x128xf32>
    %109 = arith.mulf %108, %108 : vector<32x128xf32>
    %cst_46 = arith.constant dense<0.000000e+00> : vector<32xf32>
    %110 = vector.multi_reduction <add>, %109, %cst_46 [1] : vector<32x128xf32> to vector<32xf32>
    %111 = vector.shape_cast %110 : vector<32xf32> to vector<32x1xf32>
    %cst_47 = arith.constant 1.280000e+02 : f32
    %112 = vector.broadcast %cst_47 : f32 to vector<32x1xf32>
    %113 = arith.divf %111, %112 : vector<32x1xf32>
    %cst_48 = arith.constant 9.99999974E-6 : f32
    %114 = vector.broadcast %cst_48 : f32 to vector<32x1xf32>
    %115 = arith.addf %113, %114 : vector<32x1xf32>
    %116 = math.rsqrt %115 : vector<32x1xf32>
    %117 = vector.broadcast %116 : vector<32x1xf32> to vector<32x128xf32>
    %118 = arith.mulf %108, %117 : vector<32x128xf32>
    %cst_49 = arith.constant 0.000000e+00 : f32
    %119 = vector.broadcast %cst_49 : f32 to vector<32x128xf32>
    %120 = arith.maximumf %118, %119 : vector<32x128xf32>
    %cst_50 = arith.constant dense<0.000000e+00> : vector<32x128xf32>
    %121 = tpu.matmul %93, %120, %cst_50 {dimension_numbers = #tpu.dot_dimension_numbers<[1], [0], [0], [1], [0, 0, 1, 1], [], []>} : vector<32x32xf32>, vector<32x128xf32>, vector<32x128xf32> -> vector<32x128xf32>
    %122 = vector.broadcast %94 : vector<32x1xf32> to vector<32x128xf32>
    %123 = arith.addf %121, %122 : vector<32x128xf32>
    %124 = arith.addf %61, %123 : vector<32x128xf32>
    %cst_51 = arith.constant dense<0.000000e+00> : vector<32x16xf32>
    %125 = tpu.matmul %124, %2, %cst_51 {dimension_numbers = #tpu.dot_dimension_numbers<[1], [0], [0], [1], [0, 0, 1, 1], [], []>} : vector<32x128xf32>, vector<128x16xf32>, vector<32x16xf32> -> vector<32x16xf32>
    %126 = vector.broadcast %4 : vector<1x16xf32> to vector<32x16xf32>
    %127 = arith.mulf %125, %126 : vector<32x16xf32>
    %cst_52 = arith.constant dense<0.000000e+00> : vector<32x128xf32>
    %128 = tpu.matmul %127, %3, %cst_52 {dimension_numbers = #tpu.dot_dimension_numbers<[1], [0], [0], [1], [0, 0, 1, 1], [], []>} : vector<32x16xf32>, vector<16x128xf32>, vector<32x128xf32> -> vector<32x128xf32>
    %129 = arith.subf %128, %124 : vector<32x128xf32>
    %c448 = arith.constant 448 : index
    %c0_53 = arith.constant 0 : index
    %130 = vector.load %arg2[%c448, %c0_53] : memref<1408x128xf32, #tpu.memory_space<vmem>>, vector<32x32xf32>
    %c480 = arith.constant 480 : index
    %c0_54 = arith.constant 0 : index
    %131 = vector.load %arg2[%c480, %c0_54] : memref<1408x128xf32, #tpu.memory_space<vmem>>, vector<32x1xf32>
    %cst_55 = arith.constant dense<0.000000e+00> : vector<32x128xf32>
    %132 = tpu.matmul %129, %0, %cst_55 {dimension_numbers = #tpu.dot_dimension_numbers<[1], [0], [0], [1], [0, 0, 1, 1], [], []>} : vector<32x128xf32>, vector<128x128xf32>, vector<32x128xf32> -> vector<32x128xf32>
    %133 = arith.subf %129, %132 : vector<32x128xf32>
    %134 = arith.mulf %133, %133 : vector<32x128xf32>
    %cst_56 = arith.constant dense<0.000000e+00> : vector<32x128xf32>
    %135 = tpu.matmul %134, %0, %cst_56 {dimension_numbers = #tpu.dot_dimension_numbers<[1], [0], [0], [1], [0, 0, 1, 1], [], []>} : vector<32x128xf32>, vector<128x128xf32>, vector<32x128xf32> -> vector<32x128xf32>
    %cst_57 = arith.constant 9.99999974E-6 : f32
    %136 = vector.broadcast %cst_57 : f32 to vector<32x128xf32>
    %137 = arith.addf %135, %136 : vector<32x128xf32>
    %138 = math.rsqrt %137 : vector<32x128xf32>
    %139 = arith.mulf %133, %138 : vector<32x128xf32>
    %cst_58 = arith.constant dense<0.000000e+00> : vector<32xf32>
    %140 = vector.multi_reduction <add>, %139, %cst_58 [1] : vector<32x128xf32> to vector<32xf32>
    %141 = vector.shape_cast %140 : vector<32xf32> to vector<32x1xf32>
    %cst_59 = arith.constant 1.280000e+02 : f32
    %142 = vector.broadcast %cst_59 : f32 to vector<32x1xf32>
    %143 = arith.divf %141, %142 : vector<32x1xf32>
    %144 = vector.broadcast %143 : vector<32x1xf32> to vector<32x128xf32>
    %145 = arith.subf %139, %144 : vector<32x128xf32>
    %146 = arith.mulf %145, %145 : vector<32x128xf32>
    %cst_60 = arith.constant dense<0.000000e+00> : vector<32xf32>
    %147 = vector.multi_reduction <add>, %146, %cst_60 [1] : vector<32x128xf32> to vector<32xf32>
    %148 = vector.shape_cast %147 : vector<32xf32> to vector<32x1xf32>
    %cst_61 = arith.constant 1.280000e+02 : f32
    %149 = vector.broadcast %cst_61 : f32 to vector<32x1xf32>
    %150 = arith.divf %148, %149 : vector<32x1xf32>
    %cst_62 = arith.constant 9.99999974E-6 : f32
    %151 = vector.broadcast %cst_62 : f32 to vector<32x1xf32>
    %152 = arith.addf %150, %151 : vector<32x1xf32>
    %153 = math.rsqrt %152 : vector<32x1xf32>
    %154 = vector.broadcast %153 : vector<32x1xf32> to vector<32x128xf32>
    %155 = arith.mulf %145, %154 : vector<32x128xf32>
    %cst_63 = arith.constant 0.000000e+00 : f32
    %156 = vector.broadcast %cst_63 : f32 to vector<32x128xf32>
    %157 = arith.maximumf %155, %156 : vector<32x128xf32>
    %cst_64 = arith.constant dense<0.000000e+00> : vector<32x128xf32>
    %158 = tpu.matmul %130, %157, %cst_64 {dimension_numbers = #tpu.dot_dimension_numbers<[1], [0], [0], [1], [0, 0, 1, 1], [], []>} : vector<32x32xf32>, vector<32x128xf32>, vector<32x128xf32> -> vector<32x128xf32>
    %159 = vector.broadcast %131 : vector<32x1xf32> to vector<32x128xf32>
    %160 = arith.addf %158, %159 : vector<32x128xf32>
    %c512 = arith.constant 512 : index
    %c0_65 = arith.constant 0 : index
    %161 = vector.load %arg2[%c512, %c0_65] : memref<1408x128xf32, #tpu.memory_space<vmem>>, vector<32x32xf32>
    %c544 = arith.constant 544 : index
    %c0_66 = arith.constant 0 : index
    %162 = vector.load %arg2[%c544, %c0_66] : memref<1408x128xf32, #tpu.memory_space<vmem>>, vector<32x1xf32>
    %cst_67 = arith.constant dense<0.000000e+00> : vector<32x128xf32>
    %163 = tpu.matmul %160, %0, %cst_67 {dimension_numbers = #tpu.dot_dimension_numbers<[1], [0], [0], [1], [0, 0, 1, 1], [], []>} : vector<32x128xf32>, vector<128x128xf32>, vector<32x128xf32> -> vector<32x128xf32>
    %164 = arith.subf %160, %163 : vector<32x128xf32>
    %165 = arith.mulf %164, %164 : vector<32x128xf32>
    %cst_68 = arith.constant dense<0.000000e+00> : vector<32x128xf32>
    %166 = tpu.matmul %165, %0, %cst_68 {dimension_numbers = #tpu.dot_dimension_numbers<[1], [0], [0], [1], [0, 0, 1, 1], [], []>} : vector<32x128xf32>, vector<128x128xf32>, vector<32x128xf32> -> vector<32x128xf32>
    %cst_69 = arith.constant 9.99999974E-6 : f32
    %167 = vector.broadcast %cst_69 : f32 to vector<32x128xf32>
    %168 = arith.addf %166, %167 : vector<32x128xf32>
    %169 = math.rsqrt %168 : vector<32x128xf32>
    %170 = arith.mulf %164, %169 : vector<32x128xf32>
    %cst_70 = arith.constant dense<0.000000e+00> : vector<32xf32>
    %171 = vector.multi_reduction <add>, %170, %cst_70 [1] : vector<32x128xf32> to vector<32xf32>
    %172 = vector.shape_cast %171 : vector<32xf32> to vector<32x1xf32>
    %cst_71 = arith.constant 1.280000e+02 : f32
    %173 = vector.broadcast %cst_71 : f32 to vector<32x1xf32>
    %174 = arith.divf %172, %173 : vector<32x1xf32>
    %175 = vector.broadcast %174 : vector<32x1xf32> to vector<32x128xf32>
    %176 = arith.subf %170, %175 : vector<32x128xf32>
    %177 = arith.mulf %176, %176 : vector<32x128xf32>
    %cst_72 = arith.constant dense<0.000000e+00> : vector<32xf32>
    %178 = vector.multi_reduction <add>, %177, %cst_72 [1] : vector<32x128xf32> to vector<32xf32>
    %179 = vector.shape_cast %178 : vector<32xf32> to vector<32x1xf32>
    %cst_73 = arith.constant 1.280000e+02 : f32
    %180 = vector.broadcast %cst_73 : f32 to vector<32x1xf32>
    %181 = arith.divf %179, %180 : vector<32x1xf32>
    %cst_74 = arith.constant 9.99999974E-6 : f32
    %182 = vector.broadcast %cst_74 : f32 to vector<32x1xf32>
    %183 = arith.addf %181, %182 : vector<32x1xf32>
    %184 = math.rsqrt %183 : vector<32x1xf32>
    %185 = vector.broadcast %184 : vector<32x1xf32> to vector<32x128xf32>
    %186 = arith.mulf %176, %185 : vector<32x128xf32>
    %cst_75 = arith.constant 0.000000e+00 : f32
    %187 = vector.broadcast %cst_75 : f32 to vector<32x128xf32>
    %188 = arith.maximumf %186, %187 : vector<32x128xf32>
    %cst_76 = arith.constant dense<0.000000e+00> : vector<32x128xf32>
    %189 = tpu.matmul %161, %188, %cst_76 {dimension_numbers = #tpu.dot_dimension_numbers<[1], [0], [0], [1], [0, 0, 1, 1], [], []>} : vector<32x32xf32>, vector<32x128xf32>, vector<32x128xf32> -> vector<32x128xf32>
    %190 = vector.broadcast %162 : vector<32x1xf32> to vector<32x128xf32>
    %191 = arith.addf %189, %190 : vector<32x128xf32>
    %192 = arith.addf %124, %191 : vector<32x128xf32>
    %c832 = arith.constant 832 : index
    %c0_77 = arith.constant 0 : index
    %193 = vector.load %arg2[%c832, %c0_77] : memref<1408x128xf32, #tpu.memory_space<vmem>>, vector<16x32xf32>
    %c848 = arith.constant 848 : index
    %c0_78 = arith.constant 0 : index
    %194 = vector.load %arg2[%c848, %c0_78] : memref<1408x128xf32, #tpu.memory_space<vmem>>, vector<16x1xf32>
    %cst_79 = arith.constant dense<0.000000e+00> : vector<32x128xf32>
    %195 = tpu.matmul %192, %0, %cst_79 {dimension_numbers = #tpu.dot_dimension_numbers<[1], [0], [0], [1], [0, 0, 1, 1], [], []>} : vector<32x128xf32>, vector<128x128xf32>, vector<32x128xf32> -> vector<32x128xf32>
    %196 = arith.subf %192, %195 : vector<32x128xf32>
    %197 = arith.mulf %196, %196 : vector<32x128xf32>
    %cst_80 = arith.constant dense<0.000000e+00> : vector<32x128xf32>
    %198 = tpu.matmul %197, %0, %cst_80 {dimension_numbers = #tpu.dot_dimension_numbers<[1], [0], [0], [1], [0, 0, 1, 1], [], []>} : vector<32x128xf32>, vector<128x128xf32>, vector<32x128xf32> -> vector<32x128xf32>
    %cst_81 = arith.constant 1.000000e-03 : f32
    %199 = vector.broadcast %cst_81 : f32 to vector<32x128xf32>
    %200 = arith.addf %198, %199 : vector<32x128xf32>
    %201 = math.rsqrt %200 : vector<32x128xf32>
    %202 = arith.mulf %196, %201 : vector<32x128xf32>
    %cst_82 = arith.constant dense<0.000000e+00> : vector<32xf32>
    %203 = vector.multi_reduction <add>, %202, %cst_82 [1] : vector<32x128xf32> to vector<32xf32>
    %204 = vector.shape_cast %203 : vector<32xf32> to vector<32x1xf32>
    %cst_83 = arith.constant 1.280000e+02 : f32
    %205 = vector.broadcast %cst_83 : f32 to vector<32x1xf32>
    %206 = arith.divf %204, %205 : vector<32x1xf32>
    %207 = vector.broadcast %206 : vector<32x1xf32> to vector<32x128xf32>
    %208 = arith.subf %202, %207 : vector<32x128xf32>
    %209 = arith.mulf %208, %208 : vector<32x128xf32>
    %cst_84 = arith.constant dense<0.000000e+00> : vector<32xf32>
    %210 = vector.multi_reduction <add>, %209, %cst_84 [1] : vector<32x128xf32> to vector<32xf32>
    %211 = vector.shape_cast %210 : vector<32xf32> to vector<32x1xf32>
    %cst_85 = arith.constant 1.280000e+02 : f32
    %212 = vector.broadcast %cst_85 : f32 to vector<32x1xf32>
    %213 = arith.divf %211, %212 : vector<32x1xf32>
    %cst_86 = arith.constant 9.99999974E-6 : f32
    %214 = vector.broadcast %cst_86 : f32 to vector<32x1xf32>
    %215 = arith.addf %213, %214 : vector<32x1xf32>
    %216 = math.rsqrt %215 : vector<32x1xf32>
    %217 = vector.broadcast %216 : vector<32x1xf32> to vector<32x128xf32>
    %218 = arith.mulf %208, %217 : vector<32x128xf32>
    %cst_87 = arith.constant 0.000000e+00 : f32
    %219 = vector.broadcast %cst_87 : f32 to vector<32x128xf32>
    %220 = arith.maximumf %218, %219 : vector<32x128xf32>
    %cst_88 = arith.constant dense<0.000000e+00> : vector<16x128xf32>
    %221 = tpu.matmul %193, %220, %cst_88 {dimension_numbers = #tpu.dot_dimension_numbers<[1], [0], [0], [1], [0, 0, 1, 1], [], []>} : vector<16x32xf32>, vector<32x128xf32>, vector<16x128xf32> -> vector<16x128xf32>
    %222 = vector.broadcast %194 : vector<16x1xf32> to vector<16x128xf32>
    %223 = arith.addf %221, %222 : vector<16x128xf32>
    %224 = vector.extract_strided_slice %223 {offsets = [0, 0], sizes = [16, 64], strides = [1, 1]} : vector<16x128xf32> to vector<16x64xf32>
    %cst_89 = arith.constant dense<0xFF800000> : vector<16xf32>
    %225 = vector.multi_reduction <maximumf>, %224, %cst_89 [1] : vector<16x64xf32> to vector<16xf32>
    %226 = vector.shape_cast %225 : vector<16xf32> to vector<16x1xf32>
    %227 = vector.broadcast %226 : vector<16x1xf32> to vector<16x64xf32>
    %228 = arith.subf %224, %227 : vector<16x64xf32>
    %229 = math.exp %228 : vector<16x64xf32>
    %cst_90 = arith.constant dense<0.000000e+00> : vector<16xf32>
    %230 = vector.multi_reduction <add>, %229, %cst_90 [1] : vector<16x64xf32> to vector<16xf32>
    %231 = vector.shape_cast %230 : vector<16xf32> to vector<16x1xf32>
    %232 = tpu.reciprocal %231 {approx = true} : vector<16x1xf32> -> vector<16x1xf32>
    %233 = vector.broadcast %232 : vector<16x1xf32> to vector<16x64xf32>
    %234 = arith.mulf %229, %233 : vector<16x64xf32>
    %235 = vector.extract_strided_slice %192 {offsets = [0, 0], sizes = [32, 64], strides = [1, 1]} : vector<32x128xf32> to vector<32x64xf32>
    %cst_91 = arith.constant dense<0.000000e+00> : vector<32x16xf32>
    %236 = tpu.matmul %235, %234, %cst_91 {dimension_numbers = #tpu.dot_dimension_numbers<[1], [1], [0], [0], [0, 0, 1, 0], [], []>} : vector<32x64xf32>, vector<16x64xf32>, vector<32x16xf32> -> vector<32x16xf32>
    %c0_92 = arith.constant 0 : index
    %c0_93 = arith.constant 0 : index
    %237 = vector.load %arg4[%c0_92, %c0_93] : memref<32x32xf32, #tpu.memory_space<vmem>>, vector<32x16xf32>
    tpu.vector_store %arg4[%c0_92, %c0_93], %236 {strides = array<i32>} : memref<32x32xf32, #tpu.memory_space<vmem>>, vector<32x16xf32>,
    %238 = vector.extract_strided_slice %223 {offsets = [0, 64], sizes = [16, 64], strides = [1, 1]} : vector<16x128xf32> to vector<16x64xf32>
    %cst_94 = arith.constant dense<0xFF800000> : vector<16xf32>
    %239 = vector.multi_reduction <maximumf>, %238, %cst_94 [1] : vector<16x64xf32> to vector<16xf32>
    %240 = vector.shape_cast %239 : vector<16xf32> to vector<16x1xf32>
    %241 = vector.broadcast %240 : vector<16x1xf32> to vector<16x64xf32>
    %242 = arith.subf %238, %241 : vector<16x64xf32>
    %243 = math.exp %242 : vector<16x64xf32>
    %cst_95 = arith.constant dense<0.000000e+00> : vector<16xf32>
    %244 = vector.multi_reduction <add>, %243, %cst_95 [1] : vector<16x64xf32> to vector<16xf32>
    %245 = vector.shape_cast %244 : vector<16xf32> to vector<16x1xf32>
    %246 = tpu.reciprocal %245 {approx = true} : vector<16x1xf32> -> vector<16x1xf32>
    %247 = vector.broadcast %246 : vector<16x1xf32> to vector<16x64xf32>
    %248 = arith.mulf %243, %247 : vector<16x64xf32>
    %249 = vector.extract_strided_slice %192 {offsets = [0, 64], sizes = [32, 64], strides = [1, 1]} : vector<32x128xf32> to vector<32x64xf32>
    %cst_96 = arith.constant dense<0.000000e+00> : vector<32x16xf32>
    %250 = tpu.matmul %249, %248, %cst_96 {dimension_numbers = #tpu.dot_dimension_numbers<[1], [1], [0], [0], [0, 0, 1, 0], [], []>} : vector<32x64xf32>, vector<16x64xf32>, vector<32x16xf32> -> vector<32x16xf32>
    %c0_97 = arith.constant 0 : index
    %c16_98 = arith.constant 16 : index
    %251 = vector.load %arg4[%c0_97, %c16_98] : memref<32x32xf32, #tpu.memory_space<vmem>>, vector<32x16xf32>
    tpu.vector_store %arg4[%c0_97, %c16_98], %250 {strides = array<i32>} : memref<32x32xf32, #tpu.memory_space<vmem>>, vector<32x16xf32>,
    %c0_99 = arith.constant 0 : index
    %c0_100 = arith.constant 0 : index
    %252 = vector.load %arg4[%c0_99, %c0_100] : memref<32x32xf32, #tpu.memory_space<vmem>>, vector<32x32xf32>
    %c896 = arith.constant 896 : index
    %c0_101 = arith.constant 0 : index
    %253 = vector.load %arg2[%c896, %c0_101] : memref<1408x128xf32, #tpu.memory_space<vmem>>, vector<32x32xf32>
    %c928 = arith.constant 928 : index
    %c0_102 = arith.constant 0 : index
    %254 = vector.load %arg2[%c928, %c0_102] : memref<1408x128xf32, #tpu.memory_space<vmem>>, vector<32x1xf32>
    %cst_103 = arith.constant dense<0.000000e+00> : vector<32x32xf32>
    %255 = tpu.matmul %252, %1, %cst_103 {dimension_numbers = #tpu.dot_dimension_numbers<[1], [0], [0], [1], [0, 0, 1, 1], [], []>} : vector<32x32xf32>, vector<32x32xf32>, vector<32x32xf32> -> vector<32x32xf32>
    %256 = arith.subf %252, %255 : vector<32x32xf32>
    %257 = arith.mulf %256, %256 : vector<32x32xf32>
    %cst_104 = arith.constant dense<0.000000e+00> : vector<32x32xf32>
    %258 = tpu.matmul %257, %1, %cst_104 {dimension_numbers = #tpu.dot_dimension_numbers<[1], [0], [0], [1], [0, 0, 1, 1], [], []>} : vector<32x32xf32>, vector<32x32xf32>, vector<32x32xf32> -> vector<32x32xf32>
    %cst_105 = arith.constant 1.000000e-03 : f32
    %259 = vector.broadcast %cst_105 : f32 to vector<32x32xf32>
    %260 = arith.addf %258, %259 : vector<32x32xf32>
    %261 = math.rsqrt %260 : vector<32x32xf32>
    %262 = arith.mulf %256, %261 : vector<32x32xf32>
    %cst_106 = arith.constant dense<0.000000e+00> : vector<32xf32>
    %263 = vector.multi_reduction <add>, %262, %cst_106 [1] : vector<32x32xf32> to vector<32xf32>
    %264 = vector.shape_cast %263 : vector<32xf32> to vector<32x1xf32>
    %cst_107 = arith.constant 3.200000e+01 : f32
    %265 = vector.broadcast %cst_107 : f32 to vector<32x1xf32>
    %266 = arith.divf %264, %265 : vector<32x1xf32>
    %267 = vector.broadcast %266 : vector<32x1xf32> to vector<32x32xf32>
    %268 = arith.subf %262, %267 : vector<32x32xf32>
    %269 = arith.mulf %268, %268 : vector<32x32xf32>
    %cst_108 = arith.constant dense<0.000000e+00> : vector<32xf32>
    %270 = vector.multi_reduction <add>, %269, %cst_108 [1] : vector<32x32xf32> to vector<32xf32>
    %271 = vector.shape_cast %270 : vector<32xf32> to vector<32x1xf32>
    %cst_109 = arith.constant 3.200000e+01 : f32
    %272 = vector.broadcast %cst_109 : f32 to vector<32x1xf32>
    %273 = arith.divf %271, %272 : vector<32x1xf32>
    %cst_110 = arith.constant 9.99999974E-6 : f32
    %274 = vector.broadcast %cst_110 : f32 to vector<32x1xf32>
    %275 = arith.addf %273, %274 : vector<32x1xf32>
    %276 = math.rsqrt %275 : vector<32x1xf32>
    %277 = vector.broadcast %276 : vector<32x1xf32> to vector<32x32xf32>
    %278 = arith.mulf %268, %277 : vector<32x32xf32>
    %cst_111 = arith.constant 0.000000e+00 : f32
    %279 = vector.broadcast %cst_111 : f32 to vector<32x32xf32>
    %280 = arith.maximumf %278, %279 : vector<32x32xf32>
    %cst_112 = arith.constant dense<0.000000e+00> : vector<32x32xf32>
    %281 = tpu.matmul %253, %280, %cst_112 {dimension_numbers = #tpu.dot_dimension_numbers<[1], [0], [0], [1], [0, 0, 1, 1], [], []>} : vector<32x32xf32>, vector<32x32xf32>, vector<32x32xf32> -> vector<32x32xf32>
    %282 = vector.broadcast %254 : vector<32x1xf32> to vector<32x32xf32>
    %283 = arith.addf %281, %282 : vector<32x32xf32>
    %c1376 = arith.constant 1376 : index
    %c0_113 = arith.constant 0 : index
    %284 = vector.load %arg2[%c1376, %c0_113] : memref<1408x128xf32, #tpu.memory_space<vmem>>, vector<32x32xf32>
    %cst_114 = arith.constant dense<0.000000e+00> : vector<32x32xf32>
    %285 = tpu.matmul %283, %284, %cst_114 {dimension_numbers = #tpu.dot_dimension_numbers<[1], [0], [0], [1], [0, 0, 1, 1], [], []>} : vector<32x32xf32>, vector<32x32xf32>, vector<32x32xf32> -> vector<32x32xf32>
    %cst_115 = arith.constant dense<0.000000e+00> : vector<32xf32>
    %286 = vector.multi_reduction <add>, %285, %cst_115 [0] : vector<32x32xf32> to vector<32xf32>
    %287 = vector.shape_cast %286 : vector<32xf32> to vector<1x32xf32>
    %288 = vector.broadcast %287 : vector<1x32xf32> to vector<32x32xf32>
    %289 = arith.subf %283, %288 : vector<32x32xf32>
    %290 = arith.mulf %289, %289 : vector<32x32xf32>
    %cst_116 = arith.constant dense<0.000000e+00> : vector<32x32xf32>
    %291 = tpu.matmul %290, %284, %cst_116 {dimension_numbers = #tpu.dot_dimension_numbers<[1], [0], [0], [1], [0, 0, 1, 1], [], []>} : vector<32x32xf32>, vector<32x32xf32>, vector<32x32xf32> -> vector<32x32xf32>
    %cst_117 = arith.constant dense<0.000000e+00> : vector<32xf32>
    %292 = vector.multi_reduction <add>, %291, %cst_117 [0] : vector<32x32xf32> to vector<32xf32>
    %293 = vector.shape_cast %292 : vector<32xf32> to vector<1x32xf32>
    %cst_118 = arith.constant 9.99999974E-6 : f32
    %294 = vector.broadcast %cst_118 : f32 to vector<1x32xf32>
    %295 = arith.addf %293, %294 : vector<1x32xf32>
    %296 = math.rsqrt %295 : vector<1x32xf32>
    %297 = vector.broadcast %296 : vector<1x32xf32> to vector<32x32xf32>
    %298 = arith.mulf %289, %297 : vector<32x32xf32>
    %cst_119 = arith.constant 0.000000e+00 : f32
    %299 = vector.broadcast %cst_119 : f32 to vector<32x32xf32>
    %300 = arith.maximumf %298, %299 : vector<32x32xf32>
    %c1024 = arith.constant 1024 : index
    %c0_120 = arith.constant 0 : index
    %301 = vector.load %arg2[%c1024, %c0_120] : memref<1408x128xf32, #tpu.memory_space<vmem>>, vector<32x32xf32>
    %cst_121 = arith.constant dense<0.000000e+00> : vector<32x32xf32>
    %302 = tpu.matmul %300, %301, %cst_121 {dimension_numbers = #tpu.dot_dimension_numbers<[1], [0], [0], [1], [0, 0, 1, 1], [], []>} : vector<32x32xf32>, vector<32x32xf32>, vector<32x32xf32> -> vector<32x32xf32>
    %c1056 = arith.constant 1056 : index
    %c0_122 = arith.constant 0 : index
    %303 = vector.load %arg2[%c1056, %c0_122] : memref<1408x128xf32, #tpu.memory_space<vmem>>, vector<1x32xf32>
    %304 = vector.broadcast %303 : vector<1x32xf32> to vector<32x32xf32>
    %305 = arith.addf %302, %304 : vector<32x32xf32>
    %306 = arith.addf %283, %305 : vector<32x32xf32>
    %c960 = arith.constant 960 : index
    %c0_123 = arith.constant 0 : index
    %307 = vector.load %arg2[%c960, %c0_123] : memref<1408x128xf32, #tpu.memory_space<vmem>>, vector<32x32xf32>
    %c992 = arith.constant 992 : index
    %c0_124 = arith.constant 0 : index
    %308 = vector.load %arg2[%c992, %c0_124] : memref<1408x128xf32, #tpu.memory_space<vmem>>, vector<32x1xf32>
    %cst_125 = arith.constant dense<0.000000e+00> : vector<32x32xf32>
    %309 = tpu.matmul %306, %1, %cst_125 {dimension_numbers = #tpu.dot_dimension_numbers<[1], [0], [0], [1], [0, 0, 1, 1], [], []>} : vector<32x32xf32>, vector<32x32xf32>, vector<32x32xf32> -> vector<32x32xf32>
    %310 = arith.subf %306, %309 : vector<32x32xf32>
    %311 = arith.mulf %310, %310 : vector<32x32xf32>
    %cst_126 = arith.constant dense<0.000000e+00> : vector<32x32xf32>
    %312 = tpu.matmul %311, %1, %cst_126 {dimension_numbers = #tpu.dot_dimension_numbers<[1], [0], [0], [1], [0, 0, 1, 1], [], []>} : vector<32x32xf32>, vector<32x32xf32>, vector<32x32xf32> -> vector<32x32xf32>
    %cst_127 = arith.constant 1.000000e-03 : f32
    %313 = vector.broadcast %cst_127 : f32 to vector<32x32xf32>
    %314 = arith.addf %312, %313 : vector<32x32xf32>
    %315 = math.rsqrt %314 : vector<32x32xf32>
    %316 = arith.mulf %310, %315 : vector<32x32xf32>
    %cst_128 = arith.constant dense<0.000000e+00> : vector<32xf32>
    %317 = vector.multi_reduction <add>, %316, %cst_128 [1] : vector<32x32xf32> to vector<32xf32>
    %318 = vector.shape_cast %317 : vector<32xf32> to vector<32x1xf32>
    %cst_129 = arith.constant 3.200000e+01 : f32
    %319 = vector.broadcast %cst_129 : f32 to vector<32x1xf32>
    %320 = arith.divf %318, %319 : vector<32x1xf32>
    %321 = vector.broadcast %320 : vector<32x1xf32> to vector<32x32xf32>
    %322 = arith.subf %316, %321 : vector<32x32xf32>
    %323 = arith.mulf %322, %322 : vector<32x32xf32>
    %cst_130 = arith.constant dense<0.000000e+00> : vector<32xf32>
    %324 = vector.multi_reduction <add>, %323, %cst_130 [1] : vector<32x32xf32> to vector<32xf32>
    %325 = vector.shape_cast %324 : vector<32xf32> to vector<32x1xf32>
    %cst_131 = arith.constant 3.200000e+01 : f32
    %326 = vector.broadcast %cst_131 : f32 to vector<32x1xf32>
    %327 = arith.divf %325, %326 : vector<32x1xf32>
    %cst_132 = arith.constant 9.99999974E-6 : f32
    %328 = vector.broadcast %cst_132 : f32 to vector<32x1xf32>
    %329 = arith.addf %327, %328 : vector<32x1xf32>
    %330 = math.rsqrt %329 : vector<32x1xf32>
    %331 = vector.broadcast %330 : vector<32x1xf32> to vector<32x32xf32>
    %332 = arith.mulf %322, %331 : vector<32x32xf32>
    %cst_133 = arith.constant 0.000000e+00 : f32
    %333 = vector.broadcast %cst_133 : f32 to vector<32x32xf32>
    %334 = arith.maximumf %332, %333 : vector<32x32xf32>
    %cst_134 = arith.constant dense<0.000000e+00> : vector<32x32xf32>
    %335 = tpu.matmul %307, %334, %cst_134 {dimension_numbers = #tpu.dot_dimension_numbers<[1], [0], [0], [1], [0, 0, 1, 1], [], []>} : vector<32x32xf32>, vector<32x32xf32>, vector<32x32xf32> -> vector<32x32xf32>
    %336 = vector.broadcast %308 : vector<32x1xf32> to vector<32x32xf32>
    %337 = arith.addf %335, %336 : vector<32x32xf32>
    %338 = arith.addf %337, %252 : vector<32x32xf32>
    %c864 = arith.constant 864 : index
    %c0_135 = arith.constant 0 : index
    %339 = vector.load %arg2[%c864, %c0_135] : memref<1408x128xf32, #tpu.memory_space<vmem>>, vector<16x32xf32>
    %c880 = arith.constant 880 : index
    %c0_136 = arith.constant 0 : index
    %340 = vector.load %arg2[%c880, %c0_136] : memref<1408x128xf32, #tpu.memory_space<vmem>>, vector<16x1xf32>
    %cst_137 = arith.constant dense<0.000000e+00> : vector<32x128xf32>
    %341 = tpu.matmul %192, %0, %cst_137 {dimension_numbers = #tpu.dot_dimension_numbers<[1], [0], [0], [1], [0, 0, 1, 1], [], []>} : vector<32x128xf32>, vector<128x128xf32>, vector<32x128xf32> -> vector<32x128xf32>
    %342 = arith.subf %192, %341 : vector<32x128xf32>
    %343 = arith.mulf %342, %342 : vector<32x128xf32>
    %cst_138 = arith.constant dense<0.000000e+00> : vector<32x128xf32>
    %344 = tpu.matmul %343, %0, %cst_138 {dimension_numbers = #tpu.dot_dimension_numbers<[1], [0], [0], [1], [0, 0, 1, 1], [], []>} : vector<32x128xf32>, vector<128x128xf32>, vector<32x128xf32> -> vector<32x128xf32>
    %cst_139 = arith.constant 1.000000e-03 : f32
    %345 = vector.broadcast %cst_139 : f32 to vector<32x128xf32>
    %346 = arith.addf %344, %345 : vector<32x128xf32>
    %347 = math.rsqrt %346 : vector<32x128xf32>
    %348 = arith.mulf %342, %347 : vector<32x128xf32>
    %cst_140 = arith.constant dense<0.000000e+00> : vector<32xf32>
    %349 = vector.multi_reduction <add>, %348, %cst_140 [1] : vector<32x128xf32> to vector<32xf32>
    %350 = vector.shape_cast %349 : vector<32xf32> to vector<32x1xf32>
    %cst_141 = arith.constant 1.280000e+02 : f32
    %351 = vector.broadcast %cst_141 : f32 to vector<32x1xf32>
    %352 = arith.divf %350, %351 : vector<32x1xf32>
    %353 = vector.broadcast %352 : vector<32x1xf32> to vector<32x128xf32>
    %354 = arith.subf %348, %353 : vector<32x128xf32>
    %355 = arith.mulf %354, %354 : vector<32x128xf32>
    %cst_142 = arith.constant dense<0.000000e+00> : vector<32xf32>
    %356 = vector.multi_reduction <add>, %355, %cst_142 [1] : vector<32x128xf32> to vector<32xf32>
    %357 = vector.shape_cast %356 : vector<32xf32> to vector<32x1xf32>
    %cst_143 = arith.constant 1.280000e+02 : f32
    %358 = vector.broadcast %cst_143 : f32 to vector<32x1xf32>
    %359 = arith.divf %357, %358 : vector<32x1xf32>
    %cst_144 = arith.constant 9.99999974E-6 : f32
    %360 = vector.broadcast %cst_144 : f32 to vector<32x1xf32>
    %361 = arith.addf %359, %360 : vector<32x1xf32>
    %362 = math.rsqrt %361 : vector<32x1xf32>
    %363 = vector.broadcast %362 : vector<32x1xf32> to vector<32x128xf32>
    %364 = arith.mulf %354, %363 : vector<32x128xf32>
    %cst_145 = arith.constant 0.000000e+00 : f32
    %365 = vector.broadcast %cst_145 : f32 to vector<32x128xf32>
    %366 = arith.maximumf %364, %365 : vector<32x128xf32>
    %cst_146 = arith.constant dense<0.000000e+00> : vector<16x128xf32>
    %367 = tpu.matmul %339, %366, %cst_146 {dimension_numbers = #tpu.dot_dimension_numbers<[1], [0], [0], [1], [0, 0, 1, 1], [], []>} : vector<16x32xf32>, vector<32x128xf32>, vector<16x128xf32> -> vector<16x128xf32>
    %368 = vector.broadcast %340 : vector<16x1xf32> to vector<16x128xf32>
    %369 = arith.addf %367, %368 : vector<16x128xf32>
    %cst_147 = arith.constant dense<0xFF800000> : vector<128xf32>
    %370 = vector.multi_reduction <maximumf>, %369, %cst_147 [0] : vector<16x128xf32> to vector<128xf32>
    %371 = vector.shape_cast %370 : vector<128xf32> to vector<1x128xf32>
    %372 = vector.broadcast %371 : vector<1x128xf32> to vector<16x128xf32>
    %373 = arith.subf %369, %372 : vector<16x128xf32>
    %374 = math.exp %373 : vector<16x128xf32>
    %cst_148 = arith.constant dense<0.000000e+00> : vector<128xf32>
    %375 = vector.multi_reduction <add>, %374, %cst_148 [0] : vector<16x128xf32> to vector<128xf32>
    %376 = vector.shape_cast %375 : vector<128xf32> to vector<1x128xf32>
    %377 = tpu.reciprocal %376 {approx = true} : vector<1x128xf32> -> vector<1x128xf32>
    %378 = vector.broadcast %377 : vector<1x128xf32> to vector<16x128xf32>
    %379 = arith.mulf %374, %378 : vector<16x128xf32>
    %380 = vector.extract_strided_slice %338 {offsets = [0, 0], sizes = [32, 16], strides = [1, 1]} : vector<32x32xf32> to vector<32x16xf32>
    %381 = vector.extract_strided_slice %379 {offsets = [0, 0], sizes = [16, 64], strides = [1, 1]} : vector<16x128xf32> to vector<16x64xf32>
    %cst_149 = arith.constant dense<0.000000e+00> : vector<32x64xf32>
    %382 = tpu.matmul %380, %381, %cst_149 {dimension_numbers = #tpu.dot_dimension_numbers<[1], [0], [0], [1], [0, 0, 1, 1], [], []>} : vector<32x16xf32>, vector<16x64xf32>, vector<32x64xf32> -> vector<32x64xf32>
    %c0_150 = arith.constant 0 : index
    %c0_151 = arith.constant 0 : index
    %383 = vector.load %arg5[%c0_150, %c0_151] : memref<32x128xf32, #tpu.memory_space<vmem>>, vector<32x64xf32>
    tpu.vector_store %arg5[%c0_150, %c0_151], %382 {strides = array<i32>} : memref<32x128xf32, #tpu.memory_space<vmem>>, vector<32x64xf32>,
    %384 = vector.extract_strided_slice %338 {offsets = [0, 16], sizes = [32, 16], strides = [1, 1]} : vector<32x32xf32> to vector<32x16xf32>
    %385 = vector.extract_strided_slice %379 {offsets = [0, 64], sizes = [16, 64], strides = [1, 1]} : vector<16x128xf32> to vector<16x64xf32>
    %cst_152 = arith.constant dense<0.000000e+00> : vector<32x64xf32>
    %386 = tpu.matmul %384, %385, %cst_152 {dimension_numbers = #tpu.dot_dimension_numbers<[1], [0], [0], [1], [0, 0, 1, 1], [], []>} : vector<32x16xf32>, vector<16x64xf32>, vector<32x64xf32> -> vector<32x64xf32>
    %c0_153 = arith.constant 0 : index
    %c64_154 = arith.constant 64 : index
    %387 = vector.load %arg5[%c0_153, %c64_154] : memref<32x128xf32, #tpu.memory_space<vmem>>, vector<32x64xf32>
    tpu.vector_store %arg5[%c0_153, %c64_154], %386 {strides = array<i32>} : memref<32x128xf32, #tpu.memory_space<vmem>>, vector<32x64xf32>,
    %c0_155 = arith.constant 0 : index
    %c0_156 = arith.constant 0 : index
    %388 = vector.load %arg5[%c0_155, %c0_156] : memref<32x128xf32, #tpu.memory_space<vmem>>, vector<32x128xf32>
    %389 = arith.addf %192, %388 : vector<32x128xf32>
    %c160 = arith.constant 160 : index
    %c0_157 = arith.constant 0 : index
    %390 = vector.load %arg2[%c160, %c0_157] : memref<1408x128xf32, #tpu.memory_space<vmem>>, vector<16x32xf32>
    %cst_158 = arith.constant dense<0.000000e+00> : vector<16x128xf32>
    %391 = tpu.matmul %390, %389, %cst_158 {dimension_numbers = #tpu.dot_dimension_numbers<[1], [0], [0], [1], [0, 0, 1, 1], [], []>} : vector<16x32xf32>, vector<32x128xf32>, vector<16x128xf32> -> vector<16x128xf32>
    %c176 = arith.constant 176 : index
    %c0_159 = arith.constant 0 : index
    %392 = vector.load %arg2[%c176, %c0_159] : memref<1408x128xf32, #tpu.memory_space<vmem>>, vector<16x1xf32>
    %393 = vector.broadcast %392 : vector<16x1xf32> to vector<16x128xf32>
    %394 = arith.addf %391, %393 : vector<16x128xf32>
    %c192 = arith.constant 192 : index
    %c0_160 = arith.constant 0 : index
    %395 = vector.load %arg2[%c192, %c0_160] : memref<1408x128xf32, #tpu.memory_space<vmem>>, vector<16x16xf32>
    %cst_161 = arith.constant dense<0.000000e+00> : vector<16x128xf32>
    %396 = tpu.matmul %395, %394, %cst_161 {dimension_numbers = #tpu.dot_dimension_numbers<[1], [0], [0], [1], [0, 0, 1, 1], [], []>} : vector<16x16xf32>, vector<16x128xf32>, vector<16x128xf32> -> vector<16x128xf32>
    %cst_162 = arith.constant dense<0.000000e+00> : vector<16x1024xf32>
    %397 = tpu.matmul %396, %5, %cst_162 {dimension_numbers = #tpu.dot_dimension_numbers<[1], [0], [0], [1], [0, 0, 1, 1], [], []>} : vector<16x128xf32>, vector<128x1024xf32>, vector<16x1024xf32> -> vector<16x1024xf32>
    %c208 = arith.constant 208 : index
    %c0_163 = arith.constant 0 : index
    %398 = vector.load %arg2[%c208, %c0_163] : memref<1408x128xf32, #tpu.memory_space<vmem>>, vector<16x1xf32>
    %399 = vector.broadcast %398 : vector<16x1xf32> to vector<16x1024xf32>
    %400 = arith.addf %397, %399 : vector<16x1024xf32>
    %cst_164 = arith.constant dense<0.000000e+00> : vector<16xf32>
    %401 = vector.multi_reduction <add>, %400, %cst_164 [1] : vector<16x1024xf32> to vector<16xf32>
    %402 = vector.shape_cast %401 : vector<16xf32> to vector<16x1xf32>
    %cst_165 = arith.constant 1.024000e+03 : f32
    %403 = vector.broadcast %cst_165 : f32 to vector<16x1xf32>
    %404 = arith.divf %402, %403 : vector<16x1xf32>
    %405 = vector.broadcast %404 : vector<16x1xf32> to vector<16x1024xf32>
    %406 = arith.subf %400, %405 : vector<16x1024xf32>
    %407 = arith.mulf %406, %406 : vector<16x1024xf32>
    %cst_166 = arith.constant dense<0.000000e+00> : vector<16xf32>
    %408 = vector.multi_reduction <add>, %407, %cst_166 [1] : vector<16x1024xf32> to vector<16xf32>
    %409 = vector.shape_cast %408 : vector<16xf32> to vector<16x1xf32>
    %cst_167 = arith.constant 1.024000e+03 : f32
    %410 = vector.broadcast %cst_167 : f32 to vector<16x1xf32>
    %411 = arith.divf %409, %410 : vector<16x1xf32>
    %cst_168 = arith.constant 9.99999974E-6 : f32
    %412 = vector.broadcast %cst_168 : f32 to vector<16x1xf32>
    %413 = arith.addf %411, %412 : vector<16x1xf32>
    %414 = math.rsqrt %413 : vector<16x1xf32>
    %415 = vector.broadcast %414 : vector<16x1xf32> to vector<16x1024xf32>
    %416 = arith.mulf %406, %415 : vector<16x1024xf32>
    %cst_169 = arith.constant 0.000000e+00 : f32
    %417 = vector.broadcast %cst_169 : f32 to vector<16x1024xf32>
    %418 = arith.maximumf %416, %417 : vector<16x1024xf32>
    %c224 = arith.constant 224 : index
    %c0_170 = arith.constant 0 : index
    %419 = vector.load %arg2[%c224, %c0_170] : memref<1408x128xf32, #tpu.memory_space<vmem>>, vector<16x16xf32>
    %cst_171 = arith.constant dense<0.000000e+00> : vector<16x1024xf32>
    %420 = tpu.matmul %419, %418, %cst_171 {dimension_numbers = #tpu.dot_dimension_numbers<[1], [0], [0], [1], [0, 0, 1, 1], [], []>} : vector<16x16xf32>, vector<16x1024xf32>, vector<16x1024xf32> -> vector<16x1024xf32>
    %c240 = arith.constant 240 : index
    %c0_172 = arith.constant 0 : index
    %421 = vector.load %arg2[%c240, %c0_172] : memref<1408x128xf32, #tpu.memory_space<vmem>>, vector<16x1xf32>
    %422 = vector.broadcast %421 : vector<16x1xf32> to vector<16x1024xf32>
    %423 = arith.addf %420, %422 : vector<16x1024xf32>
    %424 = vector.extract_strided_slice %423 {offsets = [0, 0], sizes = [16, 128], strides = [1, 1]} : vector<16x1024xf32> to vector<16x128xf32>
    %425 = vector.extract_strided_slice %423 {offsets = [0, 128], sizes = [16, 128], strides = [1, 1]} : vector<16x1024xf32> to vector<16x128xf32>
    %426 = arith.maximumf %424, %425 : vector<16x128xf32>
    %427 = vector.extract_strided_slice %423 {offsets = [0, 256], sizes = [16, 128], strides = [1, 1]} : vector<16x1024xf32> to vector<16x128xf32>
    %428 = arith.maximumf %426, %427 : vector<16x128xf32>
    %429 = vector.extract_strided_slice %423 {offsets = [0, 384], sizes = [16, 128], strides = [1, 1]} : vector<16x1024xf32> to vector<16x128xf32>
    %430 = arith.maximumf %428, %429 : vector<16x128xf32>
    %431 = vector.extract_strided_slice %423 {offsets = [0, 512], sizes = [16, 128], strides = [1, 1]} : vector<16x1024xf32> to vector<16x128xf32>
    %432 = arith.maximumf %430, %431 : vector<16x128xf32>
    %433 = vector.extract_strided_slice %423 {offsets = [0, 640], sizes = [16, 128], strides = [1, 1]} : vector<16x1024xf32> to vector<16x128xf32>
    %434 = arith.maximumf %432, %433 : vector<16x128xf32>
    %435 = vector.extract_strided_slice %423 {offsets = [0, 768], sizes = [16, 128], strides = [1, 1]} : vector<16x1024xf32> to vector<16x128xf32>
    %436 = arith.maximumf %434, %435 : vector<16x128xf32>
    %437 = vector.extract_strided_slice %423 {offsets = [0, 896], sizes = [16, 128], strides = [1, 1]} : vector<16x1024xf32> to vector<16x128xf32>
    %438 = arith.maximumf %436, %437 : vector<16x128xf32>
    %c256 = arith.constant 256 : index
    %c0_173 = arith.constant 0 : index
    %439 = vector.load %arg2[%c256, %c0_173] : memref<1408x128xf32, #tpu.memory_space<vmem>>, vector<32x16xf32>
    %cst_174 = arith.constant dense<0.000000e+00> : vector<32x128xf32>
    %440 = tpu.matmul %439, %438, %cst_174 {dimension_numbers = #tpu.dot_dimension_numbers<[1], [0], [0], [1], [0, 0, 1, 1], [], []>} : vector<32x16xf32>, vector<16x128xf32>, vector<32x128xf32> -> vector<32x128xf32>
    %c288 = arith.constant 288 : index
    %c0_175 = arith.constant 0 : index
    %441 = vector.load %arg2[%c288, %c0_175] : memref<1408x128xf32, #tpu.memory_space<vmem>>, vector<32x1xf32>
    %442 = vector.broadcast %441 : vector<32x1xf32> to vector<32x128xf32>
    %443 = arith.addf %440, %442 : vector<32x128xf32>
    %444 = arith.addf %389, %443 : vector<32x128xf32>
    %c576 = arith.constant 576 : index
    %c0_176 = arith.constant 0 : index
    %445 = vector.load %arg2[%c576, %c0_176] : memref<1408x128xf32, #tpu.memory_space<vmem>>, vector<32x32xf32>
    %c608 = arith.constant 608 : index
    %c0_177 = arith.constant 0 : index
    %446 = vector.load %arg2[%c608, %c0_177] : memref<1408x128xf32, #tpu.memory_space<vmem>>, vector<32x1xf32>
    %cst_178 = arith.constant dense<0.000000e+00> : vector<32x128xf32>
    %447 = tpu.matmul %444, %0, %cst_178 {dimension_numbers = #tpu.dot_dimension_numbers<[1], [0], [0], [1], [0, 0, 1, 1], [], []>} : vector<32x128xf32>, vector<128x128xf32>, vector<32x128xf32> -> vector<32x128xf32>
    %448 = arith.subf %444, %447 : vector<32x128xf32>
    %449 = arith.mulf %448, %448 : vector<32x128xf32>
    %cst_179 = arith.constant dense<0.000000e+00> : vector<32x128xf32>
    %450 = tpu.matmul %449, %0, %cst_179 {dimension_numbers = #tpu.dot_dimension_numbers<[1], [0], [0], [1], [0, 0, 1, 1], [], []>} : vector<32x128xf32>, vector<128x128xf32>, vector<32x128xf32> -> vector<32x128xf32>
    %cst_180 = arith.constant 1.000000e-03 : f32
    %451 = vector.broadcast %cst_180 : f32 to vector<32x128xf32>
    %452 = arith.addf %450, %451 : vector<32x128xf32>
    %453 = math.rsqrt %452 : vector<32x128xf32>
    %454 = arith.mulf %448, %453 : vector<32x128xf32>
    %cst_181 = arith.constant dense<0.000000e+00> : vector<32xf32>
    %455 = vector.multi_reduction <add>, %454, %cst_181 [1] : vector<32x128xf32> to vector<32xf32>
    %456 = vector.shape_cast %455 : vector<32xf32> to vector<32x1xf32>
    %cst_182 = arith.constant 1.280000e+02 : f32
    %457 = vector.broadcast %cst_182 : f32 to vector<32x1xf32>
    %458 = arith.divf %456, %457 : vector<32x1xf32>
    %459 = vector.broadcast %458 : vector<32x1xf32> to vector<32x128xf32>
    %460 = arith.subf %454, %459 : vector<32x128xf32>
    %461 = arith.mulf %460, %460 : vector<32x128xf32>
    %cst_183 = arith.constant dense<0.000000e+00> : vector<32xf32>
    %462 = vector.multi_reduction <add>, %461, %cst_183 [1] : vector<32x128xf32> to vector<32xf32>
    %463 = vector.shape_cast %462 : vector<32xf32> to vector<32x1xf32>
    %cst_184 = arith.constant 1.280000e+02 : f32
    %464 = vector.broadcast %cst_184 : f32 to vector<32x1xf32>
    %465 = arith.divf %463, %464 : vector<32x1xf32>
    %cst_185 = arith.constant 9.99999974E-6 : f32
    %466 = vector.broadcast %cst_185 : f32 to vector<32x1xf32>
    %467 = arith.addf %465, %466 : vector<32x1xf32>
    %468 = math.rsqrt %467 : vector<32x1xf32>
    %469 = vector.broadcast %468 : vector<32x1xf32> to vector<32x128xf32>
    %470 = arith.mulf %460, %469 : vector<32x128xf32>
    %cst_186 = arith.constant 0.000000e+00 : f32
    %471 = vector.broadcast %cst_186 : f32 to vector<32x128xf32>
    %472 = arith.maximumf %470, %471 : vector<32x128xf32>
    %cst_187 = arith.constant dense<0.000000e+00> : vector<32x128xf32>
    %473 = tpu.matmul %445, %472, %cst_187 {dimension_numbers = #tpu.dot_dimension_numbers<[1], [0], [0], [1], [0, 0, 1, 1], [], []>} : vector<32x32xf32>, vector<32x128xf32>, vector<32x128xf32> -> vector<32x128xf32>
    %474 = vector.broadcast %446 : vector<32x1xf32> to vector<32x128xf32>
    %475 = arith.addf %473, %474 : vector<32x128xf32>
    %c640 = arith.constant 640 : index
    %c0_188 = arith.constant 0 : index
    %476 = vector.load %arg2[%c640, %c0_188] : memref<1408x128xf32, #tpu.memory_space<vmem>>, vector<32x32xf32>
    %c672 = arith.constant 672 : index
    %c0_189 = arith.constant 0 : index
    %477 = vector.load %arg2[%c672, %c0_189] : memref<1408x128xf32, #tpu.memory_space<vmem>>, vector<32x1xf32>
    %cst_190 = arith.constant dense<0.000000e+00> : vector<32x128xf32>
    %478 = tpu.matmul %475, %0, %cst_190 {dimension_numbers = #tpu.dot_dimension_numbers<[1], [0], [0], [1], [0, 0, 1, 1], [], []>} : vector<32x128xf32>, vector<128x128xf32>, vector<32x128xf32> -> vector<32x128xf32>
    %479 = arith.subf %475, %478 : vector<32x128xf32>
    %480 = arith.mulf %479, %479 : vector<32x128xf32>
    %cst_191 = arith.constant dense<0.000000e+00> : vector<32x128xf32>
    %481 = tpu.matmul %480, %0, %cst_191 {dimension_numbers = #tpu.dot_dimension_numbers<[1], [0], [0], [1], [0, 0, 1, 1], [], []>} : vector<32x128xf32>, vector<128x128xf32>, vector<32x128xf32> -> vector<32x128xf32>
    %cst_192 = arith.constant 1.000000e-03 : f32
    %482 = vector.broadcast %cst_192 : f32 to vector<32x128xf32>
    %483 = arith.addf %481, %482 : vector<32x128xf32>
    %484 = math.rsqrt %483 : vector<32x128xf32>
    %485 = arith.mulf %479, %484 : vector<32x128xf32>
    %cst_193 = arith.constant dense<0.000000e+00> : vector<32xf32>
    %486 = vector.multi_reduction <add>, %485, %cst_193 [1] : vector<32x128xf32> to vector<32xf32>
    %487 = vector.shape_cast %486 : vector<32xf32> to vector<32x1xf32>
    %cst_194 = arith.constant 1.280000e+02 : f32
    %488 = vector.broadcast %cst_194 : f32 to vector<32x1xf32>
    %489 = arith.divf %487, %488 : vector<32x1xf32>
    %490 = vector.broadcast %489 : vector<32x1xf32> to vector<32x128xf32>
    %491 = arith.subf %485, %490 : vector<32x128xf32>
    %492 = arith.mulf %491, %491 : vector<32x128xf32>
    %cst_195 = arith.constant dense<0.000000e+00> : vector<32xf32>
    %493 = vector.multi_reduction <add>, %492, %cst_195 [1] : vector<32x128xf32> to vector<32xf32>
    %494 = vector.shape_cast %493 : vector<32xf32> to vector<32x1xf32>
    %cst_196 = arith.constant 1.280000e+02 : f32
    %495 = vector.broadcast %cst_196 : f32 to vector<32x1xf32>
    %496 = arith.divf %494, %495 : vector<32x1xf32>
    %cst_197 = arith.constant 9.99999974E-6 : f32
    %497 = vector.broadcast %cst_197 : f32 to vector<32x1xf32>
    %498 = arith.addf %496, %497 : vector<32x1xf32>
    %499 = math.rsqrt %498 : vector<32x1xf32>
    %500 = vector.broadcast %499 : vector<32x1xf32> to vector<32x128xf32>
    %501 = arith.mulf %491, %500 : vector<32x128xf32>
    %cst_198 = arith.constant 0.000000e+00 : f32
    %502 = vector.broadcast %cst_198 : f32 to vector<32x128xf32>
    %503 = arith.maximumf %501, %502 : vector<32x128xf32>
    %cst_199 = arith.constant dense<0.000000e+00> : vector<32x128xf32>
    %504 = tpu.matmul %476, %503, %cst_199 {dimension_numbers = #tpu.dot_dimension_numbers<[1], [0], [0], [1], [0, 0, 1, 1], [], []>} : vector<32x32xf32>, vector<32x128xf32>, vector<32x128xf32> -> vector<32x128xf32>
    %505 = vector.broadcast %477 : vector<32x1xf32> to vector<32x128xf32>
    %506 = arith.addf %504, %505 : vector<32x128xf32>
    %507 = arith.addf %444, %506 : vector<32x128xf32>
    %cst_200 = arith.constant dense<0.000000e+00> : vector<32x16xf32>
    %508 = tpu.matmul %507, %2, %cst_200 {dimension_numbers = #tpu.dot_dimension_numbers<[1], [0], [0], [1], [0, 0, 1, 1], [], []>} : vector<32x128xf32>, vector<128x16xf32>, vector<32x16xf32> -> vector<32x16xf32>
    %509 = vector.broadcast %4 : vector<1x16xf32> to vector<32x16xf32>
    %510 = arith.mulf %508, %509 : vector<32x16xf32>
    %cst_201 = arith.constant dense<0.000000e+00> : vector<32x128xf32>
    %511 = tpu.matmul %510, %3, %cst_201 {dimension_numbers = #tpu.dot_dimension_numbers<[1], [0], [0], [1], [0, 0, 1, 1], [], []>} : vector<32x16xf32>, vector<16x128xf32>, vector<32x128xf32> -> vector<32x128xf32>
    %512 = arith.subf %511, %507 : vector<32x128xf32>
    %c704 = arith.constant 704 : index
    %c0_202 = arith.constant 0 : index
    %513 = vector.load %arg2[%c704, %c0_202] : memref<1408x128xf32, #tpu.memory_space<vmem>>, vector<32x32xf32>
    %c736 = arith.constant 736 : index
    %c0_203 = arith.constant 0 : index
    %514 = vector.load %arg2[%c736, %c0_203] : memref<1408x128xf32, #tpu.memory_space<vmem>>, vector<32x1xf32>
    %cst_204 = arith.constant dense<0.000000e+00> : vector<32x128xf32>
    %515 = tpu.matmul %512, %0, %cst_204 {dimension_numbers = #tpu.dot_dimension_numbers<[1], [0], [0], [1], [0, 0, 1, 1], [], []>} : vector<32x128xf32>, vector<128x128xf32>, vector<32x128xf32> -> vector<32x128xf32>
    %516 = arith.subf %512, %515 : vector<32x128xf32>
    %517 = arith.mulf %516, %516 : vector<32x128xf32>
    %cst_205 = arith.constant dense<0.000000e+00> : vector<32x128xf32>
    %518 = tpu.matmul %517, %0, %cst_205 {dimension_numbers = #tpu.dot_dimension_numbers<[1], [0], [0], [1], [0, 0, 1, 1], [], []>} : vector<32x128xf32>, vector<128x128xf32>, vector<32x128xf32> -> vector<32x128xf32>
    %cst_206 = arith.constant 9.99999974E-6 : f32
    %519 = vector.broadcast %cst_206 : f32 to vector<32x128xf32>
    %520 = arith.addf %518, %519 : vector<32x128xf32>
    %521 = math.rsqrt %520 : vector<32x128xf32>
    %522 = arith.mulf %516, %521 : vector<32x128xf32>
    %cst_207 = arith.constant dense<0.000000e+00> : vector<32xf32>
    %523 = vector.multi_reduction <add>, %522, %cst_207 [1] : vector<32x128xf32> to vector<32xf32>
    %524 = vector.shape_cast %523 : vector<32xf32> to vector<32x1xf32>
    %cst_208 = arith.constant 1.280000e+02 : f32
    %525 = vector.broadcast %cst_208 : f32 to vector<32x1xf32>
    %526 = arith.divf %524, %525 : vector<32x1xf32>
    %527 = vector.broadcast %526 : vector<32x1xf32> to vector<32x128xf32>
    %528 = arith.subf %522, %527 : vector<32x128xf32>
    %529 = arith.mulf %528, %528 : vector<32x128xf32>
    %cst_209 = arith.constant dense<0.000000e+00> : vector<32xf32>
    %530 = vector.multi_reduction <add>, %529, %cst_209 [1] : vector<32x128xf32> to vector<32xf32>
    %531 = vector.shape_cast %530 : vector<32xf32> to vector<32x1xf32>
    %cst_210 = arith.constant 1.280000e+02 : f32
    %532 = vector.broadcast %cst_210 : f32 to vector<32x1xf32>
    %533 = arith.divf %531, %532 : vector<32x1xf32>
    %cst_211 = arith.constant 9.99999974E-6 : f32
    %534 = vector.broadcast %cst_211 : f32 to vector<32x1xf32>
    %535 = arith.addf %533, %534 : vector<32x1xf32>
    %536 = math.rsqrt %535 : vector<32x1xf32>
    %537 = vector.broadcast %536 : vector<32x1xf32> to vector<32x128xf32>
    %538 = arith.mulf %528, %537 : vector<32x128xf32>
    %cst_212 = arith.constant 0.000000e+00 : f32
    %539 = vector.broadcast %cst_212 : f32 to vector<32x128xf32>
    %540 = arith.maximumf %538, %539 : vector<32x128xf32>
    %cst_213 = arith.constant dense<0.000000e+00> : vector<32x128xf32>
    %541 = tpu.matmul %513, %540, %cst_213 {dimension_numbers = #tpu.dot_dimension_numbers<[1], [0], [0], [1], [0, 0, 1, 1], [], []>} : vector<32x32xf32>, vector<32x128xf32>, vector<32x128xf32> -> vector<32x128xf32>
    %542 = vector.broadcast %514 : vector<32x1xf32> to vector<32x128xf32>
    %543 = arith.addf %541, %542 : vector<32x128xf32>
    %c768 = arith.constant 768 : index
    %c0_214 = arith.constant 0 : index
    %544 = vector.load %arg2[%c768, %c0_214] : memref<1408x128xf32, #tpu.memory_space<vmem>>, vector<32x32xf32>
    %c800 = arith.constant 800 : index
    %c0_215 = arith.constant 0 : index
    %545 = vector.load %arg2[%c800, %c0_215] : memref<1408x128xf32, #tpu.memory_space<vmem>>, vector<32x1xf32>
    %cst_216 = arith.constant dense<0.000000e+00> : vector<32x128xf32>
    %546 = tpu.matmul %543, %0, %cst_216 {dimension_numbers = #tpu.dot_dimension_numbers<[1], [0], [0], [1], [0, 0, 1, 1], [], []>} : vector<32x128xf32>, vector<128x128xf32>, vector<32x128xf32> -> vector<32x128xf32>
    %547 = arith.subf %543, %546 : vector<32x128xf32>
    %548 = arith.mulf %547, %547 : vector<32x128xf32>
    %cst_217 = arith.constant dense<0.000000e+00> : vector<32x128xf32>
    %549 = tpu.matmul %548, %0, %cst_217 {dimension_numbers = #tpu.dot_dimension_numbers<[1], [0], [0], [1], [0, 0, 1, 1], [], []>} : vector<32x128xf32>, vector<128x128xf32>, vector<32x128xf32> -> vector<32x128xf32>
    %cst_218 = arith.constant 9.99999974E-6 : f32
    %550 = vector.broadcast %cst_218 : f32 to vector<32x128xf32>
    %551 = arith.addf %549, %550 : vector<32x128xf32>
    %552 = math.rsqrt %551 : vector<32x128xf32>
    %553 = arith.mulf %547, %552 : vector<32x128xf32>
    %cst_219 = arith.constant dense<0.000000e+00> : vector<32xf32>
    %554 = vector.multi_reduction <add>, %553, %cst_219 [1] : vector<32x128xf32> to vector<32xf32>
    %555 = vector.shape_cast %554 : vector<32xf32> to vector<32x1xf32>
    %cst_220 = arith.constant 1.280000e+02 : f32
    %556 = vector.broadcast %cst_220 : f32 to vector<32x1xf32>
    %557 = arith.divf %555, %556 : vector<32x1xf32>
    %558 = vector.broadcast %557 : vector<32x1xf32> to vector<32x128xf32>
    %559 = arith.subf %553, %558 : vector<32x128xf32>
    %560 = arith.mulf %559, %559 : vector<32x128xf32>
    %cst_221 = arith.constant dense<0.000000e+00> : vector<32xf32>
    %561 = vector.multi_reduction <add>, %560, %cst_221 [1] : vector<32x128xf32> to vector<32xf32>
    %562 = vector.shape_cast %561 : vector<32xf32> to vector<32x1xf32>
    %cst_222 = arith.constant 1.280000e+02 : f32
    %563 = vector.broadcast %cst_222 : f32 to vector<32x1xf32>
    %564 = arith.divf %562, %563 : vector<32x1xf32>
    %cst_223 = arith.constant 9.99999974E-6 : f32
    %565 = vector.broadcast %cst_223 : f32 to vector<32x1xf32>
    %566 = arith.addf %564, %565 : vector<32x1xf32>
    %567 = math.rsqrt %566 : vector<32x1xf32>
    %568 = vector.broadcast %567 : vector<32x1xf32> to vector<32x128xf32>
    %569 = arith.mulf %559, %568 : vector<32x128xf32>
    %cst_224 = arith.constant 0.000000e+00 : f32
    %570 = vector.broadcast %cst_224 : f32 to vector<32x128xf32>
    %571 = arith.maximumf %569, %570 : vector<32x128xf32>
    %cst_225 = arith.constant dense<0.000000e+00> : vector<32x128xf32>
    %572 = tpu.matmul %544, %571, %cst_225 {dimension_numbers = #tpu.dot_dimension_numbers<[1], [0], [0], [1], [0, 0, 1, 1], [], []>} : vector<32x32xf32>, vector<32x128xf32>, vector<32x128xf32> -> vector<32x128xf32>
    %573 = vector.broadcast %545 : vector<32x1xf32> to vector<32x128xf32>
    %574 = arith.addf %572, %573 : vector<32x128xf32>
    %575 = arith.addf %507, %574 : vector<32x128xf32>
    %c0_226 = arith.constant 0 : index
    %c0_227 = arith.constant 0 : index
    %576 = vector.load %arg3[%c0_226, %c0_227] : memref<32x128xf32, #tpu.memory_space<vmem>>, vector<32x128xf32>
    tpu.vector_store %arg3[%c0_226, %c0_227], %575 {strides = array<i32>} : memref<32x128xf32, #tpu.memory_space<vmem>>, vector<32x128xf32>,
    return
  }
}

</mosaic_0001>

<llo_original>
// kernel: eq.1
$region0: #{eq.1}
  %s0 = inlined_call_operand.vmem [shape: s32[8,2,64], index: 0, kind: input, shape index: {}]
  %s1 = inlined_call_operand.vmem [shape: s32[1024], index: 1, kind: output, shape index: {}]
  $region1: #{eq.1} parent=0
    #allocation0 [shape = 'u8[32768]{0}', space=vmem, size = 0x8000, scoped, tag = 'scoped mem for input reshape']
    %s3 = sshllo.u32 0, 2
    %s4 = smul.addr 2, 7
    %s5 = scalar_lea.vmem %s0, %s4
    %v6 = vld [vmem:[%s5] sm:%s3]
    %s7 = scalar_lea.vmem [#allocation0], 56
    %8 = vst [vmem:[%s7] sm:%s3] %v6
    %s9 = smul.addr 2, 6
    %s10 = scalar_lea.vmem %s0, %s9
    %v11 = vld [vmem:[%s10] sm:%s3]
    %s12 = scalar_lea.vmem [#allocation0], 48
    %13 = vst [vmem:[%s12] sm:%s3] %v11
    %s14 = smul.addr 2, 5
    %s15 = scalar_lea.vmem %s0, %s14
    %v16 = vld [vmem:[%s15] sm:%s3]
    %s17 = scalar_lea.vmem [#allocation0], 40
    %18 = vst [vmem:[%s17] sm:%s3] %v16
    %s19 = smul.addr 2, 4
    %s20 = scalar_lea.vmem %s0, %s19
    %v21 = vld [vmem:[%s20] sm:%s3]
    %s22 = scalar_lea.vmem [#allocation0], 32
    %23 = vst [vmem:[%s22] sm:%s3] %v21
    %s24 = smul.addr 2, 3
    %s25 = scalar_lea.vmem %s0, %s24
    %v26 = vld [vmem:[%s25] sm:%s3]
    %s27 = scalar_lea.vmem [#allocation0], 24
    %28 = vst [vmem:[%s27] sm:%s3] %v26
    %s29 = smul.addr 2, 2
    %s30 = scalar_lea.vmem %s0, %s29
    %v31 = vld [vmem:[%s30] sm:%s3]
    %s32 = scalar_lea.vmem [#allocation0], 16
    %33 = vst [vmem:[%s32] sm:%s3] %v31
    %s34 = scalar_lea.vmem %s0, 2
    %v35 = vld [vmem:[%s34] sm:%s3]
    %s36 = scalar_lea.vmem [#allocation0], 8
    %37 = vst [vmem:[%s36] sm:%s3] %v35
    %v38 = vld [vmem:[%s0] sm:%s3]
    %39 = vst [vmem:[#allocation0] sm:%s3] %v38
    %v40 = vld [vmem:[#allocation0] ss:$8 sm:$0xf]
    %v41 = vld [vmem:[#allocation0] ss:$8 sm:$0xf0]
    %vm42 = vcmask 1047556
    %v43 = vsel %vm42, %v41, %v40
    %vm44 = vcmask 523264
    %45 = vst.msk [vmem:[%s1] sm:$0xff] %vm44, %v43
    %s46 = scalar_lea.vmem [#allocation0], 1
    %v47 = vld [vmem:[%s46] ss:$8 sm:$0xf]
    %s48 = scalar_lea.vmem [#allocation0], 1
    %v49 = vld [vmem:[%s48] ss:$8 sm:$0xf0]
    %vm50 = vcmask 1047556
    %v51 = vsel %vm50, %v49, %v47
    %52 = vrot.lane.b32.xlu0 %v51, 64
    %v53 = vpop.permute.xlu0 %52
    %vm54 = vcmask 1048064
    %55 = vst.msk [vmem:[%s1] sm:$0xff] %vm54, %v53

// kernel: lmc_block.1
$region0: #{lmc_block.1}
  #allocation0 [shape = 'u32[]', space=smem, size = 0x4, offset = 0x4, fixed_abs, tag = 'smem constant byte address 0x4 - core index']
  #allocation1 [shape = 'u32[144,128]{1,0:T(1,128)}', space=vmem, size = 0x12000, scoped, tag = 'internal scratch']
  #allocation2 [shape = 'f32[32,32]{1,0:T(8,128)}', space=vmem, size = 0x4000, scoped, tag = 'scratch operand']
  #allocation3 [shape = 'f32[32,128]{1,0:T(8,128)}', space=vmem, size = 0x4000, scoped, tag = 'scratch operand']
  %s0 = inlined_call_operand.vmem [shape: f32[32,128], index: 0, kind: input, shape index: {}]
  %s1 = inlined_call_operand.vmem [shape: f32[128,1024], index: 1, kind: input, shape index: {}]
  %s2 = inlined_call_operand.vmem [shape: f32[1408,128], index: 2, kind: input, shape index: {}]
  %s3 = inlined_call_operand.vmem [shape: f32[32,128], index: 3, kind: output, shape index: {}]
  %s4 = sld [smem:[#allocation0]]
  $region22: #{lmc_block.1} parent=0
    _
  %s6 = ssub.s32 1, %s4
  %s7 = scalar_select 0, %s6, %s4
  // Predicated region
  $region2: #{lmc_block.1} parent=0 // pred_check
    _
  $region3: #{lmc_block.1} parent=0 // pred_check_branch
    %9 = sbr.rel (0) target = $region5
  $region4: #{lmc_block.1} parent=0 // pred_region
    _
  $region5: #{lmc_block.1} parent=0 // pred_fallthru
    _
  // Predicated region
  $region6: #{lmc_block.1} parent=0 // pred_check
    _
  $region7: #{lmc_block.1} parent=0 // pred_check_branch
    %11 = sbr.rel (0) target = $region9
  $region8: #{lmc_block.1} parent=0 // pred_region
    _
  $region9: #{lmc_block.1} parent=0 // pred_fallthru
    _
  // Predicated region
  $region10: #{lmc_block.1} parent=0 // pred_check
    _
  $region11: #{lmc_block.1} parent=0 // pred_check_branch
    %13 = sbr.rel (0) target = $region13
  $region12: #{lmc_block.1} parent=0 // pred_region
    _
  $region13: #{lmc_block.1} parent=0 // pred_fallthru
    _
  %v14 = vld [vmem:[%s2 + $0x4c0] sm:$0xff]
  %v15 = vld [vmem:[%s2 + $0x4c8] sm:$0xff]
  %v16 = vld [vmem:[%s2 + $0x4d0] sm:$0xff]
  %v17 = vld [vmem:[%s2 + $0x4d8] sm:$0xff]
  %v18 = vld [vmem:[%s2 + $0x4e0] sm:$0xff]
  %v19 = vld [vmem:[%s2 + $0x4e8] sm:$0xff]
  %v20 = vld [vmem:[%s2 + $0x4f0] sm:$0xff]
  %v21 = vld [vmem:[%s2 + $0x4f8] sm:$0xff]
  %v22 = vld [vmem:[%s2 + $0x500] sm:$0xff]
  %v23 = vld [vmem:[%s2 + $0x508] sm:$0xff]
  %v24 = vld [vmem:[%s2 + $0x510] sm:$0xff]
  %v25 = vld [vmem:[%s2 + $0x518] sm:$0xff]
  %v26 = vld [vmem:[%s2 + $0x520] sm:$0xff]
  %v27 = vld [vmem:[%s2 + $0x528] sm:$0xff]
  %v28 = vld [vmem:[%s2 + $0x530] sm:$0xff]
  %v29 = vld [vmem:[%s2 + $0x538] sm:$0xff]
  %v30 = vld [vmem:[%s2 + $0x540] sm:$0xff]
  %v31 = vld [vmem:[%s2 + $0x548] sm:$0xff]
  %v32 = vld [vmem:[%s2 + $0x550] sm:$0xff]
  %v33 = vld [vmem:[%s2 + $0x558] sm:$0xff]
  %v34 = vld [vmem:[%s2 + $0x428] sm:$0xff]
  %v35 = vld [vmem:[%s2 + $0x430] sm:$0xff]
  %v36 = vld [vmem:[%s2 + $0x438] sm:$0xff]
  %v37 = vld [vmem:[%s2 + $0x440] sm:$0xff]
  %v38 = vld [vmem:[%s2 + $0x448] sm:$0xff]
  %v39 = vld [vmem:[%s2 + $0x450] sm:$0xff]
  %v40 = vld [vmem:[%s2 + $0x458] sm:$0xff]
  %v41 = vld [vmem:[%s2 + $0x460] sm:$0xff]
  %v42 = vld [vmem:[%s2 + $0x468] sm:$0xff]
  %v43 = vld [vmem:[%s2 + $0x470] sm:$0xff]
  %v44 = vld [vmem:[%s2 + $0x478] sm:$0xff]
  %v45 = vld [vmem:[%s2 + $0x480] sm:$0xff]
  %v46 = vld [vmem:[%s2 + $0x488] sm:$0xff]
  %v47 = vld [vmem:[%s2 + $0x490] sm:$0xff]
  %v48 = vld [vmem:[%s2 + $0x498] sm:$0xff]
  %v49 = vld [vmem:[%s2 + $0x4a0] sm:$0xff]
  %v50 = vld [vmem:[%s2 + $0x4a8] sm:$0xff]
  %v51 = vld [vmem:[%s2 + $0x4b0] sm:$0xff]
  %v52 = vld [vmem:[%s2 + $0x4b8] sm:$0x1]
  %v53 = vld [vmem:[%s1] sm:$0xff]
  %v54 = vld [vmem:[%s1 + $0x8] sm:$0xff]
  %v55 = vld [vmem:[%s1 + $0x10] sm:$0xff]
  %v56 = vld [vmem:[%s1 + $0x18] sm:$0xff]
  %v57 = vld [vmem:[%s1 + $0x20] sm:$0xff]
  %v58 = vld [vmem:[%s1 + $0x28] sm:$0xff]
  %v59 = vld [vmem:[%s1 + $0x30] sm:$0xff]
  %v60 = vld [vmem:[%s1 + $0x38] sm:$0xff]
  %v61 = vld [vmem:[%s1 + $0x40] sm:$0xff]
  %v62 = vld [vmem:[%s1 + $0x48] sm:$0xff]
  %v63 = vld [vmem:[%s1 + $0x50] sm:$0xff]
  %v64 = vld [vmem:[%s1 + $0x58] sm:$0xff]
  %v65 = vld [vmem:[%s1 + $0x60] sm:$0xff]
  %v66 = vld [vmem:[%s1 + $0x68] sm:$0xff]
  %v67 = vld [vmem:[%s1 + $0x70] sm:$0xff]
  %v68 = vld [vmem:[%s1 + $0x78] sm:$0xff]
  %v69 = vld [vmem:[%s1 + $0x80] sm:$0xff]
  %v70 = vld [vmem:[%s1 + $0x88] sm:$0xff]
  %v71 = vld [vmem:[%s1 + $0x90] sm:$0xff]
  %v72 = vld [vmem:[%s1 + $0x98] sm:$0xff]
  %v73 = vld [vmem:[%s1 + $0xa0] sm:$0xff]
  %v74 = vld [vmem:[%s1 + $0xa8] sm:$0xff]
  %v75 = vld [vmem:[%s1 + $0xb0] sm:$0xff]
  %v76 = vld [vmem:[%s1 + $0xb8] sm:$0xff]
  %v77 = vld [vmem:[%s1 + $0xc0] sm:$0xff]
  %v78 = vld [vmem:[%s1 + $0xc8] sm:$0xff]
  %v79 = vld [vmem:[%s1 + $0xd0] sm:$0xff]
  %v80 = vld [vmem:[%s1 + $0xd8] sm:$0xff]
  %v81 = vld [vmem:[%s1 + $0xe0] sm:$0xff]
  %v82 = vld [vmem:[%s1 + $0xe8] sm:$0xff]
  %v83 = vld [vmem:[%s1 + $0xf0] sm:$0xff]
  %v84 = vld [vmem:[%s1 + $0xf8] sm:$0xff]
  %v85 = vld [vmem:[%s1 + $0x100] sm:$0xff]
  %v86 = vld [vmem:[%s1 + $0x108] sm:$0xff]
  %v87 = vld [vmem:[%s1 + $0x110] sm:$0xff]
  %v88 = vld [vmem:[%s1 + $0x118] sm:$0xff]
  %v89 = vld [vmem:[%s1 + $0x120] sm:$0xff]
  %v90 = vld [vmem:[%s1 + $0x128] sm:$0xff]
  %v91 = vld [vmem:[%s1 + $0x130] sm:$0xff]
  %v92 = vld [vmem:[%s1 + $0x138] sm:$0xff]
  %v93 = vld [vmem:[%s1 + $0x140] sm:$0xff]
  %v94 = vld [vmem:[%s1 + $0x148] sm:$0xff]
  %v95 = vld [vmem:[%s1 + $0x150] sm:$0xff]
  %v96 = vld [vmem:[%s1 + $0x158] sm:$0xff]
  %v97 = vld [vmem:[%s1 + $0x160] sm:$0xff]
  %v98 = vld [vmem:[%s1 + $0x168] sm:$0xff]
  %v99 = vld [vmem:[%s1 + $0x170] sm:$0xff]
  %v100 = vld [vmem:[%s1 + $0x178] sm:$0xff]
  %v101 = vld [vmem:[%s1 + $0x180] sm:$0xff]
  %v102 = vld [vmem:[%s1 + $0x188] sm:$0xff]
  %v103 = vld [vmem:[%s1 + $0x190] sm:$0xff]
  %v104 = vld [vmem:[%s1 + $0x198] sm:$0xff]
  %v105 = vld [vmem:[%s1 + $0x1a0] sm:$0xff]
  %v106 = vld [vmem:[%s1 + $0x1a8] sm:$0xff]
  %v107 = vld [vmem:[%s1 + $0x1b0] sm:$0xff]
  %v108 = vld [vmem:[%s1 + $0x1b8] sm:$0xff]
  %v109 = vld [vmem:[%s1 + $0x1c0] sm:$0xff]
  %v110 = vld [vmem:[%s1 + $0x1c8] sm:$0xff]
  %v111 = vld [vmem:[%s1 + $0x1d0] sm:$0xff]
  %v112 = vld [vmem:[%s1 + $0x1d8] sm:$0xff]
  %v113 = vld [vmem:[%s1 + $0x1e0] sm:$0xff]
  %v114 = vld [vmem:[%s1 + $0x1e8] sm:$0xff]
  %v115 = vld [vmem:[%s1 + $0x1f0] sm:$0xff]
  %v116 = vld [vmem:[%s1 + $0x1f8] sm:$0xff]
  %v117 = vld [vmem:[%s1 + $0x200] sm:$0xff]
  %v118 = vld [vmem:[%s1 + $0x208] sm:$0xff]
  %v119 = vld [vmem:[%s1 + $0x210] sm:$0xff]
  %v120 = vld [vmem:[%s1 + $0x218] sm:$0xff]
  %v121 = vld [vmem:[%s1 + $0x220] sm:$0xff]
  %v122 = vld [vmem:[%s1 + $0x228] sm:$0xff]
  %v123 = vld [vmem:[%s1 + $0x230] sm:$0xff]
  %v124 = vld [vmem:[%s1 + $0x238] sm:$0xff]
  %v125 = vld [vmem:[%s1 + $0x240] sm:$0xff]
  %v126 = vld [vmem:[%s1 + $0x248] sm:$0xff]
  %v127 = vld [vmem:[%s1 + $0x250] sm:$0xff]
  %v128 = vld [vmem:[%s1 + $0x258] sm:$0xff]
  %v129 = vld [vmem:[%s1 + $0x260] sm:$0xff]
  %v130 = vld [vmem:[%s1 + $0x268] sm:$0xff]
  %v131 = vld [vmem:[%s1 + $0x270] sm:$0xff]
  %v132 = vld [vmem:[%s1 + $0x278] sm:$0xff]
  %v133 = vld [vmem:[%s1 + $0x280] sm:$0xff]
  %v134 = vld [vmem:[%s1 + $0x288] sm:$0xff]
  %v135 = vld [vmem:[%s1 + $0x290] sm:$0xff]
  %v136 = vld [vmem:[%s1 + $0x298] sm:$0xff]
  %v137 = vld [vmem:[%s1 + $0x2a0] sm:$0xff]
  %v138 = vld [vmem:[%s1 + $0x2a8] sm:$0xff]
  %v139 = vld [vmem:[%s1 + $0x2b0] sm:$0xff]
  %v140 = vld [vmem:[%s1 + $0x2b8] sm:$0xff]
  %v141 = vld [vmem:[%s1 + $0x2c0] sm:$0xff]
  %v142 = vld [vmem:[%s1 + $0x2c8] sm:$0xff]
  %v143 = vld [vmem:[%s1 + $0x2d0] sm:$0xff]
  %v144 = vld [vmem:[%s1 + $0x2d8] sm:$0xff]
  %v145 = vld [vmem:[%s1 + $0x2e0] sm:$0xff]
  %v146 = vld [vmem:[%s1 + $0x2e8] sm:$0xff]
  %v147 = vld [vmem:[%s1 + $0x2f0] sm:$0xff]
  %v148 = vld [vmem:[%s1 + $0x2f8] sm:$0xff]
  %v149 = vld [vmem:[%s1 + $0x300] sm:$0xff]
  %v150 = vld [vmem:[%s1 + $0x308] sm:$0xff]
  %v151 = vld [vmem:[%s1 + $0x310] sm:$0xff]
  %v152 = vld [vmem:[%s1 + $0x318] sm:$0xff]
  %v153 = vld [vmem:[%s1 + $0x320] sm:$0xff]
  %v154 = vld [vmem:[%s1 + $0x328] sm:$0xff]
  %v155 = vld [vmem:[%s1 + $0x330] sm:$0xff]
  %v156 = vld [vmem:[%s1 + $0x338] sm:$0xff]
  %v157 = vld [vmem:[%s1 + $0x340] sm:$0xff]
  %v158 = vld [vmem:[%s1 + $0x348] sm:$0xff]
  %v159 = vld [vmem:[%s1 + $0x350] sm:$0xff]
  %v160 = vld [vmem:[%s1 + $0x358] sm:$0xff]
  %v161 = vld [vmem:[%s1 + $0x360] sm:$0xff]
  %v162 = vld [vmem:[%s1 + $0x368] sm:$0xff]
  %v163 = vld [vmem:[%s1 + $0x370] sm:$0xff]
  %v164 = vld [vmem:[%s1 + $0x378] sm:$0xff]
  %v165 = vld [vmem:[%s1 + $0x380] sm:$0xff]
  %v166 = vld [vmem:[%s1 + $0x388] sm:$0xff]
  %v167 = vld [vmem:[%s1 + $0x390] sm:$0xff]
  %v168 = vld [vmem:[%s1 + $0x398] sm:$0xff]
  %v169 = vld [vmem:[%s1 + $0x3a0] sm:$0xff]
  %v170 = vld [vmem:[%s1 + $0x3a8] sm:$0xff]
  %v171 = vld [vmem:[%s1 + $0x3b0] sm:$0xff]
  %v172 = vld [vmem:[%s1 + $0x3b8] sm:$0xff]
  %v173 = vld [vmem:[%s1 + $0x3c0] sm:$0xff]
  %v174 = vld [vmem:[%s1 + $0x3c8] sm:$0xff]
  %v175 = vld [vmem:[%s1 + $0x3d0] sm:$0xff]
  %v176 = vld [vmem:[%s1 + $0x3d8] sm:$0xff]
  %v177 = vld [vmem:[%s1 + $0x3e0] sm:$0xff]
  %v178 = vld [vmem:[%s1 + $0x3e8] sm:$0xff]
  %v179 = vld [vmem:[%s1 + $0x3f0] sm:$0xff]
  %v180 = vld [vmem:[%s1 + $0x3f8] sm:$0xff]
  %v181 = vld [vmem:[%s0] sm:$0xff]
  %v182 = vld [vmem:[%s0 + $0x8] sm:$0xff]
  %v183 = vld [vmem:[%s0 + $0x10] sm:$0xff]
  %v184 = vld [vmem:[%s0 + $0x18] sm:$0xff]
  %v185 = vld [vmem:[%s2] sm:$0xff]
  %v186 = vld [vmem:[%s2 + $0x8] sm:$0xff]
  %v187 = vld [vmem:[%s2 + $0x10] sm:$0xff]
  %v188 = vld [vmem:[%s2 + $0x18] sm:$0xff]
  %190 = vset.pattern.permute.xlu0 0
  %191 = vperm.xlu0 %190, %v187
  %v192 = vpop.permute.xlu0 %191
  %195 = vset.pattern.permute.xlu0 0
  %196 = vperm.xlu0 %195, %v188
  %v197 = vpop.permute.xlu0 %196
  %vm199 = vcmask 261120
  %v201 = vsel %vm199, %v185, 0
  %v204 = vsel %vm199, %v186, 0
  %206 = vmatprep.subr.mxu0 0.0
  %207 = vmatpush1.msra.mxu0 %v181
  %208 = vmatprep.subr.mxu0 0.0
  %209 = vmatpush1.msra.mxu0 %v182
  %210 = vmatprep.subr.mxu0 0.0
  %211 = vmatpush1.msra.mxu0 %v183
  %212 = vmatprep.subr.mxu0 0.0
  %213 = vmatpush1.msra.mxu0 %v184
  %214 = vmatprep.subr.mxu0 0.0
  %215 = vmatpush1.msra.mxu0 0.0
  %216 = vmatprep.subr.mxu0 0.0
  %217 = vmatpush1.msra.mxu0 0.0
  %218 = vmatprep.subr.mxu0 0.0
  %219 = vmatpush1.msra.mxu0 0.0
  %220 = vmatprep.subr.mxu0 0.0
  %221 = vmatpush1.msra.mxu0 0.0
  %222 = vmatprep.subr.mxu0 0.0
  %223 = vmatpush1.msra.mxu0 0.0
  %224 = vmatprep.subr.mxu0 0.0
  %225 = vmatpush1.msra.mxu0 0.0
  %226 = vmatprep.subr.mxu0 0.0
  %227 = vmatpush1.msra.mxu0 0.0
  %228 = vmatprep.subr.mxu0 0.0
  %229 = vmatpush1.msra.mxu0 0.0
  %230 = vmatprep.subr.mxu0 0.0
  %231 = vmatpush1.msra.mxu0 0.0
  %232 = vmatprep.subr.mxu0 0.0
  %233 = vmatpush1.msra.mxu0 0.0
  %234 = vmatprep.subr.mxu0 0.0
  %235 = vmatpush1.msra.mxu0 0.0
  %236 = vmatprep.subr.mxu0 0.0
  %237 = vmatpush1.msra.mxu0 0.0
  %238 = vmatprep.subr.mxu0 0.0
  %239 = vmatpush1.msra.mxu0 0.0
  %240 = vmatprep.subr.mxu0 0.0
  %241 = vmatpush1.msra.mxu0 0.0
  %242 = vmatprep.subr.mxu0 0.0
  %243 = vmatpush1.msra.mxu0 0.0
  %244 = vmatprep.subr.mxu0 0.0
  %245 = vmatpush1.msra.mxu0 0.0
  %246 = vmatprep.subr.mxu0 0.0
  %247 = vmatpush1.msra.mxu0 0.0
  %248 = vmatprep.subr.mxu0 0.0
  %249 = vmatpush1.msra.mxu0 0.0
  %250 = vmatprep.subr.mxu0 0.0
  %251 = vmatpush1.msra.mxu0 0.0
  %252 = vmatprep.subr.mxu0 0.0
  %253 = vmatpush1.msra.mxu0 0.0
  %254 = vmatprep.subr.mxu0 0.0
  %255 = vmatpush1.msra.mxu0 0.0
  %256 = vmatprep.subr.mxu0 0.0
  %257 = vmatpush1.msra.mxu0 0.0
  %258 = vmatprep.subr.mxu0 0.0
  %259 = vmatpush1.msra.mxu0 0.0
  %260 = vmatprep.subr.mxu0 0.0
  %261 = vmatpush1.msra.mxu0 0.0
  %262 = vmatprep.subr.mxu0 0.0
  %263 = vmatpush1.msra.mxu0 0.0
  %264 = vmatprep.subr.mxu0 0.0
  %265 = vmatpush1.msra.mxu0 0.0
  %266 = vmatprep.subr.mxu0 0.0
  %267 = vmatpush1.msra.mxu0 0.0
  %268 = vmatprep.subr.mxu0 0.0
  %269 = vmatpush1.msra.mxu0 0.0
  %270 = vmatprep.mubr.f32.mxu0 0.0
  %271 = vmatmul.mubr.f32.gmra.mrb[0].mxu0 %v201
  %v272 = vpop.f32.mrb[0].mxu0
  %v273 = vadd.f32 %v192, %v272
  %v274 = vpop.f32.mrb[0].mxu0
  %275 = vmatprep.mubr.f32.mxu0 0.0
  %276 = vmatmul.mubr.f32.gmra.mrb[0].mxu0 %v204
  %v277 = vpop.f32.mrb[0].mxu0
  %v278 = vadd.f32 %v197, %v277
  %v279 = vpop.f32.mrb[0].mxu0
  %280 = vdwg.mxu0
  %v281 = vld [vmem:[%s2 + $0x20] sm:$0xff]
  %v282 = vld [vmem:[%s2 + $0x28] sm:$0xff]
  %vm283 = vcmask 130048
  %v285 = vsel %vm283, %v281, 0
  %v288 = vsel %vm283, %v282, 0
  %290 = vmatprep.subr.mxu0 0.0
  %291 = vmatpush1.msra.mxu0 %v273
  %292 = vmatprep.subr.mxu0 0.0
  %293 = vmatpush1.msra.mxu0 %v278
  %294 = vmatprep.subr.mxu0 0.0
  %295 = vmatpush1.msra.mxu0 0.0
  %296 = vmatprep.subr.mxu0 0.0
  %297 = vmatpush1.msra.mxu0 0.0
  %298 = vmatprep.subr.mxu0 0.0
  %299 = vmatpush1.msra.mxu0 0.0
  %300 = vmatprep.subr.mxu0 0.0
  %301 = vmatpush1.msra.mxu0 0.0
  %302 = vmatprep.subr.mxu0 0.0
  %303 = vmatpush1.msra.mxu0 0.0
  %304 = vmatprep.subr.mxu0 0.0
  %305 = vmatpush1.msra.mxu0 0.0
  %306 = vmatprep.subr.mxu0 0.0
  %307 = vmatpush1.msra.mxu0 0.0
  %308 = vmatprep.subr.mxu0 0.0
  %309 = vmatpush1.msra.mxu0 0.0
  %310 = vmatprep.subr.mxu0 0.0
  %311 = vmatpush1.msra.mxu0 0.0
  %312 = vmatprep.subr.mxu0 0.0
  %313 = vmatpush1.msra.mxu0 0.0
  %314 = vmatprep.subr.mxu0 0.0
  %315 = vmatpush1.msra.mxu0 0.0
  %316 = vmatprep.subr.mxu0 0.0
  %317 = vmatpush1.msra.mxu0 0.0
  %318 = vmatprep.subr.mxu0 0.0
  %319 = vmatpush1.msra.mxu0 0.0
  %320 = vmatprep.subr.mxu0 0.0
  %321 = vmatpush1.msra.mxu0 0.0
  %322 = vmatprep.subr.mxu0 0.0
  %323 = vmatpush1.msra.mxu0 0.0
  %324 = vmatprep.subr.mxu0 0.0
  %325 = vmatpush1.msra.mxu0 0.0
  %326 = vmatprep.subr.mxu0 0.0
  %327 = vmatpush1.msra.mxu0 0.0
  %328 = vmatprep.subr.mxu0 0.0
  %329 = vmatpush1.msra.mxu0 0.0
  %330 = vmatprep.subr.mxu0 0.0
  %331 = vmatpush1.msra.mxu0 0.0
  %332 = vmatprep.subr.mxu0 0.0
  %333 = vmatpush1.msra.mxu0 0.0
  %334 = vmatprep.subr.mxu0 0.0
  %335 = vmatpush1.msra.mxu0 0.0
  %336 = vmatprep.subr.mxu0 0.0
  %337 = vmatpush1.msra.mxu0 0.0
  %338 = vmatprep.subr.mxu0 0.0
  %339 = vmatpush1.msra.mxu0 0.0
  %340 = vmatprep.subr.mxu0 0.0
  %341 = vmatpush1.msra.mxu0 0.0
  %342 = vmatprep.subr.mxu0 0.0
  %343 = vmatpush1.msra.mxu0 0.0
  %344 = vmatprep.subr.mxu0 0.0
  %345 = vmatpush1.msra.mxu0 0.0
  %346 = vmatprep.subr.mxu0 0.0
  %347 = vmatpush1.msra.mxu0 0.0
  %348 = vmatprep.subr.mxu0 0.0
  %349 = vmatpush1.msra.mxu0 0.0
  %350 = vmatprep.subr.mxu0 0.0
  %351 = vmatpush1.msra.mxu0 0.0
  %352 = vmatprep.subr.mxu0 0.0
  %353 = vmatpush1.msra.mxu0 0.0
  %354 = vmatprep.mubr.f32.mxu0 0.0
  %355 = vmatmul.mubr.f32.gmra.mrb[0].mxu0 %v285
  %v356 = vpop.f32.mrb[0].mxu0
  %v357 = vadd.f32 0.0, %v356
  %v358 = vpop.f32.mrb[0].mxu0
  %359 = vmatprep.mubr.f32.mxu0 0.0
  %360 = vmatmul.mubr.f32.gmra.mrb[0].mxu0 %v288
  %v361 = vpop.f32.mrb[0].mxu0
  %v362 = vadd.f32 0.0, %v361
  %v363 = vpop.f32.mrb[0].mxu0
  %364 = vdwg.mxu0
  %v365 = vld [vmem:[%s2 + $0x30] sm:$0xff]
  %v366 = vld [vmem:[%s2 + $0x38] sm:$0xff]
  %368 = vset.pattern.permute.xlu0 0
  %369 = vperm.xlu0 %368, %v365
  %v370 = vpop.permute.xlu0 %369
  %373 = vset.pattern.permute.xlu0 0
  %374 = vperm.xlu0 %373, %v366
  %v375 = vpop.permute.xlu0 %374
  %377 = vmatprep.subr.mxu0 %v54
  %378 = vmatpush1.msra.mxu0 %v53
  %379 = vmatprep.subr.mxu0 %v62
  %380 = vmatpush1.msra.mxu0 %v61
  %381 = vmatprep.subr.mxu0 %v70
  %382 = vmatpush1.msra.mxu0 %v69
  %383 = vmatprep.subr.mxu0 %v78
  %384 = vmatpush1.msra.mxu0 %v77
  %385 = vmatprep.subr.mxu0 %v86
  %386 = vmatpush1.msra.mxu0 %v85
  %387 = vmatprep.subr.mxu0 %v94
  %388 = vmatpush1.msra.mxu0 %v93
  %389 = vmatprep.subr.mxu0 %v102
  %390 = vmatpush1.msra.mxu0 %v101
  %391 = vmatprep.subr.mxu0 %v110
  %392 = vmatpush1.msra.mxu0 %v109
  %393 = vmatprep.subr.mxu0 %v118
  %394 = vmatpush1.msra.mxu0 %v117
  %395 = vmatprep.subr.mxu0 %v126
  %396 = vmatpush1.msra.mxu0 %v125
  %397 = vmatprep.subr.mxu0 %v134
  %398 = vmatpush1.msra.mxu0 %v133
  %399 = vmatprep.subr.mxu0 %v142
  %400 = vmatpush1.msra.mxu0 %v141
  %401 = vmatprep.subr.mxu0 %v150
  %402 = vmatpush1.msra.mxu0 %v149
  %403 = vmatprep.subr.mxu0 %v158
  %404 = vmatpush1.msra.mxu0 %v157
  %405 = vmatprep.subr.mxu0 %v166
  %406 = vmatpush1.msra.mxu0 %v165
  %407 = vmatprep.subr.mxu0 %v174
  %408 = vmatpush1.msra.mxu0 %v173
  %409 = vmatprep.subr.mxu0 0.0
  %410 = vmatpush1.msra.mxu0 0.0
  %411 = vmatprep.subr.mxu0 0.0
  %412 = vmatpush1.msra.mxu0 0.0
  %413 = vmatprep.subr.mxu0 0.0
  %414 = vmatpush1.msra.mxu0 0.0
  %415 = vmatprep.subr.mxu0 0.0
  %416 = vmatpush1.msra.mxu0 0.0
  %417 = vmatprep.subr.mxu0 0.0
  %418 = vmatpush1.msra.mxu0 0.0
  %419 = vmatprep.subr.mxu0 0.0
  %420 = vmatpush1.msra.mxu0 0.0
  %421 = vmatprep.subr.mxu0 0.0
  %422 = vmatpush1.msra.mxu0 0.0
  %423 = vmatprep.subr.mxu0 0.0
  %424 = vmatpush1.msra.mxu0 0.0
  %425 = vmatprep.subr.mxu0 0.0
  %426 = vmatpush1.msra.mxu0 0.0
  %427 = vmatprep.subr.mxu0 0.0
  %428 = vmatpush1.msra.mxu0 0.0
  %429 = vmatprep.subr.mxu0 0.0
  %430 = vmatpush1.msra.mxu0 0.0
  %431 = vmatprep.subr.mxu0 0.0
  %432 = vmatpush1.msra.mxu0 0.0
  %433 = vmatprep.subr.mxu0 0.0
  %434 = vmatpush1.msra.mxu0 0.0
  %435 = vmatprep.subr.mxu0 0.0
  %436 = vmatpush1.msra.mxu0 0.0
  %437 = vmatprep.subr.mxu0 0.0
  %438 = vmatpush1.msra.mxu0 0.0
  %439 = vmatprep.subr.mxu0 0.0
  %440 = vmatpush1.msra.mxu0 0.0
  %441 = vmatprep.mubr.f32.mxu0 0.0
  %442 = vmatmul.mubr.f32.gmra.mrb[0].mxu0 %v357
  %v443 = vpop.f32.mrb[0].mxu0
  %v444 = vadd.f32 %v370, %v443
  %v445 = vpop.f32.mrb[0].mxu0
  %v446 = vadd.f32 %v370, %v445
  %447 = vmatprep.mubr.f32.mxu0 0.0
  %448 = vmatmul.mubr.f32.gmra.mrb[0].mxu0 %v362
  %v449 = vpop.f32.mrb[0].mxu0
  %v450 = vadd.f32 %v375, %v449
  %v451 = vpop.f32.mrb[0].mxu0
  %v452 = vadd.f32 %v375, %v451
  %453 = vdwg.mxu0
  %454 = vmatprep.subr.mxu0 %v56
  %455 = vmatpush1.msra.mxu0 %v55
  %456 = vmatprep.subr.mxu0 %v64
  %457 = vmatpush1.msra.mxu0 %v63
  %458 = vmatprep.subr.mxu0 %v72
  %459 = vmatpush1.msra.mxu0 %v71
  %460 = vmatprep.subr.mxu0 %v80
  %461 = vmatpush1.msra.mxu0 %v79
  %462 = vmatprep.subr.mxu0 %v88
  %463 = vmatpush1.msra.mxu0 %v87
  %464 = vmatprep.subr.mxu0 %v96
  %465 = vmatpush1.msra.mxu0 %v95
  %466 = vmatprep.subr.mxu0 %v104
  %467 = vmatpush1.msra.mxu0 %v103
  %468 = vmatprep.subr.mxu0 %v112
  %469 = vmatpush1.msra.mxu0 %v111
  %470 = vmatprep.subr.mxu0 %v120
  %471 = vmatpush1.msra.mxu0 %v119
  %472 = vmatprep.subr.mxu0 %v128
  %473 = vmatpush1.msra.mxu0 %v127
  %474 = vmatprep.subr.mxu0 %v136
  %475 = vmatpush1.msra.mxu0 %v135
  %476 = vmatprep.subr.mxu0 %v144
  %477 = vmatpush1.msra.mxu0 %v143
  %478 = vmatprep.subr.mxu0 %v152
  %479 = vmatpush1.msra.mxu0 %v151
  %480 = vmatprep.subr.mxu0 %v160
  %481 = vmatpush1.msra.mxu0 %v159
  %482 = vmatprep.subr.mxu0 %v168
  %483 = vmatpush1.msra.mxu0 %v167
  %484 = vmatprep.subr.mxu0 %v176
  %485 = vmatpush1.msra.mxu0 %v175
  %486 = vmatprep.subr.mxu0 0.0
  %487 = vmatpush1.msra.mxu0 0.0
  %488 = vmatprep.subr.mxu0 0.0
  %489 = vmatpush1.msra.mxu0 0.0
  %490 = vmatprep.subr.mxu0 0.0
  %491 = vmatpush1.msra.mxu0 0.0
  %492 = vmatprep.subr.mxu0 0.0
  %493 = vmatpush1.msra.mxu0 0.0
  %494 = vmatprep.subr.mxu0 0.0
  %495 = vmatpush1.msra.mxu0 0.0
  %496 = vmatprep.subr.mxu0 0.0
  %497 = vmatpush1.msra.mxu0 0.0
  %498 = vmatprep.subr.mxu0 0.0
  %499 = vmatpush1.msra.mxu0 0.0
  %500 = vmatprep.subr.mxu0 0.0
  %501 = vmatpush1.msra.mxu0 0.0
  %502 = vmatprep.subr.mxu0 0.0
  %503 = vmatpush1.msra.mxu0 0.0
  %504 = vmatprep.subr.mxu0 0.0
  %505 = vmatpush1.msra.mxu0 0.0
  %506 = vmatprep.subr.mxu0 0.0
  %507 = vmatpush1.msra.mxu0 0.0
  %508 = vmatprep.subr.mxu0 0.0
  %509 = vmatpush1.msra.mxu0 0.0
  %510 = vmatprep.subr.mxu0 0.0
  %511 = vmatpush1.msra.mxu0 0.0
  %512 = vmatprep.subr.mxu0 0.0
  %513 = vmatpush1.msra.mxu0 0.0
  %514 = vmatprep.subr.mxu0 0.0
  %515 = vmatpush1.msra.mxu0 0.0
  %516 = vmatprep.subr.mxu0 0.0
  %517 = vmatpush1.msra.mxu0 0.0
  %518 = vmatprep.mubr.f32.mxu0 0.0
  %519 = vmatmul.mubr.f32.gmra.mrb[0].mxu0 %v357
  %v520 = vpop.f32.mrb[0].mxu0
  %v521 = vadd.f32 %v370, %v520
  %v522 = vpop.f32.mrb[0].mxu0
  %v523 = vadd.f32 %v370, %v522
  %524 = vmatprep.mubr.f32.mxu0 0.0
  %525 = vmatmul.mubr.f32.gmra.mrb[0].mxu0 %v362
  %v526 = vpop.f32.mrb[0].mxu0
  %v527 = vadd.f32 %v375, %v526
  %v528 = vpop.f32.mrb[0].mxu0
  %v529 = vadd.f32 %v375, %v528
  %530 = vdwg.mxu0
  %531 = vmatprep.subr.mxu0 %v58
  %532 = vmatpush1.msra.mxu0 %v57
  %533 = vmatprep.subr.mxu0 %v66
  %534 = vmatpush1.msra.mxu0 %v65
  %535 = vmatprep.subr.mxu0 %v74
  %536 = vmatpush1.msra.mxu0 %v73
  %537 = vmatprep.subr.mxu0 %v82
  %538 = vmatpush1.msra.mxu0 %v81
  %539 = vmatprep.subr.mxu0 %v90
  %540 = vmatpush1.msra.mxu0 %v89
  %541 = vmatprep.subr.mxu0 %v98
  %542 = vmatpush1.msra.mxu0 %v97
  %543 = vmatprep.subr.mxu0 %v106
  %544 = vmatpush1.msra.mxu0 %v105
  %545 = vmatprep.subr.mxu0 %v114
  %546 = vmatpush1.msra.mxu0 %v113
  %547 = vmatprep.subr.mxu0 %v122
  %548 = vmatpush1.msra.mxu0 %v121
  %549 = vmatprep.subr.mxu0 %v130
  %550 = vmatpush1.msra.mxu0 %v129
  %551 = vmatprep.subr.mxu0 %v138
  %552 = vmatpush1.msra.mxu0 %v137
  %553 = vmatprep.subr.mxu0 %v146
  %554 = vmatpush1.msra.mxu0 %v145
  %555 = vmatprep.subr.mxu0 %v154
  %556 = vmatpush1.msra.mxu0 %v153
  %557 = vmatprep.subr.mxu0 %v162
  %558 = vmatpush1.msra.mxu0 %v161
  %559 = vmatprep.subr.mxu0 %v170
  %560 = vmatpush1.msra.mxu0 %v169
  %561 = vmatprep.subr.mxu0 %v178
  %562 = vmatpush1.msra.mxu0 %v177
  %563 = vmatprep.subr.mxu0 0.0
  %564 = vmatpush1.msra.mxu0 0.0
  %565 = vmatprep.subr.mxu0 0.0
  %566 = vmatpush1.msra.mxu0 0.0
  %567 = vmatprep.subr.mxu0 0.0
  %568 = vmatpush1.msra.mxu0 0.0
  %569 = vmatprep.subr.mxu0 0.0
  %570 = vmatpush1.msra.mxu0 0.0
  %571 = vmatprep.subr.mxu0 0.0
  %572 = vmatpush1.msra.mxu0 0.0
  %573 = vmatprep.subr.mxu0 0.0
  %574 = vmatpush1.msra.mxu0 0.0
  %575 = vmatprep.subr.mxu0 0.0
  %576 = vmatpush1.msra.mxu0 0.0
  %577 = vmatprep.subr.mxu0 0.0
  %578 = vmatpush1.msra.mxu0 0.0
  %579 = vmatprep.subr.mxu0 0.0
  %580 = vmatpush1.msra.mxu0 0.0
  %581 = vmatprep.subr.mxu0 0.0
  %582 = vmatpush1.msra.mxu0 0.0
  %583 = vmatprep.subr.mxu0 0.0
  %584 = vmatpush1.msra.mxu0 0.0
  %585 = vmatprep.subr.mxu0 0.0
  %586 = vmatpush1.msra.mxu0 0.0
  %587 = vmatprep.subr.mxu0 0.0
  %588 = vmatpush1.msra.mxu0 0.0
  %589 = vmatprep.subr.mxu0 0.0
  %590 = vmatpush1.msra.mxu0 0.0
  %591 = vmatprep.subr.mxu0 0.0
  %592 = vmatpush1.msra.mxu0 0.0
  %593 = vmatprep.subr.mxu0 0.0
  %594 = vmatpush1.msra.mxu0 0.0
  %595 = vmatprep.mubr.f32.mxu0 0.0
  %596 = vmatmul.mubr.f32.gmra.mrb[0].mxu0 %v357
  %v597 = vpop.f32.mrb[0].mxu0
  %v598 = vadd.f32 %v370, %v597
  %v599 = vpop.f32.mrb[0].mxu0
  %v600 = vadd.f32 %v370, %v599
  %601 = vmatprep.mubr.f32.mxu0 0.0
  %602 = vmatmul.mubr.f32.gmra.mrb[0].mxu0 %v362
  %v603 = vpop.f32.mrb[0].mxu0
  %v604 = vadd.f32 %v375, %v603
  %v605 = vpop.f32.mrb[0].mxu0
  %v606 = vadd.f32 %v375, %v605
  %607 = vdwg.mxu0
  %608 = vmatprep.subr.mxu0 %v60
  %609 = vmatpush1.msra.mxu0 %v59
  %610 = vmatprep.subr.mxu0 %v68
  %611 = vmatpush1.msra.mxu0 %v67
  %612 = vmatprep.subr.mxu0 %v76
  %613 = vmatpush1.msra.mxu0 %v75
  %614 = vmatprep.subr.mxu0 %v84
  %615 = vmatpush1.msra.mxu0 %v83
  %616 = vmatprep.subr.mxu0 %v92
  %617 = vmatpush1.msra.mxu0 %v91
  %618 = vmatprep.subr.mxu0 %v100
  %619 = vmatpush1.msra.mxu0 %v99
  %620 = vmatprep.subr.mxu0 %v108
  %621 = vmatpush1.msra.mxu0 %v107
  %622 = vmatprep.subr.mxu0 %v116
  %623 = vmatpush1.msra.mxu0 %v115
  %624 = vmatprep.subr.mxu0 %v124
  %625 = vmatpush1.msra.mxu0 %v123
  %626 = vmatprep.subr.mxu0 %v132
  %627 = vmatpush1.msra.mxu0 %v131
  %628 = vmatprep.subr.mxu0 %v140
  %629 = vmatpush1.msra.mxu0 %v139
  %630 = vmatprep.subr.mxu0 %v148
  %631 = vmatpush1.msra.mxu0 %v147
  %632 = vmatprep.subr.mxu0 %v156
  %633 = vmatpush1.msra.mxu0 %v155
  %634 = vmatprep.subr.mxu0 %v164
  %635 = vmatpush1.msra.mxu0 %v163
  %636 = vmatprep.subr.mxu0 %v172
  %637 = vmatpush1.msra.mxu0 %v171
  %638 = vmatprep.subr.mxu0 %v180
  %639 = vmatpush1.msra.mxu0 %v179
  %640 = vmatprep.subr.mxu0 0.0
  %641 = vmatpush1.msra.mxu0 0.0
  %642 = vmatprep.subr.mxu0 0.0
  %643 = vmatpush1.msra.mxu0 0.0
  %644 = vmatprep.subr.mxu0 0.0
  %645 = vmatpush1.msra.mxu0 0.0
  %646 = vmatprep.subr.mxu0 0.0
  %647 = vmatpush1.msra.mxu0 0.0
  %648 = vmatprep.subr.mxu0 0.0
  %649 = vmatpush1.msra.mxu0 0.0
  %650 = vmatprep.subr.mxu0 0.0
  %651 = vmatpush1.msra.mxu0 0.0
  %652 = vmatprep.subr.mxu0 0.0
  %653 = vmatpush1.msra.mxu0 0.0
  %654 = vmatprep.subr.mxu0 0.0
  %655 = vmatpush1.msra.mxu0 0.0
  %656 = vmatprep.subr.mxu0 0.0
  %657 = vmatpush1.msra.mxu0 0.0
  %658 = vmatprep.subr.mxu0 0.0
  %659 = vmatpush1.msra.mxu0 0.0
  %660 = vmatprep.subr.mxu0 0.0
  %661 = vmatpush1.msra.mxu0 0.0
  %662 = vmatprep.subr.mxu0 0.0
  %663 = vmatpush1.msra.mxu0 0.0
  %664 = vmatprep.subr.mxu0 0.0
  %665 = vmatpush1.msra.mxu0 0.0
  %666 = vmatprep.subr.mxu0 0.0
  %667 = vmatpush1.msra.mxu0 0.0
  %668 = vmatprep.subr.mxu0 0.0
  %669 = vmatpush1.msra.mxu0 0.0
  %670 = vmatprep.subr.mxu0 0.0
  %671 = vmatpush1.msra.mxu0 0.0
  %672 = vmatprep.mubr.f32.mxu0 0.0
  %673 = vmatmul.mubr.f32.gmra.mrb[0].mxu0 %v357
  %v674 = vpop.f32.mrb[0].mxu0
  %v675 = vadd.f32 %v370, %v674
  %v676 = vpop.f32.mrb[0].mxu0
  %v677 = vadd.f32 %v370, %v676
  %678 = vmatprep.mubr.f32.mxu0 0.0
  %679 = vmatmul.mubr.f32.gmra.mrb[0].mxu0 %v362
  %v680 = vpop.f32.mrb[0].mxu0
  %v681 = vadd.f32 %v375, %v680
  %v682 = vpop.f32.mrb[0].mxu0
  %v683 = vadd.f32 %v375, %v682
  %684 = vdwg.mxu0
  %v685 = vadd.f32 %v444, %v446
  %v686 = vadd.f32 %v685, %v521
  %v687 = vadd.f32 %v686, %v523
  %v688 = vadd.f32 %v687, %v598
  %v689 = vadd.f32 %v688, %v600
  %v690 = vadd.f32 %v689, %v675
  %v691 = vadd.f32 %v690, %v677
  %692 = vadd.xlane.f32.xlu0 %v691
  %v693 = vpop.xlane.xlu0 %692
  %v694 = vadd.f32 %v450, %v452
  %v695 = vadd.f32 %v694, %v527
  %v696 = vadd.f32 %v695, %v529
  %v697 = vadd.f32 %v696, %v604
  %v698 = vadd.f32 %v697, %v606
  %v699 = vadd.f32 %v698, %v681
  %v700 = vadd.f32 %v699, %v683
  %701 = vadd.xlane.f32.xlu0 %v700
  %v702 = vpop.xlane.xlu0 %701
  %v703 = vrcp.pop 1024.0
  %v704 = vmul.f32 %v693, %v703
  %v705 = vmul.f32 %v702, %v703
  %v706 = vsub.f32 %v444, %v704
  %v707 = vsub.f32 %v446, %v704
  %v708 = vsub.f32 %v521, %v704
  %v709 = vsub.f32 %v523, %v704
  %v710 = vsub.f32 %v598, %v704
  %v711 = vsub.f32 %v600, %v704
  %v712 = vsub.f32 %v675, %v704
  %v713 = vsub.f32 %v677, %v704
  %v714 = vsub.f32 %v450, %v705
  %v715 = vsub.f32 %v452, %v705
  %v716 = vsub.f32 %v527, %v705
  %v717 = vsub.f32 %v529, %v705
  %v718 = vsub.f32 %v604, %v705
  %v719 = vsub.f32 %v606, %v705
  %v720 = vsub.f32 %v681, %v705
  %v721 = vsub.f32 %v683, %v705
  %v722 = vmul.f32 %v706, %v706
  %v723 = vmul.f32 %v707, %v707
  %v724 = vmul.f32 %v708, %v708
  %v725 = vmul.f32 %v709, %v709
  %v726 = vmul.f32 %v710, %v710
  %v727 = vmul.f32 %v711, %v711
  %v728 = vmul.f32 %v712, %v712
  %v729 = vmul.f32 %v713, %v713
  %v730 = vmul.f32 %v714, %v714
  %v731 = vmul.f32 %v715, %v715
  %v732 = vmul.f32 %v716, %v716
  %v733 = vmul.f32 %v717, %v717
  %v734 = vmul.f32 %v718, %v718
  %v735 = vmul.f32 %v719, %v719
  %v736 = vmul.f32 %v720, %v720
  %v737 = vmul.f32 %v721, %v721
  %v738 = vadd.f32 %v722, %v723
  %v739 = vadd.f32 %v738, %v724
  %v740 = vadd.f32 %v739, %v725
  %v741 = vadd.f32 %v740, %v726
  %v742 = vadd.f32 %v741, %v727
  %v743 = vadd.f32 %v742, %v728
  %v744 = vadd.f32 %v743, %v729
  %745 = vadd.xlane.f32.xlu0 %v744
  %v746 = vpop.xlane.xlu0 %745
  %v747 = vadd.f32 %v730, %v731
  %v748 = vadd.f32 %v747, %v732
  %v749 = vadd.f32 %v748, %v733
  %v750 = vadd.f32 %v749, %v734
  %v751 = vadd.f32 %v750, %v735
  %v752 = vadd.f32 %v751, %v736
  %v753 = vadd.f32 %v752, %v737
  %754 = vadd.xlane.f32.xlu0 %v753
  %v755 = vpop.xlane.xlu0 %754
  %v756 = vmul.f32 %v746, %v703
  %v757 = vmul.f32 %v755, %v703
  %v758 = vadd.f32 %v756, 1e-05
  %v759 = vadd.f32 %v757, 1e-05
  %v760 = vrsqrt.pop %v758
  %v761 = vrsqrt.pop %v759
  %v762 = vmul.f32 %v706, %v760
  %v763 = vmul.f32 %v707, %v760
  %v764 = vmul.f32 %v708, %v760
  %v765 = vmul.f32 %v709, %v760
  %v766 = vmul.f32 %v710, %v760
  %v767 = vmul.f32 %v711, %v760
  %v768 = vmul.f32 %v712, %v760
  %v769 = vmul.f32 %v713, %v760
  %v770 = vmul.f32 %v714, %v761
  %v771 = vmul.f32 %v715, %v761
  %v772 = vmul.f32 %v716, %v761
  %v773 = vmul.f32 %v717, %v761
  %v774 = vmul.f32 %v718, %v761
  %v775 = vmul.f32 %v719, %v761
  %v776 = vmul.f32 %v720, %v761
  %v777 = vmul.f32 %v721, %v761
  %v778 = vmax.f32 %v762, 0.0
  %v779 = vmax.f32 %v763, 0.0
  %v780 = vmax.f32 %v764, 0.0
  %v781 = vmax.f32 %v765, 0.0
  %v782 = vmax.f32 %v766, 0.0
  %v783 = vmax.f32 %v767, 0.0
  %v784 = vmax.f32 %v768, 0.0
  %v785 = vmax.f32 %v769, 0.0
  %v786 = vmax.f32 %v770, 0.0
  %v787 = vmax.f32 %v771, 0.0
  %v788 = vmax.f32 %v772, 0.0
  %v789 = vmax.f32 %v773, 0.0
  %v790 = vmax.f32 %v774, 0.0
  %v791 = vmax.f32 %v775, 0.0
  %v792 = vmax.f32 %v776, 0.0
  %v793 = vmax.f32 %v777, 0.0
  %v794 = vld [vmem:[%s2 + $0x40] sm:$0xff]
  %v795 = vld [vmem:[%s2 + $0x48] sm:$0xff]
  %v796 = vld [vmem:[%s2 + $0x50] sm:$0xff]
  %v797 = vld [vmem:[%s2 + $0x58] sm:$0xff]
  %799 = vset.pattern.permute.xlu0 0
  %800 = vperm.xlu0 %799, %v796
  %v801 = vpop.permute.xlu0 %800
  %804 = vset.pattern.permute.xlu0 0
  %805 = vperm.xlu0 %804, %v797
  %v806 = vpop.permute.xlu0 %805
  %v809 = vsel %vm283, %v794, 0
  %v812 = vsel %vm283, %v795, 0
  %814 = vmatprep.subr.mxu0 %v779
  %815 = vmatpush1.msra.mxu0 %v778
  %816 = vmatprep.subr.mxu0 %v787
  %817 = vmatpush1.msra.mxu0 %v786
  %818 = vmatprep.subr.mxu0 0.0
  %819 = vmatpush1.msra.mxu0 0.0
  %820 = vmatprep.subr.mxu0 0.0
  %821 = vmatpush1.msra.mxu0 0.0
  %822 = vmatprep.subr.mxu0 0.0
  %823 = vmatpush1.msra.mxu0 0.0
  %824 = vmatprep.subr.mxu0 0.0
  %825 = vmatpush1.msra.mxu0 0.0
  %826 = vmatprep.subr.mxu0 0.0
  %827 = vmatpush1.msra.mxu0 0.0
  %828 = vmatprep.subr.mxu0 0.0
  %829 = vmatpush1.msra.mxu0 0.0
  %830 = vmatprep.subr.mxu0 0.0
  %831 = vmatpush1.msra.mxu0 0.0
  %832 = vmatprep.subr.mxu0 0.0
  %833 = vmatpush1.msra.mxu0 0.0
  %834 = vmatprep.subr.mxu0 0.0
  %835 = vmatpush1.msra.mxu0 0.0
  %836 = vmatprep.subr.mxu0 0.0
  %837 = vmatpush1.msra.mxu0 0.0
  %838 = vmatprep.subr.mxu0 0.0
  %839 = vmatpush1.msra.mxu0 0.0
  %840 = vmatprep.subr.mxu0 0.0
  %841 = vmatpush1.msra.mxu0 0.0
  %842 = vmatprep.subr.mxu0 0.0
  %843 = vmatpush1.msra.mxu0 0.0
  %844 = vmatprep.subr.mxu0 0.0
  %845 = vmatpush1.msra.mxu0 0.0
  %846 = vmatprep.subr.mxu0 0.0
  %847 = vmatpush1.msra.mxu0 0.0
  %848 = vmatprep.subr.mxu0 0.0
  %849 = vmatpush1.msra.mxu0 0.0
  %850 = vmatprep.subr.mxu0 0.0
  %851 = vmatpush1.msra.mxu0 0.0
  %852 = vmatprep.subr.mxu0 0.0
  %853 = vmatpush1.msra.mxu0 0.0
  %854 = vmatprep.subr.mxu0 0.0
  %855 = vmatpush1.msra.mxu0 0.0
  %856 = vmatprep.subr.mxu0 0.0
  %857 = vmatpush1.msra.mxu0 0.0
  %858 = vmatprep.subr.mxu0 0.0
  %859 = vmatpush1.msra.mxu0 0.0
  %860 = vmatprep.subr.mxu0 0.0
  %861 = vmatpush1.msra.mxu0 0.0
  %862 = vmatprep.subr.mxu0 0.0
  %863 = vmatpush1.msra.mxu0 0.0
  %864 = vmatprep.subr.mxu0 0.0
  %865 = vmatpush1.msra.mxu0 0.0
  %866 = vmatprep.subr.mxu0 0.0
  %867 = vmatpush1.msra.mxu0 0.0
  %868 = vmatprep.subr.mxu0 0.0
  %869 = vmatpush1.msra.mxu0 0.0
  %870 = vmatprep.subr.mxu0 0.0
  %871 = vmatpush1.msra.mxu0 0.0
  %872 = vmatprep.subr.mxu0 0.0
  %873 = vmatpush1.msra.mxu0 0.0
  %874 = vmatprep.subr.mxu0 0.0
  %875 = vmatpush1.msra.mxu0 0.0
  %876 = vmatprep.subr.mxu0 0.0
  %877 = vmatpush1.msra.mxu0 0.0
  %878 = vmatprep.mubr.f32.mxu0 0.0
  %879 = vmatmul.mubr.f32.gmra.mrb[0].mxu0 %v809
  %v880 = vpop.f32.mrb[0].mxu0
  %v881 = vadd.f32 %v801, %v880
  %v882 = vpop.f32.mrb[0].mxu0
  %v883 = vadd.f32 %v801, %v882
  %884 = vmatprep.mubr.f32.mxu0 0.0
  %885 = vmatmul.mubr.f32.gmra.mrb[0].mxu0 %v812
  %v886 = vpop.f32.mrb[0].mxu0
  %v887 = vadd.f32 %v806, %v886
  %v888 = vpop.f32.mrb[0].mxu0
  %v889 = vadd.f32 %v806, %v888
  %890 = vdwg.mxu0
  %891 = vmatprep.subr.mxu0 %v781
  %892 = vmatpush1.msra.mxu0 %v780
  %893 = vmatprep.subr.mxu0 %v789
  %894 = vmatpush1.msra.mxu0 %v788
  %895 = vmatprep.subr.mxu0 0.0
  %896 = vmatpush1.msra.mxu0 0.0
  %897 = vmatprep.subr.mxu0 0.0
  %898 = vmatpush1.msra.mxu0 0.0
  %899 = vmatprep.subr.mxu0 0.0
  %900 = vmatpush1.msra.mxu0 0.0
  %901 = vmatprep.subr.mxu0 0.0
  %902 = vmatpush1.msra.mxu0 0.0
  %903 = vmatprep.subr.mxu0 0.0
  %904 = vmatpush1.msra.mxu0 0.0
  %905 = vmatprep.subr.mxu0 0.0
  %906 = vmatpush1.msra.mxu0 0.0
  %907 = vmatprep.subr.mxu0 0.0
  %908 = vmatpush1.msra.mxu0 0.0
  %909 = vmatprep.subr.mxu0 0.0
  %910 = vmatpush1.msra.mxu0 0.0
  %911 = vmatprep.subr.mxu0 0.0
  %912 = vmatpush1.msra.mxu0 0.0
  %913 = vmatprep.subr.mxu0 0.0
  %914 = vmatpush1.msra.mxu0 0.0
  %915 = vmatprep.subr.mxu0 0.0
  %916 = vmatpush1.msra.mxu0 0.0
  %917 = vmatprep.subr.mxu0 0.0
  %918 = vmatpush1.msra.mxu0 0.0
  %919 = vmatprep.subr.mxu0 0.0
  %920 = vmatpush1.msra.mxu0 0.0
  %921 = vmatprep.subr.mxu0 0.0
  %922 = vmatpush1.msra.mxu0 0.0
  %923 = vmatprep.subr.mxu0 0.0
  %924 = vmatpush1.msra.mxu0 0.0
  %925 = vmatprep.subr.mxu0 0.0
  %926 = vmatpush1.msra.mxu0 0.0
  %927 = vmatprep.subr.mxu0 0.0
  %928 = vmatpush1.msra.mxu0 0.0
  %929 = vmatprep.subr.mxu0 0.0
  %930 = vmatpush1.msra.mxu0 0.0
  %931 = vmatprep.subr.mxu0 0.0
  %932 = vmatpush1.msra.mxu0 0.0
  %933 = vmatprep.subr.mxu0 0.0
  %934 = vmatpush1.msra.mxu0 0.0
  %935 = vmatprep.subr.mxu0 0.0
  %936 = vmatpush1.msra.mxu0 0.0
  %937 = vmatprep.subr.mxu0 0.0
  %938 = vmatpush1.msra.mxu0 0.0
  %939 = vmatprep.subr.mxu0 0.0
  %940 = vmatpush1.msra.mxu0 0.0
  %941 = vmatprep.subr.mxu0 0.0
  %942 = vmatpush1.msra.mxu0 0.0
  %943 = vmatprep.subr.mxu0 0.0
  %944 = vmatpush1.msra.mxu0 0.0
  %945 = vmatprep.subr.mxu0 0.0
  %946 = vmatpush1.msra.mxu0 0.0
  %947 = vmatprep.subr.mxu0 0.0
  %948 = vmatpush1.msra.mxu0 0.0
  %949 = vmatprep.subr.mxu0 0.0
  %950 = vmatpush1.msra.mxu0 0.0
  %951 = vmatprep.subr.mxu0 0.0
  %952 = vmatpush1.msra.mxu0 0.0
  %953 = vmatprep.subr.mxu0 0.0
  %954 = vmatpush1.msra.mxu0 0.0
  %955 = vmatprep.mubr.f32.mxu0 0.0
  %956 = vmatmul.mubr.f32.gmra.mrb[0].mxu0 %v809
  %v957 = vpop.f32.mrb[0].mxu0
  %v958 = vadd.f32 %v801, %v957
  %v959 = vpop.f32.mrb[0].mxu0
  %v960 = vadd.f32 %v801, %v959
  %961 = vmatprep.mubr.f32.mxu0 0.0
  %962 = vmatmul.mubr.f32.gmra.mrb[0].mxu0 %v812
  %v963 = vpop.f32.mrb[0].mxu0
  %v964 = vadd.f32 %v806, %v963
  %v965 = vpop.f32.mrb[0].mxu0
  %v966 = vadd.f32 %v806, %v965
  %967 = vdwg.mxu0
  %968 = vmatprep.subr.mxu0 %v783
  %969 = vmatpush1.msra.mxu0 %v782
  %970 = vmatprep.subr.mxu0 %v791
  %971 = vmatpush1.msra.mxu0 %v790
  %972 = vmatprep.subr.mxu0 0.0
  %973 = vmatpush1.msra.mxu0 0.0
  %974 = vmatprep.subr.mxu0 0.0
  %975 = vmatpush1.msra.mxu0 0.0
  %976 = vmatprep.subr.mxu0 0.0
  %977 = vmatpush1.msra.mxu0 0.0
  %978 = vmatprep.subr.mxu0 0.0
  %979 = vmatpush1.msra.mxu0 0.0
  %980 = vmatprep.subr.mxu0 0.0
  %981 = vmatpush1.msra.mxu0 0.0
  %982 = vmatprep.subr.mxu0 0.0
  %983 = vmatpush1.msra.mxu0 0.0
  %984 = vmatprep.subr.mxu0 0.0
  %985 = vmatpush1.msra.mxu0 0.0
  %986 = vmatprep.subr.mxu0 0.0
  %987 = vmatpush1.msra.mxu0 0.0
  %988 = vmatprep.subr.mxu0 0.0
  %989 = vmatpush1.msra.mxu0 0.0
  %990 = vmatprep.subr.mxu0 0.0
  %991 = vmatpush1.msra.mxu0 0.0
  %992 = vmatprep.subr.mxu0 0.0
  %993 = vmatpush1.msra.mxu0 0.0
  %994 = vmatprep.subr.mxu0 0.0
  %995 = vmatpush1.msra.mxu0 0.0
  %996 = vmatprep.subr.mxu0 0.0
  %997 = vmatpush1.msra.mxu0 0.0
  %998 = vmatprep.subr.mxu0 0.0
  %999 = vmatpush1.msra.mxu0 0.0
  %1000 = vmatprep.subr.mxu0 0.0
  %1001 = vmatpush1.msra.mxu0 0.0
  %1002 = vmatprep.subr.mxu0 0.0
  %1003 = vmatpush1.msra.mxu0 0.0
  %1004 = vmatprep.subr.mxu0 0.0
  %1005 = vmatpush1.msra.mxu0 0.0
  %1006 = vmatprep.subr.mxu0 0.0
  %1007 = vmatpush1.msra.mxu0 0.0
  %1008 = vmatprep.subr.mxu0 0.0
  %1009 = vmatpush1.msra.mxu0 0.0
  %1010 = vmatprep.subr.mxu0 0.0
  %1011 = vmatpush1.msra.mxu0 0.0
  %1012 = vmatprep.subr.mxu0 0.0
  %1013 = vmatpush1.msra.mxu0 0.0
  %1014 = vmatprep.subr.mxu0 0.0
  %1015 = vmatpush1.msra.mxu0 0.0
  %1016 = vmatprep.subr.mxu0 0.0
  %1017 = vmatpush1.msra.mxu0 0.0
  %1018 = vmatprep.subr.mxu0 0.0
  %1019 = vmatpush1.msra.mxu0 0.0
  %1020 = vmatprep.subr.mxu0 0.0
  %1021 = vmatpush1.msra.mxu0 0.0
  %1022 = vmatprep.subr.mxu0 0.0
  %1023 = vmatpush1.msra.mxu0 0.0
  %1024 = vmatprep.subr.mxu0 0.0
  %1025 = vmatpush1.msra.mxu0 0.0
  %1026 = vmatprep.subr.mxu0 0.0
  %1027 = vmatpush1.msra.mxu0 0.0
  %1028 = vmatprep.subr.mxu0 0.0
  %1029 = vmatpush1.msra.mxu0 0.0
  %1030 = vmatprep.subr.mxu0 0.0
  %1031 = vmatpush1.msra.mxu0 0.0
  %1032 = vmatprep.mubr.f32.mxu0 0.0
  %1033 = vmatmul.mubr.f32.gmra.mrb[0].mxu0 %v809
  %v1034 = vpop.f32.mrb[0].mxu0
  %v1035 = vadd.f32 %v801, %v1034
  %v1036 = vpop.f32.mrb[0].mxu0
  %v1037 = vadd.f32 %v801, %v1036
  %1038 = vmatprep.mubr.f32.mxu0 0.0
  %1039 = vmatmul.mubr.f32.gmra.mrb[0].mxu0 %v812
  %v1040 = vpop.f32.mrb[0].mxu0
  %v1041 = vadd.f32 %v806, %v1040
  %v1042 = vpop.f32.mrb[0].mxu0
  %v1043 = vadd.f32 %v806, %v1042
  %1044 = vdwg.mxu0
  %1045 = vmatprep.subr.mxu0 %v785
  %1046 = vmatpush1.msra.mxu0 %v784
  %1047 = vmatprep.subr.mxu0 %v793
  %1048 = vmatpush1.msra.mxu0 %v792
  %1049 = vmatprep.subr.mxu0 0.0
  %1050 = vmatpush1.msra.mxu0 0.0
  %1051 = vmatprep.subr.mxu0 0.0
  %1052 = vmatpush1.msra.mxu0 0.0
  %1053 = vmatprep.subr.mxu0 0.0
  %1054 = vmatpush1.msra.mxu0 0.0
  %1055 = vmatprep.subr.mxu0 0.0
  %1056 = vmatpush1.msra.mxu0 0.0
  %1057 = vmatprep.subr.mxu0 0.0
  %1058 = vmatpush1.msra.mxu0 0.0
  %1059 = vmatprep.subr.mxu0 0.0
  %1060 = vmatpush1.msra.mxu0 0.0
  %1061 = vmatprep.subr.mxu0 0.0
  %1062 = vmatpush1.msra.mxu0 0.0
  %1063 = vmatprep.subr.mxu0 0.0
  %1064 = vmatpush1.msra.mxu0 0.0
  %1065 = vmatprep.subr.mxu0 0.0
  %1066 = vmatpush1.msra.mxu0 0.0
  %1067 = vmatprep.subr.mxu0 0.0
  %1068 = vmatpush1.msra.mxu0 0.0
  %1069 = vmatprep.subr.mxu0 0.0
  %1070 = vmatpush1.msra.mxu0 0.0
  %1071 = vmatprep.subr.mxu0 0.0
  %1072 = vmatpush1.msra.mxu0 0.0
  %1073 = vmatprep.subr.mxu0 0.0
  %1074 = vmatpush1.msra.mxu0 0.0
  %1075 = vmatprep.subr.mxu0 0.0
  %1076 = vmatpush1.msra.mxu0 0.0
  %1077 = vmatprep.subr.mxu0 0.0
  %1078 = vmatpush1.msra.mxu0 0.0
  %1079 = vmatprep.subr.mxu0 0.0
  %1080 = vmatpush1.msra.mxu0 0.0
  %1081 = vmatprep.subr.mxu0 0.0
  %1082 = vmatpush1.msra.mxu0 0.0
  %1083 = vmatprep.subr.mxu0 0.0
  %1084 = vmatpush1.msra.mxu0 0.0
  %1085 = vmatprep.subr.mxu0 0.0
  %1086 = vmatpush1.msra.mxu0 0.0
  %1087 = vmatprep.subr.mxu0 0.0
  %1088 = vmatpush1.msra.mxu0 0.0
  %1089 = vmatprep.subr.mxu0 0.0
  %1090 = vmatpush1.msra.mxu0 0.0
  %1091 = vmatprep.subr.mxu0 0.0
  %1092 = vmatpush1.msra.mxu0 0.0
  %1093 = vmatprep.subr.mxu0 0.0
  %1094 = vmatpush1.msra.mxu0 0.0
  %1095 = vmatprep.subr.mxu0 0.0
  %1096 = vmatpush1.msra.mxu0 0.0
  %1097 = vmatprep.subr.mxu0 0.0
  %1098 = vmatpush1.msra.mxu0 0.0
  %1099 = vmatprep.subr.mxu0 0.0
  %1100 = vmatpush1.msra.mxu0 0.0
  %1101 = vmatprep.subr.mxu0 0.0
  %1102 = vmatpush1.msra.mxu0 0.0
  %1103 = vmatprep.subr.mxu0 0.0
  %1104 = vmatpush1.msra.mxu0 0.0
  %1105 = vmatprep.subr.mxu0 0.0
  %1106 = vmatpush1.msra.mxu0 0.0
  %1107 = vmatprep.subr.mxu0 0.0
  %1108 = vmatpush1.msra.mxu0 0.0
  %1109 = vmatprep.mubr.f32.mxu0 0.0
  %1110 = vmatmul.mubr.f32.gmra.mrb[0].mxu0 %v809
  %v1111 = vpop.f32.mrb[0].mxu0
  %v1112 = vadd.f32 %v801, %v1111
  %v1113 = vpop.f32.mrb[0].mxu0
  %v1114 = vadd.f32 %v801, %v1113
  %1115 = vmatprep.mubr.f32.mxu0 0.0
  %1116 = vmatmul.mubr.f32.gmra.mrb[0].mxu0 %v812
  %v1117 = vpop.f32.mrb[0].mxu0
  %v1118 = vadd.f32 %v806, %v1117
  %v1119 = vpop.f32.mrb[0].mxu0
  %v1120 = vadd.f32 %v806, %v1119
  %1121 = vdwg.mxu0
  %v1122 = vmax.f32 %v881, %v883
  %v1123 = vmax.f32 %v887, %v889
  %v1124 = vmax.f32 %v1122, %v958
  %v1125 = vmax.f32 %v1123, %v964
  %v1126 = vmax.f32 %v1124, %v960
  %v1127 = vmax.f32 %v1125, %v966
  %v1128 = vmax.f32 %v1126, %v1035
  %v1129 = vmax.f32 %v1127, %v1041
  %v1130 = vmax.f32 %v1128, %v1037
  %v1131 = vmax.f32 %v1129, %v1043
  %v1132 = vmax.f32 %v1130, %v1112
  %v1133 = vmax.f32 %v1131, %v1118
  %v1134 = vmax.f32 %v1132, %v1114
  %v1135 = vmax.f32 %v1133, %v1120
  %v1136 = vld [vmem:[%s2 + $0x60] sm:$0xff]
  %v1137 = vld [vmem:[%s2 + $0x68] sm:$0xff]
  %v1138 = vld [vmem:[%s2 + $0x70] sm:$0xff]
  %v1139 = vld [vmem:[%s2 + $0x78] sm:$0xff]
  %v1140 = vld [vmem:[%s2 + $0x80] sm:$0xff]
  %v1141 = vld [vmem:[%s2 + $0x88] sm:$0xff]
  %v1142 = vld [vmem:[%s2 + $0x90] sm:$0xff]
  %v1143 = vld [vmem:[%s2 + $0x98] sm:$0xff]
  %1145 = vset.pattern.permute.xlu0 0
  %1146 = vperm.xlu0 %1145, %v1140
  %v1147 = vpop.permute.xlu0 %1146
  %1150 = vset.pattern.permute.xlu0 0
  %1151 = vperm.xlu0 %1150, %v1141
  %v1152 = vpop.permute.xlu0 %1151
  %1155 = vset.pattern.permute.xlu0 0
  %1156 = vperm.xlu0 %1155, %v1142
  %v1157 = vpop.permute.xlu0 %1156
  %1160 = vset.pattern.permute.xlu0 0
  %1161 = vperm.xlu0 %1160, %v1143
  %v1162 = vpop.permute.xlu0 %1161
  %v1165 = vsel %vm283, %v1136, 0
  %v1168 = vsel %vm283, %v1137, 0
  %v1171 = vsel %vm283, %v1138, 0
  %v1174 = vsel %vm283, %v1139, 0
  %1176 = vmatprep.subr.mxu0 0.0
  %1177 = vmatpush1.msra.mxu0 %v1134
  %1178 = vmatprep.subr.mxu0 0.0
  %1179 = vmatpush1.msra.mxu0 %v1135
  %1180 = vmatprep.subr.mxu0 0.0
  %1181 = vmatpush1.msra.mxu0 0.0
  %1182 = vmatprep.subr.mxu0 0.0
  %1183 = vmatpush1.msra.mxu0 0.0
  %1184 = vmatprep.subr.mxu0 0.0
  %1185 = vmatpush1.msra.mxu0 0.0
  %1186 = vmatprep.subr.mxu0 0.0
  %1187 = vmatpush1.msra.mxu0 0.0
  %1188 = vmatprep.subr.mxu0 0.0
  %1189 = vmatpush1.msra.mxu0 0.0
  %1190 = vmatprep.subr.mxu0 0.0
  %1191 = vmatpush1.msra.mxu0 0.0
  %1192 = vmatprep.subr.mxu0 0.0
  %1193 = vmatpush1.msra.mxu0 0.0
  %1194 = vmatprep.subr.mxu0 0.0
  %1195 = vmatpush1.msra.mxu0 0.0
  %1196 = vmatprep.subr.mxu0 0.0
  %1197 = vmatpush1.msra.mxu0 0.0
  %1198 = vmatprep.subr.mxu0 0.0
  %1199 = vmatpush1.msra.mxu0 0.0
  %1200 = vmatprep.subr.mxu0 0.0
  %1201 = vmatpush1.msra.mxu0 0.0
  %1202 = vmatprep.subr.mxu0 0.0
  %1203 = vmatpush1.msra.mxu0 0.0
  %1204 = vmatprep.subr.mxu0 0.0
  %1205 = vmatpush1.msra.mxu0 0.0
  %1206 = vmatprep.subr.mxu0 0.0
  %1207 = vmatpush1.msra.mxu0 0.0
  %1208 = vmatprep.subr.mxu0 0.0
  %1209 = vmatpush1.msra.mxu0 0.0
  %1210 = vmatprep.subr.mxu0 0.0
  %1211 = vmatpush1.msra.mxu0 0.0
  %1212 = vmatprep.subr.mxu0 0.0
  %1213 = vmatpush1.msra.mxu0 0.0
  %1214 = vmatprep.subr.mxu0 0.0
  %1215 = vmatpush1.msra.mxu0 0.0
  %1216 = vmatprep.subr.mxu0 0.0
  %1217 = vmatpush1.msra.mxu0 0.0
  %1218 = vmatprep.subr.mxu0 0.0
  %1219 = vmatpush1.msra.mxu0 0.0
  %1220 = vmatprep.subr.mxu0 0.0
  %1221 = vmatpush1.msra.mxu0 0.0
  %1222 = vmatprep.subr.mxu0 0.0
  %1223 = vmatpush1.msra.mxu0 0.0
  %1224 = vmatprep.subr.mxu0 0.0
  %1225 = vmatpush1.msra.mxu0 0.0
  %1226 = vmatprep.subr.mxu0 0.0
  %1227 = vmatpush1.msra.mxu0 0.0
  %1228 = vmatprep.subr.mxu0 0.0
  %1229 = vmatpush1.msra.mxu0 0.0
  %1230 = vmatprep.subr.mxu0 0.0
  %1231 = vmatpush1.msra.mxu0 0.0
  %1232 = vmatprep.subr.mxu0 0.0
  %1233 = vmatpush1.msra.mxu0 0.0
  %1234 = vmatprep.subr.mxu0 0.0
  %1235 = vmatpush1.msra.mxu0 0.0
  %1236 = vmatprep.subr.mxu0 0.0
  %1237 = vmatpush1.msra.mxu0 0.0
  %1238 = vmatprep.subr.mxu0 0.0
  %1239 = vmatpush1.msra.mxu0 0.0
  %1240 = vmatprep.mubr.f32.mxu0 0.0
  %1241 = vmatmul.mubr.f32.gmra.mrb[0].mxu0 %v1165
  %v1242 = vpop.f32.mrb[0].mxu0
  %v1243 = vadd.f32 %v1147, %v1242
  %v1244 = vpop.f32.mrb[0].mxu0
  %1245 = vmatprep.mubr.f32.mxu0 0.0
  %1246 = vmatmul.mubr.f32.gmra.mrb[0].mxu0 %v1168
  %v1247 = vpop.f32.mrb[0].mxu0
  %v1248 = vadd.f32 %v1152, %v1247
  %v1249 = vpop.f32.mrb[0].mxu0
  %1250 = vmatprep.mubr.f32.mxu0 0.0
  %1251 = vmatmul.mubr.f32.gmra.mrb[0].mxu0 %v1171
  %v1252 = vpop.f32.mrb[0].mxu0
  %v1253 = vadd.f32 %v1157, %v1252
  %v1254 = vpop.f32.mrb[0].mxu0
  %1255 = vmatprep.mubr.f32.mxu0 0.0
  %1256 = vmatmul.mubr.f32.gmra.mrb[0].mxu0 %v1174
  %v1257 = vpop.f32.mrb[0].mxu0
  %v1258 = vadd.f32 %v1162, %v1257
  %v1259 = vpop.f32.mrb[0].mxu0
  %1260 = vdwg.mxu0
  %v1261 = vadd.f32 %v181, %v1243
  %v1262 = vadd.f32 %v182, %v1248
  %v1263 = vadd.f32 %v183, %v1253
  %v1264 = vadd.f32 %v184, %v1258
  %v1265 = vld [vmem:[%s2 + $0x140] sm:$0xff]
  %v1266 = vld [vmem:[%s2 + $0x148] sm:$0xff]
  %v1267 = vld [vmem:[%s2 + $0x150] sm:$0xff]
  %v1268 = vld [vmem:[%s2 + $0x158] sm:$0xff]
  %v1269 = vld [vmem:[%s2 + $0x160] sm:$0xff]
  %v1270 = vld [vmem:[%s2 + $0x168] sm:$0xff]
  %v1271 = vld [vmem:[%s2 + $0x170] sm:$0xff]
  %v1272 = vld [vmem:[%s2 + $0x178] sm:$0xff]
  %1273 = vmatprep.subr.mxu0 0.0
  %1274 = vmatpush1.msra.mxu0 %v14
  %1275 = vmatprep.subr.mxu0 0.0
  %1276 = vmatpush1.msra.mxu0 %v15
  %1277 = vmatprep.subr.mxu0 0.0
  %1278 = vmatpush1.msra.mxu0 %v16
  %1279 = vmatprep.subr.mxu0 0.0
  %1280 = vmatpush1.msra.mxu0 %v17
  %1281 = vmatprep.subr.mxu0 0.0
  %1282 = vmatpush1.msra.mxu0 %v18
  %1283 = vmatprep.subr.mxu0 0.0
  %1284 = vmatpush1.msra.mxu0 %v19
  %1285 = vmatprep.subr.mxu0 0.0
  %1286 = vmatpush1.msra.mxu0 %v20
  %1287 = vmatprep.subr.mxu0 0.0
  %1288 = vmatpush1.msra.mxu0 %v21
  %1289 = vmatprep.subr.mxu0 0.0
  %1290 = vmatpush1.msra.mxu0 %v22
  %1291 = vmatprep.subr.mxu0 0.0
  %1292 = vmatpush1.msra.mxu0 %v23
  %1293 = vmatprep.subr.mxu0 0.0
  %1294 = vmatpush1.msra.mxu0 %v24
  %1295 = vmatprep.subr.mxu0 0.0
  %1296 = vmatpush1.msra.mxu0 %v25
  %1297 = vmatprep.subr.mxu0 0.0
  %1298 = vmatpush1.msra.mxu0 %v26
  %1299 = vmatprep.subr.mxu0 0.0
  %1300 = vmatpush1.msra.mxu0 %v27
  %1301 = vmatprep.subr.mxu0 0.0
  %1302 = vmatpush1.msra.mxu0 %v28
  %1303 = vmatprep.subr.mxu0 0.0
  %1304 = vmatpush1.msra.mxu0 %v29
  %1305 = vmatprep.subr.mxu0 0.0
  %1306 = vmatpush1.msra.mxu0 0.0
  %1307 = vmatprep.subr.mxu0 0.0
  %1308 = vmatpush1.msra.mxu0 0.0
  %1309 = vmatprep.subr.mxu0 0.0
  %1310 = vmatpush1.msra.mxu0 0.0
  %1311 = vmatprep.subr.mxu0 0.0
  %1312 = vmatpush1.msra.mxu0 0.0
  %1313 = vmatprep.subr.mxu0 0.0
  %1314 = vmatpush1.msra.mxu0 0.0
  %1315 = vmatprep.subr.mxu0 0.0
  %1316 = vmatpush1.msra.mxu0 0.0
  %1317 = vmatprep.subr.mxu0 0.0
  %1318 = vmatpush1.msra.mxu0 0.0
  %1319 = vmatprep.subr.mxu0 0.0
  %1320 = vmatpush1.msra.mxu0 0.0
  %1321 = vmatprep.subr.mxu0 0.0
  %1322 = vmatpush1.msra.mxu0 0.0
  %1323 = vmatprep.subr.mxu0 0.0
  %1324 = vmatpush1.msra.mxu0 0.0
  %1325 = vmatprep.subr.mxu0 0.0
  %1326 = vmatpush1.msra.mxu0 0.0
  %1327 = vmatprep.subr.mxu0 0.0
  %1328 = vmatpush1.msra.mxu0 0.0
  %1329 = vmatprep.subr.mxu0 0.0
  %1330 = vmatpush1.msra.mxu0 0.0
  %1331 = vmatprep.subr.mxu0 0.0
  %1332 = vmatpush1.msra.mxu0 0.0
  %1333 = vmatprep.subr.mxu0 0.0
  %1334 = vmatpush1.msra.mxu0 0.0
  %1335 = vmatprep.subr.mxu0 0.0
  %1336 = vmatpush1.msra.mxu0 0.0
  %1337 = vmatprep.mubr.f32.mxu0 0.0
  %1338 = vmatmul.mubr.f32.gmra.mrb[0].mxu0 %v1261
  %v1339 = vpop.f32.mrb[0].mxu0
  %v1340 = vadd.f32 0.0, %v1339
  %v1341 = vpop.f32.mrb[0].mxu0
  %1342 = vmatprep.mubr.f32.mxu0 0.0
  %1343 = vmatmul.mubr.f32.gmra.mrb[0].mxu0 %v1262
  %v1344 = vpop.f32.mrb[0].mxu0
  %v1345 = vadd.f32 0.0, %v1344
  %v1346 = vpop.f32.mrb[0].mxu0
  %1347 = vmatprep.mubr.f32.mxu0 0.0
  %1348 = vmatmul.mubr.f32.gmra.mrb[0].mxu0 %v1263
  %v1349 = vpop.f32.mrb[0].mxu0
  %v1350 = vadd.f32 0.0, %v1349
  %v1351 = vpop.f32.mrb[0].mxu0
  %1352 = vmatprep.mubr.f32.mxu0 0.0
  %1353 = vmatmul.mubr.f32.gmra.mrb[0].mxu0 %v1264
  %v1354 = vpop.f32.mrb[0].mxu0
  %v1355 = vadd.f32 0.0, %v1354
  %v1356 = vpop.f32.mrb[0].mxu0
  %1357 = vdwg.mxu0
  %v1358 = vsub.f32 %v1261, %v1340
  %v1359 = vsub.f32 %v1262, %v1345
  %v1360 = vsub.f32 %v1263, %v1350
  %v1361 = vsub.f32 %v1264, %v1355
  %v1362 = vmul.f32 %v1358, %v1358
  %v1363 = vmul.f32 %v1359, %v1359
  %v1364 = vmul.f32 %v1360, %v1360
  %v1365 = vmul.f32 %v1361, %v1361
  %1366 = vmatprep.subr.mxu0 0.0
  %1367 = vmatpush1.msra.mxu0 %v14
  %1368 = vmatprep.subr.mxu0 0.0
  %1369 = vmatpush1.msra.mxu0 %v15
  %1370 = vmatprep.subr.mxu0 0.0
  %1371 = vmatpush1.msra.mxu0 %v16
  %1372 = vmatprep.subr.mxu0 0.0
  %1373 = vmatpush1.msra.mxu0 %v17
  %1374 = vmatprep.subr.mxu0 0.0
  %1375 = vmatpush1.msra.mxu0 %v18
  %1376 = vmatprep.subr.mxu0 0.0
  %1377 = vmatpush1.msra.mxu0 %v19
  %1378 = vmatprep.subr.mxu0 0.0
  %1379 = vmatpush1.msra.mxu0 %v20
  %1380 = vmatprep.subr.mxu0 0.0
  %1381 = vmatpush1.msra.mxu0 %v21
  %1382 = vmatprep.subr.mxu0 0.0
  %1383 = vmatpush1.msra.mxu0 %v22
  %1384 = vmatprep.subr.mxu0 0.0
  %1385 = vmatpush1.msra.mxu0 %v23
  %1386 = vmatprep.subr.mxu0 0.0
  %1387 = vmatpush1.msra.mxu0 %v24
  %1388 = vmatprep.subr.mxu0 0.0
  %1389 = vmatpush1.msra.mxu0 %v25
  %1390 = vmatprep.subr.mxu0 0.0
  %1391 = vmatpush1.msra.mxu0 %v26
  %1392 = vmatprep.subr.mxu0 0.0
  %1393 = vmatpush1.msra.mxu0 %v27
  %1394 = vmatprep.subr.mxu0 0.0
  %1395 = vmatpush1.msra.mxu0 %v28
  %1396 = vmatprep.subr.mxu0 0.0
  %1397 = vmatpush1.msra.mxu0 %v29
  %1398 = vmatprep.subr.mxu0 0.0
  %1399 = vmatpush1.msra.mxu0 0.0
  %1400 = vmatprep.subr.mxu0 0.0
  %1401 = vmatpush1.msra.mxu0 0.0
  %1402 = vmatprep.subr.mxu0 0.0
  %1403 = vmatpush1.msra.mxu0 0.0
  %1404 = vmatprep.subr.mxu0 0.0
  %1405 = vmatpush1.msra.mxu0 0.0
  %1406 = vmatprep.subr.mxu0 0.0
  %1407 = vmatpush1.msra.mxu0 0.0
  %1408 = vmatprep.subr.mxu0 0.0
  %1409 = vmatpush1.msra.mxu0 0.0
  %1410 = vmatprep.subr.mxu0 0.0
  %1411 = vmatpush1.msra.mxu0 0.0
  %1412 = vmatprep.subr.mxu0 0.0
  %1413 = vmatpush1.msra.mxu0 0.0
  %1414 = vmatprep.subr.mxu0 0.0
  %1415 = vmatpush1.msra.mxu0 0.0
  %1416 = vmatprep.subr.mxu0 0.0
  %1417 = vmatpush1.msra.mxu0 0.0
  %1418 = vmatprep.subr.mxu0 0.0
  %1419 = vmatpush1.msra.mxu0 0.0
  %1420 = vmatprep.subr.mxu0 0.0
  %1421 = vmatpush1.msra.mxu0 0.0
  %1422 = vmatprep.subr.mxu0 0.0
  %1423 = vmatpush1.msra.mxu0 0.0
  %1424 = vmatprep.subr.mxu0 0.0
  %1425 = vmatpush1.msra.mxu0 0.0
  %1426 = vmatprep.subr.mxu0 0.0
  %1427 = vmatpush1.msra.mxu0 0.0
  %1428 = vmatprep.subr.mxu0 0.0
  %1429 = vmatpush1.msra.mxu0 0.0
  %1430 = vmatprep.mubr.f32.mxu0 0.0
  %1431 = vmatmul.mubr.f32.gmra.mrb[0].mxu0 %v1362
  %v1432 = vpop.f32.mrb[0].mxu0
  %v1433 = vadd.f32 0.001, %v1432
  %v1434 = vpop.f32.mrb[0].mxu0
  %1435 = vmatprep.mubr.f32.mxu0 0.0
  %1436 = vmatmul.mubr.f32.gmra.mrb[0].mxu0 %v1363
  %v1437 = vpop.f32.mrb[0].mxu0
  %v1438 = vadd.f32 0.001, %v1437
  %v1439 = vpop.f32.mrb[0].mxu0
  %1440 = vmatprep.mubr.f32.mxu0 0.0
  %1441 = vmatmul.mubr.f32.gmra.mrb[0].mxu0 %v1364
  %v1442 = vpop.f32.mrb[0].mxu0
  %v1443 = vadd.f32 0.001, %v1442
  %v1444 = vpop.f32.mrb[0].mxu0
  %1445 = vmatprep.mubr.f32.mxu0 0.0
  %1446 = vmatmul.mubr.f32.gmra.mrb[0].mxu0 %v1365
  %v1447 = vpop.f32.mrb[0].mxu0
  %v1448 = vadd.f32 0.001, %v1447
  %v1449 = vpop.f32.mrb[0].mxu0
  %1450 = vdwg.mxu0
  %v1451 = vrsqrt.pop %v1433
  %v1452 = vrsqrt.pop %v1438
  %v1453 = vrsqrt.pop %v1443
  %v1454 = vrsqrt.pop %v1448
  %v1455 = vmul.f32 %v1358, %v1451
  %v1456 = vmul.f32 %v1359, %v1452
  %v1457 = vmul.f32 %v1360, %v1453
  %v1458 = vmul.f32 %v1361, %v1454
  %1459 = vadd.xlane.f32.xlu0 %v1455
  %v1460 = vpop.xlane.xlu0 %1459
  %1461 = vadd.xlane.f32.xlu0 %v1456
  %v1462 = vpop.xlane.xlu0 %1461
  %1463 = vadd.xlane.f32.xlu0 %v1457
  %v1464 = vpop.xlane.xlu0 %1463
  %1465 = vadd.xlane.f32.xlu0 %v1458
  %v1466 = vpop.xlane.xlu0 %1465
  %v1467 = vrcp.pop 128.0
  %v1468 = vmul.f32 %v1460, %v1467
  %v1469 = vmul.f32 %v1462, %v1467
  %v1470 = vmul.f32 %v1464, %v1467
  %v1471 = vmul.f32 %v1466, %v1467
  %v1472 = vsub.f32 %v1455, %v1468
  %v1473 = vsub.f32 %v1456, %v1469
  %v1474 = vsub.f32 %v1457, %v1470
  %v1475 = vsub.f32 %v1458, %v1471
  %v1476 = vmul.f32 %v1472, %v1472
  %v1477 = vmul.f32 %v1473, %v1473
  %v1478 = vmul.f32 %v1474, %v1474
  %v1479 = vmul.f32 %v1475, %v1475
  %1480 = vadd.xlane.f32.xlu0 %v1476
  %v1481 = vpop.xlane.xlu0 %1480
  %1482 = vadd.xlane.f32.xlu0 %v1477
  %v1483 = vpop.xlane.xlu0 %1482
  %1484 = vadd.xlane.f32.xlu0 %v1478
  %v1485 = vpop.xlane.xlu0 %1484
  %1486 = vadd.xlane.f32.xlu0 %v1479
  %v1487 = vpop.xlane.xlu0 %1486
  %v1488 = vmul.f32 %v1481, %v1467
  %v1489 = vmul.f32 %v1483, %v1467
  %v1490 = vmul.f32 %v1485, %v1467
  %v1491 = vmul.f32 %v1487, %v1467
  %v1492 = vadd.f32 %v1488, 1e-05
  %v1493 = vadd.f32 %v1489, 1e-05
  %v1494 = vadd.f32 %v1490, 1e-05
  %v1495 = vadd.f32 %v1491, 1e-05
  %v1496 = vrsqrt.pop %v1492
  %v1497 = vrsqrt.pop %v1493
  %v1498 = vrsqrt.pop %v1494
  %v1499 = vrsqrt.pop %v1495
  %v1500 = vmul.f32 %v1472, %v1496
  %v1501 = vmul.f32 %v1473, %v1497
  %v1502 = vmul.f32 %v1474, %v1498
  %v1503 = vmul.f32 %v1475, %v1499
  %v1504 = vmax.f32 %v1500, 0.0
  %v1505 = vmax.f32 %v1501, 0.0
  %v1506 = vmax.f32 %v1502, 0.0
  %v1507 = vmax.f32 %v1503, 0.0
  %1509 = vset.pattern.permute.xlu0 0
  %1510 = vperm.xlu0 %1509, %v1269
  %v1511 = vpop.permute.xlu0 %1510
  %1514 = vset.pattern.permute.xlu0 0
  %1515 = vperm.xlu0 %1514, %v1270
  %v1516 = vpop.permute.xlu0 %1515
  %1519 = vset.pattern.permute.xlu0 0
  %1520 = vperm.xlu0 %1519, %v1271
  %v1521 = vpop.permute.xlu0 %1520
  %1524 = vset.pattern.permute.xlu0 0
  %1525 = vperm.xlu0 %1524, %v1272
  %v1526 = vpop.permute.xlu0 %1525
  %v1529 = vsel %vm199, %v1265, 0
  %v1532 = vsel %vm199, %v1266, 0
  %v1535 = vsel %vm199, %v1267, 0
  %v1538 = vsel %vm199, %v1268, 0
  %1540 = vmatprep.subr.mxu0 0.0
  %1541 = vmatpush1.msra.mxu0 %v1504
  %1542 = vmatprep.subr.mxu0 0.0
  %1543 = vmatpush1.msra.mxu0 %v1505
  %1544 = vmatprep.subr.mxu0 0.0
  %1545 = vmatpush1.msra.mxu0 %v1506
  %1546 = vmatprep.subr.mxu0 0.0
  %1547 = vmatpush1.msra.mxu0 %v1507
  %1548 = vmatprep.subr.mxu0 0.0
  %1549 = vmatpush1.msra.mxu0 0.0
  %1550 = vmatprep.subr.mxu0 0.0
  %1551 = vmatpush1.msra.mxu0 0.0
  %1552 = vmatprep.subr.mxu0 0.0
  %1553 = vmatpush1.msra.mxu0 0.0
  %1554 = vmatprep.subr.mxu0 0.0
  %1555 = vmatpush1.msra.mxu0 0.0
  %1556 = vmatprep.subr.mxu0 0.0
  %1557 = vmatpush1.msra.mxu0 0.0
  %1558 = vmatprep.subr.mxu0 0.0
  %1559 = vmatpush1.msra.mxu0 0.0
  %1560 = vmatprep.subr.mxu0 0.0
  %1561 = vmatpush1.msra.mxu0 0.0
  %1562 = vmatprep.subr.mxu0 0.0
  %1563 = vmatpush1.msra.mxu0 0.0
  %1564 = vmatprep.subr.mxu0 0.0
  %1565 = vmatpush1.msra.mxu0 0.0
  %1566 = vmatprep.subr.mxu0 0.0
  %1567 = vmatpush1.msra.mxu0 0.0
  %1568 = vmatprep.subr.mxu0 0.0
  %1569 = vmatpush1.msra.mxu0 0.0
  %1570 = vmatprep.subr.mxu0 0.0
  %1571 = vmatpush1.msra.mxu0 0.0
  %1572 = vmatprep.subr.mxu0 0.0
  %1573 = vmatpush1.msra.mxu0 0.0
  %1574 = vmatprep.subr.mxu0 0.0
  %1575 = vmatpush1.msra.mxu0 0.0
  %1576 = vmatprep.subr.mxu0 0.0
  %1577 = vmatpush1.msra.mxu0 0.0
  %1578 = vmatprep.subr.mxu0 0.0
  %1579 = vmatpush1.msra.mxu0 0.0
  %1580 = vmatprep.subr.mxu0 0.0
  %1581 = vmatpush1.msra.mxu0 0.0
  %1582 = vmatprep.subr.mxu0 0.0
  %1583 = vmatpush1.msra.mxu0 0.0
  %1584 = vmatprep.subr.mxu0 0.0
  %1585 = vmatpush1.msra.mxu0 0.0
  %1586 = vmatprep.subr.mxu0 0.0
  %1587 = vmatpush1.msra.mxu0 0.0
  %1588 = vmatprep.subr.mxu0 0.0
  %1589 = vmatpush1.msra.mxu0 0.0
  %1590 = vmatprep.subr.mxu0 0.0
  %1591 = vmatpush1.msra.mxu0 0.0
  %1592 = vmatprep.subr.mxu0 0.0
  %1593 = vmatpush1.msra.mxu0 0.0
  %1594 = vmatprep.subr.mxu0 0.0
  %1595 = vmatpush1.msra.mxu0 0.0
  %1596 = vmatprep.subr.mxu0 0.0
  %1597 = vmatpush1.msra.mxu0 0.0
  %1598 = vmatprep.subr.mxu0 0.0
  %1599 = vmatpush1.msra.mxu0 0.0
  %1600 = vmatprep.subr.mxu0 0.0
  %1601 = vmatpush1.msra.mxu0 0.0
  %1602 = vmatprep.subr.mxu0 0.0
  %1603 = vmatpush1.msra.mxu0 0.0
  %1604 = vmatprep.mubr.f32.mxu0 0.0
  %1605 = vmatmul.mubr.f32.gmra.mrb[0].mxu0 %v1529
  %v1606 = vpop.f32.mrb[0].mxu0
  %v1607 = vadd.f32 %v1511, %v1606
  %v1608 = vpop.f32.mrb[0].mxu0
  %1609 = vmatprep.mubr.f32.mxu0 0.0
  %1610 = vmatmul.mubr.f32.gmra.mrb[0].mxu0 %v1532
  %v1611 = vpop.f32.mrb[0].mxu0
  %v1612 = vadd.f32 %v1516, %v1611
  %v1613 = vpop.f32.mrb[0].mxu0
  %1614 = vmatprep.mubr.f32.mxu0 0.0
  %1615 = vmatmul.mubr.f32.gmra.mrb[0].mxu0 %v1535
  %v1616 = vpop.f32.mrb[0].mxu0
  %v1617 = vadd.f32 %v1521, %v1616
  %v1618 = vpop.f32.mrb[0].mxu0
  %1619 = vmatprep.mubr.f32.mxu0 0.0
  %1620 = vmatmul.mubr.f32.gmra.mrb[0].mxu0 %v1538
  %v1621 = vpop.f32.mrb[0].mxu0
  %v1622 = vadd.f32 %v1526, %v1621
  %v1623 = vpop.f32.mrb[0].mxu0
  %1624 = vdwg.mxu0
  %v1625 = vld [vmem:[%s2 + $0x180] sm:$0xff]
  %v1626 = vld [vmem:[%s2 + $0x188] sm:$0xff]
  %v1627 = vld [vmem:[%s2 + $0x190] sm:$0xff]
  %v1628 = vld [vmem:[%s2 + $0x198] sm:$0xff]
  %v1629 = vld [vmem:[%s2 + $0x1a0] sm:$0xff]
  %v1630 = vld [vmem:[%s2 + $0x1a8] sm:$0xff]
  %v1631 = vld [vmem:[%s2 + $0x1b0] sm:$0xff]
  %v1632 = vld [vmem:[%s2 + $0x1b8] sm:$0xff]
  %1633 = vmatprep.subr.mxu0 0.0
  %1634 = vmatpush1.msra.mxu0 %v14
  %1635 = vmatprep.subr.mxu0 0.0
  %1636 = vmatpush1.msra.mxu0 %v15
  %1637 = vmatprep.subr.mxu0 0.0
  %1638 = vmatpush1.msra.mxu0 %v16
  %1639 = vmatprep.subr.mxu0 0.0
  %1640 = vmatpush1.msra.mxu0 %v17
  %1641 = vmatprep.subr.mxu0 0.0
  %1642 = vmatpush1.msra.mxu0 %v18
  %1643 = vmatprep.subr.mxu0 0.0
  %1644 = vmatpush1.msra.mxu0 %v19
  %1645 = vmatprep.subr.mxu0 0.0
  %1646 = vmatpush1.msra.mxu0 %v20
  %1647 = vmatprep.subr.mxu0 0.0
  %1648 = vmatpush1.msra.mxu0 %v21
  %1649 = vmatprep.subr.mxu0 0.0
  %1650 = vmatpush1.msra.mxu0 %v22
  %1651 = vmatprep.subr.mxu0 0.0
  %1652 = vmatpush1.msra.mxu0 %v23
  %1653 = vmatprep.subr.mxu0 0.0
  %1654 = vmatpush1.msra.mxu0 %v24
  %1655 = vmatprep.subr.mxu0 0.0
  %1656 = vmatpush1.msra.mxu0 %v25
  %1657 = vmatprep.subr.mxu0 0.0
  %1658 = vmatpush1.msra.mxu0 %v26
  %1659 = vmatprep.subr.mxu0 0.0
  %1660 = vmatpush1.msra.mxu0 %v27
  %1661 = vmatprep.subr.mxu0 0.0
  %1662 = vmatpush1.msra.mxu0 %v28
  %1663 = vmatprep.subr.mxu0 0.0
  %1664 = vmatpush1.msra.mxu0 %v29
  %1665 = vmatprep.subr.mxu0 0.0
  %1666 = vmatpush1.msra.mxu0 0.0
  %1667 = vmatprep.subr.mxu0 0.0
  %1668 = vmatpush1.msra.mxu0 0.0
  %1669 = vmatprep.subr.mxu0 0.0
  %1670 = vmatpush1.msra.mxu0 0.0
  %1671 = vmatprep.subr.mxu0 0.0
  %1672 = vmatpush1.msra.mxu0 0.0
  %1673 = vmatprep.subr.mxu0 0.0
  %1674 = vmatpush1.msra.mxu0 0.0
  %1675 = vmatprep.subr.mxu0 0.0
  %1676 = vmatpush1.msra.mxu0 0.0
  %1677 = vmatprep.subr.mxu0 0.0
  %1678 = vmatpush1.msra.mxu0 0.0
  %1679 = vmatprep.subr.mxu0 0.0
  %1680 = vmatpush1.msra.mxu0 0.0
  %1681 = vmatprep.subr.mxu0 0.0
  %1682 = vmatpush1.msra.mxu0 0.0
  %1683 = vmatprep.subr.mxu0 0.0
  %1684 = vmatpush1.msra.mxu0 0.0
  %1685 = vmatprep.subr.mxu0 0.0
  %1686 = vmatpush1.msra.mxu0 0.0
  %1687 = vmatprep.subr.mxu0 0.0
  %1688 = vmatpush1.msra.mxu0 0.0
  %1689 = vmatprep.subr.mxu0 0.0
  %1690 = vmatpush1.msra.mxu0 0.0
  %1691 = vmatprep.subr.mxu0 0.0
  %1692 = vmatpush1.msra.mxu0 0.0
  %1693 = vmatprep.subr.mxu0 0.0
  %1694 = vmatpush1.msra.mxu0 0.0
  %1695 = vmatprep.subr.mxu0 0.0
  %1696 = vmatpush1.msra.mxu0 0.0
  %1697 = vmatprep.mubr.f32.mxu0 0.0
  %1698 = vmatmul.mubr.f32.gmra.mrb[0].mxu0 %v1607
  %v1699 = vpop.f32.mrb[0].mxu0
  %v1700 = vadd.f32 0.0, %v1699
  %v1701 = vpop.f32.mrb[0].mxu0
  %1702 = vmatprep.mubr.f32.mxu0 0.0
  %1703 = vmatmul.mubr.f32.gmra.mrb[0].mxu0 %v1612
  %v1704 = vpop.f32.mrb[0].mxu0
  %v1705 = vadd.f32 0.0, %v1704
  %v1706 = vpop.f32.mrb[0].mxu0
  %1707 = vmatprep.mubr.f32.mxu0 0.0
  %1708 = vmatmul.mubr.f32.gmra.mrb[0].mxu0 %v1617
  %v1709 = vpop.f32.mrb[0].mxu0
  %v1710 = vadd.f32 0.0, %v1709
  %v1711 = vpop.f32.mrb[0].mxu0
  %1712 = vmatprep.mubr.f32.mxu0 0.0
  %1713 = vmatmul.mubr.f32.gmra.mrb[0].mxu0 %v1622
  %v1714 = vpop.f32.mrb[0].mxu0
  %v1715 = vadd.f32 0.0, %v1714
  %v1716 = vpop.f32.mrb[0].mxu0
  %1717 = vdwg.mxu0
  %v1718 = vsub.f32 %v1607, %v1700
  %v1719 = vsub.f32 %v1612, %v1705
  %v1720 = vsub.f32 %v1617, %v1710
  %v1721 = vsub.f32 %v1622, %v1715
  %v1722 = vmul.f32 %v1718, %v1718
  %v1723 = vmul.f32 %v1719, %v1719
  %v1724 = vmul.f32 %v1720, %v1720
  %v1725 = vmul.f32 %v1721, %v1721
  %1726 = vmatprep.subr.mxu0 0.0
  %1727 = vmatpush1.msra.mxu0 %v14
  %1728 = vmatprep.subr.mxu0 0.0
  %1729 = vmatpush1.msra.mxu0 %v15
  %1730 = vmatprep.subr.mxu0 0.0
  %1731 = vmatpush1.msra.mxu0 %v16
  %1732 = vmatprep.subr.mxu0 0.0
  %1733 = vmatpush1.msra.mxu0 %v17
  %1734 = vmatprep.subr.mxu0 0.0
  %1735 = vmatpush1.msra.mxu0 %v18
  %1736 = vmatprep.subr.mxu0 0.0
  %1737 = vmatpush1.msra.mxu0 %v19
  %1738 = vmatprep.subr.mxu0 0.0
  %1739 = vmatpush1.msra.mxu0 %v20
  %1740 = vmatprep.subr.mxu0 0.0
  %1741 = vmatpush1.msra.mxu0 %v21
  %1742 = vmatprep.subr.mxu0 0.0
  %1743 = vmatpush1.msra.mxu0 %v22
  %1744 = vmatprep.subr.mxu0 0.0
  %1745 = vmatpush1.msra.mxu0 %v23
  %1746 = vmatprep.subr.mxu0 0.0
  %1747 = vmatpush1.msra.mxu0 %v24
  %1748 = vmatprep.subr.mxu0 0.0
  %1749 = vmatpush1.msra.mxu0 %v25
  %1750 = vmatprep.subr.mxu0 0.0
  %1751 = vmatpush1.msra.mxu0 %v26
  %1752 = vmatprep.subr.mxu0 0.0
  %1753 = vmatpush1.msra.mxu0 %v27
  %1754 = vmatprep.subr.mxu0 0.0
  %1755 = vmatpush1.msra.mxu0 %v28
  %1756 = vmatprep.subr.mxu0 0.0
  %1757 = vmatpush1.msra.mxu0 %v29
  %1758 = vmatprep.subr.mxu0 0.0
  %1759 = vmatpush1.msra.mxu0 0.0
  %1760 = vmatprep.subr.mxu0 0.0
  %1761 = vmatpush1.msra.mxu0 0.0
  %1762 = vmatprep.subr.mxu0 0.0
  %1763 = vmatpush1.msra.mxu0 0.0
  %1764 = vmatprep.subr.mxu0 0.0
  %1765 = vmatpush1.msra.mxu0 0.0
  %1766 = vmatprep.subr.mxu0 0.0
  %1767 = vmatpush1.msra.mxu0 0.0
  %1768 = vmatprep.subr.mxu0 0.0
  %1769 = vmatpush1.msra.mxu0 0.0
  %1770 = vmatprep.subr.mxu0 0.0
  %1771 = vmatpush1.msra.mxu0 0.0
  %1772 = vmatprep.subr.mxu0 0.0
  %1773 = vmatpush1.msra.mxu0 0.0
  %1774 = vmatprep.subr.mxu0 0.0
  %1775 = vmatpush1.msra.mxu0 0.0
  %1776 = vmatprep.subr.mxu0 0.0
  %1777 = vmatpush1.msra.mxu0 0.0
  %1778 = vmatprep.subr.mxu0 0.0
  %1779 = vmatpush1.msra.mxu0 0.0
  %1780 = vmatprep.subr.mxu0 0.0
  %1781 = vmatpush1.msra.mxu0 0.0
  %1782 = vmatprep.subr.mxu0 0.0
  %1783 = vmatpush1.msra.mxu0 0.0
  %1784 = vmatprep.subr.mxu0 0.0
  %1785 = vmatpush1.msra.mxu0 0.0
  %1786 = vmatprep.subr.mxu0 0.0
  %1787 = vmatpush1.msra.mxu0 0.0
  %1788 = vmatprep.subr.mxu0 0.0
  %1789 = vmatpush1.msra.mxu0 0.0
  %1790 = vmatprep.mubr.f32.mxu0 0.0
  %1791 = vmatmul.mubr.f32.gmra.mrb[0].mxu0 %v1722
  %v1792 = vpop.f32.mrb[0].mxu0
  %v1793 = vadd.f32 0.001, %v1792
  %v1794 = vpop.f32.mrb[0].mxu0
  %1795 = vmatprep.mubr.f32.mxu0 0.0
  %1796 = vmatmul.mubr.f32.gmra.mrb[0].mxu0 %v1723
  %v1797 = vpop.f32.mrb[0].mxu0
  %v1798 = vadd.f32 0.001, %v1797
  %v1799 = vpop.f32.mrb[0].mxu0
  %1800 = vmatprep.mubr.f32.mxu0 0.0
  %1801 = vmatmul.mubr.f32.gmra.mrb[0].mxu0 %v1724
  %v1802 = vpop.f32.mrb[0].mxu0
  %v1803 = vadd.f32 0.001, %v1802
  %v1804 = vpop.f32.mrb[0].mxu0
  %1805 = vmatprep.mubr.f32.mxu0 0.0
  %1806 = vmatmul.mubr.f32.gmra.mrb[0].mxu0 %v1725
  %v1807 = vpop.f32.mrb[0].mxu0
  %v1808 = vadd.f32 0.001, %v1807
  %v1809 = vpop.f32.mrb[0].mxu0
  %1810 = vdwg.mxu0
  %v1811 = vrsqrt.pop %v1793
  %v1812 = vrsqrt.pop %v1798
  %v1813 = vrsqrt.pop %v1803
  %v1814 = vrsqrt.pop %v1808
  %v1815 = vmul.f32 %v1718, %v1811
  %v1816 = vmul.f32 %v1719, %v1812
  %v1817 = vmul.f32 %v1720, %v1813
  %v1818 = vmul.f32 %v1721, %v1814
  %1819 = vadd.xlane.f32.xlu0 %v1815
  %v1820 = vpop.xlane.xlu0 %1819
  %1821 = vadd.xlane.f32.xlu0 %v1816
  %v1822 = vpop.xlane.xlu0 %1821
  %1823 = vadd.xlane.f32.xlu0 %v1817
  %v1824 = vpop.xlane.xlu0 %1823
  %1825 = vadd.xlane.f32.xlu0 %v1818
  %v1826 = vpop.xlane.xlu0 %1825
  %v1827 = vmul.f32 %v1820, %v1467
  %v1828 = vmul.f32 %v1822, %v1467
  %v1829 = vmul.f32 %v1824, %v1467
  %v1830 = vmul.f32 %v1826, %v1467
  %v1831 = vsub.f32 %v1815, %v1827
  %v1832 = vsub.f32 %v1816, %v1828
  %v1833 = vsub.f32 %v1817, %v1829
  %v1834 = vsub.f32 %v1818, %v1830
  %v1835 = vmul.f32 %v1831, %v1831
  %v1836 = vmul.f32 %v1832, %v1832
  %v1837 = vmul.f32 %v1833, %v1833
  %v1838 = vmul.f32 %v1834, %v1834
  %1839 = vadd.xlane.f32.xlu0 %v1835
  %v1840 = vpop.xlane.xlu0 %1839
  %1841 = vadd.xlane.f32.xlu0 %v1836
  %v1842 = vpop.xlane.xlu0 %1841
  %1843 = vadd.xlane.f32.xlu0 %v1837
  %v1844 = vpop.xlane.xlu0 %1843
  %1845 = vadd.xlane.f32.xlu0 %v1838
  %v1846 = vpop.xlane.xlu0 %1845
  %v1847 = vmul.f32 %v1840, %v1467
  %v1848 = vmul.f32 %v1842, %v1467
  %v1849 = vmul.f32 %v1844, %v1467
  %v1850 = vmul.f32 %v1846, %v1467
  %v1851 = vadd.f32 %v1847, 1e-05
  %v1852 = vadd.f32 %v1848, 1e-05
  %v1853 = vadd.f32 %v1849, 1e-05
  %v1854 = vadd.f32 %v1850, 1e-05
  %v1855 = vrsqrt.pop %v1851
  %v1856 = vrsqrt.pop %v1852
  %v1857 = vrsqrt.pop %v1853
  %v1858 = vrsqrt.pop %v1854
  %v1859 = vmul.f32 %v1831, %v1855
  %v1860 = vmul.f32 %v1832, %v1856
  %v1861 = vmul.f32 %v1833, %v1857
  %v1862 = vmul.f32 %v1834, %v1858
  %v1863 = vmax.f32 %v1859, 0.0
  %v1864 = vmax.f32 %v1860, 0.0
  %v1865 = vmax.f32 %v1861, 0.0
  %v1866 = vmax.f32 %v1862, 0.0
  %1868 = vset.pattern.permute.xlu0 0
  %1869 = vperm.xlu0 %1868, %v1629
  %v1870 = vpop.permute.xlu0 %1869
  %1873 = vset.pattern.permute.xlu0 0
  %1874 = vperm.xlu0 %1873, %v1630
  %v1875 = vpop.permute.xlu0 %1874
  %1878 = vset.pattern.permute.xlu0 0
  %1879 = vperm.xlu0 %1878, %v1631
  %v1880 = vpop.permute.xlu0 %1879
  %1883 = vset.pattern.permute.xlu0 0
  %1884 = vperm.xlu0 %1883, %v1632
  %v1885 = vpop.permute.xlu0 %1884
  %v1888 = vsel %vm199, %v1625, 0
  %v1891 = vsel %vm199, %v1626, 0
  %v1894 = vsel %vm199, %v1627, 0
  %v1897 = vsel %vm199, %v1628, 0
  %1899 = vmatprep.subr.mxu0 0.0
  %1900 = vmatpush1.msra.mxu0 %v1863
  %1901 = vmatprep.subr.mxu0 0.0
  %1902 = vmatpush1.msra.mxu0 %v1864
  %1903 = vmatprep.subr.mxu0 0.0
  %1904 = vmatpush1.msra.mxu0 %v1865
  %1905 = vmatprep.subr.mxu0 0.0
  %1906 = vmatpush1.msra.mxu0 %v1866
  %1907 = vmatprep.subr.mxu0 0.0
  %1908 = vmatpush1.msra.mxu0 0.0
  %1909 = vmatprep.subr.mxu0 0.0
  %1910 = vmatpush1.msra.mxu0 0.0
  %1911 = vmatprep.subr.mxu0 0.0
  %1912 = vmatpush1.msra.mxu0 0.0
  %1913 = vmatprep.subr.mxu0 0.0
  %1914 = vmatpush1.msra.mxu0 0.0
  %1915 = vmatprep.subr.mxu0 0.0
  %1916 = vmatpush1.msra.mxu0 0.0
  %1917 = vmatprep.subr.mxu0 0.0
  %1918 = vmatpush1.msra.mxu0 0.0
  %1919 = vmatprep.subr.mxu0 0.0
  %1920 = vmatpush1.msra.mxu0 0.0
  %1921 = vmatprep.subr.mxu0 0.0
  %1922 = vmatpush1.msra.mxu0 0.0
  %1923 = vmatprep.subr.mxu0 0.0
  %1924 = vmatpush1.msra.mxu0 0.0
  %1925 = vmatprep.subr.mxu0 0.0
  %1926 = vmatpush1.msra.mxu0 0.0
  %1927 = vmatprep.subr.mxu0 0.0
  %1928 = vmatpush1.msra.mxu0 0.0
  %1929 = vmatprep.subr.mxu0 0.0
  %1930 = vmatpush1.msra.mxu0 0.0
  %1931 = vmatprep.subr.mxu0 0.0
  %1932 = vmatpush1.msra.mxu0 0.0
  %1933 = vmatprep.subr.mxu0 0.0
  %1934 = vmatpush1.msra.mxu0 0.0
  %1935 = vmatprep.subr.mxu0 0.0
  %1936 = vmatpush1.msra.mxu0 0.0
  %1937 = vmatprep.subr.mxu0 0.0
  %1938 = vmatpush1.msra.mxu0 0.0
  %1939 = vmatprep.subr.mxu0 0.0
  %1940 = vmatpush1.msra.mxu0 0.0
  %1941 = vmatprep.subr.mxu0 0.0
  %1942 = vmatpush1.msra.mxu0 0.0
  %1943 = vmatprep.subr.mxu0 0.0
  %1944 = vmatpush1.msra.mxu0 0.0
  %1945 = vmatprep.subr.mxu0 0.0
  %1946 = vmatpush1.msra.mxu0 0.0
  %1947 = vmatprep.subr.mxu0 0.0
  %1948 = vmatpush1.msra.mxu0 0.0
  %1949 = vmatprep.subr.mxu0 0.0
  %1950 = vmatpush1.msra.mxu0 0.0
  %1951 = vmatprep.subr.mxu0 0.0
  %1952 = vmatpush1.msra.mxu0 0.0
  %1953 = vmatprep.subr.mxu0 0.0
  %1954 = vmatpush1.msra.mxu0 0.0
  %1955 = vmatprep.subr.mxu0 0.0
  %1956 = vmatpush1.msra.mxu0 0.0
  %1957 = vmatprep.subr.mxu0 0.0
  %1958 = vmatpush1.msra.mxu0 0.0
  %1959 = vmatprep.subr.mxu0 0.0
  %1960 = vmatpush1.msra.mxu0 0.0
  %1961 = vmatprep.subr.mxu0 0.0
  %1962 = vmatpush1.msra.mxu0 0.0
  %1963 = vmatprep.mubr.f32.mxu0 0.0
  %1964 = vmatmul.mubr.f32.gmra.mrb[0].mxu0 %v1888
  %v1965 = vpop.f32.mrb[0].mxu0
  %v1966 = vadd.f32 %v1870, %v1965
  %v1967 = vpop.f32.mrb[0].mxu0
  %1968 = vmatprep.mubr.f32.mxu0 0.0
  %1969 = vmatmul.mubr.f32.gmra.mrb[0].mxu0 %v1891
  %v1970 = vpop.f32.mrb[0].mxu0
  %v1971 = vadd.f32 %v1875, %v1970
  %v1972 = vpop.f32.mrb[0].mxu0
  %1973 = vmatprep.mubr.f32.mxu0 0.0
  %1974 = vmatmul.mubr.f32.gmra.mrb[0].mxu0 %v1894
  %v1975 = vpop.f32.mrb[0].mxu0
  %v1976 = vadd.f32 %v1880, %v1975
  %v1977 = vpop.f32.mrb[0].mxu0
  %1978 = vmatprep.mubr.f32.mxu0 0.0
  %1979 = vmatmul.mubr.f32.gmra.mrb[0].mxu0 %v1897
  %v1980 = vpop.f32.mrb[0].mxu0
  %v1981 = vadd.f32 %v1885, %v1980
  %v1982 = vpop.f32.mrb[0].mxu0
  %1983 = vdwg.mxu0
  %v1984 = vadd.f32 %v1261, %v1966
  %v1985 = vadd.f32 %v1262, %v1971
  %v1986 = vadd.f32 %v1263, %v1976
  %v1987 = vadd.f32 %v1264, %v1981
  %1988 = vmatprep.subr.mxu0 0.0
  %1989 = vmatpush1.msra.mxu0 %v34
  %1990 = vmatprep.subr.mxu0 0.0
  %1991 = vmatpush1.msra.mxu0 %v35
  %1992 = vmatprep.subr.mxu0 0.0
  %1993 = vmatpush1.msra.mxu0 %v36
  %1994 = vmatprep.subr.mxu0 0.0
  %1995 = vmatpush1.msra.mxu0 %v37
  %1996 = vmatprep.subr.mxu0 0.0
  %1997 = vmatpush1.msra.mxu0 %v38
  %1998 = vmatprep.subr.mxu0 0.0
  %1999 = vmatpush1.msra.mxu0 %v39
  %2000 = vmatprep.subr.mxu0 0.0
  %2001 = vmatpush1.msra.mxu0 %v40
  %2002 = vmatprep.subr.mxu0 0.0
  %2003 = vmatpush1.msra.mxu0 %v41
  %2004 = vmatprep.subr.mxu0 0.0
  %2005 = vmatpush1.msra.mxu0 %v42
  %2006 = vmatprep.subr.mxu0 0.0
  %2007 = vmatpush1.msra.mxu0 %v43
  %2008 = vmatprep.subr.mxu0 0.0
  %2009 = vmatpush1.msra.mxu0 %v44
  %2010 = vmatprep.subr.mxu0 0.0
  %2011 = vmatpush1.msra.mxu0 %v45
  %2012 = vmatprep.subr.mxu0 0.0
  %2013 = vmatpush1.msra.mxu0 %v46
  %2014 = vmatprep.subr.mxu0 0.0
  %2015 = vmatpush1.msra.mxu0 %v47
  %2016 = vmatprep.subr.mxu0 0.0
  %2017 = vmatpush1.msra.mxu0 %v48
  %2018 = vmatprep.subr.mxu0 0.0
  %2019 = vmatpush1.msra.mxu0 %v49
  %2020 = vmatprep.subr.mxu0 0.0
  %2021 = vmatpush1.msra.mxu0 0.0
  %2022 = vmatprep.subr.mxu0 0.0
  %2023 = vmatpush1.msra.mxu0 0.0
  %2024 = vmatprep.subr.mxu0 0.0
  %2025 = vmatpush1.msra.mxu0 0.0
  %2026 = vmatprep.subr.mxu0 0.0
  %2027 = vmatpush1.msra.mxu0 0.0
  %2028 = vmatprep.subr.mxu0 0.0
  %2029 = vmatpush1.msra.mxu0 0.0
  %2030 = vmatprep.subr.mxu0 0.0
  %2031 = vmatpush1.msra.mxu0 0.0
  %2032 = vmatprep.subr.mxu0 0.0
  %2033 = vmatpush1.msra.mxu0 0.0
  %2034 = vmatprep.subr.mxu0 0.0
  %2035 = vmatpush1.msra.mxu0 0.0
  %2036 = vmatprep.subr.mxu0 0.0
  %2037 = vmatpush1.msra.mxu0 0.0
  %2038 = vmatprep.subr.mxu0 0.0
  %2039 = vmatpush1.msra.mxu0 0.0
  %2040 = vmatprep.subr.mxu0 0.0
  %2041 = vmatpush1.msra.mxu0 0.0
  %2042 = vmatprep.subr.mxu0 0.0
  %2043 = vmatpush1.msra.mxu0 0.0
  %2044 = vmatprep.subr.mxu0 0.0
  %2045 = vmatpush1.msra.mxu0 0.0
  %2046 = vmatprep.subr.mxu0 0.0
  %2047 = vmatpush1.msra.mxu0 0.0
  %2048 = vmatprep.subr.mxu0 0.0
  %2049 = vmatpush1.msra.mxu0 0.0
  %2050 = vmatprep.subr.mxu0 0.0
  %2051 = vmatpush1.msra.mxu0 0.0
  %2052 = vmatprep.mubr.f32.mxu0 0.0
  %2053 = vmatmul.mubr.f32.gmra.mrb[0].mxu0 %v1984
  %v2054 = vpop.f32.mrb[0].mxu0
  %v2055 = vadd.f32 0.0, %v2054
  %v2056 = vpop.f32.mrb[0].mxu0
  %2057 = vmatprep.mubr.f32.mxu0 0.0
  %2058 = vmatmul.mubr.f32.gmra.mrb[0].mxu0 %v1985
  %v2059 = vpop.f32.mrb[0].mxu0
  %v2060 = vadd.f32 0.0, %v2059
  %v2061 = vpop.f32.mrb[0].mxu0
  %2062 = vmatprep.mubr.f32.mxu0 0.0
  %2063 = vmatmul.mubr.f32.gmra.mrb[0].mxu0 %v1986
  %v2064 = vpop.f32.mrb[0].mxu0
  %v2065 = vadd.f32 0.0, %v2064
  %v2066 = vpop.f32.mrb[0].mxu0
  %2067 = vmatprep.mubr.f32.mxu0 0.0
  %2068 = vmatmul.mubr.f32.gmra.mrb[0].mxu0 %v1987
  %v2069 = vpop.f32.mrb[0].mxu0
  %v2070 = vadd.f32 0.0, %v2069
  %v2071 = vpop.f32.mrb[0].mxu0
  %2072 = vdwg.mxu0
  %v2073 = vlaneseq
  %v2074 = vshrl.u32 %v2073, 7
  %v2075 = vsub.s32 0, %v2074
  %v2076 = vrot.slane %v52, %v2075
  %v2077 = vmul.f32 %v2055, %v2076
  %v2078 = vmul.f32 %v2060, %v2076
  %v2079 = vmul.f32 %v2065, %v2076
  %v2080 = vmul.f32 %v2070, %v2076
  %v2082 = vsel %vm283, %v2077, 0
  %v2085 = vsel %vm283, %v2078, 0
  %v2088 = vsel %vm283, %v2079, 0
  %v2091 = vsel %vm283, %v2080, 0
  %2093 = vmatprep.subr.mxu0 0.0
  %2094 = vmatpush1.msra.mxu0 %v50
  %2095 = vmatprep.subr.mxu0 0.0
  %2096 = vmatpush1.msra.mxu0 %v51
  %2097 = vmatprep.subr.mxu0 0.0
  %2098 = vmatpush1.msra.mxu0 0.0
  %2099 = vmatprep.subr.mxu0 0.0
  %2100 = vmatpush1.msra.mxu0 0.0
  %2101 = vmatprep.subr.mxu0 0.0
  %2102 = vmatpush1.msra.mxu0 0.0
  %2103 = vmatprep.subr.mxu0 0.0
  %2104 = vmatpush1.msra.mxu0 0.0
  %2105 = vmatprep.subr.mxu0 0.0
  %2106 = vmatpush1.msra.mxu0 0.0
  %2107 = vmatprep.subr.mxu0 0.0
  %2108 = vmatpush1.msra.mxu0 0.0
  %2109 = vmatprep.subr.mxu0 0.0
  %2110 = vmatpush1.msra.mxu0 0.0
  %2111 = vmatprep.subr.mxu0 0.0
  %2112 = vmatpush1.msra.mxu0 0.0
  %2113 = vmatprep.subr.mxu0 0.0
  %2114 = vmatpush1.msra.mxu0 0.0
  %2115 = vmatprep.subr.mxu0 0.0
  %2116 = vmatpush1.msra.mxu0 0.0
  %2117 = vmatprep.subr.mxu0 0.0
  %2118 = vmatpush1.msra.mxu0 0.0
  %2119 = vmatprep.subr.mxu0 0.0
  %2120 = vmatpush1.msra.mxu0 0.0
  %2121 = vmatprep.subr.mxu0 0.0
  %2122 = vmatpush1.msra.mxu0 0.0
  %2123 = vmatprep.subr.mxu0 0.0
  %2124 = vmatpush1.msra.mxu0 0.0
  %2125 = vmatprep.subr.mxu0 0.0
  %2126 = vmatpush1.msra.mxu0 0.0
  %2127 = vmatprep.subr.mxu0 0.0
  %2128 = vmatpush1.msra.mxu0 0.0
  %2129 = vmatprep.subr.mxu0 0.0
  %2130 = vmatpush1.msra.mxu0 0.0
  %2131 = vmatprep.subr.mxu0 0.0
  %2132 = vmatpush1.msra.mxu0 0.0
  %2133 = vmatprep.subr.mxu0 0.0
  %2134 = vmatpush1.msra.mxu0 0.0
  %2135 = vmatprep.subr.mxu0 0.0
  %2136 = vmatpush1.msra.mxu0 0.0
  %2137 = vmatprep.subr.mxu0 0.0
  %2138 = vmatpush1.msra.mxu0 0.0
  %2139 = vmatprep.subr.mxu0 0.0
  %2140 = vmatpush1.msra.mxu0 0.0
  %2141 = vmatprep.subr.mxu0 0.0
  %2142 = vmatpush1.msra.mxu0 0.0
  %2143 = vmatprep.subr.mxu0 0.0
  %2144 = vmatpush1.msra.mxu0 0.0
  %2145 = vmatprep.subr.mxu0 0.0
  %2146 = vmatpush1.msra.mxu0 0.0
  %2147 = vmatprep.subr.mxu0 0.0
  %2148 = vmatpush1.msra.mxu0 0.0
  %2149 = vmatprep.subr.mxu0 0.0
  %2150 = vmatpush1.msra.mxu0 0.0
  %2151 = vmatprep.subr.mxu0 0.0
  %2152 = vmatpush1.msra.mxu0 0.0
  %2153 = vmatprep.subr.mxu0 0.0
  %2154 = vmatpush1.msra.mxu0 0.0
  %2155 = vmatprep.subr.mxu0 0.0
  %2156 = vmatpush1.msra.mxu0 0.0
  %2157 = vmatprep.mubr.f32.mxu0 0.0
  %2158 = vmatmul.mubr.f32.gmra.mrb[0].mxu0 %v2082
  %v2159 = vpop.f32.mrb[0].mxu0
  %v2160 = vadd.f32 0.0, %v2159
  %v2161 = vpop.f32.mrb[0].mxu0
  %2162 = vmatprep.mubr.f32.mxu0 0.0
  %2163 = vmatmul.mubr.f32.gmra.mrb[0].mxu0 %v2085
  %v2164 = vpop.f32.mrb[0].mxu0
  %v2165 = vadd.f32 0.0, %v2164
  %v2166 = vpop.f32.mrb[0].mxu0
  %2167 = vmatprep.mubr.f32.mxu0 0.0
  %2168 = vmatmul.mubr.f32.gmra.mrb[0].mxu0 %v2088
  %v2169 = vpop.f32.mrb[0].mxu0
  %v2170 = vadd.f32 0.0, %v2169
  %v2171 = vpop.f32.mrb[0].mxu0
  %2172 = vmatprep.mubr.f32.mxu0 0.0
  %2173 = vmatmul.mubr.f32.gmra.mrb[0].mxu0 %v2091
  %v2174 = vpop.f32.mrb[0].mxu0
  %v2175 = vadd.f32 0.0, %v2174
  %v2176 = vpop.f32.mrb[0].mxu0
  %2177 = vdwg.mxu0
  %v2178 = vsub.f32 %v2160, %v1984
  %v2179 = vsub.f32 %v2165, %v1985
  %v2180 = vsub.f32 %v2170, %v1986
  %v2181 = vsub.f32 %v2175, %v1987
  %v2182 = vld [vmem:[%s2 + $0x1c0] sm:$0xff]
  %v2183 = vld [vmem:[%s2 + $0x1c8] sm:$0xff]
  %v2184 = vld [vmem:[%s2 + $0x1d0] sm:$0xff]
  %v2185 = vld [vmem:[%s2 + $0x1d8] sm:$0xff]
  %v2186 = vld [vmem:[%s2 + $0x1e0] sm:$0xff]
  %v2187 = vld [vmem:[%s2 + $0x1e8] sm:$0xff]
  %v2188 = vld [vmem:[%s2 + $0x1f0] sm:$0xff]
  %v2189 = vld [vmem:[%s2 + $0x1f8] sm:$0xff]
  %2190 = vmatprep.subr.mxu0 0.0
  %2191 = vmatpush1.msra.mxu0 %v14
  %2192 = vmatprep.subr.mxu0 0.0
  %2193 = vmatpush1.msra.mxu0 %v15
  %2194 = vmatprep.subr.mxu0 0.0
  %2195 = vmatpush1.msra.mxu0 %v16
  %2196 = vmatprep.subr.mxu0 0.0
  %2197 = vmatpush1.msra.mxu0 %v17
  %2198 = vmatprep.subr.mxu0 0.0
  %2199 = vmatpush1.msra.mxu0 %v18
  %2200 = vmatprep.subr.mxu0 0.0
  %2201 = vmatpush1.msra.mxu0 %v19
  %2202 = vmatprep.subr.mxu0 0.0
  %2203 = vmatpush1.msra.mxu0 %v20
  %2204 = vmatprep.subr.mxu0 0.0
  %2205 = vmatpush1.msra.mxu0 %v21
  %2206 = vmatprep.subr.mxu0 0.0
  %2207 = vmatpush1.msra.mxu0 %v22
  %2208 = vmatprep.subr.mxu0 0.0
  %2209 = vmatpush1.msra.mxu0 %v23
  %2210 = vmatprep.subr.mxu0 0.0
  %2211 = vmatpush1.msra.mxu0 %v24
  %2212 = vmatprep.subr.mxu0 0.0
  %2213 = vmatpush1.msra.mxu0 %v25
  %2214 = vmatprep.subr.mxu0 0.0
  %2215 = vmatpush1.msra.mxu0 %v26
  %2216 = vmatprep.subr.mxu0 0.0
  %2217 = vmatpush1.msra.mxu0 %v27
  %2218 = vmatprep.subr.mxu0 0.0
  %2219 = vmatpush1.msra.mxu0 %v28
  %2220 = vmatprep.subr.mxu0 0.0
  %2221 = vmatpush1.msra.mxu0 %v29
  %2222 = vmatprep.subr.mxu0 0.0
  %2223 = vmatpush1.msra.mxu0 0.0
  %2224 = vmatprep.subr.mxu0 0.0
  %2225 = vmatpush1.msra.mxu0 0.0
  %2226 = vmatprep.subr.mxu0 0.0
  %2227 = vmatpush1.msra.mxu0 0.0
  %2228 = vmatprep.subr.mxu0 0.0
  %2229 = vmatpush1.msra.mxu0 0.0
  %2230 = vmatprep.subr.mxu0 0.0
  %2231 = vmatpush1.msra.mxu0 0.0
  %2232 = vmatprep.subr.mxu0 0.0
  %2233 = vmatpush1.msra.mxu0 0.0
  %2234 = vmatprep.subr.mxu0 0.0
  %2235 = vmatpush1.msra.mxu0 0.0
  %2236 = vmatprep.subr.mxu0 0.0
  %2237 = vmatpush1.msra.mxu0 0.0
  %2238 = vmatprep.subr.mxu0 0.0
  %2239 = vmatpush1.msra.mxu0 0.0
  %2240 = vmatprep.subr.mxu0 0.0
  %2241 = vmatpush1.msra.mxu0 0.0
  %2242 = vmatprep.subr.mxu0 0.0
  %2243 = vmatpush1.msra.mxu0 0.0
  %2244 = vmatprep.subr.mxu0 0.0
  %2245 = vmatpush1.msra.mxu0 0.0
  %2246 = vmatprep.subr.mxu0 0.0
  %2247 = vmatpush1.msra.mxu0 0.0
  %2248 = vmatprep.subr.mxu0 0.0
  %2249 = vmatpush1.msra.mxu0 0.0
  %2250 = vmatprep.subr.mxu0 0.0
  %2251 = vmatpush1.msra.mxu0 0.0
  %2252 = vmatprep.subr.mxu0 0.0
  %2253 = vmatpush1.msra.mxu0 0.0
  %2254 = vmatprep.mubr.f32.mxu0 0.0
  %2255 = vmatmul.mubr.f32.gmra.mrb[0].mxu0 %v2178
  %v2256 = vpop.f32.mrb[0].mxu0
  %v2257 = vadd.f32 0.0, %v2256
  %v2258 = vpop.f32.mrb[0].mxu0
  %2259 = vmatprep.mubr.f32.mxu0 0.0
  %2260 = vmatmul.mubr.f32.gmra.mrb[0].mxu0 %v2179
  %v2261 = vpop.f32.mrb[0].mxu0
  %v2262 = vadd.f32 0.0, %v2261
  %v2263 = vpop.f32.mrb[0].mxu0
  %2264 = vmatprep.mubr.f32.mxu0 0.0
  %2265 = vmatmul.mubr.f32.gmra.mrb[0].mxu0 %v2180
  %v2266 = vpop.f32.mrb[0].mxu0
  %v2267 = vadd.f32 0.0, %v2266
  %v2268 = vpop.f32.mrb[0].mxu0
  %2269 = vmatprep.mubr.f32.mxu0 0.0
  %2270 = vmatmul.mubr.f32.gmra.mrb[0].mxu0 %v2181
  %v2271 = vpop.f32.mrb[0].mxu0
  %v2272 = vadd.f32 0.0, %v2271
  %v2273 = vpop.f32.mrb[0].mxu0
  %2274 = vdwg.mxu0
  %v2275 = vsub.f32 %v2178, %v2257
  %v2276 = vsub.f32 %v2179, %v2262
  %v2277 = vsub.f32 %v2180, %v2267
  %v2278 = vsub.f32 %v2181, %v2272
  %v2279 = vmul.f32 %v2275, %v2275
  %v2280 = vmul.f32 %v2276, %v2276
  %v2281 = vmul.f32 %v2277, %v2277
  %v2282 = vmul.f32 %v2278, %v2278
  %2283 = vmatprep.subr.mxu0 0.0
  %2284 = vmatpush1.msra.mxu0 %v14
  %2285 = vmatprep.subr.mxu0 0.0
  %2286 = vmatpush1.msra.mxu0 %v15
  %2287 = vmatprep.subr.mxu0 0.0
  %2288 = vmatpush1.msra.mxu0 %v16
  %2289 = vmatprep.subr.mxu0 0.0
  %2290 = vmatpush1.msra.mxu0 %v17
  %2291 = vmatprep.subr.mxu0 0.0
  %2292 = vmatpush1.msra.mxu0 %v18
  %2293 = vmatprep.subr.mxu0 0.0
  %2294 = vmatpush1.msra.mxu0 %v19
  %2295 = vmatprep.subr.mxu0 0.0
  %2296 = vmatpush1.msra.mxu0 %v20
  %2297 = vmatprep.subr.mxu0 0.0
  %2298 = vmatpush1.msra.mxu0 %v21
  %2299 = vmatprep.subr.mxu0 0.0
  %2300 = vmatpush1.msra.mxu0 %v22
  %2301 = vmatprep.subr.mxu0 0.0
  %2302 = vmatpush1.msra.mxu0 %v23
  %2303 = vmatprep.subr.mxu0 0.0
  %2304 = vmatpush1.msra.mxu0 %v24
  %2305 = vmatprep.subr.mxu0 0.0
  %2306 = vmatpush1.msra.mxu0 %v25
  %2307 = vmatprep.subr.mxu0 0.0
  %2308 = vmatpush1.msra.mxu0 %v26
  %2309 = vmatprep.subr.mxu0 0.0
  %2310 = vmatpush1.msra.mxu0 %v27
  %2311 = vmatprep.subr.mxu0 0.0
  %2312 = vmatpush1.msra.mxu0 %v28
  %2313 = vmatprep.subr.mxu0 0.0
  %2314 = vmatpush1.msra.mxu0 %v29
  %2315 = vmatprep.subr.mxu0 0.0
  %2316 = vmatpush1.msra.mxu0 0.0
  %2317 = vmatprep.subr.mxu0 0.0
  %2318 = vmatpush1.msra.mxu0 0.0
  %2319 = vmatprep.subr.mxu0 0.0
  %2320 = vmatpush1.msra.mxu0 0.0
  %2321 = vmatprep.subr.mxu0 0.0
  %2322 = vmatpush1.msra.mxu0 0.0
  %2323 = vmatprep.subr.mxu0 0.0
  %2324 = vmatpush1.msra.mxu0 0.0
  %2325 = vmatprep.subr.mxu0 0.0
  %2326 = vmatpush1.msra.mxu0 0.0
  %2327 = vmatprep.subr.mxu0 0.0
  %2328 = vmatpush1.msra.mxu0 0.0
  %2329 = vmatprep.subr.mxu0 0.0
  %2330 = vmatpush1.msra.mxu0 0.0
  %2331 = vmatprep.subr.mxu0 0.0
  %2332 = vmatpush1.msra.mxu0 0.0
  %2333 = vmatprep.subr.mxu0 0.0
  %2334 = vmatpush1.msra.mxu0 0.0
  %2335 = vmatprep.subr.mxu0 0.0
  %2336 = vmatpush1.msra.mxu0 0.0
  %2337 = vmatprep.subr.mxu0 0.0
  %2338 = vmatpush1.msra.mxu0 0.0
  %2339 = vmatprep.subr.mxu0 0.0
  %2340 = vmatpush1.msra.mxu0 0.0
  %2341 = vmatprep.subr.mxu0 0.0
  %2342 = vmatpush1.msra.mxu0 0.0
  %2343 = vmatprep.subr.mxu0 0.0
  %2344 = vmatpush1.msra.mxu0 0.0
  %2345 = vmatprep.subr.mxu0 0.0
  %2346 = vmatpush1.msra.mxu0 0.0
  %2347 = vmatprep.mubr.f32.mxu0 0.0
  %2348 = vmatmul.mubr.f32.gmra.mrb[0].mxu0 %v2279
  %v2349 = vpop.f32.mrb[0].mxu0
  %v2350 = vadd.f32 1e-05, %v2349
  %v2351 = vpop.f32.mrb[0].mxu0
  %2352 = vmatprep.mubr.f32.mxu0 0.0
  %2353 = vmatmul.mubr.f32.gmra.mrb[0].mxu0 %v2280
  %v2354 = vpop.f32.mrb[0].mxu0
  %v2355 = vadd.f32 1e-05, %v2354
  %v2356 = vpop.f32.mrb[0].mxu0
  %2357 = vmatprep.mubr.f32.mxu0 0.0
  %2358 = vmatmul.mubr.f32.gmra.mrb[0].mxu0 %v2281
  %v2359 = vpop.f32.mrb[0].mxu0
  %v2360 = vadd.f32 1e-05, %v2359
  %v2361 = vpop.f32.mrb[0].mxu0
  %2362 = vmatprep.mubr.f32.mxu0 0.0
  %2363 = vmatmul.mubr.f32.gmra.mrb[0].mxu0 %v2282
  %v2364 = vpop.f32.mrb[0].mxu0
  %v2365 = vadd.f32 1e-05, %v2364
  %v2366 = vpop.f32.mrb[0].mxu0
  %2367 = vdwg.mxu0
  %v2368 = vrsqrt.pop %v2350
  %v2369 = vrsqrt.pop %v2355
  %v2370 = vrsqrt.pop %v2360
  %v2371 = vrsqrt.pop %v2365
  %v2372 = vmul.f32 %v2275, %v2368
  %v2373 = vmul.f32 %v2276, %v2369
  %v2374 = vmul.f32 %v2277, %v2370
  %v2375 = vmul.f32 %v2278, %v2371
  %2376 = vadd.xlane.f32.xlu0 %v2372
  %v2377 = vpop.xlane.xlu0 %2376
  %2378 = vadd.xlane.f32.xlu0 %v2373
  %v2379 = vpop.xlane.xlu0 %2378
  %2380 = vadd.xlane.f32.xlu0 %v2374
  %v2381 = vpop.xlane.xlu0 %2380
  %2382 = vadd.xlane.f32.xlu0 %v2375
  %v2383 = vpop.xlane.xlu0 %2382
  %v2384 = vmul.f32 %v2377, %v1467
  %v2385 = vmul.f32 %v2379, %v1467
  %v2386 = vmul.f32 %v2381, %v1467
  %v2387 = vmul.f32 %v2383, %v1467
  %v2388 = vsub.f32 %v2372, %v2384
  %v2389 = vsub.f32 %v2373, %v2385
  %v2390 = vsub.f32 %v2374, %v2386
  %v2391 = vsub.f32 %v2375, %v2387
  %v2392 = vmul.f32 %v2388, %v2388
  %v2393 = vmul.f32 %v2389, %v2389
  %v2394 = vmul.f32 %v2390, %v2390
  %v2395 = vmul.f32 %v2391, %v2391
  %2396 = vadd.xlane.f32.xlu0 %v2392
  %v2397 = vpop.xlane.xlu0 %2396
  %2398 = vadd.xlane.f32.xlu0 %v2393
  %v2399 = vpop.xlane.xlu0 %2398
  %2400 = vadd.xlane.f32.xlu0 %v2394
  %v2401 = vpop.xlane.xlu0 %2400
  %2402 = vadd.xlane.f32.xlu0 %v2395
  %v2403 = vpop.xlane.xlu0 %2402
  %v2404 = vmul.f32 %v2397, %v1467
  %v2405 = vmul.f32 %v2399, %v1467
  %v2406 = vmul.f32 %v2401, %v1467
  %v2407 = vmul.f32 %v2403, %v1467
  %v2408 = vadd.f32 %v2404, 1e-05
  %v2409 = vadd.f32 %v2405, 1e-05
  %v2410 = vadd.f32 %v2406, 1e-05
  %v2411 = vadd.f32 %v2407, 1e-05
  %v2412 = vrsqrt.pop %v2408
  %v2413 = vrsqrt.pop %v2409
  %v2414 = vrsqrt.pop %v2410
  %v2415 = vrsqrt.pop %v2411
  %v2416 = vmul.f32 %v2388, %v2412
  %v2417 = vmul.f32 %v2389, %v2413
  %v2418 = vmul.f32 %v2390, %v2414
  %v2419 = vmul.f32 %v2391, %v2415
  %v2420 = vmax.f32 %v2416, 0.0
  %v2421 = vmax.f32 %v2417, 0.0
  %v2422 = vmax.f32 %v2418, 0.0
  %v2423 = vmax.f32 %v2419, 0.0
  %2425 = vset.pattern.permute.xlu0 0
  %2426 = vperm.xlu0 %2425, %v2186
  %v2427 = vpop.permute.xlu0 %2426
  %2430 = vset.pattern.permute.xlu0 0
  %2431 = vperm.xlu0 %2430, %v2187
  %v2432 = vpop.permute.xlu0 %2431
  %2435 = vset.pattern.permute.xlu0 0
  %2436 = vperm.xlu0 %2435, %v2188
  %v2437 = vpop.permute.xlu0 %2436
  %2440 = vset.pattern.permute.xlu0 0
  %2441 = vperm.xlu0 %2440, %v2189
  %v2442 = vpop.permute.xlu0 %2441
  %v2445 = vsel %vm199, %v2182, 0
  %v2448 = vsel %vm199, %v2183, 0
  %v2451 = vsel %vm199, %v2184, 0
  %v2454 = vsel %vm199, %v2185, 0
  %2456 = vmatprep.subr.mxu0 0.0
  %2457 = vmatpush1.msra.mxu0 %v2420
  %2458 = vmatprep.subr.mxu0 0.0
  %2459 = vmatpush1.msra.mxu0 %v2421
  %2460 = vmatprep.subr.mxu0 0.0
  %2461 = vmatpush1.msra.mxu0 %v2422
  %2462 = vmatprep.subr.mxu0 0.0
  %2463 = vmatpush1.msra.mxu0 %v2423
  %2464 = vmatprep.subr.mxu0 0.0
  %2465 = vmatpush1.msra.mxu0 0.0
  %2466 = vmatprep.subr.mxu0 0.0
  %2467 = vmatpush1.msra.mxu0 0.0
  %2468 = vmatprep.subr.mxu0 0.0
  %2469 = vmatpush1.msra.mxu0 0.0
  %2470 = vmatprep.subr.mxu0 0.0
  %2471 = vmatpush1.msra.mxu0 0.0
  %2472 = vmatprep.subr.mxu0 0.0
  %2473 = vmatpush1.msra.mxu0 0.0
  %2474 = vmatprep.subr.mxu0 0.0
  %2475 = vmatpush1.msra.mxu0 0.0
  %2476 = vmatprep.subr.mxu0 0.0
  %2477 = vmatpush1.msra.mxu0 0.0
  %2478 = vmatprep.subr.mxu0 0.0
  %2479 = vmatpush1.msra.mxu0 0.0
  %2480 = vmatprep.subr.mxu0 0.0
  %2481 = vmatpush1.msra.mxu0 0.0
  %2482 = vmatprep.subr.mxu0 0.0
  %2483 = vmatpush1.msra.mxu0 0.0
  %2484 = vmatprep.subr.mxu0 0.0
  %2485 = vmatpush1.msra.mxu0 0.0
  %2486 = vmatprep.subr.mxu0 0.0
  %2487 = vmatpush1.msra.mxu0 0.0
  %2488 = vmatprep.subr.mxu0 0.0
  %2489 = vmatpush1.msra.mxu0 0.0
  %2490 = vmatprep.subr.mxu0 0.0
  %2491 = vmatpush1.msra.mxu0 0.0
  %2492 = vmatprep.subr.mxu0 0.0
  %2493 = vmatpush1.msra.mxu0 0.0
  %2494 = vmatprep.subr.mxu0 0.0
  %2495 = vmatpush1.msra.mxu0 0.0
  %2496 = vmatprep.subr.mxu0 0.0
  %2497 = vmatpush1.msra.mxu0 0.0
  %2498 = vmatprep.subr.mxu0 0.0
  %2499 = vmatpush1.msra.mxu0 0.0
  %2500 = vmatprep.subr.mxu0 0.0
  %2501 = vmatpush1.msra.mxu0 0.0
  %2502 = vmatprep.subr.mxu0 0.0
  %2503 = vmatpush1.msra.mxu0 0.0
  %2504 = vmatprep.subr.mxu0 0.0
  %2505 = vmatpush1.msra.mxu0 0.0
  %2506 = vmatprep.subr.mxu0 0.0
  %2507 = vmatpush1.msra.mxu0 0.0
  %2508 = vmatprep.subr.mxu0 0.0
  %2509 = vmatpush1.msra.mxu0 0.0
  %2510 = vmatprep.subr.mxu0 0.0
  %2511 = vmatpush1.msra.mxu0 0.0
  %2512 = vmatprep.subr.mxu0 0.0
  %2513 = vmatpush1.msra.mxu0 0.0
  %2514 = vmatprep.subr.mxu0 0.0
  %2515 = vmatpush1.msra.mxu0 0.0
  %2516 = vmatprep.subr.mxu0 0.0
  %2517 = vmatpush1.msra.mxu0 0.0
  %2518 = vmatprep.subr.mxu0 0.0
  %2519 = vmatpush1.msra.mxu0 0.0
  %2520 = vmatprep.mubr.f32.mxu0 0.0
  %2521 = vmatmul.mubr.f32.gmra.mrb[0].mxu0 %v2445
  %v2522 = vpop.f32.mrb[0].mxu0
  %v2523 = vadd.f32 %v2427, %v2522
  %v2524 = vpop.f32.mrb[0].mxu0
  %2525 = vmatprep.mubr.f32.mxu0 0.0
  %2526 = vmatmul.mubr.f32.gmra.mrb[0].mxu0 %v2448
  %v2527 = vpop.f32.mrb[0].mxu0
  %v2528 = vadd.f32 %v2432, %v2527
  %v2529 = vpop.f32.mrb[0].mxu0
  %2530 = vmatprep.mubr.f32.mxu0 0.0
  %2531 = vmatmul.mubr.f32.gmra.mrb[0].mxu0 %v2451
  %v2532 = vpop.f32.mrb[0].mxu0
  %v2533 = vadd.f32 %v2437, %v2532
  %v2534 = vpop.f32.mrb[0].mxu0
  %2535 = vmatprep.mubr.f32.mxu0 0.0
  %2536 = vmatmul.mubr.f32.gmra.mrb[0].mxu0 %v2454
  %v2537 = vpop.f32.mrb[0].mxu0
  %v2538 = vadd.f32 %v2442, %v2537
  %v2539 = vpop.f32.mrb[0].mxu0
  %2540 = vdwg.mxu0
  %v2541 = vld [vmem:[%s2 + $0x200] sm:$0xff]
  %v2542 = vld [vmem:[%s2 + $0x208] sm:$0xff]
  %v2543 = vld [vmem:[%s2 + $0x210] sm:$0xff]
  %v2544 = vld [vmem:[%s2 + $0x218] sm:$0xff]
  %v2545 = vld [vmem:[%s2 + $0x220] sm:$0xff]
  %v2546 = vld [vmem:[%s2 + $0x228] sm:$0xff]
  %v2547 = vld [vmem:[%s2 + $0x230] sm:$0xff]
  %v2548 = vld [vmem:[%s2 + $0x238] sm:$0xff]
  %2549 = vmatprep.subr.mxu0 0.0
  %2550 = vmatpush1.msra.mxu0 %v14
  %2551 = vmatprep.subr.mxu0 0.0
  %2552 = vmatpush1.msra.mxu0 %v15
  %2553 = vmatprep.subr.mxu0 0.0
  %2554 = vmatpush1.msra.mxu0 %v16
  %2555 = vmatprep.subr.mxu0 0.0
  %2556 = vmatpush1.msra.mxu0 %v17
  %2557 = vmatprep.subr.mxu0 0.0
  %2558 = vmatpush1.msra.mxu0 %v18
  %2559 = vmatprep.subr.mxu0 0.0
  %2560 = vmatpush1.msra.mxu0 %v19
  %2561 = vmatprep.subr.mxu0 0.0
  %2562 = vmatpush1.msra.mxu0 %v20
  %2563 = vmatprep.subr.mxu0 0.0
  %2564 = vmatpush1.msra.mxu0 %v21
  %2565 = vmatprep.subr.mxu0 0.0
  %2566 = vmatpush1.msra.mxu0 %v22
  %2567 = vmatprep.subr.mxu0 0.0
  %2568 = vmatpush1.msra.mxu0 %v23
  %2569 = vmatprep.subr.mxu0 0.0
  %2570 = vmatpush1.msra.mxu0 %v24
  %2571 = vmatprep.subr.mxu0 0.0
  %2572 = vmatpush1.msra.mxu0 %v25
  %2573 = vmatprep.subr.mxu0 0.0
  %2574 = vmatpush1.msra.mxu0 %v26
  %2575 = vmatprep.subr.mxu0 0.0
  %2576 = vmatpush1.msra.mxu0 %v27
  %2577 = vmatprep.subr.mxu0 0.0
  %2578 = vmatpush1.msra.mxu0 %v28
  %2579 = vmatprep.subr.mxu0 0.0
  %2580 = vmatpush1.msra.mxu0 %v29
  %2581 = vmatprep.subr.mxu0 0.0
  %2582 = vmatpush1.msra.mxu0 0.0
  %2583 = vmatprep.subr.mxu0 0.0
  %2584 = vmatpush1.msra.mxu0 0.0
  %2585 = vmatprep.subr.mxu0 0.0
  %2586 = vmatpush1.msra.mxu0 0.0
  %2587 = vmatprep.subr.mxu0 0.0
  %2588 = vmatpush1.msra.mxu0 0.0
  %2589 = vmatprep.subr.mxu0 0.0
  %2590 = vmatpush1.msra.mxu0 0.0
  %2591 = vmatprep.subr.mxu0 0.0
  %2592 = vmatpush1.msra.mxu0 0.0
  %2593 = vmatprep.subr.mxu0 0.0
  %2594 = vmatpush1.msra.mxu0 0.0
  %2595 = vmatprep.subr.mxu0 0.0
  %2596 = vmatpush1.msra.mxu0 0.0
  %2597 = vmatprep.subr.mxu0 0.0
  %2598 = vmatpush1.msra.mxu0 0.0
  %2599 = vmatprep.subr.mxu0 0.0
  %2600 = vmatpush1.msra.mxu0 0.0
  %2601 = vmatprep.subr.mxu0 0.0
  %2602 = vmatpush1.msra.mxu0 0.0
  %2603 = vmatprep.subr.mxu0 0.0
  %2604 = vmatpush1.msra.mxu0 0.0
  %2605 = vmatprep.subr.mxu0 0.0
  %2606 = vmatpush1.msra.mxu0 0.0
  %2607 = vmatprep.subr.mxu0 0.0
  %2608 = vmatpush1.msra.mxu0 0.0
  %2609 = vmatprep.subr.mxu0 0.0
  %2610 = vmatpush1.msra.mxu0 0.0
  %2611 = vmatprep.subr.mxu0 0.0
  %2612 = vmatpush1.msra.mxu0 0.0
  %2613 = vmatprep.mubr.f32.mxu0 0.0
  %2614 = vmatmul.mubr.f32.gmra.mrb[0].mxu0 %v2523
  %v2615 = vpop.f32.mrb[0].mxu0
  %v2616 = vadd.f32 0.0, %v2615
  %v2617 = vpop.f32.mrb[0].mxu0
  %2618 = vmatprep.mubr.f32.mxu0 0.0
  %2619 = vmatmul.mubr.f32.gmra.mrb[0].mxu0 %v2528
  %v2620 = vpop.f32.mrb[0].mxu0
  %v2621 = vadd.f32 0.0, %v2620
  %v2622 = vpop.f32.mrb[0].mxu0
  %2623 = vmatprep.mubr.f32.mxu0 0.0
  %2624 = vmatmul.mubr.f32.gmra.mrb[0].mxu0 %v2533
  %v2625 = vpop.f32.mrb[0].mxu0
  %v2626 = vadd.f32 0.0, %v2625
  %v2627 = vpop.f32.mrb[0].mxu0
  %2628 = vmatprep.mubr.f32.mxu0 0.0
  %2629 = vmatmul.mubr.f32.gmra.mrb[0].mxu0 %v2538
  %v2630 = vpop.f32.mrb[0].mxu0
  %v2631 = vadd.f32 0.0, %v2630
  %v2632 = vpop.f32.mrb[0].mxu0
  %2633 = vdwg.mxu0
  %v2634 = vsub.f32 %v2523, %v2616
  %v2635 = vsub.f32 %v2528, %v2621
  %v2636 = vsub.f32 %v2533, %v2626
  %v2637 = vsub.f32 %v2538, %v2631
  %v2638 = vmul.f32 %v2634, %v2634
  %v2639 = vmul.f32 %v2635, %v2635
  %v2640 = vmul.f32 %v2636, %v2636
  %v2641 = vmul.f32 %v2637, %v2637
  %2642 = vmatprep.subr.mxu0 0.0
  %2643 = vmatpush1.msra.mxu0 %v14
  %2644 = vmatprep.subr.mxu0 0.0
  %2645 = vmatpush1.msra.mxu0 %v15
  %2646 = vmatprep.subr.mxu0 0.0
  %2647 = vmatpush1.msra.mxu0 %v16
  %2648 = vmatprep.subr.mxu0 0.0
  %2649 = vmatpush1.msra.mxu0 %v17
  %2650 = vmatprep.subr.mxu0 0.0
  %2651 = vmatpush1.msra.mxu0 %v18
  %2652 = vmatprep.subr.mxu0 0.0
  %2653 = vmatpush1.msra.mxu0 %v19
  %2654 = vmatprep.subr.mxu0 0.0
  %2655 = vmatpush1.msra.mxu0 %v20
  %2656 = vmatprep.subr.mxu0 0.0
  %2657 = vmatpush1.msra.mxu0 %v21
  %2658 = vmatprep.subr.mxu0 0.0
  %2659 = vmatpush1.msra.mxu0 %v22
  %2660 = vmatprep.subr.mxu0 0.0
  %2661 = vmatpush1.msra.mxu0 %v23
  %2662 = vmatprep.subr.mxu0 0.0
  %2663 = vmatpush1.msra.mxu0 %v24
  %2664 = vmatprep.subr.mxu0 0.0
  %2665 = vmatpush1.msra.mxu0 %v25
  %2666 = vmatprep.subr.mxu0 0.0
  %2667 = vmatpush1.msra.mxu0 %v26
  %2668 = vmatprep.subr.mxu0 0.0
  %2669 = vmatpush1.msra.mxu0 %v27
  %2670 = vmatprep.subr.mxu0 0.0
  %2671 = vmatpush1.msra.mxu0 %v28
  %2672 = vmatprep.subr.mxu0 0.0
  %2673 = vmatpush1.msra.mxu0 %v29
  %2674 = vmatprep.subr.mxu0 0.0
  %2675 = vmatpush1.msra.mxu0 0.0
  %2676 = vmatprep.subr.mxu0 0.0
  %2677 = vmatpush1.msra.mxu0 0.0
  %2678 = vmatprep.subr.mxu0 0.0
  %2679 = vmatpush1.msra.mxu0 0.0
  %2680 = vmatprep.subr.mxu0 0.0
  %2681 = vmatpush1.msra.mxu0 0.0
  %2682 = vmatprep.subr.mxu0 0.0
  %2683 = vmatpush1.msra.mxu0 0.0
  %2684 = vmatprep.subr.mxu0 0.0
  %2685 = vmatpush1.msra.mxu0 0.0
  %2686 = vmatprep.subr.mxu0 0.0
  %2687 = vmatpush1.msra.mxu0 0.0
  %2688 = vmatprep.subr.mxu0 0.0
  %2689 = vmatpush1.msra.mxu0 0.0
  %2690 = vmatprep.subr.mxu0 0.0
  %2691 = vmatpush1.msra.mxu0 0.0
  %2692 = vmatprep.subr.mxu0 0.0
  %2693 = vmatpush1.msra.mxu0 0.0
  %2694 = vmatprep.subr.mxu0 0.0
  %2695 = vmatpush1.msra.mxu0 0.0
  %2696 = vmatprep.subr.mxu0 0.0
  %2697 = vmatpush1.msra.mxu0 0.0
  %2698 = vmatprep.subr.mxu0 0.0
  %2699 = vmatpush1.msra.mxu0 0.0
  %2700 = vmatprep.subr.mxu0 0.0
  %2701 = vmatpush1.msra.mxu0 0.0
  %2702 = vmatprep.subr.mxu0 0.0
  %2703 = vmatpush1.msra.mxu0 0.0
  %2704 = vmatprep.subr.mxu0 0.0
  %2705 = vmatpush1.msra.mxu0 0.0
  %2706 = vmatprep.mubr.f32.mxu0 0.0
  %2707 = vmatmul.mubr.f32.gmra.mrb[0].mxu0 %v2638
  %v2708 = vpop.f32.mrb[0].mxu0
  %v2709 = vadd.f32 1e-05, %v2708
  %v2710 = vpop.f32.mrb[0].mxu0
  %2711 = vmatprep.mubr.f32.mxu0 0.0
  %2712 = vmatmul.mubr.f32.gmra.mrb[0].mxu0 %v2639
  %v2713 = vpop.f32.mrb[0].mxu0
  %v2714 = vadd.f32 1e-05, %v2713
  %v2715 = vpop.f32.mrb[0].mxu0
  %2716 = vmatprep.mubr.f32.mxu0 0.0
  %2717 = vmatmul.mubr.f32.gmra.mrb[0].mxu0 %v2640
  %v2718 = vpop.f32.mrb[0].mxu0
  %v2719 = vadd.f32 1e-05, %v2718
  %v2720 = vpop.f32.mrb[0].mxu0
  %2721 = vmatprep.mubr.f32.mxu0 0.0
  %2722 = vmatmul.mubr.f32.gmra.mrb[0].mxu0 %v2641
  %v2723 = vpop.f32.mrb[0].mxu0
  %v2724 = vadd.f32 1e-05, %v2723
  %v2725 = vpop.f32.mrb[0].mxu0
  %2726 = vdwg.mxu0
  %v2727 = vrsqrt.pop %v2709
  %v2728 = vrsqrt.pop %v2714
  %v2729 = vrsqrt.pop %v2719
  %v2730 = vrsqrt.pop %v2724
  %v2731 = vmul.f32 %v2634, %v2727
  %v2732 = vmul.f32 %v2635, %v2728
  %v2733 = vmul.f32 %v2636, %v2729
  %v2734 = vmul.f32 %v2637, %v2730
  %2735 = vadd.xlane.f32.xlu0 %v2731
  %v2736 = vpop.xlane.xlu0 %2735
  %2737 = vadd.xlane.f32.xlu0 %v2732
  %v2738 = vpop.xlane.xlu0 %2737
  %2739 = vadd.xlane.f32.xlu0 %v2733
  %v2740 = vpop.xlane.xlu0 %2739
  %2741 = vadd.xlane.f32.xlu0 %v2734
  %v2742 = vpop.xlane.xlu0 %2741
  %v2743 = vmul.f32 %v2736, %v1467
  %v2744 = vmul.f32 %v2738, %v1467
  %v2745 = vmul.f32 %v2740, %v1467
  %v2746 = vmul.f32 %v2742, %v1467
  %v2747 = vsub.f32 %v2731, %v2743
  %v2748 = vsub.f32 %v2732, %v2744
  %v2749 = vsub.f32 %v2733, %v2745
  %v2750 = vsub.f32 %v2734, %v2746
  %v2751 = vmul.f32 %v2747, %v2747
  %v2752 = vmul.f32 %v2748, %v2748
  %v2753 = vmul.f32 %v2749, %v2749
  %v2754 = vmul.f32 %v2750, %v2750
  %2755 = vadd.xlane.f32.xlu0 %v2751
  %v2756 = vpop.xlane.xlu0 %2755
  %2757 = vadd.xlane.f32.xlu0 %v2752
  %v2758 = vpop.xlane.xlu0 %2757
  %2759 = vadd.xlane.f32.xlu0 %v2753
  %v2760 = vpop.xlane.xlu0 %2759
  %2761 = vadd.xlane.f32.xlu0 %v2754
  %v2762 = vpop.xlane.xlu0 %2761
  %v2763 = vmul.f32 %v2756, %v1467
  %v2764 = vmul.f32 %v2758, %v1467
  %v2765 = vmul.f32 %v2760, %v1467
  %v2766 = vmul.f32 %v2762, %v1467
  %v2767 = vadd.f32 %v2763, 1e-05
  %v2768 = vadd.f32 %v2764, 1e-05
  %v2769 = vadd.f32 %v2765, 1e-05
  %v2770 = vadd.f32 %v2766, 1e-05
  %v2771 = vrsqrt.pop %v2767
  %v2772 = vrsqrt.pop %v2768
  %v2773 = vrsqrt.pop %v2769
  %v2774 = vrsqrt.pop %v2770
  %v2775 = vmul.f32 %v2747, %v2771
  %v2776 = vmul.f32 %v2748, %v2772
  %v2777 = vmul.f32 %v2749, %v2773
  %v2778 = vmul.f32 %v2750, %v2774
  %v2779 = vmax.f32 %v2775, 0.0
  %v2780 = vmax.f32 %v2776, 0.0
  %v2781 = vmax.f32 %v2777, 0.0
  %v2782 = vmax.f32 %v2778, 0.0
  %2784 = vset.pattern.permute.xlu0 0
  %2785 = vperm.xlu0 %2784, %v2545
  %v2786 = vpop.permute.xlu0 %2785
  %2789 = vset.pattern.permute.xlu0 0
  %2790 = vperm.xlu0 %2789, %v2546
  %v2791 = vpop.permute.xlu0 %2790
  %2794 = vset.pattern.permute.xlu0 0
  %2795 = vperm.xlu0 %2794, %v2547
  %v2796 = vpop.permute.xlu0 %2795
  %2799 = vset.pattern.permute.xlu0 0
  %2800 = vperm.xlu0 %2799, %v2548
  %v2801 = vpop.permute.xlu0 %2800
  %v2804 = vsel %vm199, %v2541, 0
  %v2807 = vsel %vm199, %v2542, 0
  %v2810 = vsel %vm199, %v2543, 0
  %v2813 = vsel %vm199, %v2544, 0
  %2815 = vmatprep.subr.mxu0 0.0
  %2816 = vmatpush1.msra.mxu0 %v2779
  %2817 = vmatprep.subr.mxu0 0.0
  %2818 = vmatpush1.msra.mxu0 %v2780
  %2819 = vmatprep.subr.mxu0 0.0
  %2820 = vmatpush1.msra.mxu0 %v2781
  %2821 = vmatprep.subr.mxu0 0.0
  %2822 = vmatpush1.msra.mxu0 %v2782
  %2823 = vmatprep.subr.mxu0 0.0
  %2824 = vmatpush1.msra.mxu0 0.0
  %2825 = vmatprep.subr.mxu0 0.0
  %2826 = vmatpush1.msra.mxu0 0.0
  %2827 = vmatprep.subr.mxu0 0.0
  %2828 = vmatpush1.msra.mxu0 0.0
  %2829 = vmatprep.subr.mxu0 0.0
  %2830 = vmatpush1.msra.mxu0 0.0
  %2831 = vmatprep.subr.mxu0 0.0
  %2832 = vmatpush1.msra.mxu0 0.0
  %2833 = vmatprep.subr.mxu0 0.0
  %2834 = vmatpush1.msra.mxu0 0.0
  %2835 = vmatprep.subr.mxu0 0.0
  %2836 = vmatpush1.msra.mxu0 0.0
  %2837 = vmatprep.subr.mxu0 0.0
  %2838 = vmatpush1.msra.mxu0 0.0
  %2839 = vmatprep.subr.mxu0 0.0
  %2840 = vmatpush1.msra.mxu0 0.0
  %2841 = vmatprep.subr.mxu0 0.0
  %2842 = vmatpush1.msra.mxu0 0.0
  %2843 = vmatprep.subr.mxu0 0.0
  %2844 = vmatpush1.msra.mxu0 0.0
  %2845 = vmatprep.subr.mxu0 0.0
  %2846 = vmatpush1.msra.mxu0 0.0
  %2847 = vmatprep.subr.mxu0 0.0
  %2848 = vmatpush1.msra.mxu0 0.0
  %2849 = vmatprep.subr.mxu0 0.0
  %2850 = vmatpush1.msra.mxu0 0.0
  %2851 = vmatprep.subr.mxu0 0.0
  %2852 = vmatpush1.msra.mxu0 0.0
  %2853 = vmatprep.subr.mxu0 0.0
  %2854 = vmatpush1.msra.mxu0 0.0
  %2855 = vmatprep.subr.mxu0 0.0
  %2856 = vmatpush1.msra.mxu0 0.0
  %2857 = vmatprep.subr.mxu0 0.0
  %2858 = vmatpush1.msra.mxu0 0.0
  %2859 = vmatprep.subr.mxu0 0.0
  %2860 = vmatpush1.msra.mxu0 0.0
  %2861 = vmatprep.subr.mxu0 0.0
  %2862 = vmatpush1.msra.mxu0 0.0
  %2863 = vmatprep.subr.mxu0 0.0
  %2864 = vmatpush1.msra.mxu0 0.0
  %2865 = vmatprep.subr.mxu0 0.0
  %2866 = vmatpush1.msra.mxu0 0.0
  %2867 = vmatprep.subr.mxu0 0.0
  %2868 = vmatpush1.msra.mxu0 0.0
  %2869 = vmatprep.subr.mxu0 0.0
  %2870 = vmatpush1.msra.mxu0 0.0
  %2871 = vmatprep.subr.mxu0 0.0
  %2872 = vmatpush1.msra.mxu0 0.0
  %2873 = vmatprep.subr.mxu0 0.0
  %2874 = vmatpush1.msra.mxu0 0.0
  %2875 = vmatprep.subr.mxu0 0.0
  %2876 = vmatpush1.msra.mxu0 0.0
  %2877 = vmatprep.subr.mxu0 0.0
  %2878 = vmatpush1.msra.mxu0 0.0
  %2879 = vmatprep.mubr.f32.mxu0 0.0
  %2880 = vmatmul.mubr.f32.gmra.mrb[0].mxu0 %v2804
  %v2881 = vpop.f32.mrb[0].mxu0
  %v2882 = vadd.f32 %v2786, %v2881
  %v2883 = vpop.f32.mrb[0].mxu0
  %2884 = vmatprep.mubr.f32.mxu0 0.0
  %2885 = vmatmul.mubr.f32.gmra.mrb[0].mxu0 %v2807
  %v2886 = vpop.f32.mrb[0].mxu0
  %v2887 = vadd.f32 %v2791, %v2886
  %v2888 = vpop.f32.mrb[0].mxu0
  %2889 = vmatprep.mubr.f32.mxu0 0.0
  %2890 = vmatmul.mubr.f32.gmra.mrb[0].mxu0 %v2810
  %v2891 = vpop.f32.mrb[0].mxu0
  %v2892 = vadd.f32 %v2796, %v2891
  %v2893 = vpop.f32.mrb[0].mxu0
  %2894 = vmatprep.mubr.f32.mxu0 0.0
  %2895 = vmatmul.mubr.f32.gmra.mrb[0].mxu0 %v2813
  %v2896 = vpop.f32.mrb[0].mxu0
  %v2897 = vadd.f32 %v2801, %v2896
  %v2898 = vpop.f32.mrb[0].mxu0
  %2899 = vdwg.mxu0
  %v2900 = vadd.f32 %v1984, %v2882
  %v2901 = vadd.f32 %v1985, %v2887
  %v2902 = vadd.f32 %v1986, %v2892
  %v2903 = vadd.f32 %v1987, %v2897
  %v2904 = vld [vmem:[%s2 + $0x340] sm:$0xff]
  %v2905 = vld [vmem:[%s2 + $0x348] sm:$0xff]
  %v2906 = vld [vmem:[%s2 + $0x350] sm:$0xff]
  %v2907 = vld [vmem:[%s2 + $0x358] sm:$0xff]
  %2908 = vmatprep.subr.mxu0 0.0
  %2909 = vmatpush1.msra.mxu0 %v14
  %2910 = vmatprep.subr.mxu0 0.0
  %2911 = vmatpush1.msra.mxu0 %v15
  %2912 = vmatprep.subr.mxu0 0.0
  %2913 = vmatpush1.msra.mxu0 %v16
  %2914 = vmatprep.subr.mxu0 0.0
  %2915 = vmatpush1.msra.mxu0 %v17
  %2916 = vmatprep.subr.mxu0 0.0
  %2917 = vmatpush1.msra.mxu0 %v18
  %2918 = vmatprep.subr.mxu0 0.0
  %2919 = vmatpush1.msra.mxu0 %v19
  %2920 = vmatprep.subr.mxu0 0.0
  %2921 = vmatpush1.msra.mxu0 %v20
  %2922 = vmatprep.subr.mxu0 0.0
  %2923 = vmatpush1.msra.mxu0 %v21
  %2924 = vmatprep.subr.mxu0 0.0
  %2925 = vmatpush1.msra.mxu0 %v22
  %2926 = vmatprep.subr.mxu0 0.0
  %2927 = vmatpush1.msra.mxu0 %v23
  %2928 = vmatprep.subr.mxu0 0.0
  %2929 = vmatpush1.msra.mxu0 %v24
  %2930 = vmatprep.subr.mxu0 0.0
  %2931 = vmatpush1.msra.mxu0 %v25
  %2932 = vmatprep.subr.mxu0 0.0
  %2933 = vmatpush1.msra.mxu0 %v26
  %2934 = vmatprep.subr.mxu0 0.0
  %2935 = vmatpush1.msra.mxu0 %v27
  %2936 = vmatprep.subr.mxu0 0.0
  %2937 = vmatpush1.msra.mxu0 %v28
  %2938 = vmatprep.subr.mxu0 0.0
  %2939 = vmatpush1.msra.mxu0 %v29
  %2940 = vmatprep.subr.mxu0 0.0
  %2941 = vmatpush1.msra.mxu0 0.0
  %2942 = vmatprep.subr.mxu0 0.0
  %2943 = vmatpush1.msra.mxu0 0.0
  %2944 = vmatprep.subr.mxu0 0.0
  %2945 = vmatpush1.msra.mxu0 0.0
  %2946 = vmatprep.subr.mxu0 0.0
  %2947 = vmatpush1.msra.mxu0 0.0
  %2948 = vmatprep.subr.mxu0 0.0
  %2949 = vmatpush1.msra.mxu0 0.0
  %2950 = vmatprep.subr.mxu0 0.0
  %2951 = vmatpush1.msra.mxu0 0.0
  %2952 = vmatprep.subr.mxu0 0.0
  %2953 = vmatpush1.msra.mxu0 0.0
  %2954 = vmatprep.subr.mxu0 0.0
  %2955 = vmatpush1.msra.mxu0 0.0
  %2956 = vmatprep.subr.mxu0 0.0
  %2957 = vmatpush1.msra.mxu0 0.0
  %2958 = vmatprep.subr.mxu0 0.0
  %2959 = vmatpush1.msra.mxu0 0.0
  %2960 = vmatprep.subr.mxu0 0.0
  %2961 = vmatpush1.msra.mxu0 0.0
  %2962 = vmatprep.subr.mxu0 0.0
  %2963 = vmatpush1.msra.mxu0 0.0
  %2964 = vmatprep.subr.mxu0 0.0
  %2965 = vmatpush1.msra.mxu0 0.0
  %2966 = vmatprep.subr.mxu0 0.0
  %2967 = vmatpush1.msra.mxu0 0.0
  %2968 = vmatprep.subr.mxu0 0.0
  %2969 = vmatpush1.msra.mxu0 0.0
  %2970 = vmatprep.subr.mxu0 0.0
  %2971 = vmatpush1.msra.mxu0 0.0
  %2972 = vmatprep.mubr.f32.mxu0 0.0
  %2973 = vmatmul.mubr.f32.gmra.mrb[0].mxu0 %v2900
  %v2974 = vpop.f32.mrb[0].mxu0
  %v2975 = vadd.f32 0.0, %v2974
  %v2976 = vpop.f32.mrb[0].mxu0
  %2977 = vmatprep.mubr.f32.mxu0 0.0
  %2978 = vmatmul.mubr.f32.gmra.mrb[0].mxu0 %v2901
  %v2979 = vpop.f32.mrb[0].mxu0
  %v2980 = vadd.f32 0.0, %v2979
  %v2981 = vpop.f32.mrb[0].mxu0
  %2982 = vmatprep.mubr.f32.mxu0 0.0
  %2983 = vmatmul.mubr.f32.gmra.mrb[0].mxu0 %v2902
  %v2984 = vpop.f32.mrb[0].mxu0
  %v2985 = vadd.f32 0.0, %v2984
  %v2986 = vpop.f32.mrb[0].mxu0
  %2987 = vmatprep.mubr.f32.mxu0 0.0
  %2988 = vmatmul.mubr.f32.gmra.mrb[0].mxu0 %v2903
  %v2989 = vpop.f32.mrb[0].mxu0
  %v2990 = vadd.f32 0.0, %v2989
  %v2991 = vpop.f32.mrb[0].mxu0
  %2992 = vdwg.mxu0
  %v2993 = vsub.f32 %v2900, %v2975
  %v2994 = vsub.f32 %v2901, %v2980
  %v2995 = vsub.f32 %v2902, %v2985
  %v2996 = vsub.f32 %v2903, %v2990
  %v2997 = vmul.f32 %v2993, %v2993
  %v2998 = vmul.f32 %v2994, %v2994
  %v2999 = vmul.f32 %v2995, %v2995
  %v3000 = vmul.f32 %v2996, %v2996
  %3001 = vmatprep.subr.mxu0 0.0
  %3002 = vmatpush1.msra.mxu0 %v14
  %3003 = vmatprep.subr.mxu0 0.0
  %3004 = vmatpush1.msra.mxu0 %v15
  %3005 = vmatprep.subr.mxu0 0.0
  %3006 = vmatpush1.msra.mxu0 %v16
  %3007 = vmatprep.subr.mxu0 0.0
  %3008 = vmatpush1.msra.mxu0 %v17
  %3009 = vmatprep.subr.mxu0 0.0
  %3010 = vmatpush1.msra.mxu0 %v18
  %3011 = vmatprep.subr.mxu0 0.0
  %3012 = vmatpush1.msra.mxu0 %v19
  %3013 = vmatprep.subr.mxu0 0.0
  %3014 = vmatpush1.msra.mxu0 %v20
  %3015 = vmatprep.subr.mxu0 0.0
  %3016 = vmatpush1.msra.mxu0 %v21
  %3017 = vmatprep.subr.mxu0 0.0
  %3018 = vmatpush1.msra.mxu0 %v22
  %3019 = vmatprep.subr.mxu0 0.0
  %3020 = vmatpush1.msra.mxu0 %v23
  %3021 = vmatprep.subr.mxu0 0.0
  %3022 = vmatpush1.msra.mxu0 %v24
  %3023 = vmatprep.subr.mxu0 0.0
  %3024 = vmatpush1.msra.mxu0 %v25
  %3025 = vmatprep.subr.mxu0 0.0
  %3026 = vmatpush1.msra.mxu0 %v26
  %3027 = vmatprep.subr.mxu0 0.0
  %3028 = vmatpush1.msra.mxu0 %v27
  %3029 = vmatprep.subr.mxu0 0.0
  %3030 = vmatpush1.msra.mxu0 %v28
  %3031 = vmatprep.subr.mxu0 0.0
  %3032 = vmatpush1.msra.mxu0 %v29
  %3033 = vmatprep.subr.mxu0 0.0
  %3034 = vmatpush1.msra.mxu0 0.0
  %3035 = vmatprep.subr.mxu0 0.0
  %3036 = vmatpush1.msra.mxu0 0.0
  %3037 = vmatprep.subr.mxu0 0.0
  %3038 = vmatpush1.msra.mxu0 0.0
  %3039 = vmatprep.subr.mxu0 0.0
  %3040 = vmatpush1.msra.mxu0 0.0
  %3041 = vmatprep.subr.mxu0 0.0
  %3042 = vmatpush1.msra.mxu0 0.0
  %3043 = vmatprep.subr.mxu0 0.0
  %3044 = vmatpush1.msra.mxu0 0.0
  %3045 = vmatprep.subr.mxu0 0.0
  %3046 = vmatpush1.msra.mxu0 0.0
  %3047 = vmatprep.subr.mxu0 0.0
  %3048 = vmatpush1.msra.mxu0 0.0
  %3049 = vmatprep.subr.mxu0 0.0
  %3050 = vmatpush1.msra.mxu0 0.0
  %3051 = vmatprep.subr.mxu0 0.0
  %3052 = vmatpush1.msra.mxu0 0.0
  %3053 = vmatprep.subr.mxu0 0.0
  %3054 = vmatpush1.msra.mxu0 0.0
  %3055 = vmatprep.subr.mxu0 0.0
  %3056 = vmatpush1.msra.mxu0 0.0
  %3057 = vmatprep.subr.mxu0 0.0
  %3058 = vmatpush1.msra.mxu0 0.0
  %3059 = vmatprep.subr.mxu0 0.0
  %3060 = vmatpush1.msra.mxu0 0.0
  %3061 = vmatprep.subr.mxu0 0.0
  %3062 = vmatpush1.msra.mxu0 0.0
  %3063 = vmatprep.subr.mxu0 0.0
  %3064 = vmatpush1.msra.mxu0 0.0
  %3065 = vmatprep.mubr.f32.mxu0 0.0
  %3066 = vmatmul.mubr.f32.gmra.mrb[0].mxu0 %v2997
  %v3067 = vpop.f32.mrb[0].mxu0
  %v3068 = vadd.f32 0.001, %v3067
  %v3069 = vpop.f32.mrb[0].mxu0
  %3070 = vmatprep.mubr.f32.mxu0 0.0
  %3071 = vmatmul.mubr.f32.gmra.mrb[0].mxu0 %v2998
  %v3072 = vpop.f32.mrb[0].mxu0
  %v3073 = vadd.f32 0.001, %v3072
  %v3074 = vpop.f32.mrb[0].mxu0
  %3075 = vmatprep.mubr.f32.mxu0 0.0
  %3076 = vmatmul.mubr.f32.gmra.mrb[0].mxu0 %v2999
  %v3077 = vpop.f32.mrb[0].mxu0
  %v3078 = vadd.f32 0.001, %v3077
  %v3079 = vpop.f32.mrb[0].mxu0
  %3080 = vmatprep.mubr.f32.mxu0 0.0
  %3081 = vmatmul.mubr.f32.gmra.mrb[0].mxu0 %v3000
  %v3082 = vpop.f32.mrb[0].mxu0
  %v3083 = vadd.f32 0.001, %v3082
  %v3084 = vpop.f32.mrb[0].mxu0
  %3085 = vdwg.mxu0
  %v3086 = vrsqrt.pop %v3068
  %v3087 = vrsqrt.pop %v3073
  %v3088 = vrsqrt.pop %v3078
  %v3089 = vrsqrt.pop %v3083
  %v3090 = vmul.f32 %v2993, %v3086
  %v3091 = vmul.f32 %v2994, %v3087
  %v3092 = vmul.f32 %v2995, %v3088
  %v3093 = vmul.f32 %v2996, %v3089
  %3094 = vadd.xlane.f32.xlu0 %v3090
  %v3095 = vpop.xlane.xlu0 %3094
  %3096 = vadd.xlane.f32.xlu0 %v3091
  %v3097 = vpop.xlane.xlu0 %3096
  %3098 = vadd.xlane.f32.xlu0 %v3092
  %v3099 = vpop.xlane.xlu0 %3098
  %3100 = vadd.xlane.f32.xlu0 %v3093
  %v3101 = vpop.xlane.xlu0 %3100
  %v3102 = vmul.f32 %v3095, %v1467
  %v3103 = vmul.f32 %v3097, %v1467
  %v3104 = vmul.f32 %v3099, %v1467
  %v3105 = vmul.f32 %v3101, %v1467
  %v3106 = vsub.f32 %v3090, %v3102
  %v3107 = vsub.f32 %v3091, %v3103
  %v3108 = vsub.f32 %v3092, %v3104
  %v3109 = vsub.f32 %v3093, %v3105
  %v3110 = vmul.f32 %v3106, %v3106
  %v3111 = vmul.f32 %v3107, %v3107
  %v3112 = vmul.f32 %v3108, %v3108
  %v3113 = vmul.f32 %v3109, %v3109
  %3114 = vadd.xlane.f32.xlu0 %v3110
  %v3115 = vpop.xlane.xlu0 %3114
  %3116 = vadd.xlane.f32.xlu0 %v3111
  %v3117 = vpop.xlane.xlu0 %3116
  %3118 = vadd.xlane.f32.xlu0 %v3112
  %v3119 = vpop.xlane.xlu0 %3118
  %3120 = vadd.xlane.f32.xlu0 %v3113
  %v3121 = vpop.xlane.xlu0 %3120
  %v3122 = vmul.f32 %v3115, %v1467
  %v3123 = vmul.f32 %v3117, %v1467
  %v3124 = vmul.f32 %v3119, %v1467
  %v3125 = vmul.f32 %v3121, %v1467
  %v3126 = vadd.f32 %v3122, 1e-05
  %v3127 = vadd.f32 %v3123, 1e-05
  %v3128 = vadd.f32 %v3124, 1e-05
  %v3129 = vadd.f32 %v3125, 1e-05
  %v3130 = vrsqrt.pop %v3126
  %v3131 = vrsqrt.pop %v3127
  %v3132 = vrsqrt.pop %v3128
  %v3133 = vrsqrt.pop %v3129
  %v3134 = vmul.f32 %v3106, %v3130
  %v3135 = vmul.f32 %v3107, %v3131
  %v3136 = vmul.f32 %v3108, %v3132
  %v3137 = vmul.f32 %v3109, %v3133
  %v3138 = vmax.f32 %v3134, 0.0
  %v3139 = vmax.f32 %v3135, 0.0
  %v3140 = vmax.f32 %v3136, 0.0
  %v3141 = vmax.f32 %v3137, 0.0
  %3143 = vset.pattern.permute.xlu0 0
  %3144 = vperm.xlu0 %3143, %v2906
  %v3145 = vpop.permute.xlu0 %3144
  %3148 = vset.pattern.permute.xlu0 0
  %3149 = vperm.xlu0 %3148, %v2907
  %v3150 = vpop.permute.xlu0 %3149
  %v3153 = vsel %vm199, %v2904, 0
  %v3156 = vsel %vm199, %v2905, 0
  %3158 = vmatprep.subr.mxu0 0.0
  %3159 = vmatpush1.msra.mxu0 %v3138
  %3160 = vmatprep.subr.mxu0 0.0
  %3161 = vmatpush1.msra.mxu0 %v3139
  %3162 = vmatprep.subr.mxu0 0.0
  %3163 = vmatpush1.msra.mxu0 %v3140
  %3164 = vmatprep.subr.mxu0 0.0
  %3165 = vmatpush1.msra.mxu0 %v3141
  %3166 = vmatprep.subr.mxu0 0.0
  %3167 = vmatpush1.msra.mxu0 0.0
  %3168 = vmatprep.subr.mxu0 0.0
  %3169 = vmatpush1.msra.mxu0 0.0
  %3170 = vmatprep.subr.mxu0 0.0
  %3171 = vmatpush1.msra.mxu0 0.0
  %3172 = vmatprep.subr.mxu0 0.0
  %3173 = vmatpush1.msra.mxu0 0.0
  %3174 = vmatprep.subr.mxu0 0.0
  %3175 = vmatpush1.msra.mxu0 0.0
  %3176 = vmatprep.subr.mxu0 0.0
  %3177 = vmatpush1.msra.mxu0 0.0
  %3178 = vmatprep.subr.mxu0 0.0
  %3179 = vmatpush1.msra.mxu0 0.0
  %3180 = vmatprep.subr.mxu0 0.0
  %3181 = vmatpush1.msra.mxu0 0.0
  %3182 = vmatprep.subr.mxu0 0.0
  %3183 = vmatpush1.msra.mxu0 0.0
  %3184 = vmatprep.subr.mxu0 0.0
  %3185 = vmatpush1.msra.mxu0 0.0
  %3186 = vmatprep.subr.mxu0 0.0
  %3187 = vmatpush1.msra.mxu0 0.0
  %3188 = vmatprep.subr.mxu0 0.0
  %3189 = vmatpush1.msra.mxu0 0.0
  %3190 = vmatprep.subr.mxu0 0.0
  %3191 = vmatpush1.msra.mxu0 0.0
  %3192 = vmatprep.subr.mxu0 0.0
  %3193 = vmatpush1.msra.mxu0 0.0
  %3194 = vmatprep.subr.mxu0 0.0
  %3195 = vmatpush1.msra.mxu0 0.0
  %3196 = vmatprep.subr.mxu0 0.0
  %3197 = vmatpush1.msra.mxu0 0.0
  %3198 = vmatprep.subr.mxu0 0.0
  %3199 = vmatpush1.msra.mxu0 0.0
  %3200 = vmatprep.subr.mxu0 0.0
  %3201 = vmatpush1.msra.mxu0 0.0
  %3202 = vmatprep.subr.mxu0 0.0
  %3203 = vmatpush1.msra.mxu0 0.0
  %3204 = vmatprep.subr.mxu0 0.0
  %3205 = vmatpush1.msra.mxu0 0.0
  %3206 = vmatprep.subr.mxu0 0.0
  %3207 = vmatpush1.msra.mxu0 0.0
  %3208 = vmatprep.subr.mxu0 0.0
  %3209 = vmatpush1.msra.mxu0 0.0
  %3210 = vmatprep.subr.mxu0 0.0
  %3211 = vmatpush1.msra.mxu0 0.0
  %3212 = vmatprep.subr.mxu0 0.0
  %3213 = vmatpush1.msra.mxu0 0.0
  %3214 = vmatprep.subr.mxu0 0.0
  %3215 = vmatpush1.msra.mxu0 0.0
  %3216 = vmatprep.subr.mxu0 0.0
  %3217 = vmatpush1.msra.mxu0 0.0
  %3218 = vmatprep.subr.mxu0 0.0
  %3219 = vmatpush1.msra.mxu0 0.0
  %3220 = vmatprep.subr.mxu0 0.0
  %3221 = vmatpush1.msra.mxu0 0.0
  %3222 = vmatprep.mubr.f32.mxu0 0.0
  %3223 = vmatmul.mubr.f32.gmra.mrb[0].mxu0 %v3153
  %v3224 = vpop.f32.mrb[0].mxu0
  %v3225 = vadd.f32 %v3145, %v3224
  %v3226 = vpop.f32.mrb[0].mxu0
  %3227 = vmatprep.mubr.f32.mxu0 0.0
  %3228 = vmatmul.mubr.f32.gmra.mrb[0].mxu0 %v3156
  %v3229 = vpop.f32.mrb[0].mxu0
  %v3230 = vadd.f32 %v3150, %v3229
  %v3231 = vpop.f32.mrb[0].mxu0
  %3232 = vdwg.mxu0
  %vm3233 = vcmask 523264
  %v3234 = vsel %vm3233, %v3225, -inf
  %3235 = vmax.xlane.f32.xlu0 %v3234
  %v3236 = vpop.xlane.xlu0 %3235
  %v3237 = vsel %vm3233, %v3230, -inf
  %3238 = vmax.xlane.f32.xlu0 %v3237
  %v3239 = vpop.xlane.xlu0 %3238
  %v3240 = vsub.f32 %v3225, %v3236
  %v3241 = vsub.f32 %v3230, %v3239
  %v3242 = vmul.f32 %v3240, 1.442695
  %v3243 = vpow.pop %v3242
  %v3244 = vmul.f32 %v3241, 1.442695
  %v3245 = vpow.pop %v3244
  %v3246 = vsel %vm3233, %v3243, 0.0
  %3247 = vadd.xlane.f32.xlu0 %v3246
  %v3248 = vpop.xlane.xlu0 %3247
  %v3249 = vsel %vm3233, %v3245, 0.0
  %3250 = vadd.xlane.f32.xlu0 %v3249
  %v3251 = vpop.xlane.xlu0 %3250
  %v3252 = vrcp.pop %v3248
  %v3253 = vrcp.pop %v3251
  %v3254 = vmul.f32 %v3243, %v3252
  %v3255 = vmul.f32 %v3245, %v3253
  %v3257 = vsel %vm3233, %v2900, 0
  %v3260 = vsel %vm3233, %v2901, 0
  %v3263 = vsel %vm3233, %v2902, 0
  %v3266 = vsel %vm3233, %v2903, 0
  %v3269 = vsel %vm3233, %v3254, 0
  %v3272 = vsel %vm3233, %v3255, 0
  %3274 = vmatprep.subr.mxu0 0.0
  %3275 = vmatpush1.xpose.msra.mxu0 %v3269
  %3276 = vmatprep.subr.mxu0 0.0
  %3277 = vmatpush1.xpose.msra.mxu0 %v3272
  %3278 = vmatprep.subr.mxu0 0.0
  %3279 = vmatpush1.xpose.msra.mxu0 0.0
  %3280 = vmatprep.subr.mxu0 0.0
  %3281 = vmatpush1.xpose.msra.mxu0 0.0
  %3282 = vmatprep.subr.mxu0 0.0
  %3283 = vmatpush1.xpose.msra.mxu0 0.0
  %3284 = vmatprep.subr.mxu0 0.0
  %3285 = vmatpush1.xpose.msra.mxu0 0.0
  %3286 = vmatprep.subr.mxu0 0.0
  %3287 = vmatpush1.xpose.msra.mxu0 0.0
  %3288 = vmatprep.subr.mxu0 0.0
  %3289 = vmatpush1.xpose.msra.mxu0 0.0
  %3290 = vmatprep.subr.mxu0 0.0
  %3291 = vmatpush1.xpose.msra.mxu0 0.0
  %3292 = vmatprep.subr.mxu0 0.0
  %3293 = vmatpush1.xpose.msra.mxu0 0.0
  %3294 = vmatprep.subr.mxu0 0.0
  %3295 = vmatpush1.xpose.msra.mxu0 0.0
  %3296 = vmatprep.subr.mxu0 0.0
  %3297 = vmatpush1.xpose.msra.mxu0 0.0
  %3298 = vmatprep.subr.mxu0 0.0
  %3299 = vmatpush1.xpose.msra.mxu0 0.0
  %3300 = vmatprep.subr.mxu0 0.0
  %3301 = vmatpush1.xpose.msra.mxu0 0.0
  %3302 = vmatprep.subr.mxu0 0.0
  %3303 = vmatpush1.xpose.msra.mxu0 0.0
  %3304 = vmatprep.subr.mxu0 0.0
  %3305 = vmatpush1.xpose.msra.mxu0 0.0
  %3306 = vmatprep.subr.mxu0 0.0
  %3307 = vmatpush1.xpose.msra.mxu0 0.0
  %3308 = vmatprep.subr.mxu0 0.0
  %3309 = vmatpush1.xpose.msra.mxu0 0.0
  %3310 = vmatprep.subr.mxu0 0.0
  %3311 = vmatpush1.xpose.msra.mxu0 0.0
  %3312 = vmatprep.subr.mxu0 0.0
  %3313 = vmatpush1.xpose.msra.mxu0 0.0
  %3314 = vmatprep.subr.mxu0 0.0
  %3315 = vmatpush1.xpose.msra.mxu0 0.0
  %3316 = vmatprep.subr.mxu0 0.0
  %3317 = vmatpush1.xpose.msra.mxu0 0.0
  %3318 = vmatprep.subr.mxu0 0.0
  %3319 = vmatpush1.xpose.msra.mxu0 0.0
  %3320 = vmatprep.subr.mxu0 0.0
  %3321 = vmatpush1.xpose.msra.mxu0 0.0
  %3322 = vmatprep.subr.mxu0 0.0
  %3323 = vmatpush1.xpose.msra.mxu0 0.0
  %3324 = vmatprep.subr.mxu0 0.0
  %3325 = vmatpush1.xpose.msra.mxu0 0.0
  %3326 = vmatprep.subr.mxu0 0.0
  %3327 = vmatpush1.xpose.msra.mxu0 0.0
  %3328 = vmatprep.subr.mxu0 0.0
  %3329 = vmatpush1.xpose.msra.mxu0 0.0
  %3330 = vmatprep.subr.mxu0 0.0
  %3331 = vmatpush1.xpose.msra.mxu0 0.0
  %3332 = vmatprep.subr.mxu0 0.0
  %3333 = vmatpush1.xpose.msra.mxu0 0.0
  %3334 = vmatprep.subr.mxu0 0.0
  %3335 = vmatpush1.xpose.msra.mxu0 0.0
  %3336 = vmatprep.subr.mxu0 0.0
  %3337 = vmatpush1.xpose.msra.mxu0 0.0
  %3338 = vmatprep.mubr.f32.mxu0 0.0
  %3339 = vmatmul.mubr.f32.gmra.mrb[0].mxu0 %v3257
  %v3340 = vpop.f32.mrb[0].mxu0
  %v3341 = vadd.f32 0.0, %v3340
  %v3342 = vpop.f32.mrb[0].mxu0
  %3343 = vmatprep.mubr.f32.mxu0 0.0
  %3344 = vmatmul.mubr.f32.gmra.mrb[0].mxu0 %v3260
  %v3345 = vpop.f32.mrb[0].mxu0
  %v3346 = vadd.f32 0.0, %v3345
  %v3347 = vpop.f32.mrb[0].mxu0
  %3348 = vmatprep.mubr.f32.mxu0 0.0
  %3349 = vmatmul.mubr.f32.gmra.mrb[0].mxu0 %v3263
  %v3350 = vpop.f32.mrb[0].mxu0
  %v3351 = vadd.f32 0.0, %v3350
  %v3352 = vpop.f32.mrb[0].mxu0
  %3353 = vmatprep.mubr.f32.mxu0 0.0
  %3354 = vmatmul.mubr.f32.gmra.mrb[0].mxu0 %v3266
  %v3355 = vpop.f32.mrb[0].mxu0
  %v3356 = vadd.f32 0.0, %v3355
  %v3357 = vpop.f32.mrb[0].mxu0
  %3358 = vdwg.mxu0
  %3359 = vst.msk [vmem:[#allocation2] sm:$0xff] %vm283, %v3341
  %3360 = vst.msk [vmem:[#allocation2 + $0x8] sm:$0xff] %vm283, %v3346
  %3361 = vst.msk [vmem:[#allocation2 + $0x10] sm:$0xff] %vm283, %v3351
  %3362 = vst.msk [vmem:[#allocation2 + $0x18] sm:$0xff] %vm283, %v3356
  %vm3363 = vcmask 1048064
  %v3364 = vsel %vm3363, %v3225, -inf
  %3365 = vmax.xlane.f32.xlu0 %v3364
  %v3366 = vpop.xlane.xlu0 %3365
  %v3367 = vsel %vm3363, %v3230, -inf
  %3368 = vmax.xlane.f32.xlu0 %v3367
  %v3369 = vpop.xlane.xlu0 %3368
  %v3370 = vsub.f32 %v3225, %v3366
  %v3371 = vsub.f32 %v3230, %v3369
  %v3372 = vmul.f32 %v3370, 1.442695
  %v3373 = vpow.pop %v3372
  %v3374 = vmul.f32 %v3371, 1.442695
  %v3375 = vpow.pop %v3374
  %3378 = vrot.lane.b32.xlu0 %v3373, 64
  %v3379 = vpop.permute.xlu0 %3378
  %3380 = vrot.lane.b32.xlu0 %v3375, 64
  %v3381 = vpop.permute.xlu0 %3380
  %v3384 = vsel %vm3233, %v3379, 0.0
  %3385 = vadd.xlane.f32.xlu0 %v3384
  %v3386 = vpop.xlane.xlu0 %3385
  %v3387 = vsel %vm3233, %v3381, 0.0
  %3388 = vadd.xlane.f32.xlu0 %v3387
  %v3389 = vpop.xlane.xlu0 %3388
  %v3390 = vrcp.pop %v3386
  %v3391 = vrcp.pop %v3389
  %v3392 = vmul.f32 %v3373, %v3390
  %v3393 = vmul.f32 %v3375, %v3391
  %3394 = vrot.lane.b32.xlu0 %v2900, 64
  %v3395 = vpop.permute.xlu0 %3394
  %3396 = vrot.lane.b32.xlu0 %v2901, 64
  %v3397 = vpop.permute.xlu0 %3396
  %3398 = vrot.lane.b32.xlu0 %v2902, 64
  %v3399 = vpop.permute.xlu0 %3398
  %3400 = vrot.lane.b32.xlu0 %v2903, 64
  %v3401 = vpop.permute.xlu0 %3400
  %3404 = vrot.lane.b32.xlu0 %v3392, 64
  %v3405 = vpop.permute.xlu0 %3404
  %3406 = vrot.lane.b32.xlu0 %v3393, 64
  %v3407 = vpop.permute.xlu0 %3406
  %v3408 = vsel %vm3233, %v3395, 0
  %v3410 = vsel %vm3233, %v3397, 0
  %v3412 = vsel %vm3233, %v3399, 0
  %v3414 = vsel %vm3233, %v3401, 0
  %v3416 = vsel %vm3233, %v3405, 0
  %v3418 = vsel %vm3233, %v3407, 0
  %3420 = vmatprep.subr.mxu0 0.0
  %3421 = vmatpush1.xpose.msra.mxu0 %v3416
  %3422 = vmatprep.subr.mxu0 0.0
  %3423 = vmatpush1.xpose.msra.mxu0 %v3418
  %3424 = vmatprep.subr.mxu0 0.0
  %3425 = vmatpush1.xpose.msra.mxu0 0.0
  %3426 = vmatprep.subr.mxu0 0.0
  %3427 = vmatpush1.xpose.msra.mxu0 0.0
  %3428 = vmatprep.subr.mxu0 0.0
  %3429 = vmatpush1.xpose.msra.mxu0 0.0
  %3430 = vmatprep.subr.mxu0 0.0
  %3431 = vmatpush1.xpose.msra.mxu0 0.0
  %3432 = vmatprep.subr.mxu0 0.0
  %3433 = vmatpush1.xpose.msra.mxu0 0.0
  %3434 = vmatprep.subr.mxu0 0.0
  %3435 = vmatpush1.xpose.msra.mxu0 0.0
  %3436 = vmatprep.subr.mxu0 0.0
  %3437 = vmatpush1.xpose.msra.mxu0 0.0
  %3438 = vmatprep.subr.mxu0 0.0
  %3439 = vmatpush1.xpose.msra.mxu0 0.0
  %3440 = vmatprep.subr.mxu0 0.0
  %3441 = vmatpush1.xpose.msra.mxu0 0.0
  %3442 = vmatprep.subr.mxu0 0.0
  %3443 = vmatpush1.xpose.msra.mxu0 0.0
  %3444 = vmatprep.subr.mxu0 0.0
  %3445 = vmatpush1.xpose.msra.mxu0 0.0
  %3446 = vmatprep.subr.mxu0 0.0
  %3447 = vmatpush1.xpose.msra.mxu0 0.0
  %3448 = vmatprep.subr.mxu0 0.0
  %3449 = vmatpush1.xpose.msra.mxu0 0.0
  %3450 = vmatprep.subr.mxu0 0.0
  %3451 = vmatpush1.xpose.msra.mxu0 0.0
  %3452 = vmatprep.subr.mxu0 0.0
  %3453 = vmatpush1.xpose.msra.mxu0 0.0
  %3454 = vmatprep.subr.mxu0 0.0
  %3455 = vmatpush1.xpose.msra.mxu0 0.0
  %3456 = vmatprep.subr.mxu0 0.0
  %3457 = vmatpush1.xpose.msra.mxu0 0.0
  %3458 = vmatprep.subr.mxu0 0.0
  %3459 = vmatpush1.xpose.msra.mxu0 0.0
  %3460 = vmatprep.subr.mxu0 0.0
  %3461 = vmatpush1.xpose.msra.mxu0 0.0
  %3462 = vmatprep.subr.mxu0 0.0
  %3463 = vmatpush1.xpose.msra.mxu0 0.0
  %3464 = vmatprep.subr.mxu0 0.0
  %3465 = vmatpush1.xpose.msra.mxu0 0.0
  %3466 = vmatprep.subr.mxu0 0.0
  %3467 = vmatpush1.xpose.msra.mxu0 0.0
  %3468 = vmatprep.subr.mxu0 0.0
  %3469 = vmatpush1.xpose.msra.mxu0 0.0
  %3470 = vmatprep.subr.mxu0 0.0
  %3471 = vmatpush1.xpose.msra.mxu0 0.0
  %3472 = vmatprep.subr.mxu0 0.0
  %3473 = vmatpush1.xpose.msra.mxu0 0.0
  %3474 = vmatprep.subr.mxu0 0.0
  %3475 = vmatpush1.xpose.msra.mxu0 0.0
  %3476 = vmatprep.subr.mxu0 0.0
  %3477 = vmatpush1.xpose.msra.mxu0 0.0
  %3478 = vmatprep.subr.mxu0 0.0
  %3479 = vmatpush1.xpose.msra.mxu0 0.0
  %3480 = vmatprep.subr.mxu0 0.0
  %3481 = vmatpush1.xpose.msra.mxu0 0.0
  %3482 = vmatprep.subr.mxu0 0.0
  %3483 = vmatpush1.xpose.msra.mxu0 0.0
  %3484 = vmatprep.mubr.f32.mxu0 0.0
  %3485 = vmatmul.mubr.f32.gmra.mrb[0].mxu0 %v3408
  %v3486 = vpop.f32.mrb[0].mxu0
  %v3487 = vadd.f32 0.0, %v3486
  %v3488 = vpop.f32.mrb[0].mxu0
  %3489 = vmatprep.mubr.f32.mxu0 0.0
  %3490 = vmatmul.mubr.f32.gmra.mrb[0].mxu0 %v3410
  %v3491 = vpop.f32.mrb[0].mxu0
  %v3492 = vadd.f32 0.0, %v3491
  %v3493 = vpop.f32.mrb[0].mxu0
  %3494 = vmatprep.mubr.f32.mxu0 0.0
  %3495 = vmatmul.mubr.f32.gmra.mrb[0].mxu0 %v3412
  %v3496 = vpop.f32.mrb[0].mxu0
  %v3497 = vadd.f32 0.0, %v3496
  %v3498 = vpop.f32.mrb[0].mxu0
  %3499 = vmatprep.mubr.f32.mxu0 0.0
  %3500 = vmatmul.mubr.f32.gmra.mrb[0].mxu0 %v3414
  %v3501 = vpop.f32.mrb[0].mxu0
  %v3502 = vadd.f32 0.0, %v3501
  %v3503 = vpop.f32.mrb[0].mxu0
  %3504 = vdwg.mxu0
  %3509 = vrot.lane.b32.xlu0 %v3487, 16
  %v3510 = vpop.permute.xlu0 %3509
  %3511 = vrot.lane.b32.xlu0 %v3492, 16
  %v3512 = vpop.permute.xlu0 %3511
  %3513 = vrot.lane.b32.xlu0 %v3497, 16
  %v3514 = vpop.permute.xlu0 %3513
  %3515 = vrot.lane.b32.xlu0 %v3502, 16
  %v3516 = vpop.permute.xlu0 %3515
  %vm3521 = vcmask 261248
  %3522 = vst.msk [vmem:[#allocation2] sm:$0xff] %vm3521, %v3510
  %3523 = vst.msk [vmem:[#allocation2 + $0x8] sm:$0xff] %vm3521, %v3512
  %3524 = vst.msk [vmem:[#allocation2 + $0x10] sm:$0xff] %vm3521, %v3514
  %3525 = vst.msk [vmem:[#allocation2 + $0x18] sm:$0xff] %vm3521, %v3516
  %v3526 = vld [vmem:[#allocation2] sm:$0xff]
  %v3527 = vld [vmem:[#allocation2 + $0x8] sm:$0xff]
  %v3528 = vld [vmem:[#allocation2 + $0x10] sm:$0xff]
  %v3529 = vld [vmem:[#allocation2 + $0x18] sm:$0xff]
  %v3530 = vld [vmem:[%s2 + $0x380] sm:$0xff]
  %v3531 = vld [vmem:[%s2 + $0x388] sm:$0xff]
  %v3532 = vld [vmem:[%s2 + $0x390] sm:$0xff]
  %v3533 = vld [vmem:[%s2 + $0x398] sm:$0xff]
  %v3534 = vld [vmem:[%s2 + $0x3a0] sm:$0xff]
  %v3535 = vld [vmem:[%s2 + $0x3a8] sm:$0xff]
  %v3536 = vld [vmem:[%s2 + $0x3b0] sm:$0xff]
  %v3537 = vld [vmem:[%s2 + $0x3b8] sm:$0xff]
  %v3539 = vsel %vm199, %v3526, 0
  %v3542 = vsel %vm199, %v3527, 0
  %v3545 = vsel %vm199, %v3528, 0
  %v3548 = vsel %vm199, %v3529, 0
  %3550 = vmatprep.subr.mxu0 0.0
  %3551 = vmatpush1.msra.mxu0 %v30
  %3552 = vmatprep.subr.mxu0 0.0
  %3553 = vmatpush1.msra.mxu0 %v31
  %3554 = vmatprep.subr.mxu0 0.0
  %3555 = vmatpush1.msra.mxu0 %v32
  %3556 = vmatprep.subr.mxu0 0.0
  %3557 = vmatpush1.msra.mxu0 %v33
  %3558 = vmatprep.subr.mxu0 0.0
  %3559 = vmatpush1.msra.mxu0 0.0
  %3560 = vmatprep.subr.mxu0 0.0
  %3561 = vmatpush1.msra.mxu0 0.0
  %3562 = vmatprep.subr.mxu0 0.0
  %3563 = vmatpush1.msra.mxu0 0.0
  %3564 = vmatprep.subr.mxu0 0.0
  %3565 = vmatpush1.msra.mxu0 0.0
  %3566 = vmatprep.subr.mxu0 0.0
  %3567 = vmatpush1.msra.mxu0 0.0
  %3568 = vmatprep.subr.mxu0 0.0
  %3569 = vmatpush1.msra.mxu0 0.0
  %3570 = vmatprep.subr.mxu0 0.0
  %3571 = vmatpush1.msra.mxu0 0.0
  %3572 = vmatprep.subr.mxu0 0.0
  %3573 = vmatpush1.msra.mxu0 0.0
  %3574 = vmatprep.subr.mxu0 0.0
  %3575 = vmatpush1.msra.mxu0 0.0
  %3576 = vmatprep.subr.mxu0 0.0
  %3577 = vmatpush1.msra.mxu0 0.0
  %3578 = vmatprep.subr.mxu0 0.0
  %3579 = vmatpush1.msra.mxu0 0.0
  %3580 = vmatprep.subr.mxu0 0.0
  %3581 = vmatpush1.msra.mxu0 0.0
  %3582 = vmatprep.subr.mxu0 0.0
  %3583 = vmatpush1.msra.mxu0 0.0
  %3584 = vmatprep.subr.mxu0 0.0
  %3585 = vmatpush1.msra.mxu0 0.0
  %3586 = vmatprep.subr.mxu0 0.0
  %3587 = vmatpush1.msra.mxu0 0.0
  %3588 = vmatprep.subr.mxu0 0.0
  %3589 = vmatpush1.msra.mxu0 0.0
  %3590 = vmatprep.subr.mxu0 0.0
  %3591 = vmatpush1.msra.mxu0 0.0
  %3592 = vmatprep.subr.mxu0 0.0
  %3593 = vmatpush1.msra.mxu0 0.0
  %3594 = vmatprep.subr.mxu0 0.0
  %3595 = vmatpush1.msra.mxu0 0.0
  %3596 = vmatprep.subr.mxu0 0.0
  %3597 = vmatpush1.msra.mxu0 0.0
  %3598 = vmatprep.subr.mxu0 0.0
  %3599 = vmatpush1.msra.mxu0 0.0
  %3600 = vmatprep.subr.mxu0 0.0
  %3601 = vmatpush1.msra.mxu0 0.0
  %3602 = vmatprep.subr.mxu0 0.0
  %3603 = vmatpush1.msra.mxu0 0.0
  %3604 = vmatprep.subr.mxu0 0.0
  %3605 = vmatpush1.msra.mxu0 0.0
  %3606 = vmatprep.subr.mxu0 0.0
  %3607 = vmatpush1.msra.mxu0 0.0
  %3608 = vmatprep.subr.mxu0 0.0
  %3609 = vmatpush1.msra.mxu0 0.0
  %3610 = vmatprep.subr.mxu0 0.0
  %3611 = vmatpush1.msra.mxu0 0.0
  %3612 = vmatprep.subr.mxu0 0.0
  %3613 = vmatpush1.msra.mxu0 0.0
  %3614 = vmatprep.mubr.f32.mxu0 0.0
  %3615 = vmatmul.mubr.f32.gmra.mrb[0].mxu0 %v3539
  %v3616 = vpop.f32.mrb[0].mxu0
  %v3617 = vadd.f32 0.0, %v3616
  %v3618 = vpop.f32.mrb[0].mxu0
  %3619 = vmatprep.mubr.f32.mxu0 0.0
  %3620 = vmatmul.mubr.f32.gmra.mrb[0].mxu0 %v3542
  %v3621 = vpop.f32.mrb[0].mxu0
  %v3622 = vadd.f32 0.0, %v3621
  %v3623 = vpop.f32.mrb[0].mxu0
  %3624 = vmatprep.mubr.f32.mxu0 0.0
  %3625 = vmatmul.mubr.f32.gmra.mrb[0].mxu0 %v3545
  %v3626 = vpop.f32.mrb[0].mxu0
  %v3627 = vadd.f32 0.0, %v3626
  %v3628 = vpop.f32.mrb[0].mxu0
  %3629 = vmatprep.mubr.f32.mxu0 0.0
  %3630 = vmatmul.mubr.f32.gmra.mrb[0].mxu0 %v3548
  %v3631 = vpop.f32.mrb[0].mxu0
  %v3632 = vadd.f32 0.0, %v3631
  %v3633 = vpop.f32.mrb[0].mxu0
  %3634 = vdwg.mxu0
  %v3635 = vsub.f32 %v3526, %v3617
  %v3636 = vsub.f32 %v3527, %v3622
  %v3637 = vsub.f32 %v3528, %v3627
  %v3638 = vsub.f32 %v3529, %v3632
  %v3639 = vmul.f32 %v3635, %v3635
  %v3640 = vmul.f32 %v3636, %v3636
  %v3641 = vmul.f32 %v3637, %v3637
  %v3642 = vmul.f32 %v3638, %v3638
  %v3644 = vsel %vm199, %v3639, 0
  %v3647 = vsel %vm199, %v3640, 0
  %v3650 = vsel %vm199, %v3641, 0
  %v3653 = vsel %vm199, %v3642, 0
  %3655 = vmatprep.subr.mxu0 0.0
  %3656 = vmatpush1.msra.mxu0 %v30
  %3657 = vmatprep.subr.mxu0 0.0
  %3658 = vmatpush1.msra.mxu0 %v31
  %3659 = vmatprep.subr.mxu0 0.0
  %3660 = vmatpush1.msra.mxu0 %v32
  %3661 = vmatprep.subr.mxu0 0.0
  %3662 = vmatpush1.msra.mxu0 %v33
  %3663 = vmatprep.subr.mxu0 0.0
  %3664 = vmatpush1.msra.mxu0 0.0
  %3665 = vmatprep.subr.mxu0 0.0
  %3666 = vmatpush1.msra.mxu0 0.0
  %3667 = vmatprep.subr.mxu0 0.0
  %3668 = vmatpush1.msra.mxu0 0.0
  %3669 = vmatprep.subr.mxu0 0.0
  %3670 = vmatpush1.msra.mxu0 0.0
  %3671 = vmatprep.subr.mxu0 0.0
  %3672 = vmatpush1.msra.mxu0 0.0
  %3673 = vmatprep.subr.mxu0 0.0
  %3674 = vmatpush1.msra.mxu0 0.0
  %3675 = vmatprep.subr.mxu0 0.0
  %3676 = vmatpush1.msra.mxu0 0.0
  %3677 = vmatprep.subr.mxu0 0.0
  %3678 = vmatpush1.msra.mxu0 0.0
  %3679 = vmatprep.subr.mxu0 0.0
  %3680 = vmatpush1.msra.mxu0 0.0
  %3681 = vmatprep.subr.mxu0 0.0
  %3682 = vmatpush1.msra.mxu0 0.0
  %3683 = vmatprep.subr.mxu0 0.0
  %3684 = vmatpush1.msra.mxu0 0.0
  %3685 = vmatprep.subr.mxu0 0.0
  %3686 = vmatpush1.msra.mxu0 0.0
  %3687 = vmatprep.subr.mxu0 0.0
  %3688 = vmatpush1.msra.mxu0 0.0
  %3689 = vmatprep.subr.mxu0 0.0
  %3690 = vmatpush1.msra.mxu0 0.0
  %3691 = vmatprep.subr.mxu0 0.0
  %3692 = vmatpush1.msra.mxu0 0.0
  %3693 = vmatprep.subr.mxu0 0.0
  %3694 = vmatpush1.msra.mxu0 0.0
  %3695 = vmatprep.subr.mxu0 0.0
  %3696 = vmatpush1.msra.mxu0 0.0
  %3697 = vmatprep.subr.mxu0 0.0
  %3698 = vmatpush1.msra.mxu0 0.0
  %3699 = vmatprep.subr.mxu0 0.0
  %3700 = vmatpush1.msra.mxu0 0.0
  %3701 = vmatprep.subr.mxu0 0.0
  %3702 = vmatpush1.msra.mxu0 0.0
  %3703 = vmatprep.subr.mxu0 0.0
  %3704 = vmatpush1.msra.mxu0 0.0
  %3705 = vmatprep.subr.mxu0 0.0
  %3706 = vmatpush1.msra.mxu0 0.0
  %3707 = vmatprep.subr.mxu0 0.0
  %3708 = vmatpush1.msra.mxu0 0.0
  %3709 = vmatprep.subr.mxu0 0.0
  %3710 = vmatpush1.msra.mxu0 0.0
  %3711 = vmatprep.subr.mxu0 0.0
  %3712 = vmatpush1.msra.mxu0 0.0
  %3713 = vmatprep.subr.mxu0 0.0
  %3714 = vmatpush1.msra.mxu0 0.0
  %3715 = vmatprep.subr.mxu0 0.0
  %3716 = vmatpush1.msra.mxu0 0.0
  %3717 = vmatprep.subr.mxu0 0.0
  %3718 = vmatpush1.msra.mxu0 0.0
  %3719 = vmatprep.mubr.f32.mxu0 0.0
  %3720 = vmatmul.mubr.f32.gmra.mrb[0].mxu0 %v3644
  %v3721 = vpop.f32.mrb[0].mxu0
  %v3722 = vadd.f32 0.001, %v3721
  %v3723 = vpop.f32.mrb[0].mxu0
  %3724 = vmatprep.mubr.f32.mxu0 0.0
  %3725 = vmatmul.mubr.f32.gmra.mrb[0].mxu0 %v3647
  %v3726 = vpop.f32.mrb[0].mxu0
  %v3727 = vadd.f32 0.001, %v3726
  %v3728 = vpop.f32.mrb[0].mxu0
  %3729 = vmatprep.mubr.f32.mxu0 0.0
  %3730 = vmatmul.mubr.f32.gmra.mrb[0].mxu0 %v3650
  %v3731 = vpop.f32.mrb[0].mxu0
  %v3732 = vadd.f32 0.001, %v3731
  %v3733 = vpop.f32.mrb[0].mxu0
  %3734 = vmatprep.mubr.f32.mxu0 0.0
  %3735 = vmatmul.mubr.f32.gmra.mrb[0].mxu0 %v3653
  %v3736 = vpop.f32.mrb[0].mxu0
  %v3737 = vadd.f32 0.001, %v3736
  %v3738 = vpop.f32.mrb[0].mxu0
  %3739 = vdwg.mxu0
  %v3740 = vrsqrt.pop %v3722
  %v3741 = vrsqrt.pop %v3727
  %v3742 = vrsqrt.pop %v3732
  %v3743 = vrsqrt.pop %v3737
  %v3744 = vmul.f32 %v3635, %v3740
  %v3745 = vmul.f32 %v3636, %v3741
  %v3746 = vmul.f32 %v3637, %v3742
  %v3747 = vmul.f32 %v3638, %v3743
  %v3748 = vsel %vm199, %v3744, 0.0
  %3749 = vadd.xlane.f32.xlu0 %v3748
  %v3750 = vpop.xlane.xlu0 %3749
  %v3751 = vsel %vm199, %v3745, 0.0
  %3752 = vadd.xlane.f32.xlu0 %v3751
  %v3753 = vpop.xlane.xlu0 %3752
  %v3754 = vsel %vm199, %v3746, 0.0
  %3755 = vadd.xlane.f32.xlu0 %v3754
  %v3756 = vpop.xlane.xlu0 %3755
  %v3757 = vsel %vm199, %v3747, 0.0
  %3758 = vadd.xlane.f32.xlu0 %v3757
  %v3759 = vpop.xlane.xlu0 %3758
  %v3760 = vrcp.pop 32.0
  %v3761 = vmul.f32 %v3750, %v3760
  %v3762 = vmul.f32 %v3753, %v3760
  %v3763 = vmul.f32 %v3756, %v3760
  %v3764 = vmul.f32 %v3759, %v3760
  %v3765 = vsub.f32 %v3744, %v3761
  %v3766 = vsub.f32 %v3745, %v3762
  %v3767 = vsub.f32 %v3746, %v3763
  %v3768 = vsub.f32 %v3747, %v3764
  %v3769 = vmul.f32 %v3765, %v3765
  %v3770 = vmul.f32 %v3766, %v3766
  %v3771 = vmul.f32 %v3767, %v3767
  %v3772 = vmul.f32 %v3768, %v3768
  %v3773 = vsel %vm199, %v3769, 0.0
  %3774 = vadd.xlane.f32.xlu0 %v3773
  %v3775 = vpop.xlane.xlu0 %3774
  %v3776 = vsel %vm199, %v3770, 0.0
  %3777 = vadd.xlane.f32.xlu0 %v3776
  %v3778 = vpop.xlane.xlu0 %3777
  %v3779 = vsel %vm199, %v3771, 0.0
  %3780 = vadd.xlane.f32.xlu0 %v3779
  %v3781 = vpop.xlane.xlu0 %3780
  %v3782 = vsel %vm199, %v3772, 0.0
  %3783 = vadd.xlane.f32.xlu0 %v3782
  %v3784 = vpop.xlane.xlu0 %3783
  %v3785 = vmul.f32 %v3775, %v3760
  %v3786 = vmul.f32 %v3778, %v3760
  %v3787 = vmul.f32 %v3781, %v3760
  %v3788 = vmul.f32 %v3784, %v3760
  %v3789 = vadd.f32 %v3785, 1e-05
  %v3790 = vadd.f32 %v3786, 1e-05
  %v3791 = vadd.f32 %v3787, 1e-05
  %v3792 = vadd.f32 %v3788, 1e-05
  %v3793 = vrsqrt.pop %v3789
  %v3794 = vrsqrt.pop %v3790
  %v3795 = vrsqrt.pop %v3791
  %v3796 = vrsqrt.pop %v3792
  %v3797 = vmul.f32 %v3765, %v3793
  %v3798 = vmul.f32 %v3766, %v3794
  %v3799 = vmul.f32 %v3767, %v3795
  %v3800 = vmul.f32 %v3768, %v3796
  %v3801 = vmax.f32 %v3797, 0.0
  %v3802 = vmax.f32 %v3798, 0.0
  %v3803 = vmax.f32 %v3799, 0.0
  %v3804 = vmax.f32 %v3800, 0.0
  %3806 = vset.pattern.permute.xlu0 0
  %3807 = vperm.xlu0 %3806, %v3534
  %v3808 = vpop.permute.xlu0 %3807
  %3811 = vset.pattern.permute.xlu0 0
  %3812 = vperm.xlu0 %3811, %v3535
  %v3813 = vpop.permute.xlu0 %3812
  %3816 = vset.pattern.permute.xlu0 0
  %3817 = vperm.xlu0 %3816, %v3536
  %v3818 = vpop.permute.xlu0 %3817
  %3821 = vset.pattern.permute.xlu0 0
  %3822 = vperm.xlu0 %3821, %v3537
  %v3823 = vpop.permute.xlu0 %3822
  %v3826 = vsel %vm199, %v3530, 0
  %v3829 = vsel %vm199, %v3531, 0
  %v3832 = vsel %vm199, %v3532, 0
  %v3835 = vsel %vm199, %v3533, 0
  %3837 = vmatprep.subr.mxu0 0.0
  %3838 = vmatpush1.msra.mxu0 %v3801
  %3839 = vmatprep.subr.mxu0 0.0
  %3840 = vmatpush1.msra.mxu0 %v3802
  %3841 = vmatprep.subr.mxu0 0.0
  %3842 = vmatpush1.msra.mxu0 %v3803
  %3843 = vmatprep.subr.mxu0 0.0
  %3844 = vmatpush1.msra.mxu0 %v3804
  %3845 = vmatprep.subr.mxu0 0.0
  %3846 = vmatpush1.msra.mxu0 0.0
  %3847 = vmatprep.subr.mxu0 0.0
  %3848 = vmatpush1.msra.mxu0 0.0
  %3849 = vmatprep.subr.mxu0 0.0
  %3850 = vmatpush1.msra.mxu0 0.0
  %3851 = vmatprep.subr.mxu0 0.0
  %3852 = vmatpush1.msra.mxu0 0.0
  %3853 = vmatprep.subr.mxu0 0.0
  %3854 = vmatpush1.msra.mxu0 0.0
  %3855 = vmatprep.subr.mxu0 0.0
  %3856 = vmatpush1.msra.mxu0 0.0
  %3857 = vmatprep.subr.mxu0 0.0
  %3858 = vmatpush1.msra.mxu0 0.0
  %3859 = vmatprep.subr.mxu0 0.0
  %3860 = vmatpush1.msra.mxu0 0.0
  %3861 = vmatprep.subr.mxu0 0.0
  %3862 = vmatpush1.msra.mxu0 0.0
  %3863 = vmatprep.subr.mxu0 0.0
  %3864 = vmatpush1.msra.mxu0 0.0
  %3865 = vmatprep.subr.mxu0 0.0
  %3866 = vmatpush1.msra.mxu0 0.0
  %3867 = vmatprep.subr.mxu0 0.0
  %3868 = vmatpush1.msra.mxu0 0.0
  %3869 = vmatprep.subr.mxu0 0.0
  %3870 = vmatpush1.msra.mxu0 0.0
  %3871 = vmatprep.subr.mxu0 0.0
  %3872 = vmatpush1.msra.mxu0 0.0
  %3873 = vmatprep.subr.mxu0 0.0
  %3874 = vmatpush1.msra.mxu0 0.0
  %3875 = vmatprep.subr.mxu0 0.0
  %3876 = vmatpush1.msra.mxu0 0.0
  %3877 = vmatprep.subr.mxu0 0.0
  %3878 = vmatpush1.msra.mxu0 0.0
  %3879 = vmatprep.subr.mxu0 0.0
  %3880 = vmatpush1.msra.mxu0 0.0
  %3881 = vmatprep.subr.mxu0 0.0
  %3882 = vmatpush1.msra.mxu0 0.0
  %3883 = vmatprep.subr.mxu0 0.0
  %3884 = vmatpush1.msra.mxu0 0.0
  %3885 = vmatprep.subr.mxu0 0.0
  %3886 = vmatpush1.msra.mxu0 0.0
  %3887 = vmatprep.subr.mxu0 0.0
  %3888 = vmatpush1.msra.mxu0 0.0
  %3889 = vmatprep.subr.mxu0 0.0
  %3890 = vmatpush1.msra.mxu0 0.0
  %3891 = vmatprep.subr.mxu0 0.0
  %3892 = vmatpush1.msra.mxu0 0.0
  %3893 = vmatprep.subr.mxu0 0.0
  %3894 = vmatpush1.msra.mxu0 0.0
  %3895 = vmatprep.subr.mxu0 0.0
  %3896 = vmatpush1.msra.mxu0 0.0
  %3897 = vmatprep.subr.mxu0 0.0
  %3898 = vmatpush1.msra.mxu0 0.0
  %3899 = vmatprep.subr.mxu0 0.0
  %3900 = vmatpush1.msra.mxu0 0.0
  %3901 = vmatprep.mubr.f32.mxu0 0.0
  %3902 = vmatmul.mubr.f32.gmra.mrb[0].mxu0 %v3826
  %v3903 = vpop.f32.mrb[0].mxu0
  %v3904 = vadd.f32 %v3808, %v3903
  %v3905 = vpop.f32.mrb[0].mxu0
  %3906 = vmatprep.mubr.f32.mxu0 0.0
  %3907 = vmatmul.mubr.f32.gmra.mrb[0].mxu0 %v3829
  %v3908 = vpop.f32.mrb[0].mxu0
  %v3909 = vadd.f32 %v3813, %v3908
  %v3910 = vpop.f32.mrb[0].mxu0
  %3911 = vmatprep.mubr.f32.mxu0 0.0
  %3912 = vmatmul.mubr.f32.gmra.mrb[0].mxu0 %v3832
  %v3913 = vpop.f32.mrb[0].mxu0
  %v3914 = vadd.f32 %v3818, %v3913
  %v3915 = vpop.f32.mrb[0].mxu0
  %3916 = vmatprep.mubr.f32.mxu0 0.0
  %3917 = vmatmul.mubr.f32.gmra.mrb[0].mxu0 %v3835
  %v3918 = vpop.f32.mrb[0].mxu0
  %v3919 = vadd.f32 %v3823, %v3918
  %v3920 = vpop.f32.mrb[0].mxu0
  %3921 = vdwg.mxu0
  %v3922 = vld [vmem:[%s2 + $0x560] sm:$0xff]
  %v3923 = vld [vmem:[%s2 + $0x568] sm:$0xff]
  %v3924 = vld [vmem:[%s2 + $0x570] sm:$0xff]
  %v3925 = vld [vmem:[%s2 + $0x578] sm:$0xff]
  %v3927 = vsel %vm199, %v3904, 0
  %v3930 = vsel %vm199, %v3909, 0
  %v3933 = vsel %vm199, %v3914, 0
  %v3936 = vsel %vm199, %v3919, 0
  %3938 = vmatprep.subr.mxu0 0.0
  %3939 = vmatpush1.msra.mxu0 %v3922
  %3940 = vmatprep.subr.mxu0 0.0
  %3941 = vmatpush1.msra.mxu0 %v3923
  %3942 = vmatprep.subr.mxu0 0.0
  %3943 = vmatpush1.msra.mxu0 %v3924
  %3944 = vmatprep.subr.mxu0 0.0
  %3945 = vmatpush1.msra.mxu0 %v3925
  %3946 = vmatprep.subr.mxu0 0.0
  %3947 = vmatpush1.msra.mxu0 0.0
  %3948 = vmatprep.subr.mxu0 0.0
  %3949 = vmatpush1.msra.mxu0 0.0
  %3950 = vmatprep.subr.mxu0 0.0
  %3951 = vmatpush1.msra.mxu0 0.0
  %3952 = vmatprep.subr.mxu0 0.0
  %3953 = vmatpush1.msra.mxu0 0.0
  %3954 = vmatprep.subr.mxu0 0.0
  %3955 = vmatpush1.msra.mxu0 0.0
  %3956 = vmatprep.subr.mxu0 0.0
  %3957 = vmatpush1.msra.mxu0 0.0
  %3958 = vmatprep.subr.mxu0 0.0
  %3959 = vmatpush1.msra.mxu0 0.0
  %3960 = vmatprep.subr.mxu0 0.0
  %3961 = vmatpush1.msra.mxu0 0.0
  %3962 = vmatprep.subr.mxu0 0.0
  %3963 = vmatpush1.msra.mxu0 0.0
  %3964 = vmatprep.subr.mxu0 0.0
  %3965 = vmatpush1.msra.mxu0 0.0
  %3966 = vmatprep.subr.mxu0 0.0
  %3967 = vmatpush1.msra.mxu0 0.0
  %3968 = vmatprep.subr.mxu0 0.0
  %3969 = vmatpush1.msra.mxu0 0.0
  %3970 = vmatprep.subr.mxu0 0.0
  %3971 = vmatpush1.msra.mxu0 0.0
  %3972 = vmatprep.subr.mxu0 0.0
  %3973 = vmatpush1.msra.mxu0 0.0
  %3974 = vmatprep.subr.mxu0 0.0
  %3975 = vmatpush1.msra.mxu0 0.0
  %3976 = vmatprep.subr.mxu0 0.0
  %3977 = vmatpush1.msra.mxu0 0.0
  %3978 = vmatprep.subr.mxu0 0.0
  %3979 = vmatpush1.msra.mxu0 0.0
  %3980 = vmatprep.subr.mxu0 0.0
  %3981 = vmatpush1.msra.mxu0 0.0
  %3982 = vmatprep.subr.mxu0 0.0
  %3983 = vmatpush1.msra.mxu0 0.0
  %3984 = vmatprep.subr.mxu0 0.0
  %3985 = vmatpush1.msra.mxu0 0.0
  %3986 = vmatprep.subr.mxu0 0.0
  %3987 = vmatpush1.msra.mxu0 0.0
  %3988 = vmatprep.subr.mxu0 0.0
  %3989 = vmatpush1.msra.mxu0 0.0
  %3990 = vmatprep.subr.mxu0 0.0
  %3991 = vmatpush1.msra.mxu0 0.0
  %3992 = vmatprep.subr.mxu0 0.0
  %3993 = vmatpush1.msra.mxu0 0.0
  %3994 = vmatprep.subr.mxu0 0.0
  %3995 = vmatpush1.msra.mxu0 0.0
  %3996 = vmatprep.subr.mxu0 0.0
  %3997 = vmatpush1.msra.mxu0 0.0
  %3998 = vmatprep.subr.mxu0 0.0
  %3999 = vmatpush1.msra.mxu0 0.0
  %4000 = vmatprep.subr.mxu0 0.0
  %4001 = vmatpush1.msra.mxu0 0.0
  %4002 = vmatprep.mubr.f32.mxu0 0.0
  %4003 = vmatmul.mubr.f32.gmra.mrb[0].mxu0 %v3927
  %v4004 = vpop.f32.mrb[0].mxu0
  %v4005 = vadd.f32 0.0, %v4004
  %v4006 = vpop.f32.mrb[0].mxu0
  %4007 = vmatprep.mubr.f32.mxu0 0.0
  %4008 = vmatmul.mubr.f32.gmra.mrb[0].mxu0 %v3930
  %v4009 = vpop.f32.mrb[0].mxu0
  %v4010 = vadd.f32 0.0, %v4009
  %v4011 = vpop.f32.mrb[0].mxu0
  %4012 = vmatprep.mubr.f32.mxu0 0.0
  %4013 = vmatmul.mubr.f32.gmra.mrb[0].mxu0 %v3933
  %v4014 = vpop.f32.mrb[0].mxu0
  %v4015 = vadd.f32 0.0, %v4014
  %v4016 = vpop.f32.mrb[0].mxu0
  %4017 = vmatprep.mubr.f32.mxu0 0.0
  %4018 = vmatmul.mubr.f32.gmra.mrb[0].mxu0 %v3936
  %v4019 = vpop.f32.mrb[0].mxu0
  %v4020 = vadd.f32 0.0, %v4019
  %v4021 = vpop.f32.mrb[0].mxu0
  %4022 = vdwg.mxu0
  %v4023 = vsel %vm199, %v4005, 0.0
  %v4024 = vsel %vm199, %v4010, 0.0
  %v4025 = vadd.f32 %v4023, %v4024
  %v4026 = vsel %vm199, %v4015, 0.0
  %v4027 = vadd.f32 %v4025, %v4026
  %v4028 = vsel %vm199, %v4020, 0.0
  %v4029 = vadd.f32 %v4027, %v4028
  %v4030 = vrot.slane %v4029, 4
  %v4031 = vadd.f32 %v4029, %v4030
  %v4032 = vrot.slane %v4031, 2
  %v4033 = vadd.f32 %v4031, %v4032
  %v4034 = vrot.slane %v4033, 1
  %v4035 = vadd.f32 %v4033, %v4034
  %v4036 = vsub.f32 %v3904, %v4035
  %v4037 = vsub.f32 %v3909, %v4035
  %v4038 = vsub.f32 %v3914, %v4035
  %v4039 = vsub.f32 %v3919, %v4035
  %v4040 = vmul.f32 %v4036, %v4036
  %v4041 = vmul.f32 %v4037, %v4037
  %v4042 = vmul.f32 %v4038, %v4038
  %v4043 = vmul.f32 %v4039, %v4039
  %v4045 = vsel %vm199, %v4040, 0
  %v4048 = vsel %vm199, %v4041, 0
  %v4051 = vsel %vm199, %v4042, 0
  %v4054 = vsel %vm199, %v4043, 0
  %4056 = vmatprep.subr.mxu0 0.0
  %4057 = vmatpush1.msra.mxu0 %v3922
  %4058 = vmatprep.subr.mxu0 0.0
  %4059 = vmatpush1.msra.mxu0 %v3923
  %4060 = vmatprep.subr.mxu0 0.0
  %4061 = vmatpush1.msra.mxu0 %v3924
  %4062 = vmatprep.subr.mxu0 0.0
  %4063 = vmatpush1.msra.mxu0 %v3925
  %4064 = vmatprep.subr.mxu0 0.0
  %4065 = vmatpush1.msra.mxu0 0.0
  %4066 = vmatprep.subr.mxu0 0.0
  %4067 = vmatpush1.msra.mxu0 0.0
  %4068 = vmatprep.subr.mxu0 0.0
  %4069 = vmatpush1.msra.mxu0 0.0
  %4070 = vmatprep.subr.mxu0 0.0
  %4071 = vmatpush1.msra.mxu0 0.0
  %4072 = vmatprep.subr.mxu0 0.0
  %4073 = vmatpush1.msra.mxu0 0.0
  %4074 = vmatprep.subr.mxu0 0.0
  %4075 = vmatpush1.msra.mxu0 0.0
  %4076 = vmatprep.subr.mxu0 0.0
  %4077 = vmatpush1.msra.mxu0 0.0
  %4078 = vmatprep.subr.mxu0 0.0
  %4079 = vmatpush1.msra.mxu0 0.0
  %4080 = vmatprep.subr.mxu0 0.0
  %4081 = vmatpush1.msra.mxu0 0.0
  %4082 = vmatprep.subr.mxu0 0.0
  %4083 = vmatpush1.msra.mxu0 0.0
  %4084 = vmatprep.subr.mxu0 0.0
  %4085 = vmatpush1.msra.mxu0 0.0
  %4086 = vmatprep.subr.mxu0 0.0
  %4087 = vmatpush1.msra.mxu0 0.0
  %4088 = vmatprep.subr.mxu0 0.0
  %4089 = vmatpush1.msra.mxu0 0.0
  %4090 = vmatprep.subr.mxu0 0.0
  %4091 = vmatpush1.msra.mxu0 0.0
  %4092 = vmatprep.subr.mxu0 0.0
  %4093 = vmatpush1.msra.mxu0 0.0
  %4094 = vmatprep.subr.mxu0 0.0
  %4095 = vmatpush1.msra.mxu0 0.0
  %4096 = vmatprep.subr.mxu0 0.0
  %4097 = vmatpush1.msra.mxu0 0.0
  %4098 = vmatprep.subr.mxu0 0.0
  %4099 = vmatpush1.msra.mxu0 0.0
  %4100 = vmatprep.subr.mxu0 0.0
  %4101 = vmatpush1.msra.mxu0 0.0
  %4102 = vmatprep.subr.mxu0 0.0
  %4103 = vmatpush1.msra.mxu0 0.0
  %4104 = vmatprep.subr.mxu0 0.0
  %4105 = vmatpush1.msra.mxu0 0.0
  %4106 = vmatprep.subr.mxu0 0.0
  %4107 = vmatpush1.msra.mxu0 0.0
  %4108 = vmatprep.subr.mxu0 0.0
  %4109 = vmatpush1.msra.mxu0 0.0
  %4110 = vmatprep.subr.mxu0 0.0
  %4111 = vmatpush1.msra.mxu0 0.0
  %4112 = vmatprep.subr.mxu0 0.0
  %4113 = vmatpush1.msra.mxu0 0.0
  %4114 = vmatprep.subr.mxu0 0.0
  %4115 = vmatpush1.msra.mxu0 0.0
  %4116 = vmatprep.subr.mxu0 0.0
  %4117 = vmatpush1.msra.mxu0 0.0
  %4118 = vmatprep.subr.mxu0 0.0
  %4119 = vmatpush1.msra.mxu0 0.0
  %4120 = vmatprep.mubr.f32.mxu0 0.0
  %4121 = vmatmul.mubr.f32.gmra.mrb[0].mxu0 %v4045
  %v4122 = vpop.f32.mrb[0].mxu0
  %v4123 = vadd.f32 0.0, %v4122
  %v4124 = vpop.f32.mrb[0].mxu0
  %4125 = vmatprep.mubr.f32.mxu0 0.0
  %4126 = vmatmul.mubr.f32.gmra.mrb[0].mxu0 %v4048
  %v4127 = vpop.f32.mrb[0].mxu0
  %v4128 = vadd.f32 0.0, %v4127
  %v4129 = vpop.f32.mrb[0].mxu0
  %4130 = vmatprep.mubr.f32.mxu0 0.0
  %4131 = vmatmul.mubr.f32.gmra.mrb[0].mxu0 %v4051
  %v4132 = vpop.f32.mrb[0].mxu0
  %v4133 = vadd.f32 0.0, %v4132
  %v4134 = vpop.f32.mrb[0].mxu0
  %4135 = vmatprep.mubr.f32.mxu0 0.0
  %4136 = vmatmul.mubr.f32.gmra.mrb[0].mxu0 %v4054
  %v4137 = vpop.f32.mrb[0].mxu0
  %v4138 = vadd.f32 0.0, %v4137
  %v4139 = vpop.f32.mrb[0].mxu0
  %4140 = vdwg.mxu0
  %v4141 = vsel %vm199, %v4123, 0.0
  %v4142 = vsel %vm199, %v4128, 0.0
  %v4143 = vadd.f32 %v4141, %v4142
  %v4144 = vsel %vm199, %v4133, 0.0
  %v4145 = vadd.f32 %v4143, %v4144
  %v4146 = vsel %vm199, %v4138, 0.0
  %v4147 = vadd.f32 %v4145, %v4146
  %v4148 = vrot.slane %v4147, 4
  %v4149 = vadd.f32 %v4147, %v4148
  %v4150 = vrot.slane %v4149, 2
  %v4151 = vadd.f32 %v4149, %v4150
  %v4152 = vrot.slane %v4151, 1
  %v4153 = vadd.f32 %v4151, %v4152
  %v4154 = vadd.f32 %v4153, 1e-05
  %v4155 = vrsqrt.pop %v4154
  %v4156 = vmul.f32 %v4036, %v4155
  %v4157 = vmul.f32 %v4037, %v4155
  %v4158 = vmul.f32 %v4038, %v4155
  %v4159 = vmul.f32 %v4039, %v4155
  %v4160 = vmax.f32 %v4156, 0.0
  %v4161 = vmax.f32 %v4157, 0.0
  %v4162 = vmax.f32 %v4158, 0.0
  %v4163 = vmax.f32 %v4159, 0.0
  %v4164 = vld [vmem:[%s2 + $0x400] sm:$0xff]
  %v4165 = vld [vmem:[%s2 + $0x408] sm:$0xff]
  %v4166 = vld [vmem:[%s2 + $0x410] sm:$0xff]
  %v4167 = vld [vmem:[%s2 + $0x418] sm:$0xff]
  %v4168 = vld [vmem:[%s2 + $0x420] sm:$0x1]
  %v4169 = vlaneseq
  %v4170 = vshrl.u32 %v4169, 7
  %v4171 = vsub.s32 0, %v4170
  %v4172 = vrot.slane %v4168, %v4171
  %v4174 = vsel %vm199, %v4160, 0
  %v4177 = vsel %vm199, %v4161, 0
  %v4180 = vsel %vm199, %v4162, 0
  %v4183 = vsel %vm199, %v4163, 0
  %4185 = vmatprep.subr.mxu0 0.0
  %4186 = vmatpush1.msra.mxu0 %v4164
  %4187 = vmatprep.subr.mxu0 0.0
  %4188 = vmatpush1.msra.mxu0 %v4165
  %4189 = vmatprep.subr.mxu0 0.0
  %4190 = vmatpush1.msra.mxu0 %v4166
  %4191 = vmatprep.subr.mxu0 0.0
  %4192 = vmatpush1.msra.mxu0 %v4167
  %4193 = vmatprep.subr.mxu0 0.0
  %4194 = vmatpush1.msra.mxu0 0.0
  %4195 = vmatprep.subr.mxu0 0.0
  %4196 = vmatpush1.msra.mxu0 0.0
  %4197 = vmatprep.subr.mxu0 0.0
  %4198 = vmatpush1.msra.mxu0 0.0
  %4199 = vmatprep.subr.mxu0 0.0
  %4200 = vmatpush1.msra.mxu0 0.0
  %4201 = vmatprep.subr.mxu0 0.0
  %4202 = vmatpush1.msra.mxu0 0.0
  %4203 = vmatprep.subr.mxu0 0.0
  %4204 = vmatpush1.msra.mxu0 0.0
  %4205 = vmatprep.subr.mxu0 0.0
  %4206 = vmatpush1.msra.mxu0 0.0
  %4207 = vmatprep.subr.mxu0 0.0
  %4208 = vmatpush1.msra.mxu0 0.0
  %4209 = vmatprep.subr.mxu0 0.0
  %4210 = vmatpush1.msra.mxu0 0.0
  %4211 = vmatprep.subr.mxu0 0.0
  %4212 = vmatpush1.msra.mxu0 0.0
  %4213 = vmatprep.subr.mxu0 0.0
  %4214 = vmatpush1.msra.mxu0 0.0
  %4215 = vmatprep.subr.mxu0 0.0
  %4216 = vmatpush1.msra.mxu0 0.0
  %4217 = vmatprep.subr.mxu0 0.0
  %4218 = vmatpush1.msra.mxu0 0.0
  %4219 = vmatprep.subr.mxu0 0.0
  %4220 = vmatpush1.msra.mxu0 0.0
  %4221 = vmatprep.subr.mxu0 0.0
  %4222 = vmatpush1.msra.mxu0 0.0
  %4223 = vmatprep.subr.mxu0 0.0
  %4224 = vmatpush1.msra.mxu0 0.0
  %4225 = vmatprep.subr.mxu0 0.0
  %4226 = vmatpush1.msra.mxu0 0.0
  %4227 = vmatprep.subr.mxu0 0.0
  %4228 = vmatpush1.msra.mxu0 0.0
  %4229 = vmatprep.subr.mxu0 0.0
  %4230 = vmatpush1.msra.mxu0 0.0
  %4231 = vmatprep.subr.mxu0 0.0
  %4232 = vmatpush1.msra.mxu0 0.0
  %4233 = vmatprep.subr.mxu0 0.0
  %4234 = vmatpush1.msra.mxu0 0.0
  %4235 = vmatprep.subr.mxu0 0.0
  %4236 = vmatpush1.msra.mxu0 0.0
  %4237 = vmatprep.subr.mxu0 0.0
  %4238 = vmatpush1.msra.mxu0 0.0
  %4239 = vmatprep.subr.mxu0 0.0
  %4240 = vmatpush1.msra.mxu0 0.0
  %4241 = vmatprep.subr.mxu0 0.0
  %4242 = vmatpush1.msra.mxu0 0.0
  %4243 = vmatprep.subr.mxu0 0.0
  %4244 = vmatpush1.msra.mxu0 0.0
  %4245 = vmatprep.subr.mxu0 0.0
  %4246 = vmatpush1.msra.mxu0 0.0
  %4247 = vmatprep.subr.mxu0 0.0
  %4248 = vmatpush1.msra.mxu0 0.0
  %4249 = vmatprep.mubr.f32.mxu0 0.0
  %4250 = vmatmul.mubr.f32.gmra.mrb[0].mxu0 %v4174
  %v4251 = vpop.f32.mrb[0].mxu0
  %v4252 = vadd.f32 %v4172, %v4251
  %v4253 = vpop.f32.mrb[0].mxu0
  %4254 = vmatprep.mubr.f32.mxu0 0.0
  %4255 = vmatmul.mubr.f32.gmra.mrb[0].mxu0 %v4177
  %v4256 = vpop.f32.mrb[0].mxu0
  %v4257 = vadd.f32 %v4172, %v4256
  %v4258 = vpop.f32.mrb[0].mxu0
  %4259 = vmatprep.mubr.f32.mxu0 0.0
  %4260 = vmatmul.mubr.f32.gmra.mrb[0].mxu0 %v4180
  %v4261 = vpop.f32.mrb[0].mxu0
  %v4262 = vadd.f32 %v4172, %v4261
  %v4263 = vpop.f32.mrb[0].mxu0
  %4264 = vmatprep.mubr.f32.mxu0 0.0
  %4265 = vmatmul.mubr.f32.gmra.mrb[0].mxu0 %v4183
  %v4266 = vpop.f32.mrb[0].mxu0
  %v4267 = vadd.f32 %v4172, %v4266
  %v4268 = vpop.f32.mrb[0].mxu0
  %4269 = vdwg.mxu0
  %v4270 = vadd.f32 %v3904, %v4252
  %v4271 = vadd.f32 %v3909, %v4257
  %v4272 = vadd.f32 %v3914, %v4262
  %v4273 = vadd.f32 %v3919, %v4267
  %v4274 = vld [vmem:[%s2 + $0x3c0] sm:$0xff]
  %v4275 = vld [vmem:[%s2 + $0x3c8] sm:$0xff]
  %v4276 = vld [vmem:[%s2 + $0x3d0] sm:$0xff]
  %v4277 = vld [vmem:[%s2 + $0x3d8] sm:$0xff]
  %v4278 = vld [vmem:[%s2 + $0x3e0] sm:$0xff]
  %v4279 = vld [vmem:[%s2 + $0x3e8] sm:$0xff]
  %v4280 = vld [vmem:[%s2 + $0x3f0] sm:$0xff]
  %v4281 = vld [vmem:[%s2 + $0x3f8] sm:$0xff]
  %v4283 = vsel %vm199, %v4270, 0
  %v4286 = vsel %vm199, %v4271, 0
  %v4289 = vsel %vm199, %v4272, 0
  %v4292 = vsel %vm199, %v4273, 0
  %4294 = vmatprep.subr.mxu0 0.0
  %4295 = vmatpush1.msra.mxu0 %v30
  %4296 = vmatprep.subr.mxu0 0.0
  %4297 = vmatpush1.msra.mxu0 %v31
  %4298 = vmatprep.subr.mxu0 0.0
  %4299 = vmatpush1.msra.mxu0 %v32
  %4300 = vmatprep.subr.mxu0 0.0
  %4301 = vmatpush1.msra.mxu0 %v33
  %4302 = vmatprep.subr.mxu0 0.0
  %4303 = vmatpush1.msra.mxu0 0.0
  %4304 = vmatprep.subr.mxu0 0.0
  %4305 = vmatpush1.msra.mxu0 0.0
  %4306 = vmatprep.subr.mxu0 0.0
  %4307 = vmatpush1.msra.mxu0 0.0
  %4308 = vmatprep.subr.mxu0 0.0
  %4309 = vmatpush1.msra.mxu0 0.0
  %4310 = vmatprep.subr.mxu0 0.0
  %4311 = vmatpush1.msra.mxu0 0.0
  %4312 = vmatprep.subr.mxu0 0.0
  %4313 = vmatpush1.msra.mxu0 0.0
  %4314 = vmatprep.subr.mxu0 0.0
  %4315 = vmatpush1.msra.mxu0 0.0
  %4316 = vmatprep.subr.mxu0 0.0
  %4317 = vmatpush1.msra.mxu0 0.0
  %4318 = vmatprep.subr.mxu0 0.0
  %4319 = vmatpush1.msra.mxu0 0.0
  %4320 = vmatprep.subr.mxu0 0.0
  %4321 = vmatpush1.msra.mxu0 0.0
  %4322 = vmatprep.subr.mxu0 0.0
  %4323 = vmatpush1.msra.mxu0 0.0
  %4324 = vmatprep.subr.mxu0 0.0
  %4325 = vmatpush1.msra.mxu0 0.0
  %4326 = vmatprep.subr.mxu0 0.0
  %4327 = vmatpush1.msra.mxu0 0.0
  %4328 = vmatprep.subr.mxu0 0.0
  %4329 = vmatpush1.msra.mxu0 0.0
  %4330 = vmatprep.subr.mxu0 0.0
  %4331 = vmatpush1.msra.mxu0 0.0
  %4332 = vmatprep.subr.mxu0 0.0
  %4333 = vmatpush1.msra.mxu0 0.0
  %4334 = vmatprep.subr.mxu0 0.0
  %4335 = vmatpush1.msra.mxu0 0.0
  %4336 = vmatprep.subr.mxu0 0.0
  %4337 = vmatpush1.msra.mxu0 0.0
  %4338 = vmatprep.subr.mxu0 0.0
  %4339 = vmatpush1.msra.mxu0 0.0
  %4340 = vmatprep.subr.mxu0 0.0
  %4341 = vmatpush1.msra.mxu0 0.0
  %4342 = vmatprep.subr.mxu0 0.0
  %4343 = vmatpush1.msra.mxu0 0.0
  %4344 = vmatprep.subr.mxu0 0.0
  %4345 = vmatpush1.msra.mxu0 0.0
  %4346 = vmatprep.subr.mxu0 0.0
  %4347 = vmatpush1.msra.mxu0 0.0
  %4348 = vmatprep.subr.mxu0 0.0
  %4349 = vmatpush1.msra.mxu0 0.0
  %4350 = vmatprep.subr.mxu0 0.0
  %4351 = vmatpush1.msra.mxu0 0.0
  %4352 = vmatprep.subr.mxu0 0.0
  %4353 = vmatpush1.msra.mxu0 0.0
  %4354 = vmatprep.subr.mxu0 0.0
  %4355 = vmatpush1.msra.mxu0 0.0
  %4356 = vmatprep.subr.mxu0 0.0
  %4357 = vmatpush1.msra.mxu0 0.0
  %4358 = vmatprep.mubr.f32.mxu0 0.0
  %4359 = vmatmul.mubr.f32.gmra.mrb[0].mxu0 %v4283
  %v4360 = vpop.f32.mrb[0].mxu0
  %v4361 = vadd.f32 0.0, %v4360
  %v4362 = vpop.f32.mrb[0].mxu0
  %4363 = vmatprep.mubr.f32.mxu0 0.0
  %4364 = vmatmul.mubr.f32.gmra.mrb[0].mxu0 %v4286
  %v4365 = vpop.f32.mrb[0].mxu0
  %v4366 = vadd.f32 0.0, %v4365
  %v4367 = vpop.f32.mrb[0].mxu0
  %4368 = vmatprep.mubr.f32.mxu0 0.0
  %4369 = vmatmul.mubr.f32.gmra.mrb[0].mxu0 %v4289
  %v4370 = vpop.f32.mrb[0].mxu0
  %v4371 = vadd.f32 0.0, %v4370
  %v4372 = vpop.f32.mrb[0].mxu0
  %4373 = vmatprep.mubr.f32.mxu0 0.0
  %4374 = vmatmul.mubr.f32.gmra.mrb[0].mxu0 %v4292
  %v4375 = vpop.f32.mrb[0].mxu0
  %v4376 = vadd.f32 0.0, %v4375
  %v4377 = vpop.f32.mrb[0].mxu0
  %4378 = vdwg.mxu0
  %v4379 = vsub.f32 %v4270, %v4361
  %v4380 = vsub.f32 %v4271, %v4366
  %v4381 = vsub.f32 %v4272, %v4371
  %v4382 = vsub.f32 %v4273, %v4376
  %v4383 = vmul.f32 %v4379, %v4379
  %v4384 = vmul.f32 %v4380, %v4380
  %v4385 = vmul.f32 %v4381, %v4381
  %v4386 = vmul.f32 %v4382, %v4382
  %v4388 = vsel %vm199, %v4383, 0
  %v4391 = vsel %vm199, %v4384, 0
  %v4394 = vsel %vm199, %v4385, 0
  %v4397 = vsel %vm199, %v4386, 0
  %4399 = vmatprep.subr.mxu0 0.0
  %4400 = vmatpush1.msra.mxu0 %v30
  %4401 = vmatprep.subr.mxu0 0.0
  %4402 = vmatpush1.msra.mxu0 %v31
  %4403 = vmatprep.subr.mxu0 0.0
  %4404 = vmatpush1.msra.mxu0 %v32
  %4405 = vmatprep.subr.mxu0 0.0
  %4406 = vmatpush1.msra.mxu0 %v33
  %4407 = vmatprep.subr.mxu0 0.0
  %4408 = vmatpush1.msra.mxu0 0.0
  %4409 = vmatprep.subr.mxu0 0.0
  %4410 = vmatpush1.msra.mxu0 0.0
  %4411 = vmatprep.subr.mxu0 0.0
  %4412 = vmatpush1.msra.mxu0 0.0
  %4413 = vmatprep.subr.mxu0 0.0
  %4414 = vmatpush1.msra.mxu0 0.0
  %4415 = vmatprep.subr.mxu0 0.0
  %4416 = vmatpush1.msra.mxu0 0.0
  %4417 = vmatprep.subr.mxu0 0.0
  %4418 = vmatpush1.msra.mxu0 0.0
  %4419 = vmatprep.subr.mxu0 0.0
  %4420 = vmatpush1.msra.mxu0 0.0
  %4421 = vmatprep.subr.mxu0 0.0
  %4422 = vmatpush1.msra.mxu0 0.0
  %4423 = vmatprep.subr.mxu0 0.0
  %4424 = vmatpush1.msra.mxu0 0.0
  %4425 = vmatprep.subr.mxu0 0.0
  %4426 = vmatpush1.msra.mxu0 0.0
  %4427 = vmatprep.subr.mxu0 0.0
  %4428 = vmatpush1.msra.mxu0 0.0
  %4429 = vmatprep.subr.mxu0 0.0
  %4430 = vmatpush1.msra.mxu0 0.0
  %4431 = vmatprep.subr.mxu0 0.0
  %4432 = vmatpush1.msra.mxu0 0.0
  %4433 = vmatprep.subr.mxu0 0.0
  %4434 = vmatpush1.msra.mxu0 0.0
  %4435 = vmatprep.subr.mxu0 0.0
  %4436 = vmatpush1.msra.mxu0 0.0
  %4437 = vmatprep.subr.mxu0 0.0
  %4438 = vmatpush1.msra.mxu0 0.0
  %4439 = vmatprep.subr.mxu0 0.0
  %4440 = vmatpush1.msra.mxu0 0.0
  %4441 = vmatprep.subr.mxu0 0.0
  %4442 = vmatpush1.msra.mxu0 0.0
  %4443 = vmatprep.subr.mxu0 0.0
  %4444 = vmatpush1.msra.mxu0 0.0
  %4445 = vmatprep.subr.mxu0 0.0
  %4446 = vmatpush1.msra.mxu0 0.0
  %4447 = vmatprep.subr.mxu0 0.0
  %4448 = vmatpush1.msra.mxu0 0.0
  %4449 = vmatprep.subr.mxu0 0.0
  %4450 = vmatpush1.msra.mxu0 0.0
  %4451 = vmatprep.subr.mxu0 0.0
  %4452 = vmatpush1.msra.mxu0 0.0
  %4453 = vmatprep.subr.mxu0 0.0
  %4454 = vmatpush1.msra.mxu0 0.0
  %4455 = vmatprep.subr.mxu0 0.0
  %4456 = vmatpush1.msra.mxu0 0.0
  %4457 = vmatprep.subr.mxu0 0.0
  %4458 = vmatpush1.msra.mxu0 0.0
  %4459 = vmatprep.subr.mxu0 0.0
  %4460 = vmatpush1.msra.mxu0 0.0
  %4461 = vmatprep.subr.mxu0 0.0
  %4462 = vmatpush1.msra.mxu0 0.0
  %4463 = vmatprep.mubr.f32.mxu0 0.0
  %4464 = vmatmul.mubr.f32.gmra.mrb[0].mxu0 %v4388
  %v4465 = vpop.f32.mrb[0].mxu0
  %v4466 = vadd.f32 0.001, %v4465
  %v4467 = vpop.f32.mrb[0].mxu0
  %4468 = vmatprep.mubr.f32.mxu0 0.0
  %4469 = vmatmul.mubr.f32.gmra.mrb[0].mxu0 %v4391
  %v4470 = vpop.f32.mrb[0].mxu0
  %v4471 = vadd.f32 0.001, %v4470
  %v4472 = vpop.f32.mrb[0].mxu0
  %4473 = vmatprep.mubr.f32.mxu0 0.0
  %4474 = vmatmul.mubr.f32.gmra.mrb[0].mxu0 %v4394
  %v4475 = vpop.f32.mrb[0].mxu0
  %v4476 = vadd.f32 0.001, %v4475
  %v4477 = vpop.f32.mrb[0].mxu0
  %4478 = vmatprep.mubr.f32.mxu0 0.0
  %4479 = vmatmul.mubr.f32.gmra.mrb[0].mxu0 %v4397
  %v4480 = vpop.f32.mrb[0].mxu0
  %v4481 = vadd.f32 0.001, %v4480
  %v4482 = vpop.f32.mrb[0].mxu0
  %4483 = vdwg.mxu0
  %v4484 = vrsqrt.pop %v4466
  %v4485 = vrsqrt.pop %v4471
  %v4486 = vrsqrt.pop %v4476
  %v4487 = vrsqrt.pop %v4481
  %v4488 = vmul.f32 %v4379, %v4484
  %v4489 = vmul.f32 %v4380, %v4485
  %v4490 = vmul.f32 %v4381, %v4486
  %v4491 = vmul.f32 %v4382, %v4487
  %v4492 = vsel %vm199, %v4488, 0.0
  %4493 = vadd.xlane.f32.xlu0 %v4492
  %v4494 = vpop.xlane.xlu0 %4493
  %v4495 = vsel %vm199, %v4489, 0.0
  %4496 = vadd.xlane.f32.xlu0 %v4495
  %v4497 = vpop.xlane.xlu0 %4496
  %v4498 = vsel %vm199, %v4490, 0.0
  %4499 = vadd.xlane.f32.xlu0 %v4498
  %v4500 = vpop.xlane.xlu0 %4499
  %v4501 = vsel %vm199, %v4491, 0.0
  %4502 = vadd.xlane.f32.xlu0 %v4501
  %v4503 = vpop.xlane.xlu0 %4502
  %v4504 = vmul.f32 %v4494, %v3760
  %v4505 = vmul.f32 %v4497, %v3760
  %v4506 = vmul.f32 %v4500, %v3760
  %v4507 = vmul.f32 %v4503, %v3760
  %v4508 = vsub.f32 %v4488, %v4504
  %v4509 = vsub.f32 %v4489, %v4505
  %v4510 = vsub.f32 %v4490, %v4506
  %v4511 = vsub.f32 %v4491, %v4507
  %v4512 = vmul.f32 %v4508, %v4508
  %v4513 = vmul.f32 %v4509, %v4509
  %v4514 = vmul.f32 %v4510, %v4510
  %v4515 = vmul.f32 %v4511, %v4511
  %v4516 = vsel %vm199, %v4512, 0.0
  %4517 = vadd.xlane.f32.xlu0 %v4516
  %v4518 = vpop.xlane.xlu0 %4517
  %v4519 = vsel %vm199, %v4513, 0.0
  %4520 = vadd.xlane.f32.xlu0 %v4519
  %v4521 = vpop.xlane.xlu0 %4520
  %v4522 = vsel %vm199, %v4514, 0.0
  %4523 = vadd.xlane.f32.xlu0 %v4522
  %v4524 = vpop.xlane.xlu0 %4523
  %v4525 = vsel %vm199, %v4515, 0.0
  %4526 = vadd.xlane.f32.xlu0 %v4525
  %v4527 = vpop.xlane.xlu0 %4526
  %v4528 = vmul.f32 %v4518, %v3760
  %v4529 = vmul.f32 %v4521, %v3760
  %v4530 = vmul.f32 %v4524, %v3760
  %v4531 = vmul.f32 %v4527, %v3760
  %v4532 = vadd.f32 %v4528, 1e-05
  %v4533 = vadd.f32 %v4529, 1e-05
  %v4534 = vadd.f32 %v4530, 1e-05
  %v4535 = vadd.f32 %v4531, 1e-05
  %v4536 = vrsqrt.pop %v4532
  %v4537 = vrsqrt.pop %v4533
  %v4538 = vrsqrt.pop %v4534
  %v4539 = vrsqrt.pop %v4535
  %v4540 = vmul.f32 %v4508, %v4536
  %v4541 = vmul.f32 %v4509, %v4537
  %v4542 = vmul.f32 %v4510, %v4538
  %v4543 = vmul.f32 %v4511, %v4539
  %v4544 = vmax.f32 %v4540, 0.0
  %v4545 = vmax.f32 %v4541, 0.0
  %v4546 = vmax.f32 %v4542, 0.0
  %v4547 = vmax.f32 %v4543, 0.0
  %4549 = vset.pattern.permute.xlu0 0
  %4550 = vperm.xlu0 %4549, %v4278
  %v4551 = vpop.permute.xlu0 %4550
  %4554 = vset.pattern.permute.xlu0 0
  %4555 = vperm.xlu0 %4554, %v4279
  %v4556 = vpop.permute.xlu0 %4555
  %4559 = vset.pattern.permute.xlu0 0
  %4560 = vperm.xlu0 %4559, %v4280
  %v4561 = vpop.permute.xlu0 %4560
  %4564 = vset.pattern.permute.xlu0 0
  %4565 = vperm.xlu0 %4564, %v4281
  %v4566 = vpop.permute.xlu0 %4565
  %v4569 = vsel %vm199, %v4274, 0
  %v4572 = vsel %vm199, %v4275, 0
  %v4575 = vsel %vm199, %v4276, 0
  %v4578 = vsel %vm199, %v4277, 0
  %4580 = vmatprep.subr.mxu0 0.0
  %4581 = vmatpush1.msra.mxu0 %v4544
  %4582 = vmatprep.subr.mxu0 0.0
  %4583 = vmatpush1.msra.mxu0 %v4545
  %4584 = vmatprep.subr.mxu0 0.0
  %4585 = vmatpush1.msra.mxu0 %v4546
  %4586 = vmatprep.subr.mxu0 0.0
  %4587 = vmatpush1.msra.mxu0 %v4547
  %4588 = vmatprep.subr.mxu0 0.0
  %4589 = vmatpush1.msra.mxu0 0.0
  %4590 = vmatprep.subr.mxu0 0.0
  %4591 = vmatpush1.msra.mxu0 0.0
  %4592 = vmatprep.subr.mxu0 0.0
  %4593 = vmatpush1.msra.mxu0 0.0
  %4594 = vmatprep.subr.mxu0 0.0
  %4595 = vmatpush1.msra.mxu0 0.0
  %4596 = vmatprep.subr.mxu0 0.0
  %4597 = vmatpush1.msra.mxu0 0.0
  %4598 = vmatprep.subr.mxu0 0.0
  %4599 = vmatpush1.msra.mxu0 0.0
  %4600 = vmatprep.subr.mxu0 0.0
  %4601 = vmatpush1.msra.mxu0 0.0
  %4602 = vmatprep.subr.mxu0 0.0
  %4603 = vmatpush1.msra.mxu0 0.0
  %4604 = vmatprep.subr.mxu0 0.0
  %4605 = vmatpush1.msra.mxu0 0.0
  %4606 = vmatprep.subr.mxu0 0.0
  %4607 = vmatpush1.msra.mxu0 0.0
  %4608 = vmatprep.subr.mxu0 0.0
  %4609 = vmatpush1.msra.mxu0 0.0
  %4610 = vmatprep.subr.mxu0 0.0
  %4611 = vmatpush1.msra.mxu0 0.0
  %4612 = vmatprep.subr.mxu0 0.0
  %4613 = vmatpush1.msra.mxu0 0.0
  %4614 = vmatprep.subr.mxu0 0.0
  %4615 = vmatpush1.msra.mxu0 0.0
  %4616 = vmatprep.subr.mxu0 0.0
  %4617 = vmatpush1.msra.mxu0 0.0
  %4618 = vmatprep.subr.mxu0 0.0
  %4619 = vmatpush1.msra.mxu0 0.0
  %4620 = vmatprep.subr.mxu0 0.0
  %4621 = vmatpush1.msra.mxu0 0.0
  %4622 = vmatprep.subr.mxu0 0.0
  %4623 = vmatpush1.msra.mxu0 0.0
  %4624 = vmatprep.subr.mxu0 0.0
  %4625 = vmatpush1.msra.mxu0 0.0
  %4626 = vmatprep.subr.mxu0 0.0
  %4627 = vmatpush1.msra.mxu0 0.0
  %4628 = vmatprep.subr.mxu0 0.0
  %4629 = vmatpush1.msra.mxu0 0.0
  %4630 = vmatprep.subr.mxu0 0.0
  %4631 = vmatpush1.msra.mxu0 0.0
  %4632 = vmatprep.subr.mxu0 0.0
  %4633 = vmatpush1.msra.mxu0 0.0
  %4634 = vmatprep.subr.mxu0 0.0
  %4635 = vmatpush1.msra.mxu0 0.0
  %4636 = vmatprep.subr.mxu0 0.0
  %4637 = vmatpush1.msra.mxu0 0.0
  %4638 = vmatprep.subr.mxu0 0.0
  %4639 = vmatpush1.msra.mxu0 0.0
  %4640 = vmatprep.subr.mxu0 0.0
  %4641 = vmatpush1.msra.mxu0 0.0
  %4642 = vmatprep.subr.mxu0 0.0
  %4643 = vmatpush1.msra.mxu0 0.0
  %4644 = vmatprep.mubr.f32.mxu0 0.0
  %4645 = vmatmul.mubr.f32.gmra.mrb[0].mxu0 %v4569
  %v4646 = vpop.f32.mrb[0].mxu0
  %v4647 = vadd.f32 %v4551, %v4646
  %v4648 = vpop.f32.mrb[0].mxu0
  %4649 = vmatprep.mubr.f32.mxu0 0.0
  %4650 = vmatmul.mubr.f32.gmra.mrb[0].mxu0 %v4572
  %v4651 = vpop.f32.mrb[0].mxu0
  %v4652 = vadd.f32 %v4556, %v4651
  %v4653 = vpop.f32.mrb[0].mxu0
  %4654 = vmatprep.mubr.f32.mxu0 0.0
  %4655 = vmatmul.mubr.f32.gmra.mrb[0].mxu0 %v4575
  %v4656 = vpop.f32.mrb[0].mxu0
  %v4657 = vadd.f32 %v4561, %v4656
  %v4658 = vpop.f32.mrb[0].mxu0
  %4659 = vmatprep.mubr.f32.mxu0 0.0
  %4660 = vmatmul.mubr.f32.gmra.mrb[0].mxu0 %v4578
  %v4661 = vpop.f32.mrb[0].mxu0
  %v4662 = vadd.f32 %v4566, %v4661
  %v4663 = vpop.f32.mrb[0].mxu0
  %4664 = vdwg.mxu0
  %v4665 = vadd.f32 %v4647, %v3526
  %v4666 = vadd.f32 %v4652, %v3527
  %v4667 = vadd.f32 %v4657, %v3528
  %v4668 = vadd.f32 %v4662, %v3529
  %v4669 = vld [vmem:[%s2 + $0x360] sm:$0xff]
  %v4670 = vld [vmem:[%s2 + $0x368] sm:$0xff]
  %v4671 = vld [vmem:[%s2 + $0x370] sm:$0xff]
  %v4672 = vld [vmem:[%s2 + $0x378] sm:$0xff]
  %4674 = vset.pattern.permute.xlu0 0
  %4675 = vperm.xlu0 %4674, %v4671
  %v4676 = vpop.permute.xlu0 %4675
  %4679 = vset.pattern.permute.xlu0 0
  %4680 = vperm.xlu0 %4679, %v4672
  %v4681 = vpop.permute.xlu0 %4680
  %v4684 = vsel %vm199, %v4669, 0
  %v4687 = vsel %vm199, %v4670, 0
  %4689 = vmatprep.subr.mxu0 0.0
  %4690 = vmatpush1.msra.mxu0 %v3138
  %4691 = vmatprep.subr.mxu0 0.0
  %4692 = vmatpush1.msra.mxu0 %v3139
  %4693 = vmatprep.subr.mxu0 0.0
  %4694 = vmatpush1.msra.mxu0 %v3140
  %4695 = vmatprep.subr.mxu0 0.0
  %4696 = vmatpush1.msra.mxu0 %v3141
  %4697 = vmatprep.subr.mxu0 0.0
  %4698 = vmatpush1.msra.mxu0 0.0
  %4699 = vmatprep.subr.mxu0 0.0
  %4700 = vmatpush1.msra.mxu0 0.0
  %4701 = vmatprep.subr.mxu0 0.0
  %4702 = vmatpush1.msra.mxu0 0.0
  %4703 = vmatprep.subr.mxu0 0.0
  %4704 = vmatpush1.msra.mxu0 0.0
  %4705 = vmatprep.subr.mxu0 0.0
  %4706 = vmatpush1.msra.mxu0 0.0
  %4707 = vmatprep.subr.mxu0 0.0
  %4708 = vmatpush1.msra.mxu0 0.0
  %4709 = vmatprep.subr.mxu0 0.0
  %4710 = vmatpush1.msra.mxu0 0.0
  %4711 = vmatprep.subr.mxu0 0.0
  %4712 = vmatpush1.msra.mxu0 0.0
  %4713 = vmatprep.subr.mxu0 0.0
  %4714 = vmatpush1.msra.mxu0 0.0
  %4715 = vmatprep.subr.mxu0 0.0
  %4716 = vmatpush1.msra.mxu0 0.0
  %4717 = vmatprep.subr.mxu0 0.0
  %4718 = vmatpush1.msra.mxu0 0.0
  %4719 = vmatprep.subr.mxu0 0.0
  %4720 = vmatpush1.msra.mxu0 0.0
  %4721 = vmatprep.subr.mxu0 0.0
  %4722 = vmatpush1.msra.mxu0 0.0
  %4723 = vmatprep.subr.mxu0 0.0
  %4724 = vmatpush1.msra.mxu0 0.0
  %4725 = vmatprep.subr.mxu0 0.0
  %4726 = vmatpush1.msra.mxu0 0.0
  %4727 = vmatprep.subr.mxu0 0.0
  %4728 = vmatpush1.msra.mxu0 0.0
  %4729 = vmatprep.subr.mxu0 0.0
  %4730 = vmatpush1.msra.mxu0 0.0
  %4731 = vmatprep.subr.mxu0 0.0
  %4732 = vmatpush1.msra.mxu0 0.0
  %4733 = vmatprep.subr.mxu0 0.0
  %4734 = vmatpush1.msra.mxu0 0.0
  %4735 = vmatprep.subr.mxu0 0.0
  %4736 = vmatpush1.msra.mxu0 0.0
  %4737 = vmatprep.subr.mxu0 0.0
  %4738 = vmatpush1.msra.mxu0 0.0
  %4739 = vmatprep.subr.mxu0 0.0
  %4740 = vmatpush1.msra.mxu0 0.0
  %4741 = vmatprep.subr.mxu0 0.0
  %4742 = vmatpush1.msra.mxu0 0.0
  %4743 = vmatprep.subr.mxu0 0.0
  %4744 = vmatpush1.msra.mxu0 0.0
  %4745 = vmatprep.subr.mxu0 0.0
  %4746 = vmatpush1.msra.mxu0 0.0
  %4747 = vmatprep.subr.mxu0 0.0
  %4748 = vmatpush1.msra.mxu0 0.0
  %4749 = vmatprep.subr.mxu0 0.0
  %4750 = vmatpush1.msra.mxu0 0.0
  %4751 = vmatprep.subr.mxu0 0.0
  %4752 = vmatpush1.msra.mxu0 0.0
  %4753 = vmatprep.mubr.f32.mxu0 0.0
  %4754 = vmatmul.mubr.f32.gmra.mrb[0].mxu0 %v4684
  %v4755 = vpop.f32.mrb[0].mxu0
  %v4756 = vadd.f32 %v4676, %v4755
  %v4757 = vpop.f32.mrb[0].mxu0
  %4758 = vmatprep.mubr.f32.mxu0 0.0
  %4759 = vmatmul.mubr.f32.gmra.mrb[0].mxu0 %v4687
  %v4760 = vpop.f32.mrb[0].mxu0
  %v4761 = vadd.f32 %v4681, %v4760
  %v4762 = vpop.f32.mrb[0].mxu0
  %4763 = vdwg.mxu0
  %v4764 = vmax.f32 %v4756, %v4761
  %v4765 = vrot.slane %v4764, 4
  %v4766 = vmax.f32 %v4764, %v4765
  %v4767 = vrot.slane %v4766, 2
  %v4768 = vmax.f32 %v4766, %v4767
  %v4769 = vrot.slane %v4768, 1
  %v4770 = vmax.f32 %v4768, %v4769
  %v4771 = vsub.f32 %v4756, %v4770
  %v4772 = vsub.f32 %v4761, %v4770
  %v4773 = vmul.f32 %v4771, 1.442695
  %v4774 = vpow.pop %v4773
  %v4775 = vmul.f32 %v4772, 1.442695
  %v4776 = vpow.pop %v4775
  %v4777 = vadd.f32 %v4774, %v4776
  %v4778 = vrot.slane %v4777, 4
  %v4779 = vadd.f32 %v4777, %v4778
  %v4780 = vrot.slane %v4779, 2
  %v4781 = vadd.f32 %v4779, %v4780
  %v4782 = vrot.slane %v4781, 1
  %v4783 = vadd.f32 %v4781, %v4782
  %v4784 = vrcp.pop %v4783
  %v4785 = vmul.f32 %v4774, %v4784
  %v4786 = vmul.f32 %v4776, %v4784
  %v4788 = vsel %vm283, %v4665, 0
  %v4791 = vsel %vm283, %v4666, 0
  %v4794 = vsel %vm283, %v4667, 0
  %v4797 = vsel %vm283, %v4668, 0
  %4799 = vmatprep.subr.mxu0 0.0
  %4800 = vmatpush1.msra.mxu0 %v4785
  %4801 = vmatprep.subr.mxu0 0.0
  %4802 = vmatpush1.msra.mxu0 %v4786
  %4803 = vmatprep.subr.mxu0 0.0
  %4804 = vmatpush1.msra.mxu0 0.0
  %4805 = vmatprep.subr.mxu0 0.0
  %4806 = vmatpush1.msra.mxu0 0.0
  %4807 = vmatprep.subr.mxu0 0.0
  %4808 = vmatpush1.msra.mxu0 0.0
  %4809 = vmatprep.subr.mxu0 0.0
  %4810 = vmatpush1.msra.mxu0 0.0
  %4811 = vmatprep.subr.mxu0 0.0
  %4812 = vmatpush1.msra.mxu0 0.0
  %4813 = vmatprep.subr.mxu0 0.0
  %4814 = vmatpush1.msra.mxu0 0.0
  %4815 = vmatprep.subr.mxu0 0.0
  %4816 = vmatpush1.msra.mxu0 0.0
  %4817 = vmatprep.subr.mxu0 0.0
  %4818 = vmatpush1.msra.mxu0 0.0
  %4819 = vmatprep.subr.mxu0 0.0
  %4820 = vmatpush1.msra.mxu0 0.0
  %4821 = vmatprep.subr.mxu0 0.0
  %4822 = vmatpush1.msra.mxu0 0.0
  %4823 = vmatprep.subr.mxu0 0.0
  %4824 = vmatpush1.msra.mxu0 0.0
  %4825 = vmatprep.subr.mxu0 0.0
  %4826 = vmatpush1.msra.mxu0 0.0
  %4827 = vmatprep.subr.mxu0 0.0
  %4828 = vmatpush1.msra.mxu0 0.0
  %4829 = vmatprep.subr.mxu0 0.0
  %4830 = vmatpush1.msra.mxu0 0.0
  %4831 = vmatprep.subr.mxu0 0.0
  %4832 = vmatpush1.msra.mxu0 0.0
  %4833 = vmatprep.subr.mxu0 0.0
  %4834 = vmatpush1.msra.mxu0 0.0
  %4835 = vmatprep.subr.mxu0 0.0
  %4836 = vmatpush1.msra.mxu0 0.0
  %4837 = vmatprep.subr.mxu0 0.0
  %4838 = vmatpush1.msra.mxu0 0.0
  %4839 = vmatprep.subr.mxu0 0.0
  %4840 = vmatpush1.msra.mxu0 0.0
  %4841 = vmatprep.subr.mxu0 0.0
  %4842 = vmatpush1.msra.mxu0 0.0
  %4843 = vmatprep.subr.mxu0 0.0
  %4844 = vmatpush1.msra.mxu0 0.0
  %4845 = vmatprep.subr.mxu0 0.0
  %4846 = vmatpush1.msra.mxu0 0.0
  %4847 = vmatprep.subr.mxu0 0.0
  %4848 = vmatpush1.msra.mxu0 0.0
  %4849 = vmatprep.subr.mxu0 0.0
  %4850 = vmatpush1.msra.mxu0 0.0
  %4851 = vmatprep.subr.mxu0 0.0
  %4852 = vmatpush1.msra.mxu0 0.0
  %4853 = vmatprep.subr.mxu0 0.0
  %4854 = vmatpush1.msra.mxu0 0.0
  %4855 = vmatprep.subr.mxu0 0.0
  %4856 = vmatpush1.msra.mxu0 0.0
  %4857 = vmatprep.subr.mxu0 0.0
  %4858 = vmatpush1.msra.mxu0 0.0
  %4859 = vmatprep.subr.mxu0 0.0
  %4860 = vmatpush1.msra.mxu0 0.0
  %4861 = vmatprep.subr.mxu0 0.0
  %4862 = vmatpush1.msra.mxu0 0.0
  %4863 = vmatprep.mubr.f32.mxu0 0.0
  %4864 = vmatmul.mubr.f32.gmra.mrb[0].mxu0 %v4788
  %v4865 = vpop.f32.mrb[0].mxu0
  %v4866 = vadd.f32 0.0, %v4865
  %v4867 = vpop.f32.mrb[0].mxu0
  %4868 = vmatprep.mubr.f32.mxu0 0.0
  %4869 = vmatmul.mubr.f32.gmra.mrb[0].mxu0 %v4791
  %v4870 = vpop.f32.mrb[0].mxu0
  %v4871 = vadd.f32 0.0, %v4870
  %v4872 = vpop.f32.mrb[0].mxu0
  %4873 = vmatprep.mubr.f32.mxu0 0.0
  %4874 = vmatmul.mubr.f32.gmra.mrb[0].mxu0 %v4794
  %v4875 = vpop.f32.mrb[0].mxu0
  %v4876 = vadd.f32 0.0, %v4875
  %v4877 = vpop.f32.mrb[0].mxu0
  %4878 = vmatprep.mubr.f32.mxu0 0.0
  %4879 = vmatmul.mubr.f32.gmra.mrb[0].mxu0 %v4797
  %v4880 = vpop.f32.mrb[0].mxu0
  %v4881 = vadd.f32 0.0, %v4880
  %v4882 = vpop.f32.mrb[0].mxu0
  %4883 = vdwg.mxu0
  %4884 = vst.msk [vmem:[#allocation3] sm:$0xff] %vm3233, %v4866
  %4885 = vst.msk [vmem:[#allocation3 + $0x8] sm:$0xff] %vm3233, %v4871
  %4886 = vst.msk [vmem:[#allocation3 + $0x10] sm:$0xff] %vm3233, %v4876
  %4887 = vst.msk [vmem:[#allocation3 + $0x18] sm:$0xff] %vm3233, %v4881
  %4888 = vrot.lane.b32.xlu0 %v4665, 112
  %v4889 = vpop.permute.xlu0 %4888
  %4890 = vrot.lane.b32.xlu0 %v4666, 112
  %v4891 = vpop.permute.xlu0 %4890
  %4892 = vrot.lane.b32.xlu0 %v4667, 112
  %v4893 = vpop.permute.xlu0 %4892
  %4894 = vrot.lane.b32.xlu0 %v4668, 112
  %v4895 = vpop.permute.xlu0 %4894
  %4898 = vrot.lane.b32.xlu0 %v4785, 64
  %v4899 = vpop.permute.xlu0 %4898
  %4900 = vrot.lane.b32.xlu0 %v4786, 64
  %v4901 = vpop.permute.xlu0 %4900
  %v4904 = vsel %vm283, %v4889, 0
  %v4906 = vsel %vm283, %v4891, 0
  %v4908 = vsel %vm283, %v4893, 0
  %v4910 = vsel %vm283, %v4895, 0
  %4912 = vmatprep.subr.mxu0 0.0
  %4913 = vmatpush1.msra.mxu0 %v4899
  %4914 = vmatprep.subr.mxu0 0.0
  %4915 = vmatpush1.msra.mxu0 %v4901
  %4916 = vmatprep.subr.mxu0 0.0
  %4917 = vmatpush1.msra.mxu0 0.0
  %4918 = vmatprep.subr.mxu0 0.0
  %4919 = vmatpush1.msra.mxu0 0.0
  %4920 = vmatprep.subr.mxu0 0.0
  %4921 = vmatpush1.msra.mxu0 0.0
  %4922 = vmatprep.subr.mxu0 0.0
  %4923 = vmatpush1.msra.mxu0 0.0
  %4924 = vmatprep.subr.mxu0 0.0
  %4925 = vmatpush1.msra.mxu0 0.0
  %4926 = vmatprep.subr.mxu0 0.0
  %4927 = vmatpush1.msra.mxu0 0.0
  %4928 = vmatprep.subr.mxu0 0.0
  %4929 = vmatpush1.msra.mxu0 0.0
  %4930 = vmatprep.subr.mxu0 0.0
  %4931 = vmatpush1.msra.mxu0 0.0
  %4932 = vmatprep.subr.mxu0 0.0
  %4933 = vmatpush1.msra.mxu0 0.0
  %4934 = vmatprep.subr.mxu0 0.0
  %4935 = vmatpush1.msra.mxu0 0.0
  %4936 = vmatprep.subr.mxu0 0.0
  %4937 = vmatpush1.msra.mxu0 0.0
  %4938 = vmatprep.subr.mxu0 0.0
  %4939 = vmatpush1.msra.mxu0 0.0
  %4940 = vmatprep.subr.mxu0 0.0
  %4941 = vmatpush1.msra.mxu0 0.0
  %4942 = vmatprep.subr.mxu0 0.0
  %4943 = vmatpush1.msra.mxu0 0.0
  %4944 = vmatprep.subr.mxu0 0.0
  %4945 = vmatpush1.msra.mxu0 0.0
  %4946 = vmatprep.subr.mxu0 0.0
  %4947 = vmatpush1.msra.mxu0 0.0
  %4948 = vmatprep.subr.mxu0 0.0
  %4949 = vmatpush1.msra.mxu0 0.0
  %4950 = vmatprep.subr.mxu0 0.0
  %4951 = vmatpush1.msra.mxu0 0.0
  %4952 = vmatprep.subr.mxu0 0.0
  %4953 = vmatpush1.msra.mxu0 0.0
  %4954 = vmatprep.subr.mxu0 0.0
  %4955 = vmatpush1.msra.mxu0 0.0
  %4956 = vmatprep.subr.mxu0 0.0
  %4957 = vmatpush1.msra.mxu0 0.0
  %4958 = vmatprep.subr.mxu0 0.0
  %4959 = vmatpush1.msra.mxu0 0.0
  %4960 = vmatprep.subr.mxu0 0.0
  %4961 = vmatpush1.msra.mxu0 0.0
  %4962 = vmatprep.subr.mxu0 0.0
  %4963 = vmatpush1.msra.mxu0 0.0
  %4964 = vmatprep.subr.mxu0 0.0
  %4965 = vmatpush1.msra.mxu0 0.0
  %4966 = vmatprep.subr.mxu0 0.0
  %4967 = vmatpush1.msra.mxu0 0.0
  %4968 = vmatprep.subr.mxu0 0.0
  %4969 = vmatpush1.msra.mxu0 0.0
  %4970 = vmatprep.subr.mxu0 0.0
  %4971 = vmatpush1.msra.mxu0 0.0
  %4972 = vmatprep.subr.mxu0 0.0
  %4973 = vmatpush1.msra.mxu0 0.0
  %4974 = vmatprep.subr.mxu0 0.0
  %4975 = vmatpush1.msra.mxu0 0.0
  %4976 = vmatprep.mubr.f32.mxu0 0.0
  %4977 = vmatmul.mubr.f32.gmra.mrb[0].mxu0 %v4904
  %v4978 = vpop.f32.mrb[0].mxu0
  %v4979 = vadd.f32 0.0, %v4978
  %v4980 = vpop.f32.mrb[0].mxu0
  %4981 = vmatprep.mubr.f32.mxu0 0.0
  %4982 = vmatmul.mubr.f32.gmra.mrb[0].mxu0 %v4906
  %v4983 = vpop.f32.mrb[0].mxu0
  %v4984 = vadd.f32 0.0, %v4983
  %v4985 = vpop.f32.mrb[0].mxu0
  %4986 = vmatprep.mubr.f32.mxu0 0.0
  %4987 = vmatmul.mubr.f32.gmra.mrb[0].mxu0 %v4908
  %v4988 = vpop.f32.mrb[0].mxu0
  %v4989 = vadd.f32 0.0, %v4988
  %v4990 = vpop.f32.mrb[0].mxu0
  %4991 = vmatprep.mubr.f32.mxu0 0.0
  %4992 = vmatmul.mubr.f32.gmra.mrb[0].mxu0 %v4910
  %v4993 = vpop.f32.mrb[0].mxu0
  %v4994 = vadd.f32 0.0, %v4993
  %v4995 = vpop.f32.mrb[0].mxu0
  %4996 = vdwg.mxu0
  %5001 = vrot.lane.b32.xlu0 %v4979, 64
  %v5002 = vpop.permute.xlu0 %5001
  %5003 = vrot.lane.b32.xlu0 %v4984, 64
  %v5004 = vpop.permute.xlu0 %5003
  %5005 = vrot.lane.b32.xlu0 %v4989, 64
  %v5006 = vpop.permute.xlu0 %5005
  %5007 = vrot.lane.b32.xlu0 %v4994, 64
  %v5008 = vpop.permute.xlu0 %5007
  %5013 = vst.msk [vmem:[#allocation3] sm:$0xff] %vm3363, %v5002
  %5014 = vst.msk [vmem:[#allocation3 + $0x8] sm:$0xff] %vm3363, %v5004
  %5015 = vst.msk [vmem:[#allocation3 + $0x10] sm:$0xff] %vm3363, %v5006
  %5016 = vst.msk [vmem:[#allocation3 + $0x18] sm:$0xff] %vm3363, %v5008
  %v5017 = vld [vmem:[#allocation3] sm:$0xff]
  %v5018 = vld [vmem:[#allocation3 + $0x8] sm:$0xff]
  %v5019 = vld [vmem:[#allocation3 + $0x10] sm:$0xff]
  %v5020 = vld [vmem:[#allocation3 + $0x18] sm:$0xff]
  %v5021 = vadd.f32 %v2900, %v5017
  %v5022 = vadd.f32 %v2901, %v5018
  %v5023 = vadd.f32 %v2902, %v5019
  %v5024 = vadd.f32 %v2903, %v5020
  %v5025 = vld [vmem:[%s2 + $0xa0] sm:$0xff]
  %v5026 = vld [vmem:[%s2 + $0xa8] sm:$0xff]
  %v5027 = vld [vmem:[%s2 + $0xb0] sm:$0xff]
  %v5028 = vld [vmem:[%s2 + $0xb8] sm:$0xff]
  %5030 = vset.pattern.permute.xlu0 0
  %5031 = vperm.xlu0 %5030, %v5027
  %v5032 = vpop.permute.xlu0 %5031
  %5035 = vset.pattern.permute.xlu0 0
  %5036 = vperm.xlu0 %5035, %v5028
  %v5037 = vpop.permute.xlu0 %5036
  %v5040 = vsel %vm199, %v5025, 0
  %v5043 = vsel %vm199, %v5026, 0
  %5045 = vmatprep.subr.mxu0 0.0
  %5046 = vmatpush1.msra.mxu0 %v5021
  %5047 = vmatprep.subr.mxu0 0.0
  %5048 = vmatpush1.msra.mxu0 %v5022
  %5049 = vmatprep.subr.mxu0 0.0
  %5050 = vmatpush1.msra.mxu0 %v5023
  %5051 = vmatprep.subr.mxu0 0.0
  %5052 = vmatpush1.msra.mxu0 %v5024
  %5053 = vmatprep.subr.mxu0 0.0
  %5054 = vmatpush1.msra.mxu0 0.0
  %5055 = vmatprep.subr.mxu0 0.0
  %5056 = vmatpush1.msra.mxu0 0.0
  %5057 = vmatprep.subr.mxu0 0.0
  %5058 = vmatpush1.msra.mxu0 0.0
  %5059 = vmatprep.subr.mxu0 0.0
  %5060 = vmatpush1.msra.mxu0 0.0
  %5061 = vmatprep.subr.mxu0 0.0
  %5062 = vmatpush1.msra.mxu0 0.0
  %5063 = vmatprep.subr.mxu0 0.0
  %5064 = vmatpush1.msra.mxu0 0.0
  %5065 = vmatprep.subr.mxu0 0.0
  %5066 = vmatpush1.msra.mxu0 0.0
  %5067 = vmatprep.subr.mxu0 0.0
  %5068 = vmatpush1.msra.mxu0 0.0
  %5069 = vmatprep.subr.mxu0 0.0
  %5070 = vmatpush1.msra.mxu0 0.0
  %5071 = vmatprep.subr.mxu0 0.0
  %5072 = vmatpush1.msra.mxu0 0.0
  %5073 = vmatprep.subr.mxu0 0.0
  %5074 = vmatpush1.msra.mxu0 0.0
  %5075 = vmatprep.subr.mxu0 0.0
  %5076 = vmatpush1.msra.mxu0 0.0
  %5077 = vmatprep.subr.mxu0 0.0
  %5078 = vmatpush1.msra.mxu0 0.0
  %5079 = vmatprep.subr.mxu0 0.0
  %5080 = vmatpush1.msra.mxu0 0.0
  %5081 = vmatprep.subr.mxu0 0.0
  %5082 = vmatpush1.msra.mxu0 0.0
  %5083 = vmatprep.subr.mxu0 0.0
  %5084 = vmatpush1.msra.mxu0 0.0
  %5085 = vmatprep.subr.mxu0 0.0
  %5086 = vmatpush1.msra.mxu0 0.0
  %5087 = vmatprep.subr.mxu0 0.0
  %5088 = vmatpush1.msra.mxu0 0.0
  %5089 = vmatprep.subr.mxu0 0.0
  %5090 = vmatpush1.msra.mxu0 0.0
  %5091 = vmatprep.subr.mxu0 0.0
  %5092 = vmatpush1.msra.mxu0 0.0
  %5093 = vmatprep.subr.mxu0 0.0
  %5094 = vmatpush1.msra.mxu0 0.0
  %5095 = vmatprep.subr.mxu0 0.0
  %5096 = vmatpush1.msra.mxu0 0.0
  %5097 = vmatprep.subr.mxu0 0.0
  %5098 = vmatpush1.msra.mxu0 0.0
  %5099 = vmatprep.subr.mxu0 0.0
  %5100 = vmatpush1.msra.mxu0 0.0
  %5101 = vmatprep.subr.mxu0 0.0
  %5102 = vmatpush1.msra.mxu0 0.0
  %5103 = vmatprep.subr.mxu0 0.0
  %5104 = vmatpush1.msra.mxu0 0.0
  %5105 = vmatprep.subr.mxu0 0.0
  %5106 = vmatpush1.msra.mxu0 0.0
  %5107 = vmatprep.subr.mxu0 0.0
  %5108 = vmatpush1.msra.mxu0 0.0
  %5109 = vmatprep.mubr.f32.mxu0 0.0
  %5110 = vmatmul.mubr.f32.gmra.mrb[0].mxu0 %v5040
  %v5111 = vpop.f32.mrb[0].mxu0
  %v5112 = vadd.f32 %v5032, %v5111
  %v5113 = vpop.f32.mrb[0].mxu0
  %5114 = vmatprep.mubr.f32.mxu0 0.0
  %5115 = vmatmul.mubr.f32.gmra.mrb[0].mxu0 %v5043
  %v5116 = vpop.f32.mrb[0].mxu0
  %v5117 = vadd.f32 %v5037, %v5116
  %v5118 = vpop.f32.mrb[0].mxu0
  %5119 = vdwg.mxu0
  %v5120 = vld [vmem:[%s2 + $0xc0] sm:$0xff]
  %v5121 = vld [vmem:[%s2 + $0xc8] sm:$0xff]
  %v5123 = vsel %vm283, %v5120, 0
  %v5126 = vsel %vm283, %v5121, 0
  %5128 = vmatprep.subr.mxu0 0.0
  %5129 = vmatpush1.msra.mxu0 %v5112
  %5130 = vmatprep.subr.mxu0 0.0
  %5131 = vmatpush1.msra.mxu0 %v5117
  %5132 = vmatprep.subr.mxu0 0.0
  %5133 = vmatpush1.msra.mxu0 0.0
  %5134 = vmatprep.subr.mxu0 0.0
  %5135 = vmatpush1.msra.mxu0 0.0
  %5136 = vmatprep.subr.mxu0 0.0
  %5137 = vmatpush1.msra.mxu0 0.0
  %5138 = vmatprep.subr.mxu0 0.0
  %5139 = vmatpush1.msra.mxu0 0.0
  %5140 = vmatprep.subr.mxu0 0.0
  %5141 = vmatpush1.msra.mxu0 0.0
  %5142 = vmatprep.subr.mxu0 0.0
  %5143 = vmatpush1.msra.mxu0 0.0
  %5144 = vmatprep.subr.mxu0 0.0
  %5145 = vmatpush1.msra.mxu0 0.0
  %5146 = vmatprep.subr.mxu0 0.0
  %5147 = vmatpush1.msra.mxu0 0.0
  %5148 = vmatprep.subr.mxu0 0.0
  %5149 = vmatpush1.msra.mxu0 0.0
  %5150 = vmatprep.subr.mxu0 0.0
  %5151 = vmatpush1.msra.mxu0 0.0
  %5152 = vmatprep.subr.mxu0 0.0
  %5153 = vmatpush1.msra.mxu0 0.0
  %5154 = vmatprep.subr.mxu0 0.0
  %5155 = vmatpush1.msra.mxu0 0.0
  %5156 = vmatprep.subr.mxu0 0.0
  %5157 = vmatpush1.msra.mxu0 0.0
  %5158 = vmatprep.subr.mxu0 0.0
  %5159 = vmatpush1.msra.mxu0 0.0
  %5160 = vmatprep.subr.mxu0 0.0
  %5161 = vmatpush1.msra.mxu0 0.0
  %5162 = vmatprep.subr.mxu0 0.0
  %5163 = vmatpush1.msra.mxu0 0.0
  %5164 = vmatprep.subr.mxu0 0.0
  %5165 = vmatpush1.msra.mxu0 0.0
  %5166 = vmatprep.subr.mxu0 0.0
  %5167 = vmatpush1.msra.mxu0 0.0
  %5168 = vmatprep.subr.mxu0 0.0
  %5169 = vmatpush1.msra.mxu0 0.0
  %5170 = vmatprep.subr.mxu0 0.0
  %5171 = vmatpush1.msra.mxu0 0.0
  %5172 = vmatprep.subr.mxu0 0.0
  %5173 = vmatpush1.msra.mxu0 0.0
  %5174 = vmatprep.subr.mxu0 0.0
  %5175 = vmatpush1.msra.mxu0 0.0
  %5176 = vmatprep.subr.mxu0 0.0
  %5177 = vmatpush1.msra.mxu0 0.0
  %5178 = vmatprep.subr.mxu0 0.0
  %5179 = vmatpush1.msra.mxu0 0.0
  %5180 = vmatprep.subr.mxu0 0.0
  %5181 = vmatpush1.msra.mxu0 0.0
  %5182 = vmatprep.subr.mxu0 0.0
  %5183 = vmatpush1.msra.mxu0 0.0
  %5184 = vmatprep.subr.mxu0 0.0
  %5185 = vmatpush1.msra.mxu0 0.0
  %5186 = vmatprep.subr.mxu0 0.0
  %5187 = vmatpush1.msra.mxu0 0.0
  %5188 = vmatprep.subr.mxu0 0.0
  %5189 = vmatpush1.msra.mxu0 0.0
  %5190 = vmatprep.subr.mxu0 0.0
  %5191 = vmatpush1.msra.mxu0 0.0
  %5192 = vmatprep.mubr.f32.mxu0 0.0
  %5193 = vmatmul.mubr.f32.gmra.mrb[0].mxu0 %v5123
  %v5194 = vpop.f32.mrb[0].mxu0
  %v5195 = vadd.f32 0.0, %v5194
  %v5196 = vpop.f32.mrb[0].mxu0
  %5197 = vmatprep.mubr.f32.mxu0 0.0
  %5198 = vmatmul.mubr.f32.gmra.mrb[0].mxu0 %v5126
  %v5199 = vpop.f32.mrb[0].mxu0
  %v5200 = vadd.f32 0.0, %v5199
  %v5201 = vpop.f32.mrb[0].mxu0
  %5202 = vdwg.mxu0
  %v5203 = vld [vmem:[%s2 + $0xd0] sm:$0xff]
  %v5204 = vld [vmem:[%s2 + $0xd8] sm:$0xff]
  %5206 = vset.pattern.permute.xlu0 0
  %5207 = vperm.xlu0 %5206, %v5203
  %v5208 = vpop.permute.xlu0 %5207
  %5211 = vset.pattern.permute.xlu0 0
  %5212 = vperm.xlu0 %5211, %v5204
  %v5213 = vpop.permute.xlu0 %5212
  %5215 = vmatprep.subr.mxu0 %v54
  %5216 = vmatpush1.msra.mxu0 %v53
  %5217 = vmatprep.subr.mxu0 %v62
  %5218 = vmatpush1.msra.mxu0 %v61
  %5219 = vmatprep.subr.mxu0 %v70
  %5220 = vmatpush1.msra.mxu0 %v69
  %5221 = vmatprep.subr.mxu0 %v78
  %5222 = vmatpush1.msra.mxu0 %v77
  %5223 = vmatprep.subr.mxu0 %v86
  %5224 = vmatpush1.msra.mxu0 %v85
  %5225 = vmatprep.subr.mxu0 %v94
  %5226 = vmatpush1.msra.mxu0 %v93
  %5227 = vmatprep.subr.mxu0 %v102
  %5228 = vmatpush1.msra.mxu0 %v101
  %5229 = vmatprep.subr.mxu0 %v110
  %5230 = vmatpush1.msra.mxu0 %v109
  %5231 = vmatprep.subr.mxu0 %v118
  %5232 = vmatpush1.msra.mxu0 %v117
  %5233 = vmatprep.subr.mxu0 %v126
  %5234 = vmatpush1.msra.mxu0 %v125
  %5235 = vmatprep.subr.mxu0 %v134
  %5236 = vmatpush1.msra.mxu0 %v133
  %5237 = vmatprep.subr.mxu0 %v142
  %5238 = vmatpush1.msra.mxu0 %v141
  %5239 = vmatprep.subr.mxu0 %v150
  %5240 = vmatpush1.msra.mxu0 %v149
  %5241 = vmatprep.subr.mxu0 %v158
  %5242 = vmatpush1.msra.mxu0 %v157
  %5243 = vmatprep.subr.mxu0 %v166
  %5244 = vmatpush1.msra.mxu0 %v165
  %5245 = vmatprep.subr.mxu0 %v174
  %5246 = vmatpush1.msra.mxu0 %v173
  %5247 = vmatprep.subr.mxu0 0.0
  %5248 = vmatpush1.msra.mxu0 0.0
  %5249 = vmatprep.subr.mxu0 0.0
  %5250 = vmatpush1.msra.mxu0 0.0
  %5251 = vmatprep.subr.mxu0 0.0
  %5252 = vmatpush1.msra.mxu0 0.0
  %5253 = vmatprep.subr.mxu0 0.0
  %5254 = vmatpush1.msra.mxu0 0.0
  %5255 = vmatprep.subr.mxu0 0.0
  %5256 = vmatpush1.msra.mxu0 0.0
  %5257 = vmatprep.subr.mxu0 0.0
  %5258 = vmatpush1.msra.mxu0 0.0
  %5259 = vmatprep.subr.mxu0 0.0
  %5260 = vmatpush1.msra.mxu0 0.0
  %5261 = vmatprep.subr.mxu0 0.0
  %5262 = vmatpush1.msra.mxu0 0.0
  %5263 = vmatprep.subr.mxu0 0.0
  %5264 = vmatpush1.msra.mxu0 0.0
  %5265 = vmatprep.subr.mxu0 0.0
  %5266 = vmatpush1.msra.mxu0 0.0
  %5267 = vmatprep.subr.mxu0 0.0
  %5268 = vmatpush1.msra.mxu0 0.0
  %5269 = vmatprep.subr.mxu0 0.0
  %5270 = vmatpush1.msra.mxu0 0.0
  %5271 = vmatprep.subr.mxu0 0.0
  %5272 = vmatpush1.msra.mxu0 0.0
  %5273 = vmatprep.subr.mxu0 0.0
  %5274 = vmatpush1.msra.mxu0 0.0
  %5275 = vmatprep.subr.mxu0 0.0
  %5276 = vmatpush1.msra.mxu0 0.0
  %5277 = vmatprep.subr.mxu0 0.0
  %5278 = vmatpush1.msra.mxu0 0.0
  %5279 = vmatprep.mubr.f32.mxu0 0.0
  %5280 = vmatmul.mubr.f32.gmra.mrb[0].mxu0 %v5195
  %v5281 = vpop.f32.mrb[0].mxu0
  %v5282 = vadd.f32 %v5208, %v5281
  %v5283 = vpop.f32.mrb[0].mxu0
  %v5284 = vadd.f32 %v5208, %v5283
  %5285 = vmatprep.mubr.f32.mxu0 0.0
  %5286 = vmatmul.mubr.f32.gmra.mrb[0].mxu0 %v5200
  %v5287 = vpop.f32.mrb[0].mxu0
  %v5288 = vadd.f32 %v5213, %v5287
  %v5289 = vpop.f32.mrb[0].mxu0
  %v5290 = vadd.f32 %v5213, %v5289
  %5291 = vdwg.mxu0
  %5292 = vmatprep.subr.mxu0 %v56
  %5293 = vmatpush1.msra.mxu0 %v55
  %5294 = vmatprep.subr.mxu0 %v64
  %5295 = vmatpush1.msra.mxu0 %v63
  %5296 = vmatprep.subr.mxu0 %v72
  %5297 = vmatpush1.msra.mxu0 %v71
  %5298 = vmatprep.subr.mxu0 %v80
  %5299 = vmatpush1.msra.mxu0 %v79
  %5300 = vmatprep.subr.mxu0 %v88
  %5301 = vmatpush1.msra.mxu0 %v87
  %5302 = vmatprep.subr.mxu0 %v96
  %5303 = vmatpush1.msra.mxu0 %v95
  %5304 = vmatprep.subr.mxu0 %v104
  %5305 = vmatpush1.msra.mxu0 %v103
  %5306 = vmatprep.subr.mxu0 %v112
  %5307 = vmatpush1.msra.mxu0 %v111
  %5308 = vmatprep.subr.mxu0 %v120
  %5309 = vmatpush1.msra.mxu0 %v119
  %5310 = vmatprep.subr.mxu0 %v128
  %5311 = vmatpush1.msra.mxu0 %v127
  %5312 = vmatprep.subr.mxu0 %v136
  %5313 = vmatpush1.msra.mxu0 %v135
  %5314 = vmatprep.subr.mxu0 %v144
  %5315 = vmatpush1.msra.mxu0 %v143
  %5316 = vmatprep.subr.mxu0 %v152
  %5317 = vmatpush1.msra.mxu0 %v151
  %5318 = vmatprep.subr.mxu0 %v160
  %5319 = vmatpush1.msra.mxu0 %v159
  %5320 = vmatprep.subr.mxu0 %v168
  %5321 = vmatpush1.msra.mxu0 %v167
  %5322 = vmatprep.subr.mxu0 %v176
  %5323 = vmatpush1.msra.mxu0 %v175
  %5324 = vmatprep.subr.mxu0 0.0
  %5325 = vmatpush1.msra.mxu0 0.0
  %5326 = vmatprep.subr.mxu0 0.0
  %5327 = vmatpush1.msra.mxu0 0.0
  %5328 = vmatprep.subr.mxu0 0.0
  %5329 = vmatpush1.msra.mxu0 0.0
  %5330 = vmatprep.subr.mxu0 0.0
  %5331 = vmatpush1.msra.mxu0 0.0
  %5332 = vmatprep.subr.mxu0 0.0
  %5333 = vmatpush1.msra.mxu0 0.0
  %5334 = vmatprep.subr.mxu0 0.0
  %5335 = vmatpush1.msra.mxu0 0.0
  %5336 = vmatprep.subr.mxu0 0.0
  %5337 = vmatpush1.msra.mxu0 0.0
  %5338 = vmatprep.subr.mxu0 0.0
  %5339 = vmatpush1.msra.mxu0 0.0
  %5340 = vmatprep.subr.mxu0 0.0
  %5341 = vmatpush1.msra.mxu0 0.0
  %5342 = vmatprep.subr.mxu0 0.0
  %5343 = vmatpush1.msra.mxu0 0.0
  %5344 = vmatprep.subr.mxu0 0.0
  %5345 = vmatpush1.msra.mxu0 0.0
  %5346 = vmatprep.subr.mxu0 0.0
  %5347 = vmatpush1.msra.mxu0 0.0
  %5348 = vmatprep.subr.mxu0 0.0
  %5349 = vmatpush1.msra.mxu0 0.0
  %5350 = vmatprep.subr.mxu0 0.0
  %5351 = vmatpush1.msra.mxu0 0.0
  %5352 = vmatprep.subr.mxu0 0.0
  %5353 = vmatpush1.msra.mxu0 0.0
  %5354 = vmatprep.subr.mxu0 0.0
  %5355 = vmatpush1.msra.mxu0 0.0
  %5356 = vmatprep.mubr.f32.mxu0 0.0
  %5357 = vmatmul.mubr.f32.gmra.mrb[0].mxu0 %v5195
  %v5358 = vpop.f32.mrb[0].mxu0
  %v5359 = vadd.f32 %v5208, %v5358
  %v5360 = vpop.f32.mrb[0].mxu0
  %v5361 = vadd.f32 %v5208, %v5360
  %5362 = vmatprep.mubr.f32.mxu0 0.0
  %5363 = vmatmul.mubr.f32.gmra.mrb[0].mxu0 %v5200
  %v5364 = vpop.f32.mrb[0].mxu0
  %v5365 = vadd.f32 %v5213, %v5364
  %v5366 = vpop.f32.mrb[0].mxu0
  %v5367 = vadd.f32 %v5213, %v5366
  %5368 = vdwg.mxu0
  %5369 = vmatprep.subr.mxu0 %v58
  %5370 = vmatpush1.msra.mxu0 %v57
  %5371 = vmatprep.subr.mxu0 %v66
  %5372 = vmatpush1.msra.mxu0 %v65
  %5373 = vmatprep.subr.mxu0 %v74
  %5374 = vmatpush1.msra.mxu0 %v73
  %5375 = vmatprep.subr.mxu0 %v82
  %5376 = vmatpush1.msra.mxu0 %v81
  %5377 = vmatprep.subr.mxu0 %v90
  %5378 = vmatpush1.msra.mxu0 %v89
  %5379 = vmatprep.subr.mxu0 %v98
  %5380 = vmatpush1.msra.mxu0 %v97
  %5381 = vmatprep.subr.mxu0 %v106
  %5382 = vmatpush1.msra.mxu0 %v105
  %5383 = vmatprep.subr.mxu0 %v114
  %5384 = vmatpush1.msra.mxu0 %v113
  %5385 = vmatprep.subr.mxu0 %v122
  %5386 = vmatpush1.msra.mxu0 %v121
  %5387 = vmatprep.subr.mxu0 %v130
  %5388 = vmatpush1.msra.mxu0 %v129
  %5389 = vmatprep.subr.mxu0 %v138
  %5390 = vmatpush1.msra.mxu0 %v137
  %5391 = vmatprep.subr.mxu0 %v146
  %5392 = vmatpush1.msra.mxu0 %v145
  %5393 = vmatprep.subr.mxu0 %v154
  %5394 = vmatpush1.msra.mxu0 %v153
  %5395 = vmatprep.subr.mxu0 %v162
  %5396 = vmatpush1.msra.mxu0 %v161
  %5397 = vmatprep.subr.mxu0 %v170
  %5398 = vmatpush1.msra.mxu0 %v169
  %5399 = vmatprep.subr.mxu0 %v178
  %5400 = vmatpush1.msra.mxu0 %v177
  %5401 = vmatprep.subr.mxu0 0.0
  %5402 = vmatpush1.msra.mxu0 0.0
  %5403 = vmatprep.subr.mxu0 0.0
  %5404 = vmatpush1.msra.mxu0 0.0
  %5405 = vmatprep.subr.mxu0 0.0
  %5406 = vmatpush1.msra.mxu0 0.0
  %5407 = vmatprep.subr.mxu0 0.0
  %5408 = vmatpush1.msra.mxu0 0.0
  %5409 = vmatprep.subr.mxu0 0.0
  %5410 = vmatpush1.msra.mxu0 0.0
  %5411 = vmatprep.subr.mxu0 0.0
  %5412 = vmatpush1.msra.mxu0 0.0
  %5413 = vmatprep.subr.mxu0 0.0
  %5414 = vmatpush1.msra.mxu0 0.0
  %5415 = vmatprep.subr.mxu0 0.0
  %5416 = vmatpush1.msra.mxu0 0.0
  %5417 = vmatprep.subr.mxu0 0.0
  %5418 = vmatpush1.msra.mxu0 0.0
  %5419 = vmatprep.subr.mxu0 0.0
  %5420 = vmatpush1.msra.mxu0 0.0
  %5421 = vmatprep.subr.mxu0 0.0
  %5422 = vmatpush1.msra.mxu0 0.0
  %5423 = vmatprep.subr.mxu0 0.0
  %5424 = vmatpush1.msra.mxu0 0.0
  %5425 = vmatprep.subr.mxu0 0.0
  %5426 = vmatpush1.msra.mxu0 0.0
  %5427 = vmatprep.subr.mxu0 0.0
  %5428 = vmatpush1.msra.mxu0 0.0
  %5429 = vmatprep.subr.mxu0 0.0
  %5430 = vmatpush1.msra.mxu0 0.0
  %5431 = vmatprep.subr.mxu0 0.0
  %5432 = vmatpush1.msra.mxu0 0.0
  %5433 = vmatprep.mubr.f32.mxu0 0.0
  %5434 = vmatmul.mubr.f32.gmra.mrb[0].mxu0 %v5195
  %v5435 = vpop.f32.mrb[0].mxu0
  %v5436 = vadd.f32 %v5208, %v5435
  %v5437 = vpop.f32.mrb[0].mxu0
  %v5438 = vadd.f32 %v5208, %v5437
  %5439 = vmatprep.mubr.f32.mxu0 0.0
  %5440 = vmatmul.mubr.f32.gmra.mrb[0].mxu0 %v5200
  %v5441 = vpop.f32.mrb[0].mxu0
  %v5442 = vadd.f32 %v5213, %v5441
  %v5443 = vpop.f32.mrb[0].mxu0
  %v5444 = vadd.f32 %v5213, %v5443
  %5445 = vdwg.mxu0
  %5446 = vmatprep.subr.mxu0 %v60
  %5447 = vmatpush1.msra.mxu0 %v59
  %5448 = vmatprep.subr.mxu0 %v68
  %5449 = vmatpush1.msra.mxu0 %v67
  %5450 = vmatprep.subr.mxu0 %v76
  %5451 = vmatpush1.msra.mxu0 %v75
  %5452 = vmatprep.subr.mxu0 %v84
  %5453 = vmatpush1.msra.mxu0 %v83
  %5454 = vmatprep.subr.mxu0 %v92
  %5455 = vmatpush1.msra.mxu0 %v91
  %5456 = vmatprep.subr.mxu0 %v100
  %5457 = vmatpush1.msra.mxu0 %v99
  %5458 = vmatprep.subr.mxu0 %v108
  %5459 = vmatpush1.msra.mxu0 %v107
  %5460 = vmatprep.subr.mxu0 %v116
  %5461 = vmatpush1.msra.mxu0 %v115
  %5462 = vmatprep.subr.mxu0 %v124
  %5463 = vmatpush1.msra.mxu0 %v123
  %5464 = vmatprep.subr.mxu0 %v132
  %5465 = vmatpush1.msra.mxu0 %v131
  %5466 = vmatprep.subr.mxu0 %v140
  %5467 = vmatpush1.msra.mxu0 %v139
  %5468 = vmatprep.subr.mxu0 %v148
  %5469 = vmatpush1.msra.mxu0 %v147
  %5470 = vmatprep.subr.mxu0 %v156
  %5471 = vmatpush1.msra.mxu0 %v155
  %5472 = vmatprep.subr.mxu0 %v164
  %5473 = vmatpush1.msra.mxu0 %v163
  %5474 = vmatprep.subr.mxu0 %v172
  %5475 = vmatpush1.msra.mxu0 %v171
  %5476 = vmatprep.subr.mxu0 %v180
  %5477 = vmatpush1.msra.mxu0 %v179
  %5478 = vmatprep.subr.mxu0 0.0
  %5479 = vmatpush1.msra.mxu0 0.0
  %5480 = vmatprep.subr.mxu0 0.0
  %5481 = vmatpush1.msra.mxu0 0.0
  %5482 = vmatprep.subr.mxu0 0.0
  %5483 = vmatpush1.msra.mxu0 0.0
  %5484 = vmatprep.subr.mxu0 0.0
  %5485 = vmatpush1.msra.mxu0 0.0
  %5486 = vmatprep.subr.mxu0 0.0
  %5487 = vmatpush1.msra.mxu0 0.0
  %5488 = vmatprep.subr.mxu0 0.0
  %5489 = vmatpush1.msra.mxu0 0.0
  %5490 = vmatprep.subr.mxu0 0.0
  %5491 = vmatpush1.msra.mxu0 0.0
  %5492 = vmatprep.subr.mxu0 0.0
  %5493 = vmatpush1.msra.mxu0 0.0
  %5494 = vmatprep.subr.mxu0 0.0
  %5495 = vmatpush1.msra.mxu0 0.0
  %5496 = vmatprep.subr.mxu0 0.0
  %5497 = vmatpush1.msra.mxu0 0.0
  %5498 = vmatprep.subr.mxu0 0.0
  %5499 = vmatpush1.msra.mxu0 0.0
  %5500 = vmatprep.subr.mxu0 0.0
  %5501 = vmatpush1.msra.mxu0 0.0
  %5502 = vmatprep.subr.mxu0 0.0
  %5503 = vmatpush1.msra.mxu0 0.0
  %5504 = vmatprep.subr.mxu0 0.0
  %5505 = vmatpush1.msra.mxu0 0.0
  %5506 = vmatprep.subr.mxu0 0.0
  %5507 = vmatpush1.msra.mxu0 0.0
  %5508 = vmatprep.subr.mxu0 0.0
  %5509 = vmatpush1.msra.mxu0 0.0
  %5510 = vmatprep.mubr.f32.mxu0 0.0
  %5511 = vmatmul.mubr.f32.gmra.mrb[0].mxu0 %v5195
  %v5512 = vpop.f32.mrb[0].mxu0
  %v5513 = vadd.f32 %v5208, %v5512
  %v5514 = vpop.f32.mrb[0].mxu0
  %v5515 = vadd.f32 %v5208, %v5514
  %5516 = vmatprep.mubr.f32.mxu0 0.0
  %5517 = vmatmul.mubr.f32.gmra.mrb[0].mxu0 %v5200
  %v5518 = vpop.f32.mrb[0].mxu0
  %v5519 = vadd.f32 %v5213, %v5518
  %v5520 = vpop.f32.mrb[0].mxu0
  %v5521 = vadd.f32 %v5213, %v5520
  %5522 = vdwg.mxu0
  %v5523 = vadd.f32 %v5282, %v5284
  %v5524 = vadd.f32 %v5523, %v5359
  %v5525 = vadd.f32 %v5524, %v5361
  %v5526 = vadd.f32 %v5525, %v5436
  %v5527 = vadd.f32 %v5526, %v5438
  %v5528 = vadd.f32 %v5527, %v5513
  %v5529 = vadd.f32 %v5528, %v5515
  %5530 = vadd.xlane.f32.xlu0 %v5529
  %v5531 = vpop.xlane.xlu0 %5530
  %v5532 = vadd.f32 %v5288, %v5290
  %v5533 = vadd.f32 %v5532, %v5365
  %v5534 = vadd.f32 %v5533, %v5367
  %v5535 = vadd.f32 %v5534, %v5442
  %v5536 = vadd.f32 %v5535, %v5444
  %v5537 = vadd.f32 %v5536, %v5519
  %v5538 = vadd.f32 %v5537, %v5521
  %5539 = vadd.xlane.f32.xlu0 %v5538
  %v5540 = vpop.xlane.xlu0 %5539
  %v5541 = vmul.f32 %v5531, %v703
  %v5542 = vmul.f32 %v5540, %v703
  %v5543 = vsub.f32 %v5282, %v5541
  %v5544 = vsub.f32 %v5284, %v5541
  %v5545 = vsub.f32 %v5359, %v5541
  %v5546 = vsub.f32 %v5361, %v5541
  %v5547 = vsub.f32 %v5436, %v5541
  %v5548 = vsub.f32 %v5438, %v5541
  %v5549 = vsub.f32 %v5513, %v5541
  %v5550 = vsub.f32 %v5515, %v5541
  %v5551 = vsub.f32 %v5288, %v5542
  %v5552 = vsub.f32 %v5290, %v5542
  %v5553 = vsub.f32 %v5365, %v5542
  %v5554 = vsub.f32 %v5367, %v5542
  %v5555 = vsub.f32 %v5442, %v5542
  %v5556 = vsub.f32 %v5444, %v5542
  %v5557 = vsub.f32 %v5519, %v5542
  %v5558 = vsub.f32 %v5521, %v5542
  %v5559 = vmul.f32 %v5543, %v5543
  %v5560 = vmul.f32 %v5544, %v5544
  %v5561 = vmul.f32 %v5545, %v5545
  %v5562 = vmul.f32 %v5546, %v5546
  %v5563 = vmul.f32 %v5547, %v5547
  %v5564 = vmul.f32 %v5548, %v5548
  %v5565 = vmul.f32 %v5549, %v5549
  %v5566 = vmul.f32 %v5550, %v5550
  %v5567 = vmul.f32 %v5551, %v5551
  %v5568 = vmul.f32 %v5552, %v5552
  %v5569 = vmul.f32 %v5553, %v5553
  %v5570 = vmul.f32 %v5554, %v5554
  %v5571 = vmul.f32 %v5555, %v5555
  %v5572 = vmul.f32 %v5556, %v5556
  %v5573 = vmul.f32 %v5557, %v5557
  %v5574 = vmul.f32 %v5558, %v5558
  %v5575 = vadd.f32 %v5559, %v5560
  %v5576 = vadd.f32 %v5575, %v5561
  %v5577 = vadd.f32 %v5576, %v5562
  %v5578 = vadd.f32 %v5577, %v5563
  %v5579 = vadd.f32 %v5578, %v5564
  %v5580 = vadd.f32 %v5579, %v5565
  %v5581 = vadd.f32 %v5580, %v5566
  %5582 = vadd.xlane.f32.xlu0 %v5581
  %v5583 = vpop.xlane.xlu0 %5582
  %v5584 = vadd.f32 %v5567, %v5568
  %v5585 = vadd.f32 %v5584, %v5569
  %v5586 = vadd.f32 %v5585, %v5570
  %v5587 = vadd.f32 %v5586, %v5571
  %v5588 = vadd.f32 %v5587, %v5572
  %v5589 = vadd.f32 %v5588, %v5573
  %v5590 = vadd.f32 %v5589, %v5574
  %5591 = vadd.xlane.f32.xlu0 %v5590
  %v5592 = vpop.xlane.xlu0 %5591
  %v5593 = vmul.f32 %v5583, %v703
  %v5594 = vmul.f32 %v5592, %v703
  %v5595 = vadd.f32 %v5593, 1e-05
  %v5596 = vadd.f32 %v5594, 1e-05
  %v5597 = vrsqrt.pop %v5595
  %v5598 = vrsqrt.pop %v5596
  %v5599 = vmul.f32 %v5543, %v5597
  %v5600 = vmul.f32 %v5544, %v5597
  %v5601 = vmul.f32 %v5545, %v5597
  %v5602 = vmul.f32 %v5546, %v5597
  %v5603 = vmul.f32 %v5547, %v5597
  %v5604 = vmul.f32 %v5548, %v5597
  %v5605 = vmul.f32 %v5549, %v5597
  %v5606 = vmul.f32 %v5550, %v5597
  %v5607 = vmul.f32 %v5551, %v5598
  %v5608 = vmul.f32 %v5552, %v5598
  %v5609 = vmul.f32 %v5553, %v5598
  %v5610 = vmul.f32 %v5554, %v5598
  %v5611 = vmul.f32 %v5555, %v5598
  %v5612 = vmul.f32 %v5556, %v5598
  %v5613 = vmul.f32 %v5557, %v5598
  %v5614 = vmul.f32 %v5558, %v5598
  %v5615 = vmax.f32 %v5599, 0.0
  %v5616 = vmax.f32 %v5600, 0.0
  %v5617 = vmax.f32 %v5601, 0.0
  %v5618 = vmax.f32 %v5602, 0.0
  %v5619 = vmax.f32 %v5603, 0.0
  %v5620 = vmax.f32 %v5604, 0.0
  %v5621 = vmax.f32 %v5605, 0.0
  %v5622 = vmax.f32 %v5606, 0.0
  %v5623 = vmax.f32 %v5607, 0.0
  %v5624 = vmax.f32 %v5608, 0.0
  %v5625 = vmax.f32 %v5609, 0.0
  %v5626 = vmax.f32 %v5610, 0.0
  %v5627 = vmax.f32 %v5611, 0.0
  %v5628 = vmax.f32 %v5612, 0.0
  %v5629 = vmax.f32 %v5613, 0.0
  %v5630 = vmax.f32 %v5614, 0.0
  %v5631 = vld [vmem:[%s2 + $0xe0] sm:$0xff]
  %v5632 = vld [vmem:[%s2 + $0xe8] sm:$0xff]
  %v5633 = vld [vmem:[%s2 + $0xf0] sm:$0xff]
  %v5634 = vld [vmem:[%s2 + $0xf8] sm:$0xff]
  %5636 = vset.pattern.permute.xlu0 0
  %5637 = vperm.xlu0 %5636, %v5633
  %v5638 = vpop.permute.xlu0 %5637
  %5641 = vset.pattern.permute.xlu0 0
  %5642 = vperm.xlu0 %5641, %v5634
  %v5643 = vpop.permute.xlu0 %5642
  %v5646 = vsel %vm283, %v5631, 0
  %v5649 = vsel %vm283, %v5632, 0
  %5651 = vmatprep.subr.mxu0 %v5616
  %5652 = vmatpush1.msra.mxu0 %v5615
  %5653 = vmatprep.subr.mxu0 %v5624
  %5654 = vmatpush1.msra.mxu0 %v5623
  %5655 = vmatprep.subr.mxu0 0.0
  %5656 = vmatpush1.msra.mxu0 0.0
  %5657 = vmatprep.subr.mxu0 0.0
  %5658 = vmatpush1.msra.mxu0 0.0
  %5659 = vmatprep.subr.mxu0 0.0
  %5660 = vmatpush1.msra.mxu0 0.0
  %5661 = vmatprep.subr.mxu0 0.0
  %5662 = vmatpush1.msra.mxu0 0.0
  %5663 = vmatprep.subr.mxu0 0.0
  %5664 = vmatpush1.msra.mxu0 0.0
  %5665 = vmatprep.subr.mxu0 0.0
  %5666 = vmatpush1.msra.mxu0 0.0
  %5667 = vmatprep.subr.mxu0 0.0
  %5668 = vmatpush1.msra.mxu0 0.0
  %5669 = vmatprep.subr.mxu0 0.0
  %5670 = vmatpush1.msra.mxu0 0.0
  %5671 = vmatprep.subr.mxu0 0.0
  %5672 = vmatpush1.msra.mxu0 0.0
  %5673 = vmatprep.subr.mxu0 0.0
  %5674 = vmatpush1.msra.mxu0 0.0
  %5675 = vmatprep.subr.mxu0 0.0
  %5676 = vmatpush1.msra.mxu0 0.0
  %5677 = vmatprep.subr.mxu0 0.0
  %5678 = vmatpush1.msra.mxu0 0.0
  %5679 = vmatprep.subr.mxu0 0.0
  %5680 = vmatpush1.msra.mxu0 0.0
  %5681 = vmatprep.subr.mxu0 0.0
  %5682 = vmatpush1.msra.mxu0 0.0
  %5683 = vmatprep.subr.mxu0 0.0
  %5684 = vmatpush1.msra.mxu0 0.0
  %5685 = vmatprep.subr.mxu0 0.0
  %5686 = vmatpush1.msra.mxu0 0.0
  %5687 = vmatprep.subr.mxu0 0.0
  %5688 = vmatpush1.msra.mxu0 0.0
  %5689 = vmatprep.subr.mxu0 0.0
  %5690 = vmatpush1.msra.mxu0 0.0
  %5691 = vmatprep.subr.mxu0 0.0
  %5692 = vmatpush1.msra.mxu0 0.0
  %5693 = vmatprep.subr.mxu0 0.0
  %5694 = vmatpush1.msra.mxu0 0.0
  %5695 = vmatprep.subr.mxu0 0.0
  %5696 = vmatpush1.msra.mxu0 0.0
  %5697 = vmatprep.subr.mxu0 0.0
  %5698 = vmatpush1.msra.mxu0 0.0
  %5699 = vmatprep.subr.mxu0 0.0
  %5700 = vmatpush1.msra.mxu0 0.0
  %5701 = vmatprep.subr.mxu0 0.0
  %5702 = vmatpush1.msra.mxu0 0.0
  %5703 = vmatprep.subr.mxu0 0.0
  %5704 = vmatpush1.msra.mxu0 0.0
  %5705 = vmatprep.subr.mxu0 0.0
  %5706 = vmatpush1.msra.mxu0 0.0
  %5707 = vmatprep.subr.mxu0 0.0
  %5708 = vmatpush1.msra.mxu0 0.0
  %5709 = vmatprep.subr.mxu0 0.0
  %5710 = vmatpush1.msra.mxu0 0.0
  %5711 = vmatprep.subr.mxu0 0.0
  %5712 = vmatpush1.msra.mxu0 0.0
  %5713 = vmatprep.subr.mxu0 0.0
  %5714 = vmatpush1.msra.mxu0 0.0
  %5715 = vmatprep.mubr.f32.mxu0 0.0
  %5716 = vmatmul.mubr.f32.gmra.mrb[0].mxu0 %v5646
  %v5717 = vpop.f32.mrb[0].mxu0
  %v5718 = vadd.f32 %v5638, %v5717
  %v5719 = vpop.f32.mrb[0].mxu0
  %v5720 = vadd.f32 %v5638, %v5719
  %5721 = vmatprep.mubr.f32.mxu0 0.0
  %5722 = vmatmul.mubr.f32.gmra.mrb[0].mxu0 %v5649
  %v5723 = vpop.f32.mrb[0].mxu0
  %v5724 = vadd.f32 %v5643, %v5723
  %v5725 = vpop.f32.mrb[0].mxu0
  %v5726 = vadd.f32 %v5643, %v5725
  %5727 = vdwg.mxu0
  %5728 = vmatprep.subr.mxu0 %v5618
  %5729 = vmatpush1.msra.mxu0 %v5617
  %5730 = vmatprep.subr.mxu0 %v5626
  %5731 = vmatpush1.msra.mxu0 %v5625
  %5732 = vmatprep.subr.mxu0 0.0
  %5733 = vmatpush1.msra.mxu0 0.0
  %5734 = vmatprep.subr.mxu0 0.0
  %5735 = vmatpush1.msra.mxu0 0.0
  %5736 = vmatprep.subr.mxu0 0.0
  %5737 = vmatpush1.msra.mxu0 0.0
  %5738 = vmatprep.subr.mxu0 0.0
  %5739 = vmatpush1.msra.mxu0 0.0
  %5740 = vmatprep.subr.mxu0 0.0
  %5741 = vmatpush1.msra.mxu0 0.0
  %5742 = vmatprep.subr.mxu0 0.0
  %5743 = vmatpush1.msra.mxu0 0.0
  %5744 = vmatprep.subr.mxu0 0.0
  %5745 = vmatpush1.msra.mxu0 0.0
  %5746 = vmatprep.subr.mxu0 0.0
  %5747 = vmatpush1.msra.mxu0 0.0
  %5748 = vmatprep.subr.mxu0 0.0
  %5749 = vmatpush1.msra.mxu0 0.0
  %5750 = vmatprep.subr.mxu0 0.0
  %5751 = vmatpush1.msra.mxu0 0.0
  %5752 = vmatprep.subr.mxu0 0.0
  %5753 = vmatpush1.msra.mxu0 0.0
  %5754 = vmatprep.subr.mxu0 0.0
  %5755 = vmatpush1.msra.mxu0 0.0
  %5756 = vmatprep.subr.mxu0 0.0
  %5757 = vmatpush1.msra.mxu0 0.0
  %5758 = vmatprep.subr.mxu0 0.0
  %5759 = vmatpush1.msra.mxu0 0.0
  %5760 = vmatprep.subr.mxu0 0.0
  %5761 = vmatpush1.msra.mxu0 0.0
  %5762 = vmatprep.subr.mxu0 0.0
  %5763 = vmatpush1.msra.mxu0 0.0
  %5764 = vmatprep.subr.mxu0 0.0
  %5765 = vmatpush1.msra.mxu0 0.0
  %5766 = vmatprep.subr.mxu0 0.0
  %5767 = vmatpush1.msra.mxu0 0.0
  %5768 = vmatprep.subr.mxu0 0.0
  %5769 = vmatpush1.msra.mxu0 0.0
  %5770 = vmatprep.subr.mxu0 0.0
  %5771 = vmatpush1.msra.mxu0 0.0
  %5772 = vmatprep.subr.mxu0 0.0
  %5773 = vmatpush1.msra.mxu0 0.0
  %5774 = vmatprep.subr.mxu0 0.0
  %5775 = vmatpush1.msra.mxu0 0.0
  %5776 = vmatprep.subr.mxu0 0.0
  %5777 = vmatpush1.msra.mxu0 0.0
  %5778 = vmatprep.subr.mxu0 0.0
  %5779 = vmatpush1.msra.mxu0 0.0
  %5780 = vmatprep.subr.mxu0 0.0
  %5781 = vmatpush1.msra.mxu0 0.0
  %5782 = vmatprep.subr.mxu0 0.0
  %5783 = vmatpush1.msra.mxu0 0.0
  %5784 = vmatprep.subr.mxu0 0.0
  %5785 = vmatpush1.msra.mxu0 0.0
  %5786 = vmatprep.subr.mxu0 0.0
  %5787 = vmatpush1.msra.mxu0 0.0
  %5788 = vmatprep.subr.mxu0 0.0
  %5789 = vmatpush1.msra.mxu0 0.0
  %5790 = vmatprep.subr.mxu0 0.0
  %5791 = vmatpush1.msra.mxu0 0.0
  %5792 = vmatprep.mubr.f32.mxu0 0.0
  %5793 = vmatmul.mubr.f32.gmra.mrb[0].mxu0 %v5646
  %v5794 = vpop.f32.mrb[0].mxu0
  %v5795 = vadd.f32 %v5638, %v5794
  %v5796 = vpop.f32.mrb[0].mxu0
  %v5797 = vadd.f32 %v5638, %v5796
  %5798 = vmatprep.mubr.f32.mxu0 0.0
  %5799 = vmatmul.mubr.f32.gmra.mrb[0].mxu0 %v5649
  %v5800 = vpop.f32.mrb[0].mxu0
  %v5801 = vadd.f32 %v5643, %v5800
  %v5802 = vpop.f32.mrb[0].mxu0
  %v5803 = vadd.f32 %v5643, %v5802
  %5804 = vdwg.mxu0
  %5805 = vmatprep.subr.mxu0 %v5620
  %5806 = vmatpush1.msra.mxu0 %v5619
  %5807 = vmatprep.subr.mxu0 %v5628
  %5808 = vmatpush1.msra.mxu0 %v5627
  %5809 = vmatprep.subr.mxu0 0.0
  %5810 = vmatpush1.msra.mxu0 0.0
  %5811 = vmatprep.subr.mxu0 0.0
  %5812 = vmatpush1.msra.mxu0 0.0
  %5813 = vmatprep.subr.mxu0 0.0
  %5814 = vmatpush1.msra.mxu0 0.0
  %5815 = vmatprep.subr.mxu0 0.0
  %5816 = vmatpush1.msra.mxu0 0.0
  %5817 = vmatprep.subr.mxu0 0.0
  %5818 = vmatpush1.msra.mxu0 0.0
  %5819 = vmatprep.subr.mxu0 0.0
  %5820 = vmatpush1.msra.mxu0 0.0
  %5821 = vmatprep.subr.mxu0 0.0
  %5822 = vmatpush1.msra.mxu0 0.0
  %5823 = vmatprep.subr.mxu0 0.0
  %5824 = vmatpush1.msra.mxu0 0.0
  %5825 = vmatprep.subr.mxu0 0.0
  %5826 = vmatpush1.msra.mxu0 0.0
  %5827 = vmatprep.subr.mxu0 0.0
  %5828 = vmatpush1.msra.mxu0 0.0
  %5829 = vmatprep.subr.mxu0 0.0
  %5830 = vmatpush1.msra.mxu0 0.0
  %5831 = vmatprep.subr.mxu0 0.0
  %5832 = vmatpush1.msra.mxu0 0.0
  %5833 = vmatprep.subr.mxu0 0.0
  %5834 = vmatpush1.msra.mxu0 0.0
  %5835 = vmatprep.subr.mxu0 0.0
  %5836 = vmatpush1.msra.mxu0 0.0
  %5837 = vmatprep.subr.mxu0 0.0
  %5838 = vmatpush1.msra.mxu0 0.0
  %5839 = vmatprep.subr.mxu0 0.0
  %5840 = vmatpush1.msra.mxu0 0.0
  %5841 = vmatprep.subr.mxu0 0.0
  %5842 = vmatpush1.msra.mxu0 0.0
  %5843 = vmatprep.subr.mxu0 0.0
  %5844 = vmatpush1.msra.mxu0 0.0
  %5845 = vmatprep.subr.mxu0 0.0
  %5846 = vmatpush1.msra.mxu0 0.0
  %5847 = vmatprep.subr.mxu0 0.0
  %5848 = vmatpush1.msra.mxu0 0.0
  %5849 = vmatprep.subr.mxu0 0.0
  %5850 = vmatpush1.msra.mxu0 0.0
  %5851 = vmatprep.subr.mxu0 0.0
  %5852 = vmatpush1.msra.mxu0 0.0
  %5853 = vmatprep.subr.mxu0 0.0
  %5854 = vmatpush1.msra.mxu0 0.0
  %5855 = vmatprep.subr.mxu0 0.0
  %5856 = vmatpush1.msra.mxu0 0.0
  %5857 = vmatprep.subr.mxu0 0.0
  %5858 = vmatpush1.msra.mxu0 0.0
  %5859 = vmatprep.subr.mxu0 0.0
  %5860 = vmatpush1.msra.mxu0 0.0
  %5861 = vmatprep.subr.mxu0 0.0
  %5862 = vmatpush1.msra.mxu0 0.0
  %5863 = vmatprep.subr.mxu0 0.0
  %5864 = vmatpush1.msra.mxu0 0.0
  %5865 = vmatprep.subr.mxu0 0.0
  %5866 = vmatpush1.msra.mxu0 0.0
  %5867 = vmatprep.subr.mxu0 0.0
  %5868 = vmatpush1.msra.mxu0 0.0
  %5869 = vmatprep.mubr.f32.mxu0 0.0
  %5870 = vmatmul.mubr.f32.gmra.mrb[0].mxu0 %v5646
  %v5871 = vpop.f32.mrb[0].mxu0
  %v5872 = vadd.f32 %v5638, %v5871
  %v5873 = vpop.f32.mrb[0].mxu0
  %v5874 = vadd.f32 %v5638, %v5873
  %5875 = vmatprep.mubr.f32.mxu0 0.0
  %5876 = vmatmul.mubr.f32.gmra.mrb[0].mxu0 %v5649
  %v5877 = vpop.f32.mrb[0].mxu0
  %v5878 = vadd.f32 %v5643, %v5877
  %v5879 = vpop.f32.mrb[0].mxu0
  %v5880 = vadd.f32 %v5643, %v5879
  %5881 = vdwg.mxu0
  %5882 = vmatprep.subr.mxu0 %v5622
  %5883 = vmatpush1.msra.mxu0 %v5621
  %5884 = vmatprep.subr.mxu0 %v5630
  %5885 = vmatpush1.msra.mxu0 %v5629
  %5886 = vmatprep.subr.mxu0 0.0
  %5887 = vmatpush1.msra.mxu0 0.0
  %5888 = vmatprep.subr.mxu0 0.0
  %5889 = vmatpush1.msra.mxu0 0.0
  %5890 = vmatprep.subr.mxu0 0.0
  %5891 = vmatpush1.msra.mxu0 0.0
  %5892 = vmatprep.subr.mxu0 0.0
  %5893 = vmatpush1.msra.mxu0 0.0
  %5894 = vmatprep.subr.mxu0 0.0
  %5895 = vmatpush1.msra.mxu0 0.0
  %5896 = vmatprep.subr.mxu0 0.0
  %5897 = vmatpush1.msra.mxu0 0.0
  %5898 = vmatprep.subr.mxu0 0.0
  %5899 = vmatpush1.msra.mxu0 0.0
  %5900 = vmatprep.subr.mxu0 0.0
  %5901 = vmatpush1.msra.mxu0 0.0
  %5902 = vmatprep.subr.mxu0 0.0
  %5903 = vmatpush1.msra.mxu0 0.0
  %5904 = vmatprep.subr.mxu0 0.0
  %5905 = vmatpush1.msra.mxu0 0.0
  %5906 = vmatprep.subr.mxu0 0.0
  %5907 = vmatpush1.msra.mxu0 0.0
  %5908 = vmatprep.subr.mxu0 0.0
  %5909 = vmatpush1.msra.mxu0 0.0
  %5910 = vmatprep.subr.mxu0 0.0
  %5911 = vmatpush1.msra.mxu0 0.0
  %5912 = vmatprep.subr.mxu0 0.0
  %5913 = vmatpush1.msra.mxu0 0.0
  %5914 = vmatprep.subr.mxu0 0.0
  %5915 = vmatpush1.msra.mxu0 0.0
  %5916 = vmatprep.subr.mxu0 0.0
  %5917 = vmatpush1.msra.mxu0 0.0
  %5918 = vmatprep.subr.mxu0 0.0
  %5919 = vmatpush1.msra.mxu0 0.0
  %5920 = vmatprep.subr.mxu0 0.0
  %5921 = vmatpush1.msra.mxu0 0.0
  %5922 = vmatprep.subr.mxu0 0.0
  %5923 = vmatpush1.msra.mxu0 0.0
  %5924 = vmatprep.subr.mxu0 0.0
  %5925 = vmatpush1.msra.mxu0 0.0
  %5926 = vmatprep.subr.mxu0 0.0
  %5927 = vmatpush1.msra.mxu0 0.0
  %5928 = vmatprep.subr.mxu0 0.0
  %5929 = vmatpush1.msra.mxu0 0.0
  %5930 = vmatprep.subr.mxu0 0.0
  %5931 = vmatpush1.msra.mxu0 0.0
  %5932 = vmatprep.subr.mxu0 0.0
  %5933 = vmatpush1.msra.mxu0 0.0
  %5934 = vmatprep.subr.mxu0 0.0
  %5935 = vmatpush1.msra.mxu0 0.0
  %5936 = vmatprep.subr.mxu0 0.0
  %5937 = vmatpush1.msra.mxu0 0.0
  %5938 = vmatprep.subr.mxu0 0.0
  %5939 = vmatpush1.msra.mxu0 0.0
  %5940 = vmatprep.subr.mxu0 0.0
  %5941 = vmatpush1.msra.mxu0 0.0
  %5942 = vmatprep.subr.mxu0 0.0
  %5943 = vmatpush1.msra.mxu0 0.0
  %5944 = vmatprep.subr.mxu0 0.0
  %5945 = vmatpush1.msra.mxu0 0.0
  %5946 = vmatprep.mubr.f32.mxu0 0.0
  %5947 = vmatmul.mubr.f32.gmra.mrb[0].mxu0 %v5646
  %v5948 = vpop.f32.mrb[0].mxu0
  %v5949 = vadd.f32 %v5638, %v5948
  %v5950 = vpop.f32.mrb[0].mxu0
  %v5951 = vadd.f32 %v5638, %v5950
  %5952 = vmatprep.mubr.f32.mxu0 0.0
  %5953 = vmatmul.mubr.f32.gmra.mrb[0].mxu0 %v5649
  %v5954 = vpop.f32.mrb[0].mxu0
  %v5955 = vadd.f32 %v5643, %v5954
  %v5956 = vpop.f32.mrb[0].mxu0
  %v5957 = vadd.f32 %v5643, %v5956
  %5958 = vdwg.mxu0
  %v5959 = vmax.f32 %v5718, %v5720
  %v5960 = vmax.f32 %v5724, %v5726
  %v5961 = vmax.f32 %v5959, %v5795
  %v5962 = vmax.f32 %v5960, %v5801
  %v5963 = vmax.f32 %v5961, %v5797
  %v5964 = vmax.f32 %v5962, %v5803
  %v5965 = vmax.f32 %v5963, %v5872
  %v5966 = vmax.f32 %v5964, %v5878
  %v5967 = vmax.f32 %v5965, %v5874
  %v5968 = vmax.f32 %v5966, %v5880
  %v5969 = vmax.f32 %v5967, %v5949
  %v5970 = vmax.f32 %v5968, %v5955
  %v5971 = vmax.f32 %v5969, %v5951
  %v5972 = vmax.f32 %v5970, %v5957
  %v5973 = vld [vmem:[%s2 + $0x100] sm:$0xff]
  %v5974 = vld [vmem:[%s2 + $0x108] sm:$0xff]
  %v5975 = vld [vmem:[%s2 + $0x110] sm:$0xff]
  %v5976 = vld [vmem:[%s2 + $0x118] sm:$0xff]
  %v5977 = vld [vmem:[%s2 + $0x120] sm:$0xff]
  %v5978 = vld [vmem:[%s2 + $0x128] sm:$0xff]
  %v5979 = vld [vmem:[%s2 + $0x130] sm:$0xff]
  %v5980 = vld [vmem:[%s2 + $0x138] sm:$0xff]
  %5982 = vset.pattern.permute.xlu0 0
  %5983 = vperm.xlu0 %5982, %v5977
  %v5984 = vpop.permute.xlu0 %5983
  %5987 = vset.pattern.permute.xlu0 0
  %5988 = vperm.xlu0 %5987, %v5978
  %v5989 = vpop.permute.xlu0 %5988
  %5992 = vset.pattern.permute.xlu0 0
  %5993 = vperm.xlu0 %5992, %v5979
  %v5994 = vpop.permute.xlu0 %5993
  %5997 = vset.pattern.permute.xlu0 0
  %5998 = vperm.xlu0 %5997, %v5980
  %v5999 = vpop.permute.xlu0 %5998
  %v6002 = vsel %vm283, %v5973, 0
  %v6005 = vsel %vm283, %v5974, 0
  %v6008 = vsel %vm283, %v5975, 0
  %v6011 = vsel %vm283, %v5976, 0
  %6013 = vmatprep.subr.mxu0 0.0
  %6014 = vmatpush1.msra.mxu0 %v5971
  %6015 = vmatprep.subr.mxu0 0.0
  %6016 = vmatpush1.msra.mxu0 %v5972
  %6017 = vmatprep.subr.mxu0 0.0
  %6018 = vmatpush1.msra.mxu0 0.0
  %6019 = vmatprep.subr.mxu0 0.0
  %6020 = vmatpush1.msra.mxu0 0.0
  %6021 = vmatprep.subr.mxu0 0.0
  %6022 = vmatpush1.msra.mxu0 0.0
  %6023 = vmatprep.subr.mxu0 0.0
  %6024 = vmatpush1.msra.mxu0 0.0
  %6025 = vmatprep.subr.mxu0 0.0
  %6026 = vmatpush1.msra.mxu0 0.0
  %6027 = vmatprep.subr.mxu0 0.0
  %6028 = vmatpush1.msra.mxu0 0.0
  %6029 = vmatprep.subr.mxu0 0.0
  %6030 = vmatpush1.msra.mxu0 0.0
  %6031 = vmatprep.subr.mxu0 0.0
  %6032 = vmatpush1.msra.mxu0 0.0
  %6033 = vmatprep.subr.mxu0 0.0
  %6034 = vmatpush1.msra.mxu0 0.0
  %6035 = vmatprep.subr.mxu0 0.0
  %6036 = vmatpush1.msra.mxu0 0.0
  %6037 = vmatprep.subr.mxu0 0.0
  %6038 = vmatpush1.msra.mxu0 0.0
  %6039 = vmatprep.subr.mxu0 0.0
  %6040 = vmatpush1.msra.mxu0 0.0
  %6041 = vmatprep.subr.mxu0 0.0
  %6042 = vmatpush1.msra.mxu0 0.0
  %6043 = vmatprep.subr.mxu0 0.0
  %6044 = vmatpush1.msra.mxu0 0.0
  %6045 = vmatprep.subr.mxu0 0.0
  %6046 = vmatpush1.msra.mxu0 0.0
  %6047 = vmatprep.subr.mxu0 0.0
  %6048 = vmatpush1.msra.mxu0 0.0
  %6049 = vmatprep.subr.mxu0 0.0
  %6050 = vmatpush1.msra.mxu0 0.0
  %6051 = vmatprep.subr.mxu0 0.0
  %6052 = vmatpush1.msra.mxu0 0.0
  %6053 = vmatprep.subr.mxu0 0.0
  %6054 = vmatpush1.msra.mxu0 0.0
  %6055 = vmatprep.subr.mxu0 0.0
  %6056 = vmatpush1.msra.mxu0 0.0
  %6057 = vmatprep.subr.mxu0 0.0
  %6058 = vmatpush1.msra.mxu0 0.0
  %6059 = vmatprep.subr.mxu0 0.0
  %6060 = vmatpush1.msra.mxu0 0.0
  %6061 = vmatprep.subr.mxu0 0.0
  %6062 = vmatpush1.msra.mxu0 0.0
  %6063 = vmatprep.subr.mxu0 0.0
  %6064 = vmatpush1.msra.mxu0 0.0
  %6065 = vmatprep.subr.mxu0 0.0
  %6066 = vmatpush1.msra.mxu0 0.0
  %6067 = vmatprep.subr.mxu0 0.0
  %6068 = vmatpush1.msra.mxu0 0.0
  %6069 = vmatprep.subr.mxu0 0.0
  %6070 = vmatpush1.msra.mxu0 0.0
  %6071 = vmatprep.subr.mxu0 0.0
  %6072 = vmatpush1.msra.mxu0 0.0
  %6073 = vmatprep.subr.mxu0 0.0
  %6074 = vmatpush1.msra.mxu0 0.0
  %6075 = vmatprep.subr.mxu0 0.0
  %6076 = vmatpush1.msra.mxu0 0.0
  %6077 = vmatprep.mubr.f32.mxu0 0.0
  %6078 = vmatmul.mubr.f32.gmra.mrb[0].mxu0 %v6002
  %v6079 = vpop.f32.mrb[0].mxu0
  %v6080 = vadd.f32 %v5984, %v6079
  %v6081 = vpop.f32.mrb[0].mxu0
  %6082 = vmatprep.mubr.f32.mxu0 0.0
  %6083 = vmatmul.mubr.f32.gmra.mrb[0].mxu0 %v6005
  %v6084 = vpop.f32.mrb[0].mxu0
  %v6085 = vadd.f32 %v5989, %v6084
  %v6086 = vpop.f32.mrb[0].mxu0
  %6087 = vmatprep.mubr.f32.mxu0 0.0
  %6088 = vmatmul.mubr.f32.gmra.mrb[0].mxu0 %v6008
  %v6089 = vpop.f32.mrb[0].mxu0
  %v6090 = vadd.f32 %v5994, %v6089
  %v6091 = vpop.f32.mrb[0].mxu0
  %6092 = vmatprep.mubr.f32.mxu0 0.0
  %6093 = vmatmul.mubr.f32.gmra.mrb[0].mxu0 %v6011
  %v6094 = vpop.f32.mrb[0].mxu0
  %v6095 = vadd.f32 %v5999, %v6094
  %v6096 = vpop.f32.mrb[0].mxu0
  %6097 = vdwg.mxu0
  %v6098 = vadd.f32 %v5021, %v6080
  %v6099 = vadd.f32 %v5022, %v6085
  %v6100 = vadd.f32 %v5023, %v6090
  %v6101 = vadd.f32 %v5024, %v6095
  %v6102 = vld [vmem:[%s2 + $0x240] sm:$0xff]
  %v6103 = vld [vmem:[%s2 + $0x248] sm:$0xff]
  %v6104 = vld [vmem:[%s2 + $0x250] sm:$0xff]
  %v6105 = vld [vmem:[%s2 + $0x258] sm:$0xff]
  %v6106 = vld [vmem:[%s2 + $0x260] sm:$0xff]
  %v6107 = vld [vmem:[%s2 + $0x268] sm:$0xff]
  %v6108 = vld [vmem:[%s2 + $0x270] sm:$0xff]
  %v6109 = vld [vmem:[%s2 + $0x278] sm:$0xff]
  %6110 = vmatprep.subr.mxu0 0.0
  %6111 = vmatpush1.msra.mxu0 %v14
  %6112 = vmatprep.subr.mxu0 0.0
  %6113 = vmatpush1.msra.mxu0 %v15
  %6114 = vmatprep.subr.mxu0 0.0
  %6115 = vmatpush1.msra.mxu0 %v16
  %6116 = vmatprep.subr.mxu0 0.0
  %6117 = vmatpush1.msra.mxu0 %v17
  %6118 = vmatprep.subr.mxu0 0.0
  %6119 = vmatpush1.msra.mxu0 %v18
  %6120 = vmatprep.subr.mxu0 0.0
  %6121 = vmatpush1.msra.mxu0 %v19
  %6122 = vmatprep.subr.mxu0 0.0
  %6123 = vmatpush1.msra.mxu0 %v20
  %6124 = vmatprep.subr.mxu0 0.0
  %6125 = vmatpush1.msra.mxu0 %v21
  %6126 = vmatprep.subr.mxu0 0.0
  %6127 = vmatpush1.msra.mxu0 %v22
  %6128 = vmatprep.subr.mxu0 0.0
  %6129 = vmatpush1.msra.mxu0 %v23
  %6130 = vmatprep.subr.mxu0 0.0
  %6131 = vmatpush1.msra.mxu0 %v24
  %6132 = vmatprep.subr.mxu0 0.0
  %6133 = vmatpush1.msra.mxu0 %v25
  %6134 = vmatprep.subr.mxu0 0.0
  %6135 = vmatpush1.msra.mxu0 %v26
  %6136 = vmatprep.subr.mxu0 0.0
  %6137 = vmatpush1.msra.mxu0 %v27
  %6138 = vmatprep.subr.mxu0 0.0
  %6139 = vmatpush1.msra.mxu0 %v28
  %6140 = vmatprep.subr.mxu0 0.0
  %6141 = vmatpush1.msra.mxu0 %v29
  %6142 = vmatprep.subr.mxu0 0.0
  %6143 = vmatpush1.msra.mxu0 0.0
  %6144 = vmatprep.subr.mxu0 0.0
  %6145 = vmatpush1.msra.mxu0 0.0
  %6146 = vmatprep.subr.mxu0 0.0
  %6147 = vmatpush1.msra.mxu0 0.0
  %6148 = vmatprep.subr.mxu0 0.0
  %6149 = vmatpush1.msra.mxu0 0.0
  %6150 = vmatprep.subr.mxu0 0.0
  %6151 = vmatpush1.msra.mxu0 0.0
  %6152 = vmatprep.subr.mxu0 0.0
  %6153 = vmatpush1.msra.mxu0 0.0
  %6154 = vmatprep.subr.mxu0 0.0
  %6155 = vmatpush1.msra.mxu0 0.0
  %6156 = vmatprep.subr.mxu0 0.0
  %6157 = vmatpush1.msra.mxu0 0.0
  %6158 = vmatprep.subr.mxu0 0.0
  %6159 = vmatpush1.msra.mxu0 0.0
  %6160 = vmatprep.subr.mxu0 0.0
  %6161 = vmatpush1.msra.mxu0 0.0
  %6162 = vmatprep.subr.mxu0 0.0
  %6163 = vmatpush1.msra.mxu0 0.0
  %6164 = vmatprep.subr.mxu0 0.0
  %6165 = vmatpush1.msra.mxu0 0.0
  %6166 = vmatprep.subr.mxu0 0.0
  %6167 = vmatpush1.msra.mxu0 0.0
  %6168 = vmatprep.subr.mxu0 0.0
  %6169 = vmatpush1.msra.mxu0 0.0
  %6170 = vmatprep.subr.mxu0 0.0
  %6171 = vmatpush1.msra.mxu0 0.0
  %6172 = vmatprep.subr.mxu0 0.0
  %6173 = vmatpush1.msra.mxu0 0.0
  %6174 = vmatprep.mubr.f32.mxu0 0.0
  %6175 = vmatmul.mubr.f32.gmra.mrb[0].mxu0 %v6098
  %v6176 = vpop.f32.mrb[0].mxu0
  %v6177 = vadd.f32 0.0, %v6176
  %v6178 = vpop.f32.mrb[0].mxu0
  %6179 = vmatprep.mubr.f32.mxu0 0.0
  %6180 = vmatmul.mubr.f32.gmra.mrb[0].mxu0 %v6099
  %v6181 = vpop.f32.mrb[0].mxu0
  %v6182 = vadd.f32 0.0, %v6181
  %v6183 = vpop.f32.mrb[0].mxu0
  %6184 = vmatprep.mubr.f32.mxu0 0.0
  %6185 = vmatmul.mubr.f32.gmra.mrb[0].mxu0 %v6100
  %v6186 = vpop.f32.mrb[0].mxu0
  %v6187 = vadd.f32 0.0, %v6186
  %v6188 = vpop.f32.mrb[0].mxu0
  %6189 = vmatprep.mubr.f32.mxu0 0.0
  %6190 = vmatmul.mubr.f32.gmra.mrb[0].mxu0 %v6101
  %v6191 = vpop.f32.mrb[0].mxu0
  %v6192 = vadd.f32 0.0, %v6191
  %v6193 = vpop.f32.mrb[0].mxu0
  %6194 = vdwg.mxu0
  %v6195 = vsub.f32 %v6098, %v6177
  %v6196 = vsub.f32 %v6099, %v6182
  %v6197 = vsub.f32 %v6100, %v6187
  %v6198 = vsub.f32 %v6101, %v6192
  %v6199 = vmul.f32 %v6195, %v6195
  %v6200 = vmul.f32 %v6196, %v6196
  %v6201 = vmul.f32 %v6197, %v6197
  %v6202 = vmul.f32 %v6198, %v6198
  %6203 = vmatprep.subr.mxu0 0.0
  %6204 = vmatpush1.msra.mxu0 %v14
  %6205 = vmatprep.subr.mxu0 0.0
  %6206 = vmatpush1.msra.mxu0 %v15
  %6207 = vmatprep.subr.mxu0 0.0
  %6208 = vmatpush1.msra.mxu0 %v16
  %6209 = vmatprep.subr.mxu0 0.0
  %6210 = vmatpush1.msra.mxu0 %v17
  %6211 = vmatprep.subr.mxu0 0.0
  %6212 = vmatpush1.msra.mxu0 %v18
  %6213 = vmatprep.subr.mxu0 0.0
  %6214 = vmatpush1.msra.mxu0 %v19
  %6215 = vmatprep.subr.mxu0 0.0
  %6216 = vmatpush1.msra.mxu0 %v20
  %6217 = vmatprep.subr.mxu0 0.0
  %6218 = vmatpush1.msra.mxu0 %v21
  %6219 = vmatprep.subr.mxu0 0.0
  %6220 = vmatpush1.msra.mxu0 %v22
  %6221 = vmatprep.subr.mxu0 0.0
  %6222 = vmatpush1.msra.mxu0 %v23
  %6223 = vmatprep.subr.mxu0 0.0
  %6224 = vmatpush1.msra.mxu0 %v24
  %6225 = vmatprep.subr.mxu0 0.0
  %6226 = vmatpush1.msra.mxu0 %v25
  %6227 = vmatprep.subr.mxu0 0.0
  %6228 = vmatpush1.msra.mxu0 %v26
  %6229 = vmatprep.subr.mxu0 0.0
  %6230 = vmatpush1.msra.mxu0 %v27
  %6231 = vmatprep.subr.mxu0 0.0
  %6232 = vmatpush1.msra.mxu0 %v28
  %6233 = vmatprep.subr.mxu0 0.0
  %6234 = vmatpush1.msra.mxu0 %v29
  %6235 = vmatprep.subr.mxu0 0.0
  %6236 = vmatpush1.msra.mxu0 0.0
  %6237 = vmatprep.subr.mxu0 0.0
  %6238 = vmatpush1.msra.mxu0 0.0
  %6239 = vmatprep.subr.mxu0 0.0
  %6240 = vmatpush1.msra.mxu0 0.0
  %6241 = vmatprep.subr.mxu0 0.0
  %6242 = vmatpush1.msra.mxu0 0.0
  %6243 = vmatprep.subr.mxu0 0.0
  %6244 = vmatpush1.msra.mxu0 0.0
  %6245 = vmatprep.subr.mxu0 0.0
  %6246 = vmatpush1.msra.mxu0 0.0
  %6247 = vmatprep.subr.mxu0 0.0
  %6248 = vmatpush1.msra.mxu0 0.0
  %6249 = vmatprep.subr.mxu0 0.0
  %6250 = vmatpush1.msra.mxu0 0.0
  %6251 = vmatprep.subr.mxu0 0.0
  %6252 = vmatpush1.msra.mxu0 0.0
  %6253 = vmatprep.subr.mxu0 0.0
  %6254 = vmatpush1.msra.mxu0 0.0
  %6255 = vmatprep.subr.mxu0 0.0
  %6256 = vmatpush1.msra.mxu0 0.0
  %6257 = vmatprep.subr.mxu0 0.0
  %6258 = vmatpush1.msra.mxu0 0.0
  %6259 = vmatprep.subr.mxu0 0.0
  %6260 = vmatpush1.msra.mxu0 0.0
  %6261 = vmatprep.subr.mxu0 0.0
  %6262 = vmatpush1.msra.mxu0 0.0
  %6263 = vmatprep.subr.mxu0 0.0
  %6264 = vmatpush1.msra.mxu0 0.0
  %6265 = vmatprep.subr.mxu0 0.0
  %6266 = vmatpush1.msra.mxu0 0.0
  %6267 = vmatprep.mubr.f32.mxu0 0.0
  %6268 = vmatmul.mubr.f32.gmra.mrb[0].mxu0 %v6199
  %v6269 = vpop.f32.mrb[0].mxu0
  %v6270 = vadd.f32 0.001, %v6269
  %v6271 = vpop.f32.mrb[0].mxu0
  %6272 = vmatprep.mubr.f32.mxu0 0.0
  %6273 = vmatmul.mubr.f32.gmra.mrb[0].mxu0 %v6200
  %v6274 = vpop.f32.mrb[0].mxu0
  %v6275 = vadd.f32 0.001, %v6274
  %v6276 = vpop.f32.mrb[0].mxu0
  %6277 = vmatprep.mubr.f32.mxu0 0.0
  %6278 = vmatmul.mubr.f32.gmra.mrb[0].mxu0 %v6201
  %v6279 = vpop.f32.mrb[0].mxu0
  %v6280 = vadd.f32 0.001, %v6279
  %v6281 = vpop.f32.mrb[0].mxu0
  %6282 = vmatprep.mubr.f32.mxu0 0.0
  %6283 = vmatmul.mubr.f32.gmra.mrb[0].mxu0 %v6202
  %v6284 = vpop.f32.mrb[0].mxu0
  %v6285 = vadd.f32 0.001, %v6284
  %v6286 = vpop.f32.mrb[0].mxu0
  %6287 = vdwg.mxu0
  %v6288 = vrsqrt.pop %v6270
  %v6289 = vrsqrt.pop %v6275
  %v6290 = vrsqrt.pop %v6280
  %v6291 = vrsqrt.pop %v6285
  %v6292 = vmul.f32 %v6195, %v6288
  %v6293 = vmul.f32 %v6196, %v6289
  %v6294 = vmul.f32 %v6197, %v6290
  %v6295 = vmul.f32 %v6198, %v6291
  %6296 = vadd.xlane.f32.xlu0 %v6292
  %v6297 = vpop.xlane.xlu0 %6296
  %6298 = vadd.xlane.f32.xlu0 %v6293
  %v6299 = vpop.xlane.xlu0 %6298
  %6300 = vadd.xlane.f32.xlu0 %v6294
  %v6301 = vpop.xlane.xlu0 %6300
  %6302 = vadd.xlane.f32.xlu0 %v6295
  %v6303 = vpop.xlane.xlu0 %6302
  %v6304 = vmul.f32 %v6297, %v1467
  %v6305 = vmul.f32 %v6299, %v1467
  %v6306 = vmul.f32 %v6301, %v1467
  %v6307 = vmul.f32 %v6303, %v1467
  %v6308 = vsub.f32 %v6292, %v6304
  %v6309 = vsub.f32 %v6293, %v6305
  %v6310 = vsub.f32 %v6294, %v6306
  %v6311 = vsub.f32 %v6295, %v6307
  %v6312 = vmul.f32 %v6308, %v6308
  %v6313 = vmul.f32 %v6309, %v6309
  %v6314 = vmul.f32 %v6310, %v6310
  %v6315 = vmul.f32 %v6311, %v6311
  %6316 = vadd.xlane.f32.xlu0 %v6312
  %v6317 = vpop.xlane.xlu0 %6316
  %6318 = vadd.xlane.f32.xlu0 %v6313
  %v6319 = vpop.xlane.xlu0 %6318
  %6320 = vadd.xlane.f32.xlu0 %v6314
  %v6321 = vpop.xlane.xlu0 %6320
  %6322 = vadd.xlane.f32.xlu0 %v6315
  %v6323 = vpop.xlane.xlu0 %6322
  %v6324 = vmul.f32 %v6317, %v1467
  %v6325 = vmul.f32 %v6319, %v1467
  %v6326 = vmul.f32 %v6321, %v1467
  %v6327 = vmul.f32 %v6323, %v1467
  %v6328 = vadd.f32 %v6324, 1e-05
  %v6329 = vadd.f32 %v6325, 1e-05
  %v6330 = vadd.f32 %v6326, 1e-05
  %v6331 = vadd.f32 %v6327, 1e-05
  %v6332 = vrsqrt.pop %v6328
  %v6333 = vrsqrt.pop %v6329
  %v6334 = vrsqrt.pop %v6330
  %v6335 = vrsqrt.pop %v6331
  %v6336 = vmul.f32 %v6308, %v6332
  %v6337 = vmul.f32 %v6309, %v6333
  %v6338 = vmul.f32 %v6310, %v6334
  %v6339 = vmul.f32 %v6311, %v6335
  %v6340 = vmax.f32 %v6336, 0.0
  %v6341 = vmax.f32 %v6337, 0.0
  %v6342 = vmax.f32 %v6338, 0.0
  %v6343 = vmax.f32 %v6339, 0.0
  %6345 = vset.pattern.permute.xlu0 0
  %6346 = vperm.xlu0 %6345, %v6106
  %v6347 = vpop.permute.xlu0 %6346
  %6350 = vset.pattern.permute.xlu0 0
  %6351 = vperm.xlu0 %6350, %v6107
  %v6352 = vpop.permute.xlu0 %6351
  %6355 = vset.pattern.permute.xlu0 0
  %6356 = vperm.xlu0 %6355, %v6108
  %v6357 = vpop.permute.xlu0 %6356
  %6360 = vset.pattern.permute.xlu0 0
  %6361 = vperm.xlu0 %6360, %v6109
  %v6362 = vpop.permute.xlu0 %6361
  %v6365 = vsel %vm199, %v6102, 0
  %v6368 = vsel %vm199, %v6103, 0
  %v6371 = vsel %vm199, %v6104, 0
  %v6374 = vsel %vm199, %v6105, 0
  %6376 = vmatprep.subr.mxu0 0.0
  %6377 = vmatpush1.msra.mxu0 %v6340
  %6378 = vmatprep.subr.mxu0 0.0
  %6379 = vmatpush1.msra.mxu0 %v6341
  %6380 = vmatprep.subr.mxu0 0.0
  %6381 = vmatpush1.msra.mxu0 %v6342
  %6382 = vmatprep.subr.mxu0 0.0
  %6383 = vmatpush1.msra.mxu0 %v6343
  %6384 = vmatprep.subr.mxu0 0.0
  %6385 = vmatpush1.msra.mxu0 0.0
  %6386 = vmatprep.subr.mxu0 0.0
  %6387 = vmatpush1.msra.mxu0 0.0
  %6388 = vmatprep.subr.mxu0 0.0
  %6389 = vmatpush1.msra.mxu0 0.0
  %6390 = vmatprep.subr.mxu0 0.0
  %6391 = vmatpush1.msra.mxu0 0.0
  %6392 = vmatprep.subr.mxu0 0.0
  %6393 = vmatpush1.msra.mxu0 0.0
  %6394 = vmatprep.subr.mxu0 0.0
  %6395 = vmatpush1.msra.mxu0 0.0
  %6396 = vmatprep.subr.mxu0 0.0
  %6397 = vmatpush1.msra.mxu0 0.0
  %6398 = vmatprep.subr.mxu0 0.0
  %6399 = vmatpush1.msra.mxu0 0.0
  %6400 = vmatprep.subr.mxu0 0.0
  %6401 = vmatpush1.msra.mxu0 0.0
  %6402 = vmatprep.subr.mxu0 0.0
  %6403 = vmatpush1.msra.mxu0 0.0
  %6404 = vmatprep.subr.mxu0 0.0
  %6405 = vmatpush1.msra.mxu0 0.0
  %6406 = vmatprep.subr.mxu0 0.0
  %6407 = vmatpush1.msra.mxu0 0.0
  %6408 = vmatprep.subr.mxu0 0.0
  %6409 = vmatpush1.msra.mxu0 0.0
  %6410 = vmatprep.subr.mxu0 0.0
  %6411 = vmatpush1.msra.mxu0 0.0
  %6412 = vmatprep.subr.mxu0 0.0
  %6413 = vmatpush1.msra.mxu0 0.0
  %6414 = vmatprep.subr.mxu0 0.0
  %6415 = vmatpush1.msra.mxu0 0.0
  %6416 = vmatprep.subr.mxu0 0.0
  %6417 = vmatpush1.msra.mxu0 0.0
  %6418 = vmatprep.subr.mxu0 0.0
  %6419 = vmatpush1.msra.mxu0 0.0
  %6420 = vmatprep.subr.mxu0 0.0
  %6421 = vmatpush1.msra.mxu0 0.0
  %6422 = vmatprep.subr.mxu0 0.0
  %6423 = vmatpush1.msra.mxu0 0.0
  %6424 = vmatprep.subr.mxu0 0.0
  %6425 = vmatpush1.msra.mxu0 0.0
  %6426 = vmatprep.subr.mxu0 0.0
  %6427 = vmatpush1.msra.mxu0 0.0
  %6428 = vmatprep.subr.mxu0 0.0
  %6429 = vmatpush1.msra.mxu0 0.0
  %6430 = vmatprep.subr.mxu0 0.0
  %6431 = vmatpush1.msra.mxu0 0.0
  %6432 = vmatprep.subr.mxu0 0.0
  %6433 = vmatpush1.msra.mxu0 0.0
  %6434 = vmatprep.subr.mxu0 0.0
  %6435 = vmatpush1.msra.mxu0 0.0
  %6436 = vmatprep.subr.mxu0 0.0
  %6437 = vmatpush1.msra.mxu0 0.0
  %6438 = vmatprep.subr.mxu0 0.0
  %6439 = vmatpush1.msra.mxu0 0.0
  %6440 = vmatprep.mubr.f32.mxu0 0.0
  %6441 = vmatmul.mubr.f32.gmra.mrb[0].mxu0 %v6365
  %v6442 = vpop.f32.mrb[0].mxu0
  %v6443 = vadd.f32 %v6347, %v6442
  %v6444 = vpop.f32.mrb[0].mxu0
  %6445 = vmatprep.mubr.f32.mxu0 0.0
  %6446 = vmatmul.mubr.f32.gmra.mrb[0].mxu0 %v6368
  %v6447 = vpop.f32.mrb[0].mxu0
  %v6448 = vadd.f32 %v6352, %v6447
  %v6449 = vpop.f32.mrb[0].mxu0
  %6450 = vmatprep.mubr.f32.mxu0 0.0
  %6451 = vmatmul.mubr.f32.gmra.mrb[0].mxu0 %v6371
  %v6452 = vpop.f32.mrb[0].mxu0
  %v6453 = vadd.f32 %v6357, %v6452
  %v6454 = vpop.f32.mrb[0].mxu0
  %6455 = vmatprep.mubr.f32.mxu0 0.0
  %6456 = vmatmul.mubr.f32.gmra.mrb[0].mxu0 %v6374
  %v6457 = vpop.f32.mrb[0].mxu0
  %v6458 = vadd.f32 %v6362, %v6457
  %v6459 = vpop.f32.mrb[0].mxu0
  %6460 = vdwg.mxu0
  %v6461 = vld [vmem:[%s2 + $0x280] sm:$0xff]
  %v6462 = vld [vmem:[%s2 + $0x288] sm:$0xff]
  %v6463 = vld [vmem:[%s2 + $0x290] sm:$0xff]
  %v6464 = vld [vmem:[%s2 + $0x298] sm:$0xff]
  %v6465 = vld [vmem:[%s2 + $0x2a0] sm:$0xff]
  %v6466 = vld [vmem:[%s2 + $0x2a8] sm:$0xff]
  %v6467 = vld [vmem:[%s2 + $0x2b0] sm:$0xff]
  %v6468 = vld [vmem:[%s2 + $0x2b8] sm:$0xff]
  %6469 = vmatprep.subr.mxu0 0.0
  %6470 = vmatpush1.msra.mxu0 %v14
  %6471 = vmatprep.subr.mxu0 0.0
  %6472 = vmatpush1.msra.mxu0 %v15
  %6473 = vmatprep.subr.mxu0 0.0
  %6474 = vmatpush1.msra.mxu0 %v16
  %6475 = vmatprep.subr.mxu0 0.0
  %6476 = vmatpush1.msra.mxu0 %v17
  %6477 = vmatprep.subr.mxu0 0.0
  %6478 = vmatpush1.msra.mxu0 %v18
  %6479 = vmatprep.subr.mxu0 0.0
  %6480 = vmatpush1.msra.mxu0 %v19
  %6481 = vmatprep.subr.mxu0 0.0
  %6482 = vmatpush1.msra.mxu0 %v20
  %6483 = vmatprep.subr.mxu0 0.0
  %6484 = vmatpush1.msra.mxu0 %v21
  %6485 = vmatprep.subr.mxu0 0.0
  %6486 = vmatpush1.msra.mxu0 %v22
  %6487 = vmatprep.subr.mxu0 0.0
  %6488 = vmatpush1.msra.mxu0 %v23
  %6489 = vmatprep.subr.mxu0 0.0
  %6490 = vmatpush1.msra.mxu0 %v24
  %6491 = vmatprep.subr.mxu0 0.0
  %6492 = vmatpush1.msra.mxu0 %v25
  %6493 = vmatprep.subr.mxu0 0.0
  %6494 = vmatpush1.msra.mxu0 %v26
  %6495 = vmatprep.subr.mxu0 0.0
  %6496 = vmatpush1.msra.mxu0 %v27
  %6497 = vmatprep.subr.mxu0 0.0
  %6498 = vmatpush1.msra.mxu0 %v28
  %6499 = vmatprep.subr.mxu0 0.0
  %6500 = vmatpush1.msra.mxu0 %v29
  %6501 = vmatprep.subr.mxu0 0.0
  %6502 = vmatpush1.msra.mxu0 0.0
  %6503 = vmatprep.subr.mxu0 0.0
  %6504 = vmatpush1.msra.mxu0 0.0
  %6505 = vmatprep.subr.mxu0 0.0
  %6506 = vmatpush1.msra.mxu0 0.0
  %6507 = vmatprep.subr.mxu0 0.0
  %6508 = vmatpush1.msra.mxu0 0.0
  %6509 = vmatprep.subr.mxu0 0.0
  %6510 = vmatpush1.msra.mxu0 0.0
  %6511 = vmatprep.subr.mxu0 0.0
  %6512 = vmatpush1.msra.mxu0 0.0
  %6513 = vmatprep.subr.mxu0 0.0
  %6514 = vmatpush1.msra.mxu0 0.0
  %6515 = vmatprep.subr.mxu0 0.0
  %6516 = vmatpush1.msra.mxu0 0.0
  %6517 = vmatprep.subr.mxu0 0.0
  %6518 = vmatpush1.msra.mxu0 0.0
  %6519 = vmatprep.subr.mxu0 0.0
  %6520 = vmatpush1.msra.mxu0 0.0
  %6521 = vmatprep.subr.mxu0 0.0
  %6522 = vmatpush1.msra.mxu0 0.0
  %6523 = vmatprep.subr.mxu0 0.0
  %6524 = vmatpush1.msra.mxu0 0.0
  %6525 = vmatprep.subr.mxu0 0.0
  %6526 = vmatpush1.msra.mxu0 0.0
  %6527 = vmatprep.subr.mxu0 0.0
  %6528 = vmatpush1.msra.mxu0 0.0
  %6529 = vmatprep.subr.mxu0 0.0
  %6530 = vmatpush1.msra.mxu0 0.0
  %6531 = vmatprep.subr.mxu0 0.0
  %6532 = vmatpush1.msra.mxu0 0.0
  %6533 = vmatprep.mubr.f32.mxu0 0.0
  %6534 = vmatmul.mubr.f32.gmra.mrb[0].mxu0 %v6443
  %v6535 = vpop.f32.mrb[0].mxu0
  %v6536 = vadd.f32 0.0, %v6535
  %v6537 = vpop.f32.mrb[0].mxu0
  %6538 = vmatprep.mubr.f32.mxu0 0.0
  %6539 = vmatmul.mubr.f32.gmra.mrb[0].mxu0 %v6448
  %v6540 = vpop.f32.mrb[0].mxu0
  %v6541 = vadd.f32 0.0, %v6540
  %v6542 = vpop.f32.mrb[0].mxu0
  %6543 = vmatprep.mubr.f32.mxu0 0.0
  %6544 = vmatmul.mubr.f32.gmra.mrb[0].mxu0 %v6453
  %v6545 = vpop.f32.mrb[0].mxu0
  %v6546 = vadd.f32 0.0, %v6545
  %v6547 = vpop.f32.mrb[0].mxu0
  %6548 = vmatprep.mubr.f32.mxu0 0.0
  %6549 = vmatmul.mubr.f32.gmra.mrb[0].mxu0 %v6458
  %v6550 = vpop.f32.mrb[0].mxu0
  %v6551 = vadd.f32 0.0, %v6550
  %v6552 = vpop.f32.mrb[0].mxu0
  %6553 = vdwg.mxu0
  %v6554 = vsub.f32 %v6443, %v6536
  %v6555 = vsub.f32 %v6448, %v6541
  %v6556 = vsub.f32 %v6453, %v6546
  %v6557 = vsub.f32 %v6458, %v6551
  %v6558 = vmul.f32 %v6554, %v6554
  %v6559 = vmul.f32 %v6555, %v6555
  %v6560 = vmul.f32 %v6556, %v6556
  %v6561 = vmul.f32 %v6557, %v6557
  %6562 = vmatprep.subr.mxu0 0.0
  %6563 = vmatpush1.msra.mxu0 %v14
  %6564 = vmatprep.subr.mxu0 0.0
  %6565 = vmatpush1.msra.mxu0 %v15
  %6566 = vmatprep.subr.mxu0 0.0
  %6567 = vmatpush1.msra.mxu0 %v16
  %6568 = vmatprep.subr.mxu0 0.0
  %6569 = vmatpush1.msra.mxu0 %v17
  %6570 = vmatprep.subr.mxu0 0.0
  %6571 = vmatpush1.msra.mxu0 %v18
  %6572 = vmatprep.subr.mxu0 0.0
  %6573 = vmatpush1.msra.mxu0 %v19
  %6574 = vmatprep.subr.mxu0 0.0
  %6575 = vmatpush1.msra.mxu0 %v20
  %6576 = vmatprep.subr.mxu0 0.0
  %6577 = vmatpush1.msra.mxu0 %v21
  %6578 = vmatprep.subr.mxu0 0.0
  %6579 = vmatpush1.msra.mxu0 %v22
  %6580 = vmatprep.subr.mxu0 0.0
  %6581 = vmatpush1.msra.mxu0 %v23
  %6582 = vmatprep.subr.mxu0 0.0
  %6583 = vmatpush1.msra.mxu0 %v24
  %6584 = vmatprep.subr.mxu0 0.0
  %6585 = vmatpush1.msra.mxu0 %v25
  %6586 = vmatprep.subr.mxu0 0.0
  %6587 = vmatpush1.msra.mxu0 %v26
  %6588 = vmatprep.subr.mxu0 0.0
  %6589 = vmatpush1.msra.mxu0 %v27
  %6590 = vmatprep.subr.mxu0 0.0
  %6591 = vmatpush1.msra.mxu0 %v28
  %6592 = vmatprep.subr.mxu0 0.0
  %6593 = vmatpush1.msra.mxu0 %v29
  %6594 = vmatprep.subr.mxu0 0.0
  %6595 = vmatpush1.msra.mxu0 0.0
  %6596 = vmatprep.subr.mxu0 0.0
  %6597 = vmatpush1.msra.mxu0 0.0
  %6598 = vmatprep.subr.mxu0 0.0
  %6599 = vmatpush1.msra.mxu0 0.0
  %6600 = vmatprep.subr.mxu0 0.0
  %6601 = vmatpush1.msra.mxu0 0.0
  %6602 = vmatprep.subr.mxu0 0.0
  %6603 = vmatpush1.msra.mxu0 0.0
  %6604 = vmatprep.subr.mxu0 0.0
  %6605 = vmatpush1.msra.mxu0 0.0
  %6606 = vmatprep.subr.mxu0 0.0
  %6607 = vmatpush1.msra.mxu0 0.0
  %6608 = vmatprep.subr.mxu0 0.0
  %6609 = vmatpush1.msra.mxu0 0.0
  %6610 = vmatprep.subr.mxu0 0.0
  %6611 = vmatpush1.msra.mxu0 0.0
  %6612 = vmatprep.subr.mxu0 0.0
  %6613 = vmatpush1.msra.mxu0 0.0
  %6614 = vmatprep.subr.mxu0 0.0
  %6615 = vmatpush1.msra.mxu0 0.0
  %6616 = vmatprep.subr.mxu0 0.0
  %6617 = vmatpush1.msra.mxu0 0.0
  %6618 = vmatprep.subr.mxu0 0.0
  %6619 = vmatpush1.msra.mxu0 0.0
  %6620 = vmatprep.subr.mxu0 0.0
  %6621 = vmatpush1.msra.mxu0 0.0
  %6622 = vmatprep.subr.mxu0 0.0
  %6623 = vmatpush1.msra.mxu0 0.0
  %6624 = vmatprep.subr.mxu0 0.0
  %6625 = vmatpush1.msra.mxu0 0.0
  %6626 = vmatprep.mubr.f32.mxu0 0.0
  %6627 = vmatmul.mubr.f32.gmra.mrb[0].mxu0 %v6558
  %v6628 = vpop.f32.mrb[0].mxu0
  %v6629 = vadd.f32 0.001, %v6628
  %v6630 = vpop.f32.mrb[0].mxu0
  %6631 = vmatprep.mubr.f32.mxu0 0.0
  %6632 = vmatmul.mubr.f32.gmra.mrb[0].mxu0 %v6559
  %v6633 = vpop.f32.mrb[0].mxu0
  %v6634 = vadd.f32 0.001, %v6633
  %v6635 = vpop.f32.mrb[0].mxu0
  %6636 = vmatprep.mubr.f32.mxu0 0.0
  %6637 = vmatmul.mubr.f32.gmra.mrb[0].mxu0 %v6560
  %v6638 = vpop.f32.mrb[0].mxu0
  %v6639 = vadd.f32 0.001, %v6638
  %v6640 = vpop.f32.mrb[0].mxu0
  %6641 = vmatprep.mubr.f32.mxu0 0.0
  %6642 = vmatmul.mubr.f32.gmra.mrb[0].mxu0 %v6561
  %v6643 = vpop.f32.mrb[0].mxu0
  %v6644 = vadd.f32 0.001, %v6643
  %v6645 = vpop.f32.mrb[0].mxu0
  %6646 = vdwg.mxu0
  %v6647 = vrsqrt.pop %v6629
  %v6648 = vrsqrt.pop %v6634
  %v6649 = vrsqrt.pop %v6639
  %v6650 = vrsqrt.pop %v6644
  %v6651 = vmul.f32 %v6554, %v6647
  %v6652 = vmul.f32 %v6555, %v6648
  %v6653 = vmul.f32 %v6556, %v6649
  %v6654 = vmul.f32 %v6557, %v6650
  %6655 = vadd.xlane.f32.xlu0 %v6651
  %v6656 = vpop.xlane.xlu0 %6655
  %6657 = vadd.xlane.f32.xlu0 %v6652
  %v6658 = vpop.xlane.xlu0 %6657
  %6659 = vadd.xlane.f32.xlu0 %v6653
  %v6660 = vpop.xlane.xlu0 %6659
  %6661 = vadd.xlane.f32.xlu0 %v6654
  %v6662 = vpop.xlane.xlu0 %6661
  %v6663 = vmul.f32 %v6656, %v1467
  %v6664 = vmul.f32 %v6658, %v1467
  %v6665 = vmul.f32 %v6660, %v1467
  %v6666 = vmul.f32 %v6662, %v1467
  %v6667 = vsub.f32 %v6651, %v6663
  %v6668 = vsub.f32 %v6652, %v6664
  %v6669 = vsub.f32 %v6653, %v6665
  %v6670 = vsub.f32 %v6654, %v6666
  %v6671 = vmul.f32 %v6667, %v6667
  %v6672 = vmul.f32 %v6668, %v6668
  %v6673 = vmul.f32 %v6669, %v6669
  %v6674 = vmul.f32 %v6670, %v6670
  %6675 = vadd.xlane.f32.xlu0 %v6671
  %v6676 = vpop.xlane.xlu0 %6675
  %6677 = vadd.xlane.f32.xlu0 %v6672
  %v6678 = vpop.xlane.xlu0 %6677
  %6679 = vadd.xlane.f32.xlu0 %v6673
  %v6680 = vpop.xlane.xlu0 %6679
  %6681 = vadd.xlane.f32.xlu0 %v6674
  %v6682 = vpop.xlane.xlu0 %6681
  %v6683 = vmul.f32 %v6676, %v1467
  %v6684 = vmul.f32 %v6678, %v1467
  %v6685 = vmul.f32 %v6680, %v1467
  %v6686 = vmul.f32 %v6682, %v1467
  %v6687 = vadd.f32 %v6683, 1e-05
  %v6688 = vadd.f32 %v6684, 1e-05
  %v6689 = vadd.f32 %v6685, 1e-05
  %v6690 = vadd.f32 %v6686, 1e-05
  %v6691 = vrsqrt.pop %v6687
  %v6692 = vrsqrt.pop %v6688
  %v6693 = vrsqrt.pop %v6689
  %v6694 = vrsqrt.pop %v6690
  %v6695 = vmul.f32 %v6667, %v6691
  %v6696 = vmul.f32 %v6668, %v6692
  %v6697 = vmul.f32 %v6669, %v6693
  %v6698 = vmul.f32 %v6670, %v6694
  %v6699 = vmax.f32 %v6695, 0.0
  %v6700 = vmax.f32 %v6696, 0.0
  %v6701 = vmax.f32 %v6697, 0.0
  %v6702 = vmax.f32 %v6698, 0.0
  %6704 = vset.pattern.permute.xlu0 0
  %6705 = vperm.xlu0 %6704, %v6465
  %v6706 = vpop.permute.xlu0 %6705
  %6709 = vset.pattern.permute.xlu0 0
  %6710 = vperm.xlu0 %6709, %v6466
  %v6711 = vpop.permute.xlu0 %6710
  %6714 = vset.pattern.permute.xlu0 0
  %6715 = vperm.xlu0 %6714, %v6467
  %v6716 = vpop.permute.xlu0 %6715
  %6719 = vset.pattern.permute.xlu0 0
  %6720 = vperm.xlu0 %6719, %v6468
  %v6721 = vpop.permute.xlu0 %6720
  %v6724 = vsel %vm199, %v6461, 0
  %v6727 = vsel %vm199, %v6462, 0
  %v6730 = vsel %vm199, %v6463, 0
  %v6733 = vsel %vm199, %v6464, 0
  %6735 = vmatprep.subr.mxu0 0.0
  %6736 = vmatpush1.msra.mxu0 %v6699
  %6737 = vmatprep.subr.mxu0 0.0
  %6738 = vmatpush1.msra.mxu0 %v6700
  %6739 = vmatprep.subr.mxu0 0.0
  %6740 = vmatpush1.msra.mxu0 %v6701
  %6741 = vmatprep.subr.mxu0 0.0
  %6742 = vmatpush1.msra.mxu0 %v6702
  %6743 = vmatprep.subr.mxu0 0.0
  %6744 = vmatpush1.msra.mxu0 0.0
  %6745 = vmatprep.subr.mxu0 0.0
  %6746 = vmatpush1.msra.mxu0 0.0
  %6747 = vmatprep.subr.mxu0 0.0
  %6748 = vmatpush1.msra.mxu0 0.0
  %6749 = vmatprep.subr.mxu0 0.0
  %6750 = vmatpush1.msra.mxu0 0.0
  %6751 = vmatprep.subr.mxu0 0.0
  %6752 = vmatpush1.msra.mxu0 0.0
  %6753 = vmatprep.subr.mxu0 0.0
  %6754 = vmatpush1.msra.mxu0 0.0
  %6755 = vmatprep.subr.mxu0 0.0
  %6756 = vmatpush1.msra.mxu0 0.0
  %6757 = vmatprep.subr.mxu0 0.0
  %6758 = vmatpush1.msra.mxu0 0.0
  %6759 = vmatprep.subr.mxu0 0.0
  %6760 = vmatpush1.msra.mxu0 0.0
  %6761 = vmatprep.subr.mxu0 0.0
  %6762 = vmatpush1.msra.mxu0 0.0
  %6763 = vmatprep.subr.mxu0 0.0
  %6764 = vmatpush1.msra.mxu0 0.0
  %6765 = vmatprep.subr.mxu0 0.0
  %6766 = vmatpush1.msra.mxu0 0.0
  %6767 = vmatprep.subr.mxu0 0.0
  %6768 = vmatpush1.msra.mxu0 0.0
  %6769 = vmatprep.subr.mxu0 0.0
  %6770 = vmatpush1.msra.mxu0 0.0
  %6771 = vmatprep.subr.mxu0 0.0
  %6772 = vmatpush1.msra.mxu0 0.0
  %6773 = vmatprep.subr.mxu0 0.0
  %6774 = vmatpush1.msra.mxu0 0.0
  %6775 = vmatprep.subr.mxu0 0.0
  %6776 = vmatpush1.msra.mxu0 0.0
  %6777 = vmatprep.subr.mxu0 0.0
  %6778 = vmatpush1.msra.mxu0 0.0
  %6779 = vmatprep.subr.mxu0 0.0
  %6780 = vmatpush1.msra.mxu0 0.0
  %6781 = vmatprep.subr.mxu0 0.0
  %6782 = vmatpush1.msra.mxu0 0.0
  %6783 = vmatprep.subr.mxu0 0.0
  %6784 = vmatpush1.msra.mxu0 0.0
  %6785 = vmatprep.subr.mxu0 0.0
  %6786 = vmatpush1.msra.mxu0 0.0
  %6787 = vmatprep.subr.mxu0 0.0
  %6788 = vmatpush1.msra.mxu0 0.0
  %6789 = vmatprep.subr.mxu0 0.0
  %6790 = vmatpush1.msra.mxu0 0.0
  %6791 = vmatprep.subr.mxu0 0.0
  %6792 = vmatpush1.msra.mxu0 0.0
  %6793 = vmatprep.subr.mxu0 0.0
  %6794 = vmatpush1.msra.mxu0 0.0
  %6795 = vmatprep.subr.mxu0 0.0
  %6796 = vmatpush1.msra.mxu0 0.0
  %6797 = vmatprep.subr.mxu0 0.0
  %6798 = vmatpush1.msra.mxu0 0.0
  %6799 = vmatprep.mubr.f32.mxu0 0.0
  %6800 = vmatmul.mubr.f32.gmra.mrb[0].mxu0 %v6724
  %v6801 = vpop.f32.mrb[0].mxu0
  %v6802 = vadd.f32 %v6706, %v6801
  %v6803 = vpop.f32.mrb[0].mxu0
  %6804 = vmatprep.mubr.f32.mxu0 0.0
  %6805 = vmatmul.mubr.f32.gmra.mrb[0].mxu0 %v6727
  %v6806 = vpop.f32.mrb[0].mxu0
  %v6807 = vadd.f32 %v6711, %v6806
  %v6808 = vpop.f32.mrb[0].mxu0
  %6809 = vmatprep.mubr.f32.mxu0 0.0
  %6810 = vmatmul.mubr.f32.gmra.mrb[0].mxu0 %v6730
  %v6811 = vpop.f32.mrb[0].mxu0
  %v6812 = vadd.f32 %v6716, %v6811
  %v6813 = vpop.f32.mrb[0].mxu0
  %6814 = vmatprep.mubr.f32.mxu0 0.0
  %6815 = vmatmul.mubr.f32.gmra.mrb[0].mxu0 %v6733
  %v6816 = vpop.f32.mrb[0].mxu0
  %v6817 = vadd.f32 %v6721, %v6816
  %v6818 = vpop.f32.mrb[0].mxu0
  %6819 = vdwg.mxu0
  %v6820 = vadd.f32 %v6098, %v6802
  %v6821 = vadd.f32 %v6099, %v6807
  %v6822 = vadd.f32 %v6100, %v6812
  %v6823 = vadd.f32 %v6101, %v6817
  %6824 = vmatprep.subr.mxu0 0.0
  %6825 = vmatpush1.msra.mxu0 %v34
  %6826 = vmatprep.subr.mxu0 0.0
  %6827 = vmatpush1.msra.mxu0 %v35
  %6828 = vmatprep.subr.mxu0 0.0
  %6829 = vmatpush1.msra.mxu0 %v36
  %6830 = vmatprep.subr.mxu0 0.0
  %6831 = vmatpush1.msra.mxu0 %v37
  %6832 = vmatprep.subr.mxu0 0.0
  %6833 = vmatpush1.msra.mxu0 %v38
  %6834 = vmatprep.subr.mxu0 0.0
  %6835 = vmatpush1.msra.mxu0 %v39
  %6836 = vmatprep.subr.mxu0 0.0
  %6837 = vmatpush1.msra.mxu0 %v40
  %6838 = vmatprep.subr.mxu0 0.0
  %6839 = vmatpush1.msra.mxu0 %v41
  %6840 = vmatprep.subr.mxu0 0.0
  %6841 = vmatpush1.msra.mxu0 %v42
  %6842 = vmatprep.subr.mxu0 0.0
  %6843 = vmatpush1.msra.mxu0 %v43
  %6844 = vmatprep.subr.mxu0 0.0
  %6845 = vmatpush1.msra.mxu0 %v44
  %6846 = vmatprep.subr.mxu0 0.0
  %6847 = vmatpush1.msra.mxu0 %v45
  %6848 = vmatprep.subr.mxu0 0.0
  %6849 = vmatpush1.msra.mxu0 %v46
  %6850 = vmatprep.subr.mxu0 0.0
  %6851 = vmatpush1.msra.mxu0 %v47
  %6852 = vmatprep.subr.mxu0 0.0
  %6853 = vmatpush1.msra.mxu0 %v48
  %6854 = vmatprep.subr.mxu0 0.0
  %6855 = vmatpush1.msra.mxu0 %v49
  %6856 = vmatprep.subr.mxu0 0.0
  %6857 = vmatpush1.msra.mxu0 0.0
  %6858 = vmatprep.subr.mxu0 0.0
  %6859 = vmatpush1.msra.mxu0 0.0
  %6860 = vmatprep.subr.mxu0 0.0
  %6861 = vmatpush1.msra.mxu0 0.0
  %6862 = vmatprep.subr.mxu0 0.0
  %6863 = vmatpush1.msra.mxu0 0.0
  %6864 = vmatprep.subr.mxu0 0.0
  %6865 = vmatpush1.msra.mxu0 0.0
  %6866 = vmatprep.subr.mxu0 0.0
  %6867 = vmatpush1.msra.mxu0 0.0
  %6868 = vmatprep.subr.mxu0 0.0
  %6869 = vmatpush1.msra.mxu0 0.0
  %6870 = vmatprep.subr.mxu0 0.0
  %6871 = vmatpush1.msra.mxu0 0.0
  %6872 = vmatprep.subr.mxu0 0.0
  %6873 = vmatpush1.msra.mxu0 0.0
  %6874 = vmatprep.subr.mxu0 0.0
  %6875 = vmatpush1.msra.mxu0 0.0
  %6876 = vmatprep.subr.mxu0 0.0
  %6877 = vmatpush1.msra.mxu0 0.0
  %6878 = vmatprep.subr.mxu0 0.0
  %6879 = vmatpush1.msra.mxu0 0.0
  %6880 = vmatprep.subr.mxu0 0.0
  %6881 = vmatpush1.msra.mxu0 0.0
  %6882 = vmatprep.subr.mxu0 0.0
  %6883 = vmatpush1.msra.mxu0 0.0
  %6884 = vmatprep.subr.mxu0 0.0
  %6885 = vmatpush1.msra.mxu0 0.0
  %6886 = vmatprep.subr.mxu0 0.0
  %6887 = vmatpush1.msra.mxu0 0.0
  %6888 = vmatprep.mubr.f32.mxu0 0.0
  %6889 = vmatmul.mubr.f32.gmra.mrb[0].mxu0 %v6820
  %v6890 = vpop.f32.mrb[0].mxu0
  %v6891 = vadd.f32 0.0, %v6890
  %v6892 = vpop.f32.mrb[0].mxu0
  %6893 = vmatprep.mubr.f32.mxu0 0.0
  %6894 = vmatmul.mubr.f32.gmra.mrb[0].mxu0 %v6821
  %v6895 = vpop.f32.mrb[0].mxu0
  %v6896 = vadd.f32 0.0, %v6895
  %v6897 = vpop.f32.mrb[0].mxu0
  %6898 = vmatprep.mubr.f32.mxu0 0.0
  %6899 = vmatmul.mubr.f32.gmra.mrb[0].mxu0 %v6822
  %v6900 = vpop.f32.mrb[0].mxu0
  %v6901 = vadd.f32 0.0, %v6900
  %v6902 = vpop.f32.mrb[0].mxu0
  %6903 = vmatprep.mubr.f32.mxu0 0.0
  %6904 = vmatmul.mubr.f32.gmra.mrb[0].mxu0 %v6823
  %v6905 = vpop.f32.mrb[0].mxu0
  %v6906 = vadd.f32 0.0, %v6905
  %v6907 = vpop.f32.mrb[0].mxu0
  %6908 = vdwg.mxu0
  %v6909 = vmul.f32 %v6891, %v2076
  %v6910 = vmul.f32 %v6896, %v2076
  %v6911 = vmul.f32 %v6901, %v2076
  %v6912 = vmul.f32 %v6906, %v2076
  %v6914 = vsel %vm283, %v6909, 0
  %v6917 = vsel %vm283, %v6910, 0
  %v6920 = vsel %vm283, %v6911, 0
  %v6923 = vsel %vm283, %v6912, 0
  %6925 = vmatprep.subr.mxu0 0.0
  %6926 = vmatpush1.msra.mxu0 %v50
  %6927 = vmatprep.subr.mxu0 0.0
  %6928 = vmatpush1.msra.mxu0 %v51
  %6929 = vmatprep.subr.mxu0 0.0
  %6930 = vmatpush1.msra.mxu0 0.0
  %6931 = vmatprep.subr.mxu0 0.0
  %6932 = vmatpush1.msra.mxu0 0.0
  %6933 = vmatprep.subr.mxu0 0.0
  %6934 = vmatpush1.msra.mxu0 0.0
  %6935 = vmatprep.subr.mxu0 0.0
  %6936 = vmatpush1.msra.mxu0 0.0
  %6937 = vmatprep.subr.mxu0 0.0
  %6938 = vmatpush1.msra.mxu0 0.0
  %6939 = vmatprep.subr.mxu0 0.0
  %6940 = vmatpush1.msra.mxu0 0.0
  %6941 = vmatprep.subr.mxu0 0.0
  %6942 = vmatpush1.msra.mxu0 0.0
  %6943 = vmatprep.subr.mxu0 0.0
  %6944 = vmatpush1.msra.mxu0 0.0
  %6945 = vmatprep.subr.mxu0 0.0
  %6946 = vmatpush1.msra.mxu0 0.0
  %6947 = vmatprep.subr.mxu0 0.0
  %6948 = vmatpush1.msra.mxu0 0.0
  %6949 = vmatprep.subr.mxu0 0.0
  %6950 = vmatpush1.msra.mxu0 0.0
  %6951 = vmatprep.subr.mxu0 0.0
  %6952 = vmatpush1.msra.mxu0 0.0
  %6953 = vmatprep.subr.mxu0 0.0
  %6954 = vmatpush1.msra.mxu0 0.0
  %6955 = vmatprep.subr.mxu0 0.0
  %6956 = vmatpush1.msra.mxu0 0.0
  %6957 = vmatprep.subr.mxu0 0.0
  %6958 = vmatpush1.msra.mxu0 0.0
  %6959 = vmatprep.subr.mxu0 0.0
  %6960 = vmatpush1.msra.mxu0 0.0
  %6961 = vmatprep.subr.mxu0 0.0
  %6962 = vmatpush1.msra.mxu0 0.0
  %6963 = vmatprep.subr.mxu0 0.0
  %6964 = vmatpush1.msra.mxu0 0.0
  %6965 = vmatprep.subr.mxu0 0.0
  %6966 = vmatpush1.msra.mxu0 0.0
  %6967 = vmatprep.subr.mxu0 0.0
  %6968 = vmatpush1.msra.mxu0 0.0
  %6969 = vmatprep.subr.mxu0 0.0
  %6970 = vmatpush1.msra.mxu0 0.0
  %6971 = vmatprep.subr.mxu0 0.0
  %6972 = vmatpush1.msra.mxu0 0.0
  %6973 = vmatprep.subr.mxu0 0.0
  %6974 = vmatpush1.msra.mxu0 0.0
  %6975 = vmatprep.subr.mxu0 0.0
  %6976 = vmatpush1.msra.mxu0 0.0
  %6977 = vmatprep.subr.mxu0 0.0
  %6978 = vmatpush1.msra.mxu0 0.0
  %6979 = vmatprep.subr.mxu0 0.0
  %6980 = vmatpush1.msra.mxu0 0.0
  %6981 = vmatprep.subr.mxu0 0.0
  %6982 = vmatpush1.msra.mxu0 0.0
  %6983 = vmatprep.subr.mxu0 0.0
  %6984 = vmatpush1.msra.mxu0 0.0
  %6985 = vmatprep.subr.mxu0 0.0
  %6986 = vmatpush1.msra.mxu0 0.0
  %6987 = vmatprep.subr.mxu0 0.0
  %6988 = vmatpush1.msra.mxu0 0.0
  %6989 = vmatprep.mubr.f32.mxu0 0.0
  %6990 = vmatmul.mubr.f32.gmra.mrb[0].mxu0 %v6914
  %v6991 = vpop.f32.mrb[0].mxu0
  %v6992 = vadd.f32 0.0, %v6991
  %v6993 = vpop.f32.mrb[0].mxu0
  %6994 = vmatprep.mubr.f32.mxu0 0.0
  %6995 = vmatmul.mubr.f32.gmra.mrb[0].mxu0 %v6917
  %v6996 = vpop.f32.mrb[0].mxu0
  %v6997 = vadd.f32 0.0, %v6996
  %v6998 = vpop.f32.mrb[0].mxu0
  %6999 = vmatprep.mubr.f32.mxu0 0.0
  %7000 = vmatmul.mubr.f32.gmra.mrb[0].mxu0 %v6920
  %v7001 = vpop.f32.mrb[0].mxu0
  %v7002 = vadd.f32 0.0, %v7001
  %v7003 = vpop.f32.mrb[0].mxu0
  %7004 = vmatprep.mubr.f32.mxu0 0.0
  %7005 = vmatmul.mubr.f32.gmra.mrb[0].mxu0 %v6923
  %v7006 = vpop.f32.mrb[0].mxu0
  %v7007 = vadd.f32 0.0, %v7006
  %v7008 = vpop.f32.mrb[0].mxu0
  %7009 = vdwg.mxu0
  %v7010 = vsub.f32 %v6992, %v6820
  %v7011 = vsub.f32 %v6997, %v6821
  %v7012 = vsub.f32 %v7002, %v6822
  %v7013 = vsub.f32 %v7007, %v6823
  %v7014 = vld [vmem:[%s2 + $0x2c0] sm:$0xff]
  %v7015 = vld [vmem:[%s2 + $0x2c8] sm:$0xff]
  %v7016 = vld [vmem:[%s2 + $0x2d0] sm:$0xff]
  %v7017 = vld [vmem:[%s2 + $0x2d8] sm:$0xff]
  %v7018 = vld [vmem:[%s2 + $0x2e0] sm:$0xff]
  %v7019 = vld [vmem:[%s2 + $0x2e8] sm:$0xff]
  %v7020 = vld [vmem:[%s2 + $0x2f0] sm:$0xff]
  %v7021 = vld [vmem:[%s2 + $0x2f8] sm:$0xff]
  %7022 = vmatprep.subr.mxu0 0.0
  %7023 = vmatpush1.msra.mxu0 %v14
  %7024 = vmatprep.subr.mxu0 0.0
  %7025 = vmatpush1.msra.mxu0 %v15
  %7026 = vmatprep.subr.mxu0 0.0
  %7027 = vmatpush1.msra.mxu0 %v16
  %7028 = vmatprep.subr.mxu0 0.0
  %7029 = vmatpush1.msra.mxu0 %v17
  %7030 = vmatprep.subr.mxu0 0.0
  %7031 = vmatpush1.msra.mxu0 %v18
  %7032 = vmatprep.subr.mxu0 0.0
  %7033 = vmatpush1.msra.mxu0 %v19
  %7034 = vmatprep.subr.mxu0 0.0
  %7035 = vmatpush1.msra.mxu0 %v20
  %7036 = vmatprep.subr.mxu0 0.0
  %7037 = vmatpush1.msra.mxu0 %v21
  %7038 = vmatprep.subr.mxu0 0.0
  %7039 = vmatpush1.msra.mxu0 %v22
  %7040 = vmatprep.subr.mxu0 0.0
  %7041 = vmatpush1.msra.mxu0 %v23
  %7042 = vmatprep.subr.mxu0 0.0
  %7043 = vmatpush1.msra.mxu0 %v24
  %7044 = vmatprep.subr.mxu0 0.0
  %7045 = vmatpush1.msra.mxu0 %v25
  %7046 = vmatprep.subr.mxu0 0.0
  %7047 = vmatpush1.msra.mxu0 %v26
  %7048 = vmatprep.subr.mxu0 0.0
  %7049 = vmatpush1.msra.mxu0 %v27
  %7050 = vmatprep.subr.mxu0 0.0
  %7051 = vmatpush1.msra.mxu0 %v28
  %7052 = vmatprep.subr.mxu0 0.0
  %7053 = vmatpush1.msra.mxu0 %v29
  %7054 = vmatprep.subr.mxu0 0.0
  %7055 = vmatpush1.msra.mxu0 0.0
  %7056 = vmatprep.subr.mxu0 0.0
  %7057 = vmatpush1.msra.mxu0 0.0
  %7058 = vmatprep.subr.mxu0 0.0
  %7059 = vmatpush1.msra.mxu0 0.0
  %7060 = vmatprep.subr.mxu0 0.0
  %7061 = vmatpush1.msra.mxu0 0.0
  %7062 = vmatprep.subr.mxu0 0.0
  %7063 = vmatpush1.msra.mxu0 0.0
  %7064 = vmatprep.subr.mxu0 0.0
  %7065 = vmatpush1.msra.mxu0 0.0
  %7066 = vmatprep.subr.mxu0 0.0
  %7067 = vmatpush1.msra.mxu0 0.0
  %7068 = vmatprep.subr.mxu0 0.0
  %7069 = vmatpush1.msra.mxu0 0.0
  %7070 = vmatprep.subr.mxu0 0.0
  %7071 = vmatpush1.msra.mxu0 0.0
  %7072 = vmatprep.subr.mxu0 0.0
  %7073 = vmatpush1.msra.mxu0 0.0
  %7074 = vmatprep.subr.mxu0 0.0
  %7075 = vmatpush1.msra.mxu0 0.0
  %7076 = vmatprep.subr.mxu0 0.0
  %7077 = vmatpush1.msra.mxu0 0.0
  %7078 = vmatprep.subr.mxu0 0.0
  %7079 = vmatpush1.msra.mxu0 0.0
  %7080 = vmatprep.subr.mxu0 0.0
  %7081 = vmatpush1.msra.mxu0 0.0
  %7082 = vmatprep.subr.mxu0 0.0
  %7083 = vmatpush1.msra.mxu0 0.0
  %7084 = vmatprep.subr.mxu0 0.0
  %7085 = vmatpush1.msra.mxu0 0.0
  %7086 = vmatprep.mubr.f32.mxu0 0.0
  %7087 = vmatmul.mubr.f32.gmra.mrb[0].mxu0 %v7010
  %v7088 = vpop.f32.mrb[0].mxu0
  %v7089 = vadd.f32 0.0, %v7088
  %v7090 = vpop.f32.mrb[0].mxu0
  %7091 = vmatprep.mubr.f32.mxu0 0.0
  %7092 = vmatmul.mubr.f32.gmra.mrb[0].mxu0 %v7011
  %v7093 = vpop.f32.mrb[0].mxu0
  %v7094 = vadd.f32 0.0, %v7093
  %v7095 = vpop.f32.mrb[0].mxu0
  %7096 = vmatprep.mubr.f32.mxu0 0.0
  %7097 = vmatmul.mubr.f32.gmra.mrb[0].mxu0 %v7012
  %v7098 = vpop.f32.mrb[0].mxu0
  %v7099 = vadd.f32 0.0, %v7098
  %v7100 = vpop.f32.mrb[0].mxu0
  %7101 = vmatprep.mubr.f32.mxu0 0.0
  %7102 = vmatmul.mubr.f32.gmra.mrb[0].mxu0 %v7013
  %v7103 = vpop.f32.mrb[0].mxu0
  %v7104 = vadd.f32 0.0, %v7103
  %v7105 = vpop.f32.mrb[0].mxu0
  %7106 = vdwg.mxu0
  %v7107 = vsub.f32 %v7010, %v7089
  %v7108 = vsub.f32 %v7011, %v7094
  %v7109 = vsub.f32 %v7012, %v7099
  %v7110 = vsub.f32 %v7013, %v7104
  %v7111 = vmul.f32 %v7107, %v7107
  %v7112 = vmul.f32 %v7108, %v7108
  %v7113 = vmul.f32 %v7109, %v7109
  %v7114 = vmul.f32 %v7110, %v7110
  %7115 = vmatprep.subr.mxu0 0.0
  %7116 = vmatpush1.msra.mxu0 %v14
  %7117 = vmatprep.subr.mxu0 0.0
  %7118 = vmatpush1.msra.mxu0 %v15
  %7119 = vmatprep.subr.mxu0 0.0
  %7120 = vmatpush1.msra.mxu0 %v16
  %7121 = vmatprep.subr.mxu0 0.0
  %7122 = vmatpush1.msra.mxu0 %v17
  %7123 = vmatprep.subr.mxu0 0.0
  %7124 = vmatpush1.msra.mxu0 %v18
  %7125 = vmatprep.subr.mxu0 0.0
  %7126 = vmatpush1.msra.mxu0 %v19
  %7127 = vmatprep.subr.mxu0 0.0
  %7128 = vmatpush1.msra.mxu0 %v20
  %7129 = vmatprep.subr.mxu0 0.0
  %7130 = vmatpush1.msra.mxu0 %v21
  %7131 = vmatprep.subr.mxu0 0.0
  %7132 = vmatpush1.msra.mxu0 %v22
  %7133 = vmatprep.subr.mxu0 0.0
  %7134 = vmatpush1.msra.mxu0 %v23
  %7135 = vmatprep.subr.mxu0 0.0
  %7136 = vmatpush1.msra.mxu0 %v24
  %7137 = vmatprep.subr.mxu0 0.0
  %7138 = vmatpush1.msra.mxu0 %v25
  %7139 = vmatprep.subr.mxu0 0.0
  %7140 = vmatpush1.msra.mxu0 %v26
  %7141 = vmatprep.subr.mxu0 0.0
  %7142 = vmatpush1.msra.mxu0 %v27
  %7143 = vmatprep.subr.mxu0 0.0
  %7144 = vmatpush1.msra.mxu0 %v28
  %7145 = vmatprep.subr.mxu0 0.0
  %7146 = vmatpush1.msra.mxu0 %v29
  %7147 = vmatprep.subr.mxu0 0.0
  %7148 = vmatpush1.msra.mxu0 0.0
  %7149 = vmatprep.subr.mxu0 0.0
  %7150 = vmatpush1.msra.mxu0 0.0
  %7151 = vmatprep.subr.mxu0 0.0
  %7152 = vmatpush1.msra.mxu0 0.0
  %7153 = vmatprep.subr.mxu0 0.0
  %7154 = vmatpush1.msra.mxu0 0.0
  %7155 = vmatprep.subr.mxu0 0.0
  %7156 = vmatpush1.msra.mxu0 0.0
  %7157 = vmatprep.subr.mxu0 0.0
  %7158 = vmatpush1.msra.mxu0 0.0
  %7159 = vmatprep.subr.mxu0 0.0
  %7160 = vmatpush1.msra.mxu0 0.0
  %7161 = vmatprep.subr.mxu0 0.0
  %7162 = vmatpush1.msra.mxu0 0.0
  %7163 = vmatprep.subr.mxu0 0.0
  %7164 = vmatpush1.msra.mxu0 0.0
  %7165 = vmatprep.subr.mxu0 0.0
  %7166 = vmatpush1.msra.mxu0 0.0
  %7167 = vmatprep.subr.mxu0 0.0
  %7168 = vmatpush1.msra.mxu0 0.0
  %7169 = vmatprep.subr.mxu0 0.0
  %7170 = vmatpush1.msra.mxu0 0.0
  %7171 = vmatprep.subr.mxu0 0.0
  %7172 = vmatpush1.msra.mxu0 0.0
  %7173 = vmatprep.subr.mxu0 0.0
  %7174 = vmatpush1.msra.mxu0 0.0
  %7175 = vmatprep.subr.mxu0 0.0
  %7176 = vmatpush1.msra.mxu0 0.0
  %7177 = vmatprep.subr.mxu0 0.0
  %7178 = vmatpush1.msra.mxu0 0.0
  %7179 = vmatprep.mubr.f32.mxu0 0.0
  %7180 = vmatmul.mubr.f32.gmra.mrb[0].mxu0 %v7111
  %v7181 = vpop.f32.mrb[0].mxu0
  %v7182 = vadd.f32 1e-05, %v7181
  %v7183 = vpop.f32.mrb[0].mxu0
  %7184 = vmatprep.mubr.f32.mxu0 0.0
  %7185 = vmatmul.mubr.f32.gmra.mrb[0].mxu0 %v7112
  %v7186 = vpop.f32.mrb[0].mxu0
  %v7187 = vadd.f32 1e-05, %v7186
  %v7188 = vpop.f32.mrb[0].mxu0
  %7189 = vmatprep.mubr.f32.mxu0 0.0
  %7190 = vmatmul.mubr.f32.gmra.mrb[0].mxu0 %v7113
  %v7191 = vpop.f32.mrb[0].mxu0
  %v7192 = vadd.f32 1e-05, %v7191
  %v7193 = vpop.f32.mrb[0].mxu0
  %7194 = vmatprep.mubr.f32.mxu0 0.0
  %7195 = vmatmul.mubr.f32.gmra.mrb[0].mxu0 %v7114
  %v7196 = vpop.f32.mrb[0].mxu0
  %v7197 = vadd.f32 1e-05, %v7196
  %v7198 = vpop.f32.mrb[0].mxu0
  %7199 = vdwg.mxu0
  %v7200 = vrsqrt.pop %v7182
  %v7201 = vrsqrt.pop %v7187
  %v7202 = vrsqrt.pop %v7192
  %v7203 = vrsqrt.pop %v7197
  %v7204 = vmul.f32 %v7107, %v7200
  %v7205 = vmul.f32 %v7108, %v7201
  %v7206 = vmul.f32 %v7109, %v7202
  %v7207 = vmul.f32 %v7110, %v7203
  %7208 = vadd.xlane.f32.xlu0 %v7204
  %v7209 = vpop.xlane.xlu0 %7208
  %7210 = vadd.xlane.f32.xlu0 %v7205
  %v7211 = vpop.xlane.xlu0 %7210
  %7212 = vadd.xlane.f32.xlu0 %v7206
  %v7213 = vpop.xlane.xlu0 %7212
  %7214 = vadd.xlane.f32.xlu0 %v7207
  %v7215 = vpop.xlane.xlu0 %7214
  %v7216 = vmul.f32 %v7209, %v1467
  %v7217 = vmul.f32 %v7211, %v1467
  %v7218 = vmul.f32 %v7213, %v1467
  %v7219 = vmul.f32 %v7215, %v1467
  %v7220 = vsub.f32 %v7204, %v7216
  %v7221 = vsub.f32 %v7205, %v7217
  %v7222 = vsub.f32 %v7206, %v7218
  %v7223 = vsub.f32 %v7207, %v7219
  %v7224 = vmul.f32 %v7220, %v7220
  %v7225 = vmul.f32 %v7221, %v7221
  %v7226 = vmul.f32 %v7222, %v7222
  %v7227 = vmul.f32 %v7223, %v7223
  %7228 = vadd.xlane.f32.xlu0 %v7224
  %v7229 = vpop.xlane.xlu0 %7228
  %7230 = vadd.xlane.f32.xlu0 %v7225
  %v7231 = vpop.xlane.xlu0 %7230
  %7232 = vadd.xlane.f32.xlu0 %v7226
  %v7233 = vpop.xlane.xlu0 %7232
  %7234 = vadd.xlane.f32.xlu0 %v7227
  %v7235 = vpop.xlane.xlu0 %7234
  %v7236 = vmul.f32 %v7229, %v1467
  %v7237 = vmul.f32 %v7231, %v1467
  %v7238 = vmul.f32 %v7233, %v1467
  %v7239 = vmul.f32 %v7235, %v1467
  %v7240 = vadd.f32 %v7236, 1e-05
  %v7241 = vadd.f32 %v7237, 1e-05
  %v7242 = vadd.f32 %v7238, 1e-05
  %v7243 = vadd.f32 %v7239, 1e-05
  %v7244 = vrsqrt.pop %v7240
  %v7245 = vrsqrt.pop %v7241
  %v7246 = vrsqrt.pop %v7242
  %v7247 = vrsqrt.pop %v7243
  %v7248 = vmul.f32 %v7220, %v7244
  %v7249 = vmul.f32 %v7221, %v7245
  %v7250 = vmul.f32 %v7222, %v7246
  %v7251 = vmul.f32 %v7223, %v7247
  %v7252 = vmax.f32 %v7248, 0.0
  %v7253 = vmax.f32 %v7249, 0.0
  %v7254 = vmax.f32 %v7250, 0.0
  %v7255 = vmax.f32 %v7251, 0.0
  %7257 = vset.pattern.permute.xlu0 0
  %7258 = vperm.xlu0 %7257, %v7018
  %v7259 = vpop.permute.xlu0 %7258
  %7262 = vset.pattern.permute.xlu0 0
  %7263 = vperm.xlu0 %7262, %v7019
  %v7264 = vpop.permute.xlu0 %7263
  %7267 = vset.pattern.permute.xlu0 0
  %7268 = vperm.xlu0 %7267, %v7020
  %v7269 = vpop.permute.xlu0 %7268
  %7272 = vset.pattern.permute.xlu0 0
  %7273 = vperm.xlu0 %7272, %v7021
  %v7274 = vpop.permute.xlu0 %7273
  %v7277 = vsel %vm199, %v7014, 0
  %v7280 = vsel %vm199, %v7015, 0
  %v7283 = vsel %vm199, %v7016, 0
  %v7286 = vsel %vm199, %v7017, 0
  %7288 = vmatprep.subr.mxu0 0.0
  %7289 = vmatpush1.msra.mxu0 %v7252
  %7290 = vmatprep.subr.mxu0 0.0
  %7291 = vmatpush1.msra.mxu0 %v7253
  %7292 = vmatprep.subr.mxu0 0.0
  %7293 = vmatpush1.msra.mxu0 %v7254
  %7294 = vmatprep.subr.mxu0 0.0
  %7295 = vmatpush1.msra.mxu0 %v7255
  %7296 = vmatprep.subr.mxu0 0.0
  %7297 = vmatpush1.msra.mxu0 0.0
  %7298 = vmatprep.subr.mxu0 0.0
  %7299 = vmatpush1.msra.mxu0 0.0
  %7300 = vmatprep.subr.mxu0 0.0
  %7301 = vmatpush1.msra.mxu0 0.0
  %7302 = vmatprep.subr.mxu0 0.0
  %7303 = vmatpush1.msra.mxu0 0.0
  %7304 = vmatprep.subr.mxu0 0.0
  %7305 = vmatpush1.msra.mxu0 0.0
  %7306 = vmatprep.subr.mxu0 0.0
  %7307 = vmatpush1.msra.mxu0 0.0
  %7308 = vmatprep.subr.mxu0 0.0
  %7309 = vmatpush1.msra.mxu0 0.0
  %7310 = vmatprep.subr.mxu0 0.0
  %7311 = vmatpush1.msra.mxu0 0.0
  %7312 = vmatprep.subr.mxu0 0.0
  %7313 = vmatpush1.msra.mxu0 0.0
  %7314 = vmatprep.subr.mxu0 0.0
  %7315 = vmatpush1.msra.mxu0 0.0
  %7316 = vmatprep.subr.mxu0 0.0
  %7317 = vmatpush1.msra.mxu0 0.0
  %7318 = vmatprep.subr.mxu0 0.0
  %7319 = vmatpush1.msra.mxu0 0.0
  %7320 = vmatprep.subr.mxu0 0.0
  %7321 = vmatpush1.msra.mxu0 0.0
  %7322 = vmatprep.subr.mxu0 0.0
  %7323 = vmatpush1.msra.mxu0 0.0
  %7324 = vmatprep.subr.mxu0 0.0
  %7325 = vmatpush1.msra.mxu0 0.0
  %7326 = vmatprep.subr.mxu0 0.0
  %7327 = vmatpush1.msra.mxu0 0.0
  %7328 = vmatprep.subr.mxu0 0.0
  %7329 = vmatpush1.msra.mxu0 0.0
  %7330 = vmatprep.subr.mxu0 0.0
  %7331 = vmatpush1.msra.mxu0 0.0
  %7332 = vmatprep.subr.mxu0 0.0
  %7333 = vmatpush1.msra.mxu0 0.0
  %7334 = vmatprep.subr.mxu0 0.0
  %7335 = vmatpush1.msra.mxu0 0.0
  %7336 = vmatprep.subr.mxu0 0.0
  %7337 = vmatpush1.msra.mxu0 0.0
  %7338 = vmatprep.subr.mxu0 0.0
  %7339 = vmatpush1.msra.mxu0 0.0
  %7340 = vmatprep.subr.mxu0 0.0
  %7341 = vmatpush1.msra.mxu0 0.0
  %7342 = vmatprep.subr.mxu0 0.0
  %7343 = vmatpush1.msra.mxu0 0.0
  %7344 = vmatprep.subr.mxu0 0.0
  %7345 = vmatpush1.msra.mxu0 0.0
  %7346 = vmatprep.subr.mxu0 0.0
  %7347 = vmatpush1.msra.mxu0 0.0
  %7348 = vmatprep.subr.mxu0 0.0
  %7349 = vmatpush1.msra.mxu0 0.0
  %7350 = vmatprep.subr.mxu0 0.0
  %7351 = vmatpush1.msra.mxu0 0.0
  %7352 = vmatprep.mubr.f32.mxu0 0.0
  %7353 = vmatmul.mubr.f32.gmra.mrb[0].mxu0 %v7277
  %v7354 = vpop.f32.mrb[0].mxu0
  %v7355 = vadd.f32 %v7259, %v7354
  %v7356 = vpop.f32.mrb[0].mxu0
  %7357 = vmatprep.mubr.f32.mxu0 0.0
  %7358 = vmatmul.mubr.f32.gmra.mrb[0].mxu0 %v7280
  %v7359 = vpop.f32.mrb[0].mxu0
  %v7360 = vadd.f32 %v7264, %v7359
  %v7361 = vpop.f32.mrb[0].mxu0
  %7362 = vmatprep.mubr.f32.mxu0 0.0
  %7363 = vmatmul.mubr.f32.gmra.mrb[0].mxu0 %v7283
  %v7364 = vpop.f32.mrb[0].mxu0
  %v7365 = vadd.f32 %v7269, %v7364
  %v7366 = vpop.f32.mrb[0].mxu0
  %7367 = vmatprep.mubr.f32.mxu0 0.0
  %7368 = vmatmul.mubr.f32.gmra.mrb[0].mxu0 %v7286
  %v7369 = vpop.f32.mrb[0].mxu0
  %v7370 = vadd.f32 %v7274, %v7369
  %v7371 = vpop.f32.mrb[0].mxu0
  %7372 = vdwg.mxu0
  %v7373 = vld [vmem:[%s2 + $0x300] sm:$0xff]
  %v7374 = vld [vmem:[%s2 + $0x308] sm:$0xff]
  %v7375 = vld [vmem:[%s2 + $0x310] sm:$0xff]
  %v7376 = vld [vmem:[%s2 + $0x318] sm:$0xff]
  %v7377 = vld [vmem:[%s2 + $0x320] sm:$0xff]
  %v7378 = vld [vmem:[%s2 + $0x328] sm:$0xff]
  %v7379 = vld [vmem:[%s2 + $0x330] sm:$0xff]
  %v7380 = vld [vmem:[%s2 + $0x338] sm:$0xff]
  %7381 = vmatprep.subr.mxu0 0.0
  %7382 = vmatpush1.msra.mxu0 %v14
  %7383 = vmatprep.subr.mxu0 0.0
  %7384 = vmatpush1.msra.mxu0 %v15
  %7385 = vmatprep.subr.mxu0 0.0
  %7386 = vmatpush1.msra.mxu0 %v16
  %7387 = vmatprep.subr.mxu0 0.0
  %7388 = vmatpush1.msra.mxu0 %v17
  %7389 = vmatprep.subr.mxu0 0.0
  %7390 = vmatpush1.msra.mxu0 %v18
  %7391 = vmatprep.subr.mxu0 0.0
  %7392 = vmatpush1.msra.mxu0 %v19
  %7393 = vmatprep.subr.mxu0 0.0
  %7394 = vmatpush1.msra.mxu0 %v20
  %7395 = vmatprep.subr.mxu0 0.0
  %7396 = vmatpush1.msra.mxu0 %v21
  %7397 = vmatprep.subr.mxu0 0.0
  %7398 = vmatpush1.msra.mxu0 %v22
  %7399 = vmatprep.subr.mxu0 0.0
  %7400 = vmatpush1.msra.mxu0 %v23
  %7401 = vmatprep.subr.mxu0 0.0
  %7402 = vmatpush1.msra.mxu0 %v24
  %7403 = vmatprep.subr.mxu0 0.0
  %7404 = vmatpush1.msra.mxu0 %v25
  %7405 = vmatprep.subr.mxu0 0.0
  %7406 = vmatpush1.msra.mxu0 %v26
  %7407 = vmatprep.subr.mxu0 0.0
  %7408 = vmatpush1.msra.mxu0 %v27
  %7409 = vmatprep.subr.mxu0 0.0
  %7410 = vmatpush1.msra.mxu0 %v28
  %7411 = vmatprep.subr.mxu0 0.0
  %7412 = vmatpush1.msra.mxu0 %v29
  %7413 = vmatprep.subr.mxu0 0.0
  %7414 = vmatpush1.msra.mxu0 0.0
  %7415 = vmatprep.subr.mxu0 0.0
  %7416 = vmatpush1.msra.mxu0 0.0
  %7417 = vmatprep.subr.mxu0 0.0
  %7418 = vmatpush1.msra.mxu0 0.0
  %7419 = vmatprep.subr.mxu0 0.0
  %7420 = vmatpush1.msra.mxu0 0.0
  %7421 = vmatprep.subr.mxu0 0.0
  %7422 = vmatpush1.msra.mxu0 0.0
  %7423 = vmatprep.subr.mxu0 0.0
  %7424 = vmatpush1.msra.mxu0 0.0
  %7425 = vmatprep.subr.mxu0 0.0
  %7426 = vmatpush1.msra.mxu0 0.0
  %7427 = vmatprep.subr.mxu0 0.0
  %7428 = vmatpush1.msra.mxu0 0.0
  %7429 = vmatprep.subr.mxu0 0.0
  %7430 = vmatpush1.msra.mxu0 0.0
  %7431 = vmatprep.subr.mxu0 0.0
  %7432 = vmatpush1.msra.mxu0 0.0
  %7433 = vmatprep.subr.mxu0 0.0
  %7434 = vmatpush1.msra.mxu0 0.0
  %7435 = vmatprep.subr.mxu0 0.0
  %7436 = vmatpush1.msra.mxu0 0.0
  %7437 = vmatprep.subr.mxu0 0.0
  %7438 = vmatpush1.msra.mxu0 0.0
  %7439 = vmatprep.subr.mxu0 0.0
  %7440 = vmatpush1.msra.mxu0 0.0
  %7441 = vmatprep.subr.mxu0 0.0
  %7442 = vmatpush1.msra.mxu0 0.0
  %7443 = vmatprep.subr.mxu0 0.0
  %7444 = vmatpush1.msra.mxu0 0.0
  %7445 = vmatprep.mubr.f32.mxu0 0.0
  %7446 = vmatmul.mubr.f32.gmra.mrb[0].mxu0 %v7355
  %v7447 = vpop.f32.mrb[0].mxu0
  %v7448 = vadd.f32 0.0, %v7447
  %v7449 = vpop.f32.mrb[0].mxu0
  %7450 = vmatprep.mubr.f32.mxu0 0.0
  %7451 = vmatmul.mubr.f32.gmra.mrb[0].mxu0 %v7360
  %v7452 = vpop.f32.mrb[0].mxu0
  %v7453 = vadd.f32 0.0, %v7452
  %v7454 = vpop.f32.mrb[0].mxu0
  %7455 = vmatprep.mubr.f32.mxu0 0.0
  %7456 = vmatmul.mubr.f32.gmra.mrb[0].mxu0 %v7365
  %v7457 = vpop.f32.mrb[0].mxu0
  %v7458 = vadd.f32 0.0, %v7457
  %v7459 = vpop.f32.mrb[0].mxu0
  %7460 = vmatprep.mubr.f32.mxu0 0.0
  %7461 = vmatmul.mubr.f32.gmra.mrb[0].mxu0 %v7370
  %v7462 = vpop.f32.mrb[0].mxu0
  %v7463 = vadd.f32 0.0, %v7462
  %v7464 = vpop.f32.mrb[0].mxu0
  %7465 = vdwg.mxu0
  %v7466 = vsub.f32 %v7355, %v7448
  %v7467 = vsub.f32 %v7360, %v7453
  %v7468 = vsub.f32 %v7365, %v7458
  %v7469 = vsub.f32 %v7370, %v7463
  %v7470 = vmul.f32 %v7466, %v7466
  %v7471 = vmul.f32 %v7467, %v7467
  %v7472 = vmul.f32 %v7468, %v7468
  %v7473 = vmul.f32 %v7469, %v7469
  %7474 = vmatprep.subr.mxu0 0.0
  %7475 = vmatpush1.msra.mxu0 %v14
  %7476 = vmatprep.subr.mxu0 0.0
  %7477 = vmatpush1.msra.mxu0 %v15
  %7478 = vmatprep.subr.mxu0 0.0
  %7479 = vmatpush1.msra.mxu0 %v16
  %7480 = vmatprep.subr.mxu0 0.0
  %7481 = vmatpush1.msra.mxu0 %v17
  %7482 = vmatprep.subr.mxu0 0.0
  %7483 = vmatpush1.msra.mxu0 %v18
  %7484 = vmatprep.subr.mxu0 0.0
  %7485 = vmatpush1.msra.mxu0 %v19
  %7486 = vmatprep.subr.mxu0 0.0
  %7487 = vmatpush1.msra.mxu0 %v20
  %7488 = vmatprep.subr.mxu0 0.0
  %7489 = vmatpush1.msra.mxu0 %v21
  %7490 = vmatprep.subr.mxu0 0.0
  %7491 = vmatpush1.msra.mxu0 %v22
  %7492 = vmatprep.subr.mxu0 0.0
  %7493 = vmatpush1.msra.mxu0 %v23
  %7494 = vmatprep.subr.mxu0 0.0
  %7495 = vmatpush1.msra.mxu0 %v24
  %7496 = vmatprep.subr.mxu0 0.0
  %7497 = vmatpush1.msra.mxu0 %v25
  %7498 = vmatprep.subr.mxu0 0.0
  %7499 = vmatpush1.msra.mxu0 %v26
  %7500 = vmatprep.subr.mxu0 0.0
  %7501 = vmatpush1.msra.mxu0 %v27
  %7502 = vmatprep.subr.mxu0 0.0
  %7503 = vmatpush1.msra.mxu0 %v28
  %7504 = vmatprep.subr.mxu0 0.0
  %7505 = vmatpush1.msra.mxu0 %v29
  %7506 = vmatprep.subr.mxu0 0.0
  %7507 = vmatpush1.msra.mxu0 0.0
  %7508 = vmatprep.subr.mxu0 0.0
  %7509 = vmatpush1.msra.mxu0 0.0
  %7510 = vmatprep.subr.mxu0 0.0
  %7511 = vmatpush1.msra.mxu0 0.0
  %7512 = vmatprep.subr.mxu0 0.0
  %7513 = vmatpush1.msra.mxu0 0.0
  %7514 = vmatprep.subr.mxu0 0.0
  %7515 = vmatpush1.msra.mxu0 0.0
  %7516 = vmatprep.subr.mxu0 0.0
  %7517 = vmatpush1.msra.mxu0 0.0
  %7518 = vmatprep.subr.mxu0 0.0
  %7519 = vmatpush1.msra.mxu0 0.0
  %7520 = vmatprep.subr.mxu0 0.0
  %7521 = vmatpush1.msra.mxu0 0.0
  %7522 = vmatprep.subr.mxu0 0.0
  %7523 = vmatpush1.msra.mxu0 0.0
  %7524 = vmatprep.subr.mxu0 0.0
  %7525 = vmatpush1.msra.mxu0 0.0
  %7526 = vmatprep.subr.mxu0 0.0
  %7527 = vmatpush1.msra.mxu0 0.0
  %7528 = vmatprep.subr.mxu0 0.0
  %7529 = vmatpush1.msra.mxu0 0.0
  %7530 = vmatprep.subr.mxu0 0.0
  %7531 = vmatpush1.msra.mxu0 0.0
  %7532 = vmatprep.subr.mxu0 0.0
  %7533 = vmatpush1.msra.mxu0 0.0
  %7534 = vmatprep.subr.mxu0 0.0
  %7535 = vmatpush1.msra.mxu0 0.0
  %7536 = vmatprep.subr.mxu0 0.0
  %7537 = vmatpush1.msra.mxu0 0.0
  %7538 = vmatprep.mubr.f32.mxu0 0.0
  %7539 = vmatmul.mubr.f32.gmra.mrb[0].mxu0 %v7470
  %v7540 = vpop.f32.mrb[0].mxu0
  %v7541 = vadd.f32 1e-05, %v7540
  %v7542 = vpop.f32.mrb[0].mxu0
  %7543 = vmatprep.mubr.f32.mxu0 0.0
  %7544 = vmatmul.mubr.f32.gmra.mrb[0].mxu0 %v7471
  %v7545 = vpop.f32.mrb[0].mxu0
  %v7546 = vadd.f32 1e-05, %v7545
  %v7547 = vpop.f32.mrb[0].mxu0
  %7548 = vmatprep.mubr.f32.mxu0 0.0
  %7549 = vmatmul.mubr.f32.gmra.mrb[0].mxu0 %v7472
  %v7550 = vpop.f32.mrb[0].mxu0
  %v7551 = vadd.f32 1e-05, %v7550
  %v7552 = vpop.f32.mrb[0].mxu0
  %7553 = vmatprep.mubr.f32.mxu0 0.0
  %7554 = vmatmul.mubr.f32.gmra.mrb[0].mxu0 %v7473
  %v7555 = vpop.f32.mrb[0].mxu0
  %v7556 = vadd.f32 1e-05, %v7555
  %v7557 = vpop.f32.mrb[0].mxu0
  %7558 = vdwg.mxu0
  %v7559 = vrsqrt.pop %v7541
  %v7560 = vrsqrt.pop %v7546
  %v7561 = vrsqrt.pop %v7551
  %v7562 = vrsqrt.pop %v7556
  %v7563 = vmul.f32 %v7466, %v7559
  %v7564 = vmul.f32 %v7467, %v7560
  %v7565 = vmul.f32 %v7468, %v7561
  %v7566 = vmul.f32 %v7469, %v7562
  %7567 = vadd.xlane.f32.xlu0 %v7563
  %v7568 = vpop.xlane.xlu0 %7567
  %7569 = vadd.xlane.f32.xlu0 %v7564
  %v7570 = vpop.xlane.xlu0 %7569
  %7571 = vadd.xlane.f32.xlu0 %v7565
  %v7572 = vpop.xlane.xlu0 %7571
  %7573 = vadd.xlane.f32.xlu0 %v7566
  %v7574 = vpop.xlane.xlu0 %7573
  %v7575 = vmul.f32 %v7568, %v1467
  %v7576 = vmul.f32 %v7570, %v1467
  %v7577 = vmul.f32 %v7572, %v1467
  %v7578 = vmul.f32 %v7574, %v1467
  %v7579 = vsub.f32 %v7563, %v7575
  %v7580 = vsub.f32 %v7564, %v7576
  %v7581 = vsub.f32 %v7565, %v7577
  %v7582 = vsub.f32 %v7566, %v7578
  %v7583 = vmul.f32 %v7579, %v7579
  %v7584 = vmul.f32 %v7580, %v7580
  %v7585 = vmul.f32 %v7581, %v7581
  %v7586 = vmul.f32 %v7582, %v7582
  %7587 = vadd.xlane.f32.xlu0 %v7583
  %v7588 = vpop.xlane.xlu0 %7587
  %7589 = vadd.xlane.f32.xlu0 %v7584
  %v7590 = vpop.xlane.xlu0 %7589
  %7591 = vadd.xlane.f32.xlu0 %v7585
  %v7592 = vpop.xlane.xlu0 %7591
  %7593 = vadd.xlane.f32.xlu0 %v7586
  %v7594 = vpop.xlane.xlu0 %7593
  %v7595 = vmul.f32 %v7588, %v1467
  %v7596 = vmul.f32 %v7590, %v1467
  %v7597 = vmul.f32 %v7592, %v1467
  %v7598 = vmul.f32 %v7594, %v1467
  %v7599 = vadd.f32 %v7595, 1e-05
  %v7600 = vadd.f32 %v7596, 1e-05
  %v7601 = vadd.f32 %v7597, 1e-05
  %v7602 = vadd.f32 %v7598, 1e-05
  %v7603 = vrsqrt.pop %v7599
  %v7604 = vrsqrt.pop %v7600
  %v7605 = vrsqrt.pop %v7601
  %v7606 = vrsqrt.pop %v7602
  %v7607 = vmul.f32 %v7579, %v7603
  %v7608 = vmul.f32 %v7580, %v7604
  %v7609 = vmul.f32 %v7581, %v7605
  %v7610 = vmul.f32 %v7582, %v7606
  %v7611 = vmax.f32 %v7607, 0.0
  %v7612 = vmax.f32 %v7608, 0.0
  %v7613 = vmax.f32 %v7609, 0.0
  %v7614 = vmax.f32 %v7610, 0.0
  %7616 = vset.pattern.permute.xlu0 0
  %7617 = vperm.xlu0 %7616, %v7377
  %v7618 = vpop.permute.xlu0 %7617
  %7621 = vset.pattern.permute.xlu0 0
  %7622 = vperm.xlu0 %7621, %v7378
  %v7623 = vpop.permute.xlu0 %7622
  %7626 = vset.pattern.permute.xlu0 0
  %7627 = vperm.xlu0 %7626, %v7379
  %v7628 = vpop.permute.xlu0 %7627
  %7631 = vset.pattern.permute.xlu0 0
  %7632 = vperm.xlu0 %7631, %v7380
  %v7633 = vpop.permute.xlu0 %7632
  %v7636 = vsel %vm199, %v7373, 0
  %v7639 = vsel %vm199, %v7374, 0
  %v7642 = vsel %vm199, %v7375, 0
  %v7645 = vsel %vm199, %v7376, 0
  %7647 = vmatprep.subr.mxu0 0.0
  %7648 = vmatpush1.msra.mxu0 %v7611
  %7649 = vmatprep.subr.mxu0 0.0
  %7650 = vmatpush1.msra.mxu0 %v7612
  %7651 = vmatprep.subr.mxu0 0.0
  %7652 = vmatpush1.msra.mxu0 %v7613
  %7653 = vmatprep.subr.mxu0 0.0
  %7654 = vmatpush1.msra.mxu0 %v7614
  %7655 = vmatprep.subr.mxu0 0.0
  %7656 = vmatpush1.msra.mxu0 0.0
  %7657 = vmatprep.subr.mxu0 0.0
  %7658 = vmatpush1.msra.mxu0 0.0
  %7659 = vmatprep.subr.mxu0 0.0
  %7660 = vmatpush1.msra.mxu0 0.0
  %7661 = vmatprep.subr.mxu0 0.0
  %7662 = vmatpush1.msra.mxu0 0.0
  %7663 = vmatprep.subr.mxu0 0.0
  %7664 = vmatpush1.msra.mxu0 0.0
  %7665 = vmatprep.subr.mxu0 0.0
  %7666 = vmatpush1.msra.mxu0 0.0
  %7667 = vmatprep.subr.mxu0 0.0
  %7668 = vmatpush1.msra.mxu0 0.0
  %7669 = vmatprep.subr.mxu0 0.0
  %7670 = vmatpush1.msra.mxu0 0.0
  %7671 = vmatprep.subr.mxu0 0.0
  %7672 = vmatpush1.msra.mxu0 0.0
  %7673 = vmatprep.subr.mxu0 0.0
  %7674 = vmatpush1.msra.mxu0 0.0
  %7675 = vmatprep.subr.mxu0 0.0
  %7676 = vmatpush1.msra.mxu0 0.0
  %7677 = vmatprep.subr.mxu0 0.0
  %7678 = vmatpush1.msra.mxu0 0.0
  %7679 = vmatprep.subr.mxu0 0.0
  %7680 = vmatpush1.msra.mxu0 0.0
  %7681 = vmatprep.subr.mxu0 0.0
  %7682 = vmatpush1.msra.mxu0 0.0
  %7683 = vmatprep.subr.mxu0 0.0
  %7684 = vmatpush1.msra.mxu0 0.0
  %7685 = vmatprep.subr.mxu0 0.0
  %7686 = vmatpush1.msra.mxu0 0.0
  %7687 = vmatprep.subr.mxu0 0.0
  %7688 = vmatpush1.msra.mxu0 0.0
  %7689 = vmatprep.subr.mxu0 0.0
  %7690 = vmatpush1.msra.mxu0 0.0
  %7691 = vmatprep.subr.mxu0 0.0
  %7692 = vmatpush1.msra.mxu0 0.0
  %7693 = vmatprep.subr.mxu0 0.0
  %7694 = vmatpush1.msra.mxu0 0.0
  %7695 = vmatprep.subr.mxu0 0.0
  %7696 = vmatpush1.msra.mxu0 0.0
  %7697 = vmatprep.subr.mxu0 0.0
  %7698 = vmatpush1.msra.mxu0 0.0
  %7699 = vmatprep.subr.mxu0 0.0
  %7700 = vmatpush1.msra.mxu0 0.0
  %7701 = vmatprep.subr.mxu0 0.0
  %7702 = vmatpush1.msra.mxu0 0.0
  %7703 = vmatprep.subr.mxu0 0.0
  %7704 = vmatpush1.msra.mxu0 0.0
  %7705 = vmatprep.subr.mxu0 0.0
  %7706 = vmatpush1.msra.mxu0 0.0
  %7707 = vmatprep.subr.mxu0 0.0
  %7708 = vmatpush1.msra.mxu0 0.0
  %7709 = vmatprep.subr.mxu0 0.0
  %7710 = vmatpush1.msra.mxu0 0.0
  %7711 = vmatprep.mubr.f32.mxu0 0.0
  %7712 = vmatmul.mubr.f32.gmra.mrb[0].mxu0 %v7636
  %v7713 = vpop.f32.mrb[0].mxu0
  %v7714 = vadd.f32 %v7618, %v7713
  %v7715 = vpop.f32.mrb[0].mxu0
  %7716 = vmatprep.mubr.f32.mxu0 0.0
  %7717 = vmatmul.mubr.f32.gmra.mrb[0].mxu0 %v7639
  %v7718 = vpop.f32.mrb[0].mxu0
  %v7719 = vadd.f32 %v7623, %v7718
  %v7720 = vpop.f32.mrb[0].mxu0
  %7721 = vmatprep.mubr.f32.mxu0 0.0
  %7722 = vmatmul.mubr.f32.gmra.mrb[0].mxu0 %v7642
  %v7723 = vpop.f32.mrb[0].mxu0
  %v7724 = vadd.f32 %v7628, %v7723
  %v7725 = vpop.f32.mrb[0].mxu0
  %7726 = vmatprep.mubr.f32.mxu0 0.0
  %7727 = vmatmul.mubr.f32.gmra.mrb[0].mxu0 %v7645
  %v7728 = vpop.f32.mrb[0].mxu0
  %v7729 = vadd.f32 %v7633, %v7728
  %v7730 = vpop.f32.mrb[0].mxu0
  %7731 = vdwg.mxu0
  %v7732 = vadd.f32 %v6820, %v7714
  %v7733 = vadd.f32 %v6821, %v7719
  %v7734 = vadd.f32 %v6822, %v7724
  %v7735 = vadd.f32 %v6823, %v7729
  %7736 = vst [vmem:[%s3] sm:$0xff] %v7732
  %7737 = vst [vmem:[%s3 + $0x8] sm:$0xff] %v7733
  %7738 = vst [vmem:[%s3 + $0x10] sm:$0xff] %v7734
  %7739 = vst [vmem:[%s3 + $0x18] sm:$0xff] %v7735
  // Predicated region
  $region14: #{lmc_block.1} parent=0 // pred_check
    _
  $region15: #{lmc_block.1} parent=0 // pred_check_branch
    %7741 = sbr.rel (0) target = $region17
  $region16: #{lmc_block.1} parent=0 // pred_region
    _
  $region17: #{lmc_block.1} parent=0 // pred_fallthru
    _
  // Predicated region
  $region18: #{lmc_block.1} parent=0 // pred_check
    _
  $region19: #{lmc_block.1} parent=0 // pred_check_branch
    %7743 = sbr.rel (0) target = $region21
  $region20: #{lmc_block.1} parent=0 // pred_region
    _
  $region21: #{lmc_block.1} parent=0 // pred_fallthru
    _

</llo_original>
